<compile_context>
chip_gen: v7x
topology: tpu7x:2x2x1
jax: 0.10.0
libtpu: 0.0.40
codegen_flags: <defaults>
</compile_context>

<pallas_src>
import functools
import numpy as np
import jax
import jax.numpy as jnp
from jax import lax
from jax.experimental import pallas as pl
from jax.experimental.pallas import tpu as pltpu


def _round_up(x, m):
    return (x + m - 1) // m * m


# ------------------------------------------------------------------
# Pallas kernel 1: fused frame_lin + cross-attention + GRU input proj
# TODO(synk): exact CrossAttention internals not in the reference source;
#             standard scaled-dot-product Q/K/V with att_out = concat(Q, ctx).
# ------------------------------------------------------------------
def _xatt_fused_kernel(x_ref, p_ref, m_ref, wf_ref, bf_ref, wq_ref, bq_ref,
                       wkv_ref, bkv_ref, wih_ref, bih_ref,
                       att_out_ref, xg_ref, energy_ref, att_log_ref,
                       *, scale, H):
    x = x_ref[0]            # (T, 1024) bf16
    p = p_ref[0]            # (P, H)    bf16
    m = m_ref[0]            # (1, P)    f32 (1 = valid phoneme)

    # frame_lin fused in (eval-mode dropout = identity)
    f = jnp.dot(x, wf_ref[...], preferred_element_type=jnp.float32) + bf_ref[...]
    q = jnp.dot(f.astype(jnp.bfloat16), wq_ref[...],
                preferred_element_type=jnp.float32) + bq_ref[...]
    # stacked K/V projection: one lane-dense (H, 2H) matmul
    kv = jnp.dot(p, wkv_ref[...], preferred_element_type=jnp.float32) + bkv_ref[...]
    k = kv[:, 0:H]
    v = kv[:, H:2 * H]

    # energy = q @ k^T (contract on feature axis; no explicit transpose relayout)
    energy = lax.dot_general(
        q.astype(jnp.bfloat16), k.astype(jnp.bfloat16),
        (((1,), (1,)), ((), ())), preferred_element_type=jnp.float32) * scale
    energy_ref[0] = energy

    # single masked softmax pass (mask constant -1000 exactly as in the torch
    # code; exp(-1000) underflows to 0, so it also serves the attention weights)
    # softmax/exp math stays in f32 (v5e has no bf16 VPU/EUP).
    masked = energy + (1.0 - m) * (-1000.0)
    emax = jnp.max(masked, axis=-1, keepdims=True)
    pexp = jnp.exp(masked - emax)
    ssum = jnp.sum(pexp, axis=-1, keepdims=True)
    attw = pexp * pl.reciprocal(ssum, approx=True)
    ctx = jnp.dot(attw.astype(jnp.bfloat16), v.astype(jnp.bfloat16),
                  preferred_element_type=jnp.float32)

    # att_out = concat(Q, ctx) written as two 128-lane aligned slabs
    att_out_ref[0, :, 0:H] = q
    att_out_ref[0, :, H:2 * H] = ctx
    # torch-exact log_softmax(energy + (1-mask)*-1000)
    att_log_ref[0] = masked - emax - jnp.log(ssum)

    # fused GRU input projection: xg = concat(q, ctx) @ W_ih + b_ih
    # (split into two 128-lane matmuls so no concat relayout is needed)
    wih = wih_ref[...]                                    # (2H, 3H) bf16
    xg = (jnp.dot(q.astype(jnp.bfloat16), wih[0:H, :],
                  preferred_element_type=jnp.float32)
          + jnp.dot(ctx.astype(jnp.bfloat16), wih[H:2 * H, :],
                    preferred_element_type=jnp.float32)
          + bih_ref[...])
    xg_ref[0] = xg


def fused_cross_attention(x, phn, mask, wf, bf, wq, bq, wkv, bkv, wih, bih):
    B, T, Din = x.shape
    P = phn.shape[1]
    H = wf.shape[1]
    G = wih.shape[1]                                      # 3H
    kern = functools.partial(_xatt_fused_kernel,
                             scale=1.0 / float(np.sqrt(H)), H=H)
    return pl.pallas_call(
        kern,
        out_shape=(
            jax.ShapeDtypeStruct((B, T, 2 * H), jnp.float32),   # att_out
            jax.ShapeDtypeStruct((B, T, G), jnp.float32),       # GRU input gates
            jax.ShapeDtypeStruct((B, T, P), jnp.float32),       # energy
            jax.ShapeDtypeStruct((B, T, P), jnp.float32),       # log-softmax att
        ),
        grid=(B,),
        in_specs=[
            pl.BlockSpec((1, T, Din), lambda i: (i, 0, 0)),
            pl.BlockSpec((1, P, H), lambda i: (i, 0, 0)),
            pl.BlockSpec((1, 1, P), lambda i: (i, 0, 0)),
            pl.BlockSpec((Din, H), lambda i: (0, 0)),
            pl.BlockSpec((1, H), lambda i: (0, 0)),
            pl.BlockSpec((H, H), lambda i: (0, 0)),
            pl.BlockSpec((1, H), lambda i: (0, 0)),
            pl.BlockSpec((H, 2 * H), lambda i: (0, 0)),
            pl.BlockSpec((1, 2 * H), lambda i: (0, 0)),
            pl.BlockSpec((2 * H, G), lambda i: (0, 0)),
            pl.BlockSpec((1, G), lambda i: (0, 0)),
        ],
        out_specs=(
            pl.BlockSpec((1, T, 2 * H), lambda i: (i, 0, 0)),
            pl.BlockSpec((1, T, G), lambda i: (i, 0, 0)),
            pl.BlockSpec((1, T, P), lambda i: (i, 0, 0)),
            pl.BlockSpec((1, T, P), lambda i: (i, 0, 0)),
        ),
        compiler_params=pltpu.CompilerParams(dimension_semantics=("parallel",)),
    )(x.astype(jnp.bfloat16), phn.astype(jnp.bfloat16), mask.astype(jnp.float32),
      wf.astype(jnp.bfloat16), bf.reshape(1, H).astype(jnp.float32),
      wq.astype(jnp.bfloat16), bq.reshape(1, H).astype(jnp.float32),
      wkv.astype(jnp.bfloat16), bkv.reshape(1, 2 * H).astype(jnp.float32),
      wih.astype(jnp.bfloat16), bih.reshape(1, G).astype(jnp.float32))


# ------------------------------------------------------------------
# Pallas kernel 2: GRU recurrence (whole sequence inside one kernel)
# TODO(synk): reference RNN class source unavailable; assumed 1-layer GRU
#             (hidden 128) + Linear(128, 9) head, dropout in eval mode.
# ------------------------------------------------------------------
def _gru_kernel(xg_ref, whh_ref, bhh_ref, hs_ref, h_scr, *, T, H):
    h_scr[...] = jnp.zeros_like(h_scr)

    def body(t, carry):
        h = h_scr[...]                                        # (Bp, H) f32
        hg = jnp.dot(h, whh_ref[...],
                     preferred_element_type=jnp.float32) + bhh_ref[...]
        xg_t = xg_ref[t]                                      # (Bp, 3H)
        r = jax.nn.sigmoid(xg_t[:, 0:H] + hg[:, 0:H])
        z = jax.nn.sigmoid(xg_t[:, H:2 * H] + hg[:, H:2 * H])
        n = jnp.tanh(xg_t[:, 2 * H:3 * H] + r * hg[:, 2 * H:3 * H])
        h_new = (1.0 - z) * n + z * h
        h_scr[...] = h_new
        hs_ref[t] = h_new
        return carry

    lax.fori_loop(0, T, body, 0, unroll=(T <= 32))


def gru_recurrence(xg_tb, w_hh, b_hh):
    """xg_tb: (T, Bp, 3H) time-major precomputed input gates -> hs (T, Bp, H)."""
    T, Bp, threeH = xg_tb.shape
    H = w_hh.shape[0]
    kern = functools.partial(_gru_kernel, T=T, H=H)
    return pl.pallas_call(
        kern,
        out_shape=jax.ShapeDtypeStruct((T, Bp, H), jnp.float32),
        grid=(1,),
        in_specs=[
            pl.BlockSpec((T, Bp, threeH), lambda i: (0, 0, 0)),
            pl.BlockSpec((H, threeH), lambda i: (0, 0)),
            pl.BlockSpec((1, threeH), lambda i: (0, 0)),
        ],
        out_specs=pl.BlockSpec((T, Bp, H), lambda i: (0, 0, 0)),
        scratch_shapes=[pltpu.VMEM((Bp, H), jnp.float32)],
        compiler_params=pltpu.CompilerParams(dimension_semantics=("arbitrary",)),
    )(xg_tb.astype(jnp.float32), w_hh.astype(jnp.float32),
      b_hh.reshape(1, threeH).astype(jnp.float32))


# ------------------------------------------------------------------
# Pallas kernel 3: fused GRU output head (lane-dense 128 slab) + FIR low-pass
# expressed as one banded (T, T) matmul on the MXU.
# TODO(synk): exact LowPassFilterLayer design/padding unknown; using a 49-tap
#             Hamming-windowed sinc (10 Hz cutoff @ 50 Hz) with zero padding.
# ------------------------------------------------------------------
def _head_fir_kernel(h_ref, w_ref, b_ref, fir_ref, o_ref):
    tv = jnp.dot(h_ref[0], w_ref[...],
                 preferred_element_type=jnp.float32) + b_ref[...]     # (T, 128)
    o_ref[0] = jnp.dot(fir_ref[...], tv, preferred_element_type=jnp.float32)


def head_lowpass(hs, w_out_p, b_out_p, fir_mat):
    B, T, H = hs.shape
    C = w_out_p.shape[1]
    return pl.pallas_call(
        _head_fir_kernel,
        out_shape=jax.ShapeDtypeStruct((B, T, C), jnp.float32),
        grid=(B,),
        in_specs=[
            pl.BlockSpec((1, T, H), lambda i: (i, 0, 0)),
            pl.BlockSpec((H, C), lambda i: (0, 0)),
            pl.BlockSpec((1, C), lambda i: (0, 0)),
            pl.BlockSpec((T, T), lambda i: (0, 0)),
        ],
        out_specs=pl.BlockSpec((1, T, C), lambda i: (i, 0, 0)),
        compiler_params=pltpu.CompilerParams(dimension_semantics=("parallel",)),
    )(hs.astype(jnp.float32), w_out_p.astype(jnp.float32),
      b_out_p.reshape(1, C).astype(jnp.float32), fir_mat.astype(jnp.float32))


# ------------------------------------------------------------------
# Plain-JAX glue
# ------------------------------------------------------------------
def make_positional_encoding(max_len, d_model):
    pos = np.arange(max_len)[:, None].astype(np.float64)
    div = np.exp(np.arange(0, d_model, 2) * (-np.log(10000.0) / d_model))
    pe = np.zeros((max_len, d_model))
    pe[:, 0::2] = np.sin(pos * div)
    pe[:, 1::2] = np.cos(pos * div)
    return jnp.asarray(pe, jnp.float32)


def make_lowpass_fir(cutoff_hz=10.0, fs_hz=50.0, taps=49):
    n = np.arange(taps) - (taps - 1) / 2.0
    fc = cutoff_hz / fs_hz
    h = 2.0 * fc * np.sinc(2.0 * fc * n)
    h *= np.hamming(taps)
    h /= h.sum()
    return h.astype(np.float32)


def make_fir_matrix(fir, T):
    """Banded (T, T) matrix equivalent to a zero-padded FIR over time."""
    fir = jnp.asarray(fir, jnp.float32)
    taps = fir.shape[0]
    pad = (taps - 1) // 2
    t = jnp.arange(T)[:, None]
    s = jnp.arange(T)[None, :]
    k = s - t + pad
    valid = (k >= 0) & (k < taps)
    return jnp.where(valid, jnp.take(fir, jnp.clip(k, 0, taps - 1)), 0.0)


def forward_sum_loss(att_log, phn_seq_lens, frame_seq_lens, K_max,
                     blank_logprob=-1.0):
    # TODO(synk): ForwardSumLoss source unavailable; standard RAD-TTS style
    #             (pad blank column, log_softmax, CTC forward, mean over batch).
    # Batched/padded CTC: compiles once, no per-sample Python loop.
    B, T, P = att_log.shape
    phn_lens = jnp.asarray(phn_seq_lens, jnp.int32)
    frm_lens = jnp.asarray(frame_seq_lens, jnp.int32)

    S = 2 * K_max + 1
    ext_np = np.zeros(S, np.int32)
    ext_np[1::2] = np.arange(1, K_max + 1)
    ext = jnp.asarray(ext_np)
    can_skip_np = np.zeros(S, bool)
    can_skip_np[3::2] = True          # targets [1..K] are all distinct
    can_skip = jnp.asarray(can_skip_np)
    NEG = -1e30

    def per_sample(lp_bt, K, Tq):
        lp = jnp.concatenate(
            [jnp.full((T, 1), blank_logprob, jnp.float32), lp_bt[:, :K_max]],
            axis=1)                                           # (T, K_max+1)
        col = jnp.arange(K_max + 1)
        lp = jnp.where((col <= K)[None, :], lp, NEG)
        lp = jax.nn.log_softmax(lp, axis=-1)

        alpha0 = jnp.full((S,), NEG, jnp.float32)
        alpha0 = alpha0.at[0].set(lp[0, 0]).at[1].set(lp[0, 1])

        def step(a, inp):
            lp_t, valid = inp
            a1 = jnp.concatenate([jnp.full((1,), NEG), a[:-1]])
            a2 = jnp.concatenate([jnp.full((2,), NEG), a[:-2]])
            comb = jnp.logaddexp(a, a1)
            comb = jnp.where(can_skip, jnp.logaddexp(comb, a2), comb)
            a_new = comb + lp_t[ext]
            return jnp.where(valid, a_new, a), None

        tvalid = jnp.arange(1, T) < Tq
        alpha, _ = lax.scan(step, alpha0, (lp[1:], tvalid))
        s_last = 2 * K
        nll = -jnp.logaddexp(alpha[s_last], alpha[s_last - 1])
        return nll / K.astype(jnp.float32)

    losses = jax.vmap(per_sample)(att_log, phn_lens, frm_lens)
    return jnp.mean(losses)


# ------------------------------------------------------------------
# Full forward (eval-mode dropout = identity)
# ------------------------------------------------------------------
def force_aptai_forward(params, ac_frame_embs, phn_pred_seq, phn_seq_lens,
                        frame_seq_lens, tv_targets):
    B, T, _ = ac_frame_embs.shape
    H = params["frame_w"].shape[1]
    MAX_P = params["pe"].shape[0]                 # 60 (max_phn_seq_len)
    P_PAD = 128                                   # lane-dense phoneme axis
    # TODO(synk): wrappers assume T % 8 == 0 (true for w2v2 frame counts used here).

    # phoneme embedding + positional encoding, padded to 128 columns
    phn_seq_p = jnp.pad(phn_pred_seq, ((0, 0), (0, P_PAD - phn_pred_seq.shape[1])))
    phn_mask = (phn_seq_p != 0).astype(jnp.float32)            # (B, P_PAD)
    pe_pad = jnp.pad(params["pe"], ((0, P_PAD - MAX_P), (0, 0)))
    phn_embs = jnp.take(params["phn_emb"], phn_seq_p, axis=0) + pe_pad[None]

    # fused frame_lin + cross-attention + GRU input projection (Pallas)
    xp = params["xatt"]
    rp = params["rnn"]
    wkv = jnp.concatenate([xp["wk"], xp["wv"]], axis=1)        # (H, 2H)
    bkv = jnp.concatenate([xp["bk"], xp["bv"]], axis=0)        # (2H,)
    att_out, xg, energy, att = fused_cross_attention(
        ac_frame_embs, phn_embs, phn_mask[:, None, :],
        params["frame_w"], params["frame_b"], xp["wq"], xp["bq"], wkv, bkv,
        rp["w_ih"], rp["b_ih"])

    # GRU recurrence in one Pallas kernel (batch padded to 8 sublanes, time-major)
    Bp = _round_up(B, 8)
    xg_tb = jnp.transpose(jnp.pad(xg, ((0, Bp - B), (0, 0), (0, 0))), (1, 0, 2))
    hs_tb = gru_recurrence(xg_tb, rp["w_hh"], rp["b_hh"])
    hs = jnp.transpose(hs_tb, (1, 0, 2))[:B]                   # (B, T, H)

    # fused GRU head (9 -> padded 128 lanes) + FIR low-pass as one MXU matmul
    C_PAD = 128
    w_out_p = jnp.pad(rp["w_out"], ((0, 0), (0, C_PAD - rp["w_out"].shape[1])))
    b_out_p = jnp.pad(rp["b_out"], (0, C_PAD - rp["b_out"].shape[0]))
    fir_mat = make_fir_matrix(params["fir"], T)
    tvs_out = head_lowpass(hs, w_out_p, b_out_p, fir_mat)[..., :9]   # (B, T, 9)

    # masked MSE over valid TV frames
    pad_mask = (tv_targets != -100.0).astype(jnp.float32)
    diff = (tvs_out - tv_targets) * pad_mask
    tv_loss = jnp.sum(diff * diff) / jnp.maximum(jnp.sum(pad_mask), 1.0)

    align_loss = forward_sum_loss(att, phn_seq_lens, frame_seq_lens, K_max=MAX_P)
    a = 0.4
    loss = a * tv_loss + (1.0 - a) * align_loss

    return {"loss": loss, "tv_loss": tv_loss, "align_loss": align_loss,
            "tvs_pred": tvs_out,
            "att": att[:, :, :MAX_P], "energy": energy[:, :, :MAX_P],
            "hidden_alignment": att_out, "hidden_tvs": hs}


# ------------------------------------------------------------------
# Parameter init + example run
# ------------------------------------------------------------------
def init_params(key, vocab_size, w2v2_dim=1024, H=128, max_phn_len=60):
    ks = jax.random.split(key, 12)
    p = {}
    emb = 0.1 * jax.random.normal(ks[0], (vocab_size, H), jnp.float32)
    p["phn_emb"] = emb.at[0].set(0.0)                      # padding_idx = 0
    p["pe"] = make_positional_encoding(max_phn_len, H)
    p["frame_w"] = 0.02 * jax.random.normal(ks[1], (w2v2_dim, H), jnp.float32)
    p["frame_b"] = jnp.zeros((H,), jnp.float32)
    p["xatt"] = {
        "wq": 0.05 * jax.random.normal(ks[2], (H, H), jnp.float32),
        "bq": jnp.zeros((H,), jnp.float32),
        "wk": 0.05 * jax.random.normal(ks[3], (H, H), jnp.float32),
        "bk": jnp.zeros((H,), jnp.float32),
        "wv": 0.05 * jax.random.normal(ks[4], (H, H), jnp.float32),
        "bv": jnp.zeros((H,), jnp.float32),
    }
    p["rnn"] = {
        "w_ih": 0.05 * jax.random.normal(ks[5], (2 * H, 3 * H), jnp.float32),
        "b_ih": jnp.zeros((3 * H,), jnp.float32),
        "w_hh": 0.05 * jax.random.normal(ks[6], (H, 3 * H), jnp.float32),
        "b_hh": jnp.zeros((3 * H,), jnp.float32),
        "w_out": 0.05 * jax.random.normal(ks[7], (H, 9), jnp.float32),
        "b_out": jnp.zeros((9,), jnp.float32),
    }
    p["fir"] = jnp.asarray(make_lowpass_fir(10.0, 50.0, 49))
    return p


if __name__ == "__main__":
    key = jax.random.PRNGKey(0)
    B, T, W2V2_DIM, H, MAX_PHN = 2, 16, 1024, 128, 60
    VOCAB = 16

    params = init_params(key, VOCAB, W2V2_DIM, H, MAX_PHN)

    # --- synthetic stand-in for frozen Wav2Vec2_PR outputs -----------------
    # TODO(synk): Wav2Vec2_PR is a frozen pretrained checkpoint; replaced by
    #             deterministic synthetic frame embeddings / CTC phoneme seq.
    k1, k2, _ = jax.random.split(jax.random.PRNGKey(0), 3)
    ac_frame_embs = jax.random.normal(k1, (B, T, W2V2_DIM), jnp.float32)
    phn_pred_list = [[3, 5, 2, 7, 4, 1], [2, 6, 3, 5]]
    frame_seq_lens_list = [16, 12]
    phn_seq_lens_list = [len(s) for s in phn_pred_list]
    phn_pred_seq_np = np.zeros((B, MAX_PHN), dtype=np.int32)
    for b, s in enumerate(phn_pred_list):
        phn_pred_seq_np[b, :len(s)] = s
    phn_pred_seq = jnp.asarray(phn_pred_seq_np)
    phn_seq_lens = jnp.asarray(phn_seq_lens_list, jnp.int32)
    frame_seq_lens = jnp.asarray(frame_seq_lens_list, jnp.int32)

    # --- TV targets (LA, LP, JA, TTCL, TTCD, TMCL, TMCD, TBCL, TBCD) -------
    tv_list = []
    for i in range(9):
        tv = jax.random.normal(jax.random.fold_in(k2, i), (B, T), jnp.float32)
        tv_list.append(tv)
    tv_targets = jnp.stack(tv_list, axis=-1)              # (B, T, 9)
    frame_valid = np.zeros((B, T, 1), dtype=np.float32)
    for b in range(B):
        frame_valid[b, :frame_seq_lens_list[b], 0] = 1.0
    tv_targets = jnp.where(jnp.asarray(frame_valid) > 0, tv_targets, -100.0)

    fwd = jax.jit(force_aptai_forward)
    out = fwd(params, ac_frame_embs, phn_pred_seq, phn_seq_lens,
              frame_seq_lens, tv_targets)
    jax.block_until_ready(out["loss"])
    jax.block_until_ready(out["tvs_pred"])

    # host-side frame->phoneme decoding (list-of-lists, as in torch forward)
    att_np = np.asarray(out["att"])
    align_out = np.argmax(att_np, axis=2)                 # (B, T)
    pred_frame_phns = []
    for b in range(B):
        pred_frame_phns.append(
            [int(phn_pred_seq_np[b, f])
             for f in align_out[b, :frame_seq_lens_list[b]]])

    assert out["tvs_pred"].shape == (B, T, 9)
    assert out["att"].shape == (B, T, MAX_PHN)
    assert np.isfinite(float(out["loss"]))
    print("KERNEL_OK")
</pallas_src>

<mosaic_0001>
module attributes {stable_mosaic.version = 11 : i64} {
  func.func @_xatt_fused_kernel(%arg0: i32, %arg1: memref<1x16x1024xbf16, #tpu.memory_space<vmem>>, %arg2: memref<1x128x128xbf16, #tpu.memory_space<vmem>>, %arg3: memref<1x1x128xf32, #tpu.memory_space<vmem>>, %arg4: memref<1024x128xbf16, #tpu.memory_space<vmem>>, %arg5: memref<1x128xf32, #tpu.memory_space<vmem>>, %arg6: memref<128x128xbf16, #tpu.memory_space<vmem>>, %arg7: memref<1x128xf32, #tpu.memory_space<vmem>>, %arg8: memref<128x256xbf16, #tpu.memory_space<vmem>>, %arg9: memref<1x256xf32, #tpu.memory_space<vmem>>, %arg10: memref<256x384xbf16, #tpu.memory_space<vmem>>, %arg11: memref<1x384xf32, #tpu.memory_space<vmem>>, %arg12: memref<1x16x256xf32, #tpu.memory_space<vmem>>, %arg13: memref<1x16x384xf32, #tpu.memory_space<vmem>>, %arg14: memref<1x16x128xf32, #tpu.memory_space<vmem>>, %arg15: memref<1x16x128xf32, #tpu.memory_space<vmem>>) attributes {dimension_semantics = [#tpu.dimension_semantics<parallel>], iteration_bounds = array<i64: 2>, scalar_prefetch = 0 : i64, scratch_operands = 0 : i64, tpu.core_type = #tpu.core_type<tc>, window_params = [{transform_indices = @transform_0, window_bounds = array<i64: 1, 16, 1024>}, {transform_indices = @transform_1, window_bounds = array<i64: 1, 128, 128>}, {transform_indices = @transform_2, window_bounds = array<i64: 1, 1, 128>}, {pipeline_mode = #tpu.pipeline_mode<synchronous>, transform_indices = @transform_3, window_bounds = array<i64: 1024, 128>}, {pipeline_mode = #tpu.pipeline_mode<synchronous>, transform_indices = @transform_4, window_bounds = array<i64: 1, 128>}, {pipeline_mode = #tpu.pipeline_mode<synchronous>, transform_indices = @transform_5, window_bounds = array<i64: 128, 128>}, {pipeline_mode = #tpu.pipeline_mode<synchronous>, transform_indices = @transform_6, window_bounds = array<i64: 1, 128>}, {pipeline_mode = #tpu.pipeline_mode<synchronous>, transform_indices = @transform_7, window_bounds = array<i64: 128, 256>}, {pipeline_mode = #tpu.pipeline_mode<synchronous>, transform_indices = @transform_8, window_bounds = array<i64: 1, 256>}, {pipeline_mode = #tpu.pipeline_mode<synchronous>, transform_indices = @transform_9, window_bounds = array<i64: 256, 384>}, {pipeline_mode = #tpu.pipeline_mode<synchronous>, transform_indices = @transform_10, window_bounds = array<i64: 1, 384>}, {transform_indices = @transform_11, window_bounds = array<i64: 1, 16, 256>}, {transform_indices = @transform_12, window_bounds = array<i64: 1, 16, 384>}, {transform_indices = @transform_13, window_bounds = array<i64: 1, 16, 128>}, {transform_indices = @transform_14, window_bounds = array<i64: 1, 16, 128>}]} {
    %c0 = arith.constant 0 : index
    %c0_0 = arith.constant 0 : index
    %c0_1 = arith.constant 0 : index
    %0 = vector.load %arg1[%c0, %c0_0, %c0_1] : memref<1x16x1024xbf16, #tpu.memory_space<vmem>>, vector<1x16x1024xbf16>
    %1 = vector.shape_cast %0 : vector<1x16x1024xbf16> to vector<16x1024xbf16>
    %c0_2 = arith.constant 0 : index
    %c0_3 = arith.constant 0 : index
    %c0_4 = arith.constant 0 : index
    %2 = vector.load %arg2[%c0_2, %c0_3, %c0_4] : memref<1x128x128xbf16, #tpu.memory_space<vmem>>, vector<1x128x128xbf16>
    %3 = vector.shape_cast %2 : vector<1x128x128xbf16> to vector<128x128xbf16>
    %c0_5 = arith.constant 0 : index
    %c0_6 = arith.constant 0 : index
    %c0_7 = arith.constant 0 : index
    %4 = vector.load %arg3[%c0_5, %c0_6, %c0_7] : memref<1x1x128xf32, #tpu.memory_space<vmem>>, vector<1x1x128xf32>
    %5 = vector.shape_cast %4 : vector<1x1x128xf32> to vector<1x128xf32>
    %c0_8 = arith.constant 0 : index
    %c0_9 = arith.constant 0 : index
    %6 = vector.load %arg4[%c0_8, %c0_9] : memref<1024x128xbf16, #tpu.memory_space<vmem>>, vector<1024x128xbf16>
    %cst = arith.constant dense<0.000000e+00> : vector<16x128xf32>
    %7 = tpu.matmul %1, %6, %cst {dimension_numbers = #tpu.dot_dimension_numbers<[1], [0], [0], [1], [0, 0, 1, 1], [], []>} : vector<16x1024xbf16>, vector<1024x128xbf16>, vector<16x128xf32> -> vector<16x128xf32>
    %c0_10 = arith.constant 0 : index
    %c0_11 = arith.constant 0 : index
    %8 = vector.load %arg5[%c0_10, %c0_11] : memref<1x128xf32, #tpu.memory_space<vmem>>, vector<1x128xf32>
    %9 = vector.broadcast %8 : vector<1x128xf32> to vector<16x128xf32>
    %10 = arith.addf %7, %9 : vector<16x128xf32>
    %11 = arith.truncf %10 : vector<16x128xf32> to vector<16x128xbf16>
    %c0_12 = arith.constant 0 : index
    %c0_13 = arith.constant 0 : index
    %12 = vector.load %arg6[%c0_12, %c0_13] : memref<128x128xbf16, #tpu.memory_space<vmem>>, vector<128x128xbf16>
    %cst_14 = arith.constant dense<0.000000e+00> : vector<16x128xf32>
    %13 = tpu.matmul %11, %12, %cst_14 {dimension_numbers = #tpu.dot_dimension_numbers<[1], [0], [0], [1], [0, 0, 1, 1], [], []>} : vector<16x128xbf16>, vector<128x128xbf16>, vector<16x128xf32> -> vector<16x128xf32>
    %c0_15 = arith.constant 0 : index
    %c0_16 = arith.constant 0 : index
    %14 = vector.load %arg7[%c0_15, %c0_16] : memref<1x128xf32, #tpu.memory_space<vmem>>, vector<1x128xf32>
    %15 = vector.broadcast %14 : vector<1x128xf32> to vector<16x128xf32>
    %16 = arith.addf %13, %15 : vector<16x128xf32>
    %c0_17 = arith.constant 0 : index
    %c0_18 = arith.constant 0 : index
    %17 = vector.load %arg8[%c0_17, %c0_18] : memref<128x256xbf16, #tpu.memory_space<vmem>>, vector<128x256xbf16>
    %cst_19 = arith.constant dense<0.000000e+00> : vector<128x256xf32>
    %18 = tpu.matmul %3, %17, %cst_19 {dimension_numbers = #tpu.dot_dimension_numbers<[1], [0], [0], [1], [0, 0, 1, 1], [], []>} : vector<128x128xbf16>, vector<128x256xbf16>, vector<128x256xf32> -> vector<128x256xf32>
    %c0_20 = arith.constant 0 : index
    %c0_21 = arith.constant 0 : index
    %19 = vector.load %arg9[%c0_20, %c0_21] : memref<1x256xf32, #tpu.memory_space<vmem>>, vector<1x256xf32>
    %20 = vector.broadcast %19 : vector<1x256xf32> to vector<128x256xf32>
    %21 = arith.addf %18, %20 : vector<128x256xf32>
    %22 = vector.extract_strided_slice %21 {offsets = [0, 0], sizes = [128, 128], strides = [1, 1]} : vector<128x256xf32> to vector<128x128xf32>
    %23 = vector.extract_strided_slice %21 {offsets = [0, 128], sizes = [128, 128], strides = [1, 1]} : vector<128x256xf32> to vector<128x128xf32>
    %24 = arith.truncf %16 : vector<16x128xf32> to vector<16x128xbf16>
    %25 = arith.truncf %22 : vector<128x128xf32> to vector<128x128xbf16>
    %cst_22 = arith.constant dense<0.000000e+00> : vector<16x128xf32>
    %26 = tpu.matmul %24, %25, %cst_22 {dimension_numbers = #tpu.dot_dimension_numbers<[1], [1], [0], [0], [0, 0, 1, 0], [], []>} : vector<16x128xbf16>, vector<128x128xbf16>, vector<16x128xf32> -> vector<16x128xf32>
    %cst_23 = arith.constant 0.0883883461 : f32
    %27 = vector.broadcast %cst_23 : f32 to vector<16x128xf32>
    %28 = arith.mulf %26, %27 : vector<16x128xf32>
    %c0_24 = arith.constant 0 : index
    %c0_25 = arith.constant 0 : index
    %c0_26 = arith.constant 0 : index
    %29 = vector.load %arg14[%c0_24, %c0_25, %c0_26] : memref<1x16x128xf32, #tpu.memory_space<vmem>>, vector<1x16x128xf32>
    %30 = vector.shape_cast %29 : vector<1x16x128xf32> to vector<16x128xf32>
    %31 = vector.shape_cast %28 : vector<16x128xf32> to vector<1x16x128xf32>
    tpu.vector_store %arg14[%c0_24, %c0_25, %c0_26], %31 {strides = array<i32>} : memref<1x16x128xf32, #tpu.memory_space<vmem>>, vector<1x16x128xf32>,
    %cst_27 = arith.constant 1.000000e+00 : f32
    %32 = vector.broadcast %cst_27 : f32 to vector<1x128xf32>
    %33 = arith.subf %32, %5 : vector<1x128xf32>
    %cst_28 = arith.constant -1.000000e+03 : f32
    %34 = vector.broadcast %cst_28 : f32 to vector<1x128xf32>
    %35 = arith.mulf %33, %34 : vector<1x128xf32>
    %36 = vector.broadcast %35 : vector<1x128xf32> to vector<16x128xf32>
    %37 = arith.addf %28, %36 : vector<16x128xf32>
    %cst_29 = arith.constant dense<0xFF800000> : vector<16xf32>
    %38 = vector.multi_reduction <maximumf>, %37, %cst_29 [1] : vector<16x128xf32> to vector<16xf32>
    %39 = vector.shape_cast %38 : vector<16xf32> to vector<16x1xf32>
    %40 = vector.broadcast %39 : vector<16x1xf32> to vector<16x128xf32>
    %41 = arith.subf %37, %40 : vector<16x128xf32>
    %42 = math.exp %41 : vector<16x128xf32>
    %cst_30 = arith.constant dense<0.000000e+00> : vector<16xf32>
    %43 = vector.multi_reduction <add>, %42, %cst_30 [1] : vector<16x128xf32> to vector<16xf32>
    %44 = vector.shape_cast %43 : vector<16xf32> to vector<16x1xf32>
    %45 = tpu.reciprocal %44 {approx = true} : vector<16x1xf32> -> vector<16x1xf32>
    %46 = vector.broadcast %45 : vector<16x1xf32> to vector<16x128xf32>
    %47 = arith.mulf %42, %46 : vector<16x128xf32>
    %48 = arith.truncf %47 : vector<16x128xf32> to vector<16x128xbf16>
    %49 = arith.truncf %23 : vector<128x128xf32> to vector<128x128xbf16>
    %cst_31 = arith.constant dense<0.000000e+00> : vector<16x128xf32>
    %50 = tpu.matmul %48, %49, %cst_31 {dimension_numbers = #tpu.dot_dimension_numbers<[1], [0], [0], [1], [0, 0, 1, 1], [], []>} : vector<16x128xbf16>, vector<128x128xbf16>, vector<16x128xf32> -> vector<16x128xf32>
    %c0_32 = arith.constant 0 : index
    %c0_33 = arith.constant 0 : index
    %c0_34 = arith.constant 0 : index
    %51 = vector.load %arg12[%c0_32, %c0_33, %c0_34] : memref<1x16x256xf32, #tpu.memory_space<vmem>>, vector<1x16x128xf32>
    %52 = vector.shape_cast %51 : vector<1x16x128xf32> to vector<16x128xf32>
    %53 = vector.shape_cast %16 : vector<16x128xf32> to vector<1x16x128xf32>
    tpu.vector_store %arg12[%c0_32, %c0_33, %c0_34], %53 {strides = array<i32>} : memref<1x16x256xf32, #tpu.memory_space<vmem>>, vector<1x16x128xf32>,
    %c0_35 = arith.constant 0 : index
    %c0_36 = arith.constant 0 : index
    %c128 = arith.constant 128 : index
    %54 = vector.load %arg12[%c0_35, %c0_36, %c128] : memref<1x16x256xf32, #tpu.memory_space<vmem>>, vector<1x16x128xf32>
    %55 = vector.shape_cast %54 : vector<1x16x128xf32> to vector<16x128xf32>
    %56 = vector.shape_cast %50 : vector<16x128xf32> to vector<1x16x128xf32>
    tpu.vector_store %arg12[%c0_35, %c0_36, %c128], %56 {strides = array<i32>} : memref<1x16x256xf32, #tpu.memory_space<vmem>>, vector<1x16x128xf32>,
    %57 = vector.broadcast %39 : vector<16x1xf32> to vector<16x128xf32>
    %58 = arith.subf %37, %57 : vector<16x128xf32>
    %59 = math.log %44 : vector<16x1xf32>
    %60 = vector.broadcast %59 : vector<16x1xf32> to vector<16x128xf32>
    %61 = arith.subf %58, %60 : vector<16x128xf32>
    %c0_37 = arith.constant 0 : index
    %c0_38 = arith.constant 0 : index
    %c0_39 = arith.constant 0 : index
    %62 = vector.load %arg15[%c0_37, %c0_38, %c0_39] : memref<1x16x128xf32, #tpu.memory_space<vmem>>, vector<1x16x128xf32>
    %63 = vector.shape_cast %62 : vector<1x16x128xf32> to vector<16x128xf32>
    %64 = vector.shape_cast %61 : vector<16x128xf32> to vector<1x16x128xf32>
    tpu.vector_store %arg15[%c0_37, %c0_38, %c0_39], %64 {strides = array<i32>} : memref<1x16x128xf32, #tpu.memory_space<vmem>>, vector<1x16x128xf32>,
    %c0_40 = arith.constant 0 : index
    %c0_41 = arith.constant 0 : index
    %65 = vector.load %arg10[%c0_40, %c0_41] : memref<256x384xbf16, #tpu.memory_space<vmem>>, vector<256x384xbf16>
    %66 = arith.truncf %16 : vector<16x128xf32> to vector<16x128xbf16>
    %67 = vector.extract_strided_slice %65 {offsets = [0, 0], sizes = [128, 384], strides = [1, 1]} : vector<256x384xbf16> to vector<128x384xbf16>
    %cst_42 = arith.constant dense<0.000000e+00> : vector<16x384xf32>
    %68 = tpu.matmul %66, %67, %cst_42 {dimension_numbers = #tpu.dot_dimension_numbers<[1], [0], [0], [1], [0, 0, 1, 1], [], []>} : vector<16x128xbf16>, vector<128x384xbf16>, vector<16x384xf32> -> vector<16x384xf32>
    %69 = arith.truncf %50 : vector<16x128xf32> to vector<16x128xbf16>
    %70 = vector.extract_strided_slice %65 {offsets = [128, 0], sizes = [128, 384], strides = [1, 1]} : vector<256x384xbf16> to vector<128x384xbf16>
    %cst_43 = arith.constant dense<0.000000e+00> : vector<16x384xf32>
    %71 = tpu.matmul %69, %70, %cst_43 {dimension_numbers = #tpu.dot_dimension_numbers<[1], [0], [0], [1], [0, 0, 1, 1], [], []>} : vector<16x128xbf16>, vector<128x384xbf16>, vector<16x384xf32> -> vector<16x384xf32>
    %72 = arith.addf %68, %71 : vector<16x384xf32>
    %c0_44 = arith.constant 0 : index
    %c0_45 = arith.constant 0 : index
    %73 = vector.load %arg11[%c0_44, %c0_45] : memref<1x384xf32, #tpu.memory_space<vmem>>, vector<1x384xf32>
    %74 = vector.broadcast %73 : vector<1x384xf32> to vector<16x384xf32>
    %75 = arith.addf %72, %74 : vector<16x384xf32>
    %c0_46 = arith.constant 0 : index
    %c0_47 = arith.constant 0 : index
    %c0_48 = arith.constant 0 : index
    %76 = vector.load %arg13[%c0_46, %c0_47, %c0_48] : memref<1x16x384xf32, #tpu.memory_space<vmem>>, vector<1x16x384xf32>
    %77 = vector.shape_cast %76 : vector<1x16x384xf32> to vector<16x384xf32>
    %78 = vector.shape_cast %75 : vector<16x384xf32> to vector<1x16x384xf32>
    tpu.vector_store %arg13[%c0_46, %c0_47, %c0_48], %78 {strides = array<i32>} : memref<1x16x384xf32, #tpu.memory_space<vmem>>, vector<1x16x384xf32>,
    return
  }
  func.func @transform_0(%arg0: i32) -> (i32, i32, i32) {
    %c0_i32 = arith.constant 0 : i32
    %c0_i32_0 = arith.constant 0 : i32
    %c0_i32_1 = arith.constant 0 : i32
    return %arg0, %c0_i32, %c0_i32_0 : i32, i32, i32
  }
  func.func @transform_1(%arg0: i32) -> (i32, i32, i32) {
    %c0_i32 = arith.constant 0 : i32
    %c0_i32_0 = arith.constant 0 : i32
    %c0_i32_1 = arith.constant 0 : i32
    return %arg0, %c0_i32, %c0_i32_0 : i32, i32, i32
  }
  func.func @transform_2(%arg0: i32) -> (i32, i32, i32) {
    %c0_i32 = arith.constant 0 : i32
    %c0_i32_0 = arith.constant 0 : i32
    %c0_i32_1 = arith.constant 0 : i32
    return %arg0, %c0_i32, %c0_i32_0 : i32, i32, i32
  }
  func.func @transform_3(%arg0: i32) -> (i32, i32) {
    %c0_i32 = arith.constant 0 : i32
    %c0_i32_0 = arith.constant 0 : i32
    %c0_i32_1 = arith.constant 0 : i32
    return %c0_i32, %c0_i32_0 : i32, i32
  }
  func.func @transform_4(%arg0: i32) -> (i32, i32) {
    %c0_i32 = arith.constant 0 : i32
    %c0_i32_0 = arith.constant 0 : i32
    %c0_i32_1 = arith.constant 0 : i32
    return %c0_i32, %c0_i32_0 : i32, i32
  }
  func.func @transform_5(%arg0: i32) -> (i32, i32) {
    %c0_i32 = arith.constant 0 : i32
    %c0_i32_0 = arith.constant 0 : i32
    %c0_i32_1 = arith.constant 0 : i32
    return %c0_i32, %c0_i32_0 : i32, i32
  }
  func.func @transform_6(%arg0: i32) -> (i32, i32) {
    %c0_i32 = arith.constant 0 : i32
    %c0_i32_0 = arith.constant 0 : i32
    %c0_i32_1 = arith.constant 0 : i32
    return %c0_i32, %c0_i32_0 : i32, i32
  }
  func.func @transform_7(%arg0: i32) -> (i32, i32) {
    %c0_i32 = arith.constant 0 : i32
    %c0_i32_0 = arith.constant 0 : i32
    %c0_i32_1 = arith.constant 0 : i32
    return %c0_i32, %c0_i32_0 : i32, i32
  }
  func.func @transform_8(%arg0: i32) -> (i32, i32) {
    %c0_i32 = arith.constant 0 : i32
    %c0_i32_0 = arith.constant 0 : i32
    %c0_i32_1 = arith.constant 0 : i32
    return %c0_i32, %c0_i32_0 : i32, i32
  }
  func.func @transform_9(%arg0: i32) -> (i32, i32) {
    %c0_i32 = arith.constant 0 : i32
    %c0_i32_0 = arith.constant 0 : i32
    %c0_i32_1 = arith.constant 0 : i32
    return %c0_i32, %c0_i32_0 : i32, i32
  }
  func.func @transform_10(%arg0: i32) -> (i32, i32) {
    %c0_i32 = arith.constant 0 : i32
    %c0_i32_0 = arith.constant 0 : i32
    %c0_i32_1 = arith.constant 0 : i32
    return %c0_i32, %c0_i32_0 : i32, i32
  }
  func.func @transform_11(%arg0: i32) -> (i32, i32, i32) {
    %c0_i32 = arith.constant 0 : i32
    %c0_i32_0 = arith.constant 0 : i32
    %c0_i32_1 = arith.constant 0 : i32
    return %arg0, %c0_i32, %c0_i32_0 : i32, i32, i32
  }
  func.func @transform_12(%arg0: i32) -> (i32, i32, i32) {
    %c0_i32 = arith.constant 0 : i32
    %c0_i32_0 = arith.constant 0 : i32
    %c0_i32_1 = arith.constant 0 : i32
    return %arg0, %c0_i32, %c0_i32_0 : i32, i32, i32
  }
  func.func @transform_13(%arg0: i32) -> (i32, i32, i32) {
    %c0_i32 = arith.constant 0 : i32
    %c0_i32_0 = arith.constant 0 : i32
    %c0_i32_1 = arith.constant 0 : i32
    return %arg0, %c0_i32, %c0_i32_0 : i32, i32, i32
  }
  func.func @transform_14(%arg0: i32) -> (i32, i32, i32) {
    %c0_i32 = arith.constant 0 : i32
    %c0_i32_0 = arith.constant 0 : i32
    %c0_i32_1 = arith.constant 0 : i32
    return %arg0, %c0_i32, %c0_i32_0 : i32, i32, i32
  }
}

module attributes {stable_mosaic.version = 11 : i64} {
  func.func @_gru_kernel(%arg0: i32, %arg1: memref<16x8x384xf32, #tpu.memory_space<vmem>>, %arg2: memref<128x384xf32, #tpu.memory_space<vmem>>, %arg3: memref<1x384xf32, #tpu.memory_space<vmem>>, %arg4: memref<16x8x128xf32, #tpu.memory_space<vmem>>, %arg5: memref<8x128xf32, #tpu.memory_space<vmem>>) attributes {dimension_semantics = [#tpu.dimension_semantics<arbitrary>], iteration_bounds = array<i64: 1>, scalar_prefetch = 0 : i64, scratch_operands = 1 : i64, tpu.core_type = #tpu.core_type<tc>, window_params = [{pipeline_mode = #tpu.pipeline_mode<synchronous>, transform_indices = @transform_0, window_bounds = array<i64: 16, 8, 384>}, {pipeline_mode = #tpu.pipeline_mode<synchronous>, transform_indices = @transform_1, window_bounds = array<i64: 128, 384>}, {pipeline_mode = #tpu.pipeline_mode<synchronous>, transform_indices = @transform_2, window_bounds = array<i64: 1, 384>}, {pipeline_mode = #tpu.pipeline_mode<synchronous>, transform_indices = @transform_3, window_bounds = array<i64: 16, 8, 128>}]} {
    %cst = arith.constant 0.000000e+00 : f32
    %0 = vector.broadcast %cst : f32 to vector<8x128xf32>
    %c0 = arith.constant 0 : index
    %c0_0 = arith.constant 0 : index
    %1 = vector.load %arg5[%c0, %c0_0] : memref<8x128xf32, #tpu.memory_space<vmem>>, vector<8x128xf32>
    tpu.vector_store %arg5[%c0, %c0_0], %0 {strides = array<i32>} : memref<8x128xf32, #tpu.memory_space<vmem>>, vector<8x128xf32>,
    %c0_i32 = arith.constant 0 : i32
    %c0_1 = arith.constant 0 : index
    %c0_2 = arith.constant 0 : index
    %2 = vector.load %arg5[%c0_1, %c0_2] : memref<8x128xf32, #tpu.memory_space<vmem>>, vector<8x128xf32>
    %c0_3 = arith.constant 0 : index
    %c0_4 = arith.constant 0 : index
    %3 = vector.load %arg2[%c0_3, %c0_4] : memref<128x384xf32, #tpu.memory_space<vmem>>, vector<128x384xf32>
    %cst_5 = arith.constant dense<0.000000e+00> : vector<8x384xf32>
    %4 = tpu.matmul %2, %3, %cst_5 {dimension_numbers = #tpu.dot_dimension_numbers<[1], [0], [0], [1], [0, 0, 1, 1], [], []>} : vector<8x128xf32>, vector<128x384xf32>, vector<8x384xf32> -> vector<8x384xf32>
    %c0_6 = arith.constant 0 : index
    %c0_7 = arith.constant 0 : index
    %5 = vector.load %arg3[%c0_6, %c0_7] : memref<1x384xf32, #tpu.memory_space<vmem>>, vector<1x384xf32>
    %6 = vector.broadcast %5 : vector<1x384xf32> to vector<8x384xf32>
    %7 = arith.addf %4, %6 : vector<8x384xf32>
    %8 = arith.index_cast %c0_i32 : i32 to index
    %c0_8 = arith.constant 0 : index
    %c0_9 = arith.constant 0 : index
    %9 = vector.load %arg1[%8, %c0_8, %c0_9] : memref<16x8x384xf32, #tpu.memory_space<vmem>>, vector<1x8x384xf32>
    %10 = vector.shape_cast %9 : vector<1x8x384xf32> to vector<8x384xf32>
    %11 = vector.extract_strided_slice %10 {offsets = [0, 0], sizes = [8, 128], strides = [1, 1]} : vector<8x384xf32> to vector<8x128xf32>
    %12 = vector.extract_strided_slice %7 {offsets = [0, 0], sizes = [8, 128], strides = [1, 1]} : vector<8x384xf32> to vector<8x128xf32>
    %13 = arith.addf %11, %12 : vector<8x128xf32>
    %14 = arith.negf %13 : vector<8x128xf32>
    %15 = math.exp %14 : vector<8x128xf32>
    %cst_10 = arith.constant 1.000000e+00 : f32
    %16 = vector.broadcast %cst_10 : f32 to vector<8x128xf32>
    %17 = arith.addf %16, %15 : vector<8x128xf32>
    %18 = arith.divf %16, %17 : vector<8x128xf32>
    %19 = vector.extract_strided_slice %10 {offsets = [0, 128], sizes = [8, 128], strides = [1, 1]} : vector<8x384xf32> to vector<8x128xf32>
    %20 = vector.extract_strided_slice %7 {offsets = [0, 128], sizes = [8, 128], strides = [1, 1]} : vector<8x384xf32> to vector<8x128xf32>
    %21 = arith.addf %19, %20 : vector<8x128xf32>
    %22 = arith.negf %21 : vector<8x128xf32>
    %23 = math.exp %22 : vector<8x128xf32>
    %cst_11 = arith.constant 1.000000e+00 : f32
    %24 = vector.broadcast %cst_11 : f32 to vector<8x128xf32>
    %25 = arith.addf %24, %23 : vector<8x128xf32>
    %26 = arith.divf %24, %25 : vector<8x128xf32>
    %27 = vector.extract_strided_slice %10 {offsets = [0, 256], sizes = [8, 128], strides = [1, 1]} : vector<8x384xf32> to vector<8x128xf32>
    %28 = vector.extract_strided_slice %7 {offsets = [0, 256], sizes = [8, 128], strides = [1, 1]} : vector<8x384xf32> to vector<8x128xf32>
    %29 = arith.mulf %18, %28 : vector<8x128xf32>
    %30 = arith.addf %27, %29 : vector<8x128xf32>
    %31 = math.tanh %30 : vector<8x128xf32>
    %cst_12 = arith.constant 1.000000e+00 : f32
    %32 = vector.broadcast %cst_12 : f32 to vector<8x128xf32>
    %33 = arith.subf %32, %26 : vector<8x128xf32>
    %34 = arith.mulf %33, %31 : vector<8x128xf32>
    %35 = arith.mulf %26, %2 : vector<8x128xf32>
    %36 = arith.addf %34, %35 : vector<8x128xf32>
    %c0_13 = arith.constant 0 : index
    %c0_14 = arith.constant 0 : index
    %37 = vector.load %arg5[%c0_13, %c0_14] : memref<8x128xf32, #tpu.memory_space<vmem>>, vector<8x128xf32>
    tpu.vector_store %arg5[%c0_13, %c0_14], %36 {strides = array<i32>} : memref<8x128xf32, #tpu.memory_space<vmem>>, vector<8x128xf32>,
    %38 = arith.index_cast %c0_i32 : i32 to index
    %c0_15 = arith.constant 0 : index
    %c0_16 = arith.constant 0 : index
    %39 = vector.load %arg4[%38, %c0_15, %c0_16] : memref<16x8x128xf32, #tpu.memory_space<vmem>>, vector<1x8x128xf32>
    %40 = vector.shape_cast %39 : vector<1x8x128xf32> to vector<8x128xf32>
    %41 = vector.shape_cast %36 : vector<8x128xf32> to vector<1x8x128xf32>
    tpu.vector_store %arg4[%38, %c0_15, %c0_16], %41 {strides = array<i32>} : memref<16x8x128xf32, #tpu.memory_space<vmem>>, vector<1x8x128xf32>,
    %c1_i32 = arith.constant 1 : i32
    %c0_17 = arith.constant 0 : index
    %c0_18 = arith.constant 0 : index
    %42 = vector.load %arg5[%c0_17, %c0_18] : memref<8x128xf32, #tpu.memory_space<vmem>>, vector<8x128xf32>
    %c0_19 = arith.constant 0 : index
    %c0_20 = arith.constant 0 : index
    %43 = vector.load %arg2[%c0_19, %c0_20] : memref<128x384xf32, #tpu.memory_space<vmem>>, vector<128x384xf32>
    %cst_21 = arith.constant dense<0.000000e+00> : vector<8x384xf32>
    %44 = tpu.matmul %42, %43, %cst_21 {dimension_numbers = #tpu.dot_dimension_numbers<[1], [0], [0], [1], [0, 0, 1, 1], [], []>} : vector<8x128xf32>, vector<128x384xf32>, vector<8x384xf32> -> vector<8x384xf32>
    %c0_22 = arith.constant 0 : index
    %c0_23 = arith.constant 0 : index
    %45 = vector.load %arg3[%c0_22, %c0_23] : memref<1x384xf32, #tpu.memory_space<vmem>>, vector<1x384xf32>
    %46 = vector.broadcast %45 : vector<1x384xf32> to vector<8x384xf32>
    %47 = arith.addf %44, %46 : vector<8x384xf32>
    %48 = arith.index_cast %c1_i32 : i32 to index
    %c0_24 = arith.constant 0 : index
    %c0_25 = arith.constant 0 : index
    %49 = vector.load %arg1[%48, %c0_24, %c0_25] : memref<16x8x384xf32, #tpu.memory_space<vmem>>, vector<1x8x384xf32>
    %50 = vector.shape_cast %49 : vector<1x8x384xf32> to vector<8x384xf32>
    %51 = vector.extract_strided_slice %50 {offsets = [0, 0], sizes = [8, 128], strides = [1, 1]} : vector<8x384xf32> to vector<8x128xf32>
    %52 = vector.extract_strided_slice %47 {offsets = [0, 0], sizes = [8, 128], strides = [1, 1]} : vector<8x384xf32> to vector<8x128xf32>
    %53 = arith.addf %51, %52 : vector<8x128xf32>
    %54 = arith.negf %53 : vector<8x128xf32>
    %55 = math.exp %54 : vector<8x128xf32>
    %cst_26 = arith.constant 1.000000e+00 : f32
    %56 = vector.broadcast %cst_26 : f32 to vector<8x128xf32>
    %57 = arith.addf %56, %55 : vector<8x128xf32>
    %58 = arith.divf %56, %57 : vector<8x128xf32>
    %59 = vector.extract_strided_slice %50 {offsets = [0, 128], sizes = [8, 128], strides = [1, 1]} : vector<8x384xf32> to vector<8x128xf32>
    %60 = vector.extract_strided_slice %47 {offsets = [0, 128], sizes = [8, 128], strides = [1, 1]} : vector<8x384xf32> to vector<8x128xf32>
    %61 = arith.addf %59, %60 : vector<8x128xf32>
    %62 = arith.negf %61 : vector<8x128xf32>
    %63 = math.exp %62 : vector<8x128xf32>
    %cst_27 = arith.constant 1.000000e+00 : f32
    %64 = vector.broadcast %cst_27 : f32 to vector<8x128xf32>
    %65 = arith.addf %64, %63 : vector<8x128xf32>
    %66 = arith.divf %64, %65 : vector<8x128xf32>
    %67 = vector.extract_strided_slice %50 {offsets = [0, 256], sizes = [8, 128], strides = [1, 1]} : vector<8x384xf32> to vector<8x128xf32>
    %68 = vector.extract_strided_slice %47 {offsets = [0, 256], sizes = [8, 128], strides = [1, 1]} : vector<8x384xf32> to vector<8x128xf32>
    %69 = arith.mulf %58, %68 : vector<8x128xf32>
    %70 = arith.addf %67, %69 : vector<8x128xf32>
    %71 = math.tanh %70 : vector<8x128xf32>
    %cst_28 = arith.constant 1.000000e+00 : f32
    %72 = vector.broadcast %cst_28 : f32 to vector<8x128xf32>
    %73 = arith.subf %72, %66 : vector<8x128xf32>
    %74 = arith.mulf %73, %71 : vector<8x128xf32>
    %75 = arith.mulf %66, %42 : vector<8x128xf32>
    %76 = arith.addf %74, %75 : vector<8x128xf32>
    %c0_29 = arith.constant 0 : index
    %c0_30 = arith.constant 0 : index
    %77 = vector.load %arg5[%c0_29, %c0_30] : memref<8x128xf32, #tpu.memory_space<vmem>>, vector<8x128xf32>
    tpu.vector_store %arg5[%c0_29, %c0_30], %76 {strides = array<i32>} : memref<8x128xf32, #tpu.memory_space<vmem>>, vector<8x128xf32>,
    %78 = arith.index_cast %c1_i32 : i32 to index
    %c0_31 = arith.constant 0 : index
    %c0_32 = arith.constant 0 : index
    %79 = vector.load %arg4[%78, %c0_31, %c0_32] : memref<16x8x128xf32, #tpu.memory_space<vmem>>, vector<1x8x128xf32>
    %80 = vector.shape_cast %79 : vector<1x8x128xf32> to vector<8x128xf32>
    %81 = vector.shape_cast %76 : vector<8x128xf32> to vector<1x8x128xf32>
    tpu.vector_store %arg4[%78, %c0_31, %c0_32], %81 {strides = array<i32>} : memref<16x8x128xf32, #tpu.memory_space<vmem>>, vector<1x8x128xf32>,
    %c2_i32 = arith.constant 2 : i32
    %c0_33 = arith.constant 0 : index
    %c0_34 = arith.constant 0 : index
    %82 = vector.load %arg5[%c0_33, %c0_34] : memref<8x128xf32, #tpu.memory_space<vmem>>, vector<8x128xf32>
    %c0_35 = arith.constant 0 : index
    %c0_36 = arith.constant 0 : index
    %83 = vector.load %arg2[%c0_35, %c0_36] : memref<128x384xf32, #tpu.memory_space<vmem>>, vector<128x384xf32>
    %cst_37 = arith.constant dense<0.000000e+00> : vector<8x384xf32>
    %84 = tpu.matmul %82, %83, %cst_37 {dimension_numbers = #tpu.dot_dimension_numbers<[1], [0], [0], [1], [0, 0, 1, 1], [], []>} : vector<8x128xf32>, vector<128x384xf32>, vector<8x384xf32> -> vector<8x384xf32>
    %c0_38 = arith.constant 0 : index
    %c0_39 = arith.constant 0 : index
    %85 = vector.load %arg3[%c0_38, %c0_39] : memref<1x384xf32, #tpu.memory_space<vmem>>, vector<1x384xf32>
    %86 = vector.broadcast %85 : vector<1x384xf32> to vector<8x384xf32>
    %87 = arith.addf %84, %86 : vector<8x384xf32>
    %88 = arith.index_cast %c2_i32 : i32 to index
    %c0_40 = arith.constant 0 : index
    %c0_41 = arith.constant 0 : index
    %89 = vector.load %arg1[%88, %c0_40, %c0_41] : memref<16x8x384xf32, #tpu.memory_space<vmem>>, vector<1x8x384xf32>
    %90 = vector.shape_cast %89 : vector<1x8x384xf32> to vector<8x384xf32>
    %91 = vector.extract_strided_slice %90 {offsets = [0, 0], sizes = [8, 128], strides = [1, 1]} : vector<8x384xf32> to vector<8x128xf32>
    %92 = vector.extract_strided_slice %87 {offsets = [0, 0], sizes = [8, 128], strides = [1, 1]} : vector<8x384xf32> to vector<8x128xf32>
    %93 = arith.addf %91, %92 : vector<8x128xf32>
    %94 = arith.negf %93 : vector<8x128xf32>
    %95 = math.exp %94 : vector<8x128xf32>
    %cst_42 = arith.constant 1.000000e+00 : f32
    %96 = vector.broadcast %cst_42 : f32 to vector<8x128xf32>
    %97 = arith.addf %96, %95 : vector<8x128xf32>
    %98 = arith.divf %96, %97 : vector<8x128xf32>
    %99 = vector.extract_strided_slice %90 {offsets = [0, 128], sizes = [8, 128], strides = [1, 1]} : vector<8x384xf32> to vector<8x128xf32>
    %100 = vector.extract_strided_slice %87 {offsets = [0, 128], sizes = [8, 128], strides = [1, 1]} : vector<8x384xf32> to vector<8x128xf32>
    %101 = arith.addf %99, %100 : vector<8x128xf32>
    %102 = arith.negf %101 : vector<8x128xf32>
    %103 = math.exp %102 : vector<8x128xf32>
    %cst_43 = arith.constant 1.000000e+00 : f32
    %104 = vector.broadcast %cst_43 : f32 to vector<8x128xf32>
    %105 = arith.addf %104, %103 : vector<8x128xf32>
    %106 = arith.divf %104, %105 : vector<8x128xf32>
    %107 = vector.extract_strided_slice %90 {offsets = [0, 256], sizes = [8, 128], strides = [1, 1]} : vector<8x384xf32> to vector<8x128xf32>
    %108 = vector.extract_strided_slice %87 {offsets = [0, 256], sizes = [8, 128], strides = [1, 1]} : vector<8x384xf32> to vector<8x128xf32>
    %109 = arith.mulf %98, %108 : vector<8x128xf32>
    %110 = arith.addf %107, %109 : vector<8x128xf32>
    %111 = math.tanh %110 : vector<8x128xf32>
    %cst_44 = arith.constant 1.000000e+00 : f32
    %112 = vector.broadcast %cst_44 : f32 to vector<8x128xf32>
    %113 = arith.subf %112, %106 : vector<8x128xf32>
    %114 = arith.mulf %113, %111 : vector<8x128xf32>
    %115 = arith.mulf %106, %82 : vector<8x128xf32>
    %116 = arith.addf %114, %115 : vector<8x128xf32>
    %c0_45 = arith.constant 0 : index
    %c0_46 = arith.constant 0 : index
    %117 = vector.load %arg5[%c0_45, %c0_46] : memref<8x128xf32, #tpu.memory_space<vmem>>, vector<8x128xf32>
    tpu.vector_store %arg5[%c0_45, %c0_46], %116 {strides = array<i32>} : memref<8x128xf32, #tpu.memory_space<vmem>>, vector<8x128xf32>,
    %118 = arith.index_cast %c2_i32 : i32 to index
    %c0_47 = arith.constant 0 : index
    %c0_48 = arith.constant 0 : index
    %119 = vector.load %arg4[%118, %c0_47, %c0_48] : memref<16x8x128xf32, #tpu.memory_space<vmem>>, vector<1x8x128xf32>
    %120 = vector.shape_cast %119 : vector<1x8x128xf32> to vector<8x128xf32>
    %121 = vector.shape_cast %116 : vector<8x128xf32> to vector<1x8x128xf32>
    tpu.vector_store %arg4[%118, %c0_47, %c0_48], %121 {strides = array<i32>} : memref<16x8x128xf32, #tpu.memory_space<vmem>>, vector<1x8x128xf32>,
    %c3_i32 = arith.constant 3 : i32
    %c0_49 = arith.constant 0 : index
    %c0_50 = arith.constant 0 : index
    %122 = vector.load %arg5[%c0_49, %c0_50] : memref<8x128xf32, #tpu.memory_space<vmem>>, vector<8x128xf32>
    %c0_51 = arith.constant 0 : index
    %c0_52 = arith.constant 0 : index
    %123 = vector.load %arg2[%c0_51, %c0_52] : memref<128x384xf32, #tpu.memory_space<vmem>>, vector<128x384xf32>
    %cst_53 = arith.constant dense<0.000000e+00> : vector<8x384xf32>
    %124 = tpu.matmul %122, %123, %cst_53 {dimension_numbers = #tpu.dot_dimension_numbers<[1], [0], [0], [1], [0, 0, 1, 1], [], []>} : vector<8x128xf32>, vector<128x384xf32>, vector<8x384xf32> -> vector<8x384xf32>
    %c0_54 = arith.constant 0 : index
    %c0_55 = arith.constant 0 : index
    %125 = vector.load %arg3[%c0_54, %c0_55] : memref<1x384xf32, #tpu.memory_space<vmem>>, vector<1x384xf32>
    %126 = vector.broadcast %125 : vector<1x384xf32> to vector<8x384xf32>
    %127 = arith.addf %124, %126 : vector<8x384xf32>
    %128 = arith.index_cast %c3_i32 : i32 to index
    %c0_56 = arith.constant 0 : index
    %c0_57 = arith.constant 0 : index
    %129 = vector.load %arg1[%128, %c0_56, %c0_57] : memref<16x8x384xf32, #tpu.memory_space<vmem>>, vector<1x8x384xf32>
    %130 = vector.shape_cast %129 : vector<1x8x384xf32> to vector<8x384xf32>
    %131 = vector.extract_strided_slice %130 {offsets = [0, 0], sizes = [8, 128], strides = [1, 1]} : vector<8x384xf32> to vector<8x128xf32>
    %132 = vector.extract_strided_slice %127 {offsets = [0, 0], sizes = [8, 128], strides = [1, 1]} : vector<8x384xf32> to vector<8x128xf32>
    %133 = arith.addf %131, %132 : vector<8x128xf32>
    %134 = arith.negf %133 : vector<8x128xf32>
    %135 = math.exp %134 : vector<8x128xf32>
    %cst_58 = arith.constant 1.000000e+00 : f32
    %136 = vector.broadcast %cst_58 : f32 to vector<8x128xf32>
    %137 = arith.addf %136, %135 : vector<8x128xf32>
    %138 = arith.divf %136, %137 : vector<8x128xf32>
    %139 = vector.extract_strided_slice %130 {offsets = [0, 128], sizes = [8, 128], strides = [1, 1]} : vector<8x384xf32> to vector<8x128xf32>
    %140 = vector.extract_strided_slice %127 {offsets = [0, 128], sizes = [8, 128], strides = [1, 1]} : vector<8x384xf32> to vector<8x128xf32>
    %141 = arith.addf %139, %140 : vector<8x128xf32>
    %142 = arith.negf %141 : vector<8x128xf32>
    %143 = math.exp %142 : vector<8x128xf32>
    %cst_59 = arith.constant 1.000000e+00 : f32
    %144 = vector.broadcast %cst_59 : f32 to vector<8x128xf32>
    %145 = arith.addf %144, %143 : vector<8x128xf32>
    %146 = arith.divf %144, %145 : vector<8x128xf32>
    %147 = vector.extract_strided_slice %130 {offsets = [0, 256], sizes = [8, 128], strides = [1, 1]} : vector<8x384xf32> to vector<8x128xf32>
    %148 = vector.extract_strided_slice %127 {offsets = [0, 256], sizes = [8, 128], strides = [1, 1]} : vector<8x384xf32> to vector<8x128xf32>
    %149 = arith.mulf %138, %148 : vector<8x128xf32>
    %150 = arith.addf %147, %149 : vector<8x128xf32>
    %151 = math.tanh %150 : vector<8x128xf32>
    %cst_60 = arith.constant 1.000000e+00 : f32
    %152 = vector.broadcast %cst_60 : f32 to vector<8x128xf32>
    %153 = arith.subf %152, %146 : vector<8x128xf32>
    %154 = arith.mulf %153, %151 : vector<8x128xf32>
    %155 = arith.mulf %146, %122 : vector<8x128xf32>
    %156 = arith.addf %154, %155 : vector<8x128xf32>
    %c0_61 = arith.constant 0 : index
    %c0_62 = arith.constant 0 : index
    %157 = vector.load %arg5[%c0_61, %c0_62] : memref<8x128xf32, #tpu.memory_space<vmem>>, vector<8x128xf32>
    tpu.vector_store %arg5[%c0_61, %c0_62], %156 {strides = array<i32>} : memref<8x128xf32, #tpu.memory_space<vmem>>, vector<8x128xf32>,
    %158 = arith.index_cast %c3_i32 : i32 to index
    %c0_63 = arith.constant 0 : index
    %c0_64 = arith.constant 0 : index
    %159 = vector.load %arg4[%158, %c0_63, %c0_64] : memref<16x8x128xf32, #tpu.memory_space<vmem>>, vector<1x8x128xf32>
    %160 = vector.shape_cast %159 : vector<1x8x128xf32> to vector<8x128xf32>
    %161 = vector.shape_cast %156 : vector<8x128xf32> to vector<1x8x128xf32>
    tpu.vector_store %arg4[%158, %c0_63, %c0_64], %161 {strides = array<i32>} : memref<16x8x128xf32, #tpu.memory_space<vmem>>, vector<1x8x128xf32>,
    %c4_i32 = arith.constant 4 : i32
    %c0_65 = arith.constant 0 : index
    %c0_66 = arith.constant 0 : index
    %162 = vector.load %arg5[%c0_65, %c0_66] : memref<8x128xf32, #tpu.memory_space<vmem>>, vector<8x128xf32>
    %c0_67 = arith.constant 0 : index
    %c0_68 = arith.constant 0 : index
    %163 = vector.load %arg2[%c0_67, %c0_68] : memref<128x384xf32, #tpu.memory_space<vmem>>, vector<128x384xf32>
    %cst_69 = arith.constant dense<0.000000e+00> : vector<8x384xf32>
    %164 = tpu.matmul %162, %163, %cst_69 {dimension_numbers = #tpu.dot_dimension_numbers<[1], [0], [0], [1], [0, 0, 1, 1], [], []>} : vector<8x128xf32>, vector<128x384xf32>, vector<8x384xf32> -> vector<8x384xf32>
    %c0_70 = arith.constant 0 : index
    %c0_71 = arith.constant 0 : index
    %165 = vector.load %arg3[%c0_70, %c0_71] : memref<1x384xf32, #tpu.memory_space<vmem>>, vector<1x384xf32>
    %166 = vector.broadcast %165 : vector<1x384xf32> to vector<8x384xf32>
    %167 = arith.addf %164, %166 : vector<8x384xf32>
    %168 = arith.index_cast %c4_i32 : i32 to index
    %c0_72 = arith.constant 0 : index
    %c0_73 = arith.constant 0 : index
    %169 = vector.load %arg1[%168, %c0_72, %c0_73] : memref<16x8x384xf32, #tpu.memory_space<vmem>>, vector<1x8x384xf32>
    %170 = vector.shape_cast %169 : vector<1x8x384xf32> to vector<8x384xf32>
    %171 = vector.extract_strided_slice %170 {offsets = [0, 0], sizes = [8, 128], strides = [1, 1]} : vector<8x384xf32> to vector<8x128xf32>
    %172 = vector.extract_strided_slice %167 {offsets = [0, 0], sizes = [8, 128], strides = [1, 1]} : vector<8x384xf32> to vector<8x128xf32>
    %173 = arith.addf %171, %172 : vector<8x128xf32>
    %174 = arith.negf %173 : vector<8x128xf32>
    %175 = math.exp %174 : vector<8x128xf32>
    %cst_74 = arith.constant 1.000000e+00 : f32
    %176 = vector.broadcast %cst_74 : f32 to vector<8x128xf32>
    %177 = arith.addf %176, %175 : vector<8x128xf32>
    %178 = arith.divf %176, %177 : vector<8x128xf32>
    %179 = vector.extract_strided_slice %170 {offsets = [0, 128], sizes = [8, 128], strides = [1, 1]} : vector<8x384xf32> to vector<8x128xf32>
    %180 = vector.extract_strided_slice %167 {offsets = [0, 128], sizes = [8, 128], strides = [1, 1]} : vector<8x384xf32> to vector<8x128xf32>
    %181 = arith.addf %179, %180 : vector<8x128xf32>
    %182 = arith.negf %181 : vector<8x128xf32>
    %183 = math.exp %182 : vector<8x128xf32>
    %cst_75 = arith.constant 1.000000e+00 : f32
    %184 = vector.broadcast %cst_75 : f32 to vector<8x128xf32>
    %185 = arith.addf %184, %183 : vector<8x128xf32>
    %186 = arith.divf %184, %185 : vector<8x128xf32>
    %187 = vector.extract_strided_slice %170 {offsets = [0, 256], sizes = [8, 128], strides = [1, 1]} : vector<8x384xf32> to vector<8x128xf32>
    %188 = vector.extract_strided_slice %167 {offsets = [0, 256], sizes = [8, 128], strides = [1, 1]} : vector<8x384xf32> to vector<8x128xf32>
    %189 = arith.mulf %178, %188 : vector<8x128xf32>
    %190 = arith.addf %187, %189 : vector<8x128xf32>
    %191 = math.tanh %190 : vector<8x128xf32>
    %cst_76 = arith.constant 1.000000e+00 : f32
    %192 = vector.broadcast %cst_76 : f32 to vector<8x128xf32>
    %193 = arith.subf %192, %186 : vector<8x128xf32>
    %194 = arith.mulf %193, %191 : vector<8x128xf32>
    %195 = arith.mulf %186, %162 : vector<8x128xf32>
    %196 = arith.addf %194, %195 : vector<8x128xf32>
    %c0_77 = arith.constant 0 : index
    %c0_78 = arith.constant 0 : index
    %197 = vector.load %arg5[%c0_77, %c0_78] : memref<8x128xf32, #tpu.memory_space<vmem>>, vector<8x128xf32>
    tpu.vector_store %arg5[%c0_77, %c0_78], %196 {strides = array<i32>} : memref<8x128xf32, #tpu.memory_space<vmem>>, vector<8x128xf32>,
    %198 = arith.index_cast %c4_i32 : i32 to index
    %c0_79 = arith.constant 0 : index
    %c0_80 = arith.constant 0 : index
    %199 = vector.load %arg4[%198, %c0_79, %c0_80] : memref<16x8x128xf32, #tpu.memory_space<vmem>>, vector<1x8x128xf32>
    %200 = vector.shape_cast %199 : vector<1x8x128xf32> to vector<8x128xf32>
    %201 = vector.shape_cast %196 : vector<8x128xf32> to vector<1x8x128xf32>
    tpu.vector_store %arg4[%198, %c0_79, %c0_80], %201 {strides = array<i32>} : memref<16x8x128xf32, #tpu.memory_space<vmem>>, vector<1x8x128xf32>,
    %c5_i32 = arith.constant 5 : i32
    %c0_81 = arith.constant 0 : index
    %c0_82 = arith.constant 0 : index
    %202 = vector.load %arg5[%c0_81, %c0_82] : memref<8x128xf32, #tpu.memory_space<vmem>>, vector<8x128xf32>
    %c0_83 = arith.constant 0 : index
    %c0_84 = arith.constant 0 : index
    %203 = vector.load %arg2[%c0_83, %c0_84] : memref<128x384xf32, #tpu.memory_space<vmem>>, vector<128x384xf32>
    %cst_85 = arith.constant dense<0.000000e+00> : vector<8x384xf32>
    %204 = tpu.matmul %202, %203, %cst_85 {dimension_numbers = #tpu.dot_dimension_numbers<[1], [0], [0], [1], [0, 0, 1, 1], [], []>} : vector<8x128xf32>, vector<128x384xf32>, vector<8x384xf32> -> vector<8x384xf32>
    %c0_86 = arith.constant 0 : index
    %c0_87 = arith.constant 0 : index
    %205 = vector.load %arg3[%c0_86, %c0_87] : memref<1x384xf32, #tpu.memory_space<vmem>>, vector<1x384xf32>
    %206 = vector.broadcast %205 : vector<1x384xf32> to vector<8x384xf32>
    %207 = arith.addf %204, %206 : vector<8x384xf32>
    %208 = arith.index_cast %c5_i32 : i32 to index
    %c0_88 = arith.constant 0 : index
    %c0_89 = arith.constant 0 : index
    %209 = vector.load %arg1[%208, %c0_88, %c0_89] : memref<16x8x384xf32, #tpu.memory_space<vmem>>, vector<1x8x384xf32>
    %210 = vector.shape_cast %209 : vector<1x8x384xf32> to vector<8x384xf32>
    %211 = vector.extract_strided_slice %210 {offsets = [0, 0], sizes = [8, 128], strides = [1, 1]} : vector<8x384xf32> to vector<8x128xf32>
    %212 = vector.extract_strided_slice %207 {offsets = [0, 0], sizes = [8, 128], strides = [1, 1]} : vector<8x384xf32> to vector<8x128xf32>
    %213 = arith.addf %211, %212 : vector<8x128xf32>
    %214 = arith.negf %213 : vector<8x128xf32>
    %215 = math.exp %214 : vector<8x128xf32>
    %cst_90 = arith.constant 1.000000e+00 : f32
    %216 = vector.broadcast %cst_90 : f32 to vector<8x128xf32>
    %217 = arith.addf %216, %215 : vector<8x128xf32>
    %218 = arith.divf %216, %217 : vector<8x128xf32>
    %219 = vector.extract_strided_slice %210 {offsets = [0, 128], sizes = [8, 128], strides = [1, 1]} : vector<8x384xf32> to vector<8x128xf32>
    %220 = vector.extract_strided_slice %207 {offsets = [0, 128], sizes = [8, 128], strides = [1, 1]} : vector<8x384xf32> to vector<8x128xf32>
    %221 = arith.addf %219, %220 : vector<8x128xf32>
    %222 = arith.negf %221 : vector<8x128xf32>
    %223 = math.exp %222 : vector<8x128xf32>
    %cst_91 = arith.constant 1.000000e+00 : f32
    %224 = vector.broadcast %cst_91 : f32 to vector<8x128xf32>
    %225 = arith.addf %224, %223 : vector<8x128xf32>
    %226 = arith.divf %224, %225 : vector<8x128xf32>
    %227 = vector.extract_strided_slice %210 {offsets = [0, 256], sizes = [8, 128], strides = [1, 1]} : vector<8x384xf32> to vector<8x128xf32>
    %228 = vector.extract_strided_slice %207 {offsets = [0, 256], sizes = [8, 128], strides = [1, 1]} : vector<8x384xf32> to vector<8x128xf32>
    %229 = arith.mulf %218, %228 : vector<8x128xf32>
    %230 = arith.addf %227, %229 : vector<8x128xf32>
    %231 = math.tanh %230 : vector<8x128xf32>
    %cst_92 = arith.constant 1.000000e+00 : f32
    %232 = vector.broadcast %cst_92 : f32 to vector<8x128xf32>
    %233 = arith.subf %232, %226 : vector<8x128xf32>
    %234 = arith.mulf %233, %231 : vector<8x128xf32>
    %235 = arith.mulf %226, %202 : vector<8x128xf32>
    %236 = arith.addf %234, %235 : vector<8x128xf32>
    %c0_93 = arith.constant 0 : index
    %c0_94 = arith.constant 0 : index
    %237 = vector.load %arg5[%c0_93, %c0_94] : memref<8x128xf32, #tpu.memory_space<vmem>>, vector<8x128xf32>
    tpu.vector_store %arg5[%c0_93, %c0_94], %236 {strides = array<i32>} : memref<8x128xf32, #tpu.memory_space<vmem>>, vector<8x128xf32>,
    %238 = arith.index_cast %c5_i32 : i32 to index
    %c0_95 = arith.constant 0 : index
    %c0_96 = arith.constant 0 : index
    %239 = vector.load %arg4[%238, %c0_95, %c0_96] : memref<16x8x128xf32, #tpu.memory_space<vmem>>, vector<1x8x128xf32>
    %240 = vector.shape_cast %239 : vector<1x8x128xf32> to vector<8x128xf32>
    %241 = vector.shape_cast %236 : vector<8x128xf32> to vector<1x8x128xf32>
    tpu.vector_store %arg4[%238, %c0_95, %c0_96], %241 {strides = array<i32>} : memref<16x8x128xf32, #tpu.memory_space<vmem>>, vector<1x8x128xf32>,
    %c6_i32 = arith.constant 6 : i32
    %c0_97 = arith.constant 0 : index
    %c0_98 = arith.constant 0 : index
    %242 = vector.load %arg5[%c0_97, %c0_98] : memref<8x128xf32, #tpu.memory_space<vmem>>, vector<8x128xf32>
    %c0_99 = arith.constant 0 : index
    %c0_100 = arith.constant 0 : index
    %243 = vector.load %arg2[%c0_99, %c0_100] : memref<128x384xf32, #tpu.memory_space<vmem>>, vector<128x384xf32>
    %cst_101 = arith.constant dense<0.000000e+00> : vector<8x384xf32>
    %244 = tpu.matmul %242, %243, %cst_101 {dimension_numbers = #tpu.dot_dimension_numbers<[1], [0], [0], [1], [0, 0, 1, 1], [], []>} : vector<8x128xf32>, vector<128x384xf32>, vector<8x384xf32> -> vector<8x384xf32>
    %c0_102 = arith.constant 0 : index
    %c0_103 = arith.constant 0 : index
    %245 = vector.load %arg3[%c0_102, %c0_103] : memref<1x384xf32, #tpu.memory_space<vmem>>, vector<1x384xf32>
    %246 = vector.broadcast %245 : vector<1x384xf32> to vector<8x384xf32>
    %247 = arith.addf %244, %246 : vector<8x384xf32>
    %248 = arith.index_cast %c6_i32 : i32 to index
    %c0_104 = arith.constant 0 : index
    %c0_105 = arith.constant 0 : index
    %249 = vector.load %arg1[%248, %c0_104, %c0_105] : memref<16x8x384xf32, #tpu.memory_space<vmem>>, vector<1x8x384xf32>
    %250 = vector.shape_cast %249 : vector<1x8x384xf32> to vector<8x384xf32>
    %251 = vector.extract_strided_slice %250 {offsets = [0, 0], sizes = [8, 128], strides = [1, 1]} : vector<8x384xf32> to vector<8x128xf32>
    %252 = vector.extract_strided_slice %247 {offsets = [0, 0], sizes = [8, 128], strides = [1, 1]} : vector<8x384xf32> to vector<8x128xf32>
    %253 = arith.addf %251, %252 : vector<8x128xf32>
    %254 = arith.negf %253 : vector<8x128xf32>
    %255 = math.exp %254 : vector<8x128xf32>
    %cst_106 = arith.constant 1.000000e+00 : f32
    %256 = vector.broadcast %cst_106 : f32 to vector<8x128xf32>
    %257 = arith.addf %256, %255 : vector<8x128xf32>
    %258 = arith.divf %256, %257 : vector<8x128xf32>
    %259 = vector.extract_strided_slice %250 {offsets = [0, 128], sizes = [8, 128], strides = [1, 1]} : vector<8x384xf32> to vector<8x128xf32>
    %260 = vector.extract_strided_slice %247 {offsets = [0, 128], sizes = [8, 128], strides = [1, 1]} : vector<8x384xf32> to vector<8x128xf32>
    %261 = arith.addf %259, %260 : vector<8x128xf32>
    %262 = arith.negf %261 : vector<8x128xf32>
    %263 = math.exp %262 : vector<8x128xf32>
    %cst_107 = arith.constant 1.000000e+00 : f32
    %264 = vector.broadcast %cst_107 : f32 to vector<8x128xf32>
    %265 = arith.addf %264, %263 : vector<8x128xf32>
    %266 = arith.divf %264, %265 : vector<8x128xf32>
    %267 = vector.extract_strided_slice %250 {offsets = [0, 256], sizes = [8, 128], strides = [1, 1]} : vector<8x384xf32> to vector<8x128xf32>
    %268 = vector.extract_strided_slice %247 {offsets = [0, 256], sizes = [8, 128], strides = [1, 1]} : vector<8x384xf32> to vector<8x128xf32>
    %269 = arith.mulf %258, %268 : vector<8x128xf32>
    %270 = arith.addf %267, %269 : vector<8x128xf32>
    %271 = math.tanh %270 : vector<8x128xf32>
    %cst_108 = arith.constant 1.000000e+00 : f32
    %272 = vector.broadcast %cst_108 : f32 to vector<8x128xf32>
    %273 = arith.subf %272, %266 : vector<8x128xf32>
    %274 = arith.mulf %273, %271 : vector<8x128xf32>
    %275 = arith.mulf %266, %242 : vector<8x128xf32>
    %276 = arith.addf %274, %275 : vector<8x128xf32>
    %c0_109 = arith.constant 0 : index
    %c0_110 = arith.constant 0 : index
    %277 = vector.load %arg5[%c0_109, %c0_110] : memref<8x128xf32, #tpu.memory_space<vmem>>, vector<8x128xf32>
    tpu.vector_store %arg5[%c0_109, %c0_110], %276 {strides = array<i32>} : memref<8x128xf32, #tpu.memory_space<vmem>>, vector<8x128xf32>,
    %278 = arith.index_cast %c6_i32 : i32 to index
    %c0_111 = arith.constant 0 : index
    %c0_112 = arith.constant 0 : index
    %279 = vector.load %arg4[%278, %c0_111, %c0_112] : memref<16x8x128xf32, #tpu.memory_space<vmem>>, vector<1x8x128xf32>
    %280 = vector.shape_cast %279 : vector<1x8x128xf32> to vector<8x128xf32>
    %281 = vector.shape_cast %276 : vector<8x128xf32> to vector<1x8x128xf32>
    tpu.vector_store %arg4[%278, %c0_111, %c0_112], %281 {strides = array<i32>} : memref<16x8x128xf32, #tpu.memory_space<vmem>>, vector<1x8x128xf32>,
    %c7_i32 = arith.constant 7 : i32
    %c0_113 = arith.constant 0 : index
    %c0_114 = arith.constant 0 : index
    %282 = vector.load %arg5[%c0_113, %c0_114] : memref<8x128xf32, #tpu.memory_space<vmem>>, vector<8x128xf32>
    %c0_115 = arith.constant 0 : index
    %c0_116 = arith.constant 0 : index
    %283 = vector.load %arg2[%c0_115, %c0_116] : memref<128x384xf32, #tpu.memory_space<vmem>>, vector<128x384xf32>
    %cst_117 = arith.constant dense<0.000000e+00> : vector<8x384xf32>
    %284 = tpu.matmul %282, %283, %cst_117 {dimension_numbers = #tpu.dot_dimension_numbers<[1], [0], [0], [1], [0, 0, 1, 1], [], []>} : vector<8x128xf32>, vector<128x384xf32>, vector<8x384xf32> -> vector<8x384xf32>
    %c0_118 = arith.constant 0 : index
    %c0_119 = arith.constant 0 : index
    %285 = vector.load %arg3[%c0_118, %c0_119] : memref<1x384xf32, #tpu.memory_space<vmem>>, vector<1x384xf32>
    %286 = vector.broadcast %285 : vector<1x384xf32> to vector<8x384xf32>
    %287 = arith.addf %284, %286 : vector<8x384xf32>
    %288 = arith.index_cast %c7_i32 : i32 to index
    %c0_120 = arith.constant 0 : index
    %c0_121 = arith.constant 0 : index
    %289 = vector.load %arg1[%288, %c0_120, %c0_121] : memref<16x8x384xf32, #tpu.memory_space<vmem>>, vector<1x8x384xf32>
    %290 = vector.shape_cast %289 : vector<1x8x384xf32> to vector<8x384xf32>
    %291 = vector.extract_strided_slice %290 {offsets = [0, 0], sizes = [8, 128], strides = [1, 1]} : vector<8x384xf32> to vector<8x128xf32>
    %292 = vector.extract_strided_slice %287 {offsets = [0, 0], sizes = [8, 128], strides = [1, 1]} : vector<8x384xf32> to vector<8x128xf32>
    %293 = arith.addf %291, %292 : vector<8x128xf32>
    %294 = arith.negf %293 : vector<8x128xf32>
    %295 = math.exp %294 : vector<8x128xf32>
    %cst_122 = arith.constant 1.000000e+00 : f32
    %296 = vector.broadcast %cst_122 : f32 to vector<8x128xf32>
    %297 = arith.addf %296, %295 : vector<8x128xf32>
    %298 = arith.divf %296, %297 : vector<8x128xf32>
    %299 = vector.extract_strided_slice %290 {offsets = [0, 128], sizes = [8, 128], strides = [1, 1]} : vector<8x384xf32> to vector<8x128xf32>
    %300 = vector.extract_strided_slice %287 {offsets = [0, 128], sizes = [8, 128], strides = [1, 1]} : vector<8x384xf32> to vector<8x128xf32>
    %301 = arith.addf %299, %300 : vector<8x128xf32>
    %302 = arith.negf %301 : vector<8x128xf32>
    %303 = math.exp %302 : vector<8x128xf32>
    %cst_123 = arith.constant 1.000000e+00 : f32
    %304 = vector.broadcast %cst_123 : f32 to vector<8x128xf32>
    %305 = arith.addf %304, %303 : vector<8x128xf32>
    %306 = arith.divf %304, %305 : vector<8x128xf32>
    %307 = vector.extract_strided_slice %290 {offsets = [0, 256], sizes = [8, 128], strides = [1, 1]} : vector<8x384xf32> to vector<8x128xf32>
    %308 = vector.extract_strided_slice %287 {offsets = [0, 256], sizes = [8, 128], strides = [1, 1]} : vector<8x384xf32> to vector<8x128xf32>
    %309 = arith.mulf %298, %308 : vector<8x128xf32>
    %310 = arith.addf %307, %309 : vector<8x128xf32>
    %311 = math.tanh %310 : vector<8x128xf32>
    %cst_124 = arith.constant 1.000000e+00 : f32
    %312 = vector.broadcast %cst_124 : f32 to vector<8x128xf32>
    %313 = arith.subf %312, %306 : vector<8x128xf32>
    %314 = arith.mulf %313, %311 : vector<8x128xf32>
    %315 = arith.mulf %306, %282 : vector<8x128xf32>
    %316 = arith.addf %314, %315 : vector<8x128xf32>
    %c0_125 = arith.constant 0 : index
    %c0_126 = arith.constant 0 : index
    %317 = vector.load %arg5[%c0_125, %c0_126] : memref<8x128xf32, #tpu.memory_space<vmem>>, vector<8x128xf32>
    tpu.vector_store %arg5[%c0_125, %c0_126], %316 {strides = array<i32>} : memref<8x128xf32, #tpu.memory_space<vmem>>, vector<8x128xf32>,
    %318 = arith.index_cast %c7_i32 : i32 to index
    %c0_127 = arith.constant 0 : index
    %c0_128 = arith.constant 0 : index
    %319 = vector.load %arg4[%318, %c0_127, %c0_128] : memref<16x8x128xf32, #tpu.memory_space<vmem>>, vector<1x8x128xf32>
    %320 = vector.shape_cast %319 : vector<1x8x128xf32> to vector<8x128xf32>
    %321 = vector.shape_cast %316 : vector<8x128xf32> to vector<1x8x128xf32>
    tpu.vector_store %arg4[%318, %c0_127, %c0_128], %321 {strides = array<i32>} : memref<16x8x128xf32, #tpu.memory_space<vmem>>, vector<1x8x128xf32>,
    %c8_i32 = arith.constant 8 : i32
    %c0_129 = arith.constant 0 : index
    %c0_130 = arith.constant 0 : index
    %322 = vector.load %arg5[%c0_129, %c0_130] : memref<8x128xf32, #tpu.memory_space<vmem>>, vector<8x128xf32>
    %c0_131 = arith.constant 0 : index
    %c0_132 = arith.constant 0 : index
    %323 = vector.load %arg2[%c0_131, %c0_132] : memref<128x384xf32, #tpu.memory_space<vmem>>, vector<128x384xf32>
    %cst_133 = arith.constant dense<0.000000e+00> : vector<8x384xf32>
    %324 = tpu.matmul %322, %323, %cst_133 {dimension_numbers = #tpu.dot_dimension_numbers<[1], [0], [0], [1], [0, 0, 1, 1], [], []>} : vector<8x128xf32>, vector<128x384xf32>, vector<8x384xf32> -> vector<8x384xf32>
    %c0_134 = arith.constant 0 : index
    %c0_135 = arith.constant 0 : index
    %325 = vector.load %arg3[%c0_134, %c0_135] : memref<1x384xf32, #tpu.memory_space<vmem>>, vector<1x384xf32>
    %326 = vector.broadcast %325 : vector<1x384xf32> to vector<8x384xf32>
    %327 = arith.addf %324, %326 : vector<8x384xf32>
    %328 = arith.index_cast %c8_i32 : i32 to index
    %c0_136 = arith.constant 0 : index
    %c0_137 = arith.constant 0 : index
    %329 = vector.load %arg1[%328, %c0_136, %c0_137] : memref<16x8x384xf32, #tpu.memory_space<vmem>>, vector<1x8x384xf32>
    %330 = vector.shape_cast %329 : vector<1x8x384xf32> to vector<8x384xf32>
    %331 = vector.extract_strided_slice %330 {offsets = [0, 0], sizes = [8, 128], strides = [1, 1]} : vector<8x384xf32> to vector<8x128xf32>
    %332 = vector.extract_strided_slice %327 {offsets = [0, 0], sizes = [8, 128], strides = [1, 1]} : vector<8x384xf32> to vector<8x128xf32>
    %333 = arith.addf %331, %332 : vector<8x128xf32>
    %334 = arith.negf %333 : vector<8x128xf32>
    %335 = math.exp %334 : vector<8x128xf32>
    %cst_138 = arith.constant 1.000000e+00 : f32
    %336 = vector.broadcast %cst_138 : f32 to vector<8x128xf32>
    %337 = arith.addf %336, %335 : vector<8x128xf32>
    %338 = arith.divf %336, %337 : vector<8x128xf32>
    %339 = vector.extract_strided_slice %330 {offsets = [0, 128], sizes = [8, 128], strides = [1, 1]} : vector<8x384xf32> to vector<8x128xf32>
    %340 = vector.extract_strided_slice %327 {offsets = [0, 128], sizes = [8, 128], strides = [1, 1]} : vector<8x384xf32> to vector<8x128xf32>
    %341 = arith.addf %339, %340 : vector<8x128xf32>
    %342 = arith.negf %341 : vector<8x128xf32>
    %343 = math.exp %342 : vector<8x128xf32>
    %cst_139 = arith.constant 1.000000e+00 : f32
    %344 = vector.broadcast %cst_139 : f32 to vector<8x128xf32>
    %345 = arith.addf %344, %343 : vector<8x128xf32>
    %346 = arith.divf %344, %345 : vector<8x128xf32>
    %347 = vector.extract_strided_slice %330 {offsets = [0, 256], sizes = [8, 128], strides = [1, 1]} : vector<8x384xf32> to vector<8x128xf32>
    %348 = vector.extract_strided_slice %327 {offsets = [0, 256], sizes = [8, 128], strides = [1, 1]} : vector<8x384xf32> to vector<8x128xf32>
    %349 = arith.mulf %338, %348 : vector<8x128xf32>
    %350 = arith.addf %347, %349 : vector<8x128xf32>
    %351 = math.tanh %350 : vector<8x128xf32>
    %cst_140 = arith.constant 1.000000e+00 : f32
    %352 = vector.broadcast %cst_140 : f32 to vector<8x128xf32>
    %353 = arith.subf %352, %346 : vector<8x128xf32>
    %354 = arith.mulf %353, %351 : vector<8x128xf32>
    %355 = arith.mulf %346, %322 : vector<8x128xf32>
    %356 = arith.addf %354, %355 : vector<8x128xf32>
    %c0_141 = arith.constant 0 : index
    %c0_142 = arith.constant 0 : index
    %357 = vector.load %arg5[%c0_141, %c0_142] : memref<8x128xf32, #tpu.memory_space<vmem>>, vector<8x128xf32>
    tpu.vector_store %arg5[%c0_141, %c0_142], %356 {strides = array<i32>} : memref<8x128xf32, #tpu.memory_space<vmem>>, vector<8x128xf32>,
    %358 = arith.index_cast %c8_i32 : i32 to index
    %c0_143 = arith.constant 0 : index
    %c0_144 = arith.constant 0 : index
    %359 = vector.load %arg4[%358, %c0_143, %c0_144] : memref<16x8x128xf32, #tpu.memory_space<vmem>>, vector<1x8x128xf32>
    %360 = vector.shape_cast %359 : vector<1x8x128xf32> to vector<8x128xf32>
    %361 = vector.shape_cast %356 : vector<8x128xf32> to vector<1x8x128xf32>
    tpu.vector_store %arg4[%358, %c0_143, %c0_144], %361 {strides = array<i32>} : memref<16x8x128xf32, #tpu.memory_space<vmem>>, vector<1x8x128xf32>,
    %c9_i32 = arith.constant 9 : i32
    %c0_145 = arith.constant 0 : index
    %c0_146 = arith.constant 0 : index
    %362 = vector.load %arg5[%c0_145, %c0_146] : memref<8x128xf32, #tpu.memory_space<vmem>>, vector<8x128xf32>
    %c0_147 = arith.constant 0 : index
    %c0_148 = arith.constant 0 : index
    %363 = vector.load %arg2[%c0_147, %c0_148] : memref<128x384xf32, #tpu.memory_space<vmem>>, vector<128x384xf32>
    %cst_149 = arith.constant dense<0.000000e+00> : vector<8x384xf32>
    %364 = tpu.matmul %362, %363, %cst_149 {dimension_numbers = #tpu.dot_dimension_numbers<[1], [0], [0], [1], [0, 0, 1, 1], [], []>} : vector<8x128xf32>, vector<128x384xf32>, vector<8x384xf32> -> vector<8x384xf32>
    %c0_150 = arith.constant 0 : index
    %c0_151 = arith.constant 0 : index
    %365 = vector.load %arg3[%c0_150, %c0_151] : memref<1x384xf32, #tpu.memory_space<vmem>>, vector<1x384xf32>
    %366 = vector.broadcast %365 : vector<1x384xf32> to vector<8x384xf32>
    %367 = arith.addf %364, %366 : vector<8x384xf32>
    %368 = arith.index_cast %c9_i32 : i32 to index
    %c0_152 = arith.constant 0 : index
    %c0_153 = arith.constant 0 : index
    %369 = vector.load %arg1[%368, %c0_152, %c0_153] : memref<16x8x384xf32, #tpu.memory_space<vmem>>, vector<1x8x384xf32>
    %370 = vector.shape_cast %369 : vector<1x8x384xf32> to vector<8x384xf32>
    %371 = vector.extract_strided_slice %370 {offsets = [0, 0], sizes = [8, 128], strides = [1, 1]} : vector<8x384xf32> to vector<8x128xf32>
    %372 = vector.extract_strided_slice %367 {offsets = [0, 0], sizes = [8, 128], strides = [1, 1]} : vector<8x384xf32> to vector<8x128xf32>
    %373 = arith.addf %371, %372 : vector<8x128xf32>
    %374 = arith.negf %373 : vector<8x128xf32>
    %375 = math.exp %374 : vector<8x128xf32>
    %cst_154 = arith.constant 1.000000e+00 : f32
    %376 = vector.broadcast %cst_154 : f32 to vector<8x128xf32>
    %377 = arith.addf %376, %375 : vector<8x128xf32>
    %378 = arith.divf %376, %377 : vector<8x128xf32>
    %379 = vector.extract_strided_slice %370 {offsets = [0, 128], sizes = [8, 128], strides = [1, 1]} : vector<8x384xf32> to vector<8x128xf32>
    %380 = vector.extract_strided_slice %367 {offsets = [0, 128], sizes = [8, 128], strides = [1, 1]} : vector<8x384xf32> to vector<8x128xf32>
    %381 = arith.addf %379, %380 : vector<8x128xf32>
    %382 = arith.negf %381 : vector<8x128xf32>
    %383 = math.exp %382 : vector<8x128xf32>
    %cst_155 = arith.constant 1.000000e+00 : f32
    %384 = vector.broadcast %cst_155 : f32 to vector<8x128xf32>
    %385 = arith.addf %384, %383 : vector<8x128xf32>
    %386 = arith.divf %384, %385 : vector<8x128xf32>
    %387 = vector.extract_strided_slice %370 {offsets = [0, 256], sizes = [8, 128], strides = [1, 1]} : vector<8x384xf32> to vector<8x128xf32>
    %388 = vector.extract_strided_slice %367 {offsets = [0, 256], sizes = [8, 128], strides = [1, 1]} : vector<8x384xf32> to vector<8x128xf32>
    %389 = arith.mulf %378, %388 : vector<8x128xf32>
    %390 = arith.addf %387, %389 : vector<8x128xf32>
    %391 = math.tanh %390 : vector<8x128xf32>
    %cst_156 = arith.constant 1.000000e+00 : f32
    %392 = vector.broadcast %cst_156 : f32 to vector<8x128xf32>
    %393 = arith.subf %392, %386 : vector<8x128xf32>
    %394 = arith.mulf %393, %391 : vector<8x128xf32>
    %395 = arith.mulf %386, %362 : vector<8x128xf32>
    %396 = arith.addf %394, %395 : vector<8x128xf32>
    %c0_157 = arith.constant 0 : index
    %c0_158 = arith.constant 0 : index
    %397 = vector.load %arg5[%c0_157, %c0_158] : memref<8x128xf32, #tpu.memory_space<vmem>>, vector<8x128xf32>
    tpu.vector_store %arg5[%c0_157, %c0_158], %396 {strides = array<i32>} : memref<8x128xf32, #tpu.memory_space<vmem>>, vector<8x128xf32>,
    %398 = arith.index_cast %c9_i32 : i32 to index
    %c0_159 = arith.constant 0 : index
    %c0_160 = arith.constant 0 : index
    %399 = vector.load %arg4[%398, %c0_159, %c0_160] : memref<16x8x128xf32, #tpu.memory_space<vmem>>, vector<1x8x128xf32>
    %400 = vector.shape_cast %399 : vector<1x8x128xf32> to vector<8x128xf32>
    %401 = vector.shape_cast %396 : vector<8x128xf32> to vector<1x8x128xf32>
    tpu.vector_store %arg4[%398, %c0_159, %c0_160], %401 {strides = array<i32>} : memref<16x8x128xf32, #tpu.memory_space<vmem>>, vector<1x8x128xf32>,
    %c10_i32 = arith.constant 10 : i32
    %c0_161 = arith.constant 0 : index
    %c0_162 = arith.constant 0 : index
    %402 = vector.load %arg5[%c0_161, %c0_162] : memref<8x128xf32, #tpu.memory_space<vmem>>, vector<8x128xf32>
    %c0_163 = arith.constant 0 : index
    %c0_164 = arith.constant 0 : index
    %403 = vector.load %arg2[%c0_163, %c0_164] : memref<128x384xf32, #tpu.memory_space<vmem>>, vector<128x384xf32>
    %cst_165 = arith.constant dense<0.000000e+00> : vector<8x384xf32>
    %404 = tpu.matmul %402, %403, %cst_165 {dimension_numbers = #tpu.dot_dimension_numbers<[1], [0], [0], [1], [0, 0, 1, 1], [], []>} : vector<8x128xf32>, vector<128x384xf32>, vector<8x384xf32> -> vector<8x384xf32>
    %c0_166 = arith.constant 0 : index
    %c0_167 = arith.constant 0 : index
    %405 = vector.load %arg3[%c0_166, %c0_167] : memref<1x384xf32, #tpu.memory_space<vmem>>, vector<1x384xf32>
    %406 = vector.broadcast %405 : vector<1x384xf32> to vector<8x384xf32>
    %407 = arith.addf %404, %406 : vector<8x384xf32>
    %408 = arith.index_cast %c10_i32 : i32 to index
    %c0_168 = arith.constant 0 : index
    %c0_169 = arith.constant 0 : index
    %409 = vector.load %arg1[%408, %c0_168, %c0_169] : memref<16x8x384xf32, #tpu.memory_space<vmem>>, vector<1x8x384xf32>
    %410 = vector.shape_cast %409 : vector<1x8x384xf32> to vector<8x384xf32>
    %411 = vector.extract_strided_slice %410 {offsets = [0, 0], sizes = [8, 128], strides = [1, 1]} : vector<8x384xf32> to vector<8x128xf32>
    %412 = vector.extract_strided_slice %407 {offsets = [0, 0], sizes = [8, 128], strides = [1, 1]} : vector<8x384xf32> to vector<8x128xf32>
    %413 = arith.addf %411, %412 : vector<8x128xf32>
    %414 = arith.negf %413 : vector<8x128xf32>
    %415 = math.exp %414 : vector<8x128xf32>
    %cst_170 = arith.constant 1.000000e+00 : f32
    %416 = vector.broadcast %cst_170 : f32 to vector<8x128xf32>
    %417 = arith.addf %416, %415 : vector<8x128xf32>
    %418 = arith.divf %416, %417 : vector<8x128xf32>
    %419 = vector.extract_strided_slice %410 {offsets = [0, 128], sizes = [8, 128], strides = [1, 1]} : vector<8x384xf32> to vector<8x128xf32>
    %420 = vector.extract_strided_slice %407 {offsets = [0, 128], sizes = [8, 128], strides = [1, 1]} : vector<8x384xf32> to vector<8x128xf32>
    %421 = arith.addf %419, %420 : vector<8x128xf32>
    %422 = arith.negf %421 : vector<8x128xf32>
    %423 = math.exp %422 : vector<8x128xf32>
    %cst_171 = arith.constant 1.000000e+00 : f32
    %424 = vector.broadcast %cst_171 : f32 to vector<8x128xf32>
    %425 = arith.addf %424, %423 : vector<8x128xf32>
    %426 = arith.divf %424, %425 : vector<8x128xf32>
    %427 = vector.extract_strided_slice %410 {offsets = [0, 256], sizes = [8, 128], strides = [1, 1]} : vector<8x384xf32> to vector<8x128xf32>
    %428 = vector.extract_strided_slice %407 {offsets = [0, 256], sizes = [8, 128], strides = [1, 1]} : vector<8x384xf32> to vector<8x128xf32>
    %429 = arith.mulf %418, %428 : vector<8x128xf32>
    %430 = arith.addf %427, %429 : vector<8x128xf32>
    %431 = math.tanh %430 : vector<8x128xf32>
    %cst_172 = arith.constant 1.000000e+00 : f32
    %432 = vector.broadcast %cst_172 : f32 to vector<8x128xf32>
    %433 = arith.subf %432, %426 : vector<8x128xf32>
    %434 = arith.mulf %433, %431 : vector<8x128xf32>
    %435 = arith.mulf %426, %402 : vector<8x128xf32>
    %436 = arith.addf %434, %435 : vector<8x128xf32>
    %c0_173 = arith.constant 0 : index
    %c0_174 = arith.constant 0 : index
    %437 = vector.load %arg5[%c0_173, %c0_174] : memref<8x128xf32, #tpu.memory_space<vmem>>, vector<8x128xf32>
    tpu.vector_store %arg5[%c0_173, %c0_174], %436 {strides = array<i32>} : memref<8x128xf32, #tpu.memory_space<vmem>>, vector<8x128xf32>,
    %438 = arith.index_cast %c10_i32 : i32 to index
    %c0_175 = arith.constant 0 : index
    %c0_176 = arith.constant 0 : index
    %439 = vector.load %arg4[%438, %c0_175, %c0_176] : memref<16x8x128xf32, #tpu.memory_space<vmem>>, vector<1x8x128xf32>
    %440 = vector.shape_cast %439 : vector<1x8x128xf32> to vector<8x128xf32>
    %441 = vector.shape_cast %436 : vector<8x128xf32> to vector<1x8x128xf32>
    tpu.vector_store %arg4[%438, %c0_175, %c0_176], %441 {strides = array<i32>} : memref<16x8x128xf32, #tpu.memory_space<vmem>>, vector<1x8x128xf32>,
    %c11_i32 = arith.constant 11 : i32
    %c0_177 = arith.constant 0 : index
    %c0_178 = arith.constant 0 : index
    %442 = vector.load %arg5[%c0_177, %c0_178] : memref<8x128xf32, #tpu.memory_space<vmem>>, vector<8x128xf32>
    %c0_179 = arith.constant 0 : index
    %c0_180 = arith.constant 0 : index
    %443 = vector.load %arg2[%c0_179, %c0_180] : memref<128x384xf32, #tpu.memory_space<vmem>>, vector<128x384xf32>
    %cst_181 = arith.constant dense<0.000000e+00> : vector<8x384xf32>
    %444 = tpu.matmul %442, %443, %cst_181 {dimension_numbers = #tpu.dot_dimension_numbers<[1], [0], [0], [1], [0, 0, 1, 1], [], []>} : vector<8x128xf32>, vector<128x384xf32>, vector<8x384xf32> -> vector<8x384xf32>
    %c0_182 = arith.constant 0 : index
    %c0_183 = arith.constant 0 : index
    %445 = vector.load %arg3[%c0_182, %c0_183] : memref<1x384xf32, #tpu.memory_space<vmem>>, vector<1x384xf32>
    %446 = vector.broadcast %445 : vector<1x384xf32> to vector<8x384xf32>
    %447 = arith.addf %444, %446 : vector<8x384xf32>
    %448 = arith.index_cast %c11_i32 : i32 to index
    %c0_184 = arith.constant 0 : index
    %c0_185 = arith.constant 0 : index
    %449 = vector.load %arg1[%448, %c0_184, %c0_185] : memref<16x8x384xf32, #tpu.memory_space<vmem>>, vector<1x8x384xf32>
    %450 = vector.shape_cast %449 : vector<1x8x384xf32> to vector<8x384xf32>
    %451 = vector.extract_strided_slice %450 {offsets = [0, 0], sizes = [8, 128], strides = [1, 1]} : vector<8x384xf32> to vector<8x128xf32>
    %452 = vector.extract_strided_slice %447 {offsets = [0, 0], sizes = [8, 128], strides = [1, 1]} : vector<8x384xf32> to vector<8x128xf32>
    %453 = arith.addf %451, %452 : vector<8x128xf32>
    %454 = arith.negf %453 : vector<8x128xf32>
    %455 = math.exp %454 : vector<8x128xf32>
    %cst_186 = arith.constant 1.000000e+00 : f32
    %456 = vector.broadcast %cst_186 : f32 to vector<8x128xf32>
    %457 = arith.addf %456, %455 : vector<8x128xf32>
    %458 = arith.divf %456, %457 : vector<8x128xf32>
    %459 = vector.extract_strided_slice %450 {offsets = [0, 128], sizes = [8, 128], strides = [1, 1]} : vector<8x384xf32> to vector<8x128xf32>
    %460 = vector.extract_strided_slice %447 {offsets = [0, 128], sizes = [8, 128], strides = [1, 1]} : vector<8x384xf32> to vector<8x128xf32>
    %461 = arith.addf %459, %460 : vector<8x128xf32>
    %462 = arith.negf %461 : vector<8x128xf32>
    %463 = math.exp %462 : vector<8x128xf32>
    %cst_187 = arith.constant 1.000000e+00 : f32
    %464 = vector.broadcast %cst_187 : f32 to vector<8x128xf32>
    %465 = arith.addf %464, %463 : vector<8x128xf32>
    %466 = arith.divf %464, %465 : vector<8x128xf32>
    %467 = vector.extract_strided_slice %450 {offsets = [0, 256], sizes = [8, 128], strides = [1, 1]} : vector<8x384xf32> to vector<8x128xf32>
    %468 = vector.extract_strided_slice %447 {offsets = [0, 256], sizes = [8, 128], strides = [1, 1]} : vector<8x384xf32> to vector<8x128xf32>
    %469 = arith.mulf %458, %468 : vector<8x128xf32>
    %470 = arith.addf %467, %469 : vector<8x128xf32>
    %471 = math.tanh %470 : vector<8x128xf32>
    %cst_188 = arith.constant 1.000000e+00 : f32
    %472 = vector.broadcast %cst_188 : f32 to vector<8x128xf32>
    %473 = arith.subf %472, %466 : vector<8x128xf32>
    %474 = arith.mulf %473, %471 : vector<8x128xf32>
    %475 = arith.mulf %466, %442 : vector<8x128xf32>
    %476 = arith.addf %474, %475 : vector<8x128xf32>
    %c0_189 = arith.constant 0 : index
    %c0_190 = arith.constant 0 : index
    %477 = vector.load %arg5[%c0_189, %c0_190] : memref<8x128xf32, #tpu.memory_space<vmem>>, vector<8x128xf32>
    tpu.vector_store %arg5[%c0_189, %c0_190], %476 {strides = array<i32>} : memref<8x128xf32, #tpu.memory_space<vmem>>, vector<8x128xf32>,
    %478 = arith.index_cast %c11_i32 : i32 to index
    %c0_191 = arith.constant 0 : index
    %c0_192 = arith.constant 0 : index
    %479 = vector.load %arg4[%478, %c0_191, %c0_192] : memref<16x8x128xf32, #tpu.memory_space<vmem>>, vector<1x8x128xf32>
    %480 = vector.shape_cast %479 : vector<1x8x128xf32> to vector<8x128xf32>
    %481 = vector.shape_cast %476 : vector<8x128xf32> to vector<1x8x128xf32>
    tpu.vector_store %arg4[%478, %c0_191, %c0_192], %481 {strides = array<i32>} : memref<16x8x128xf32, #tpu.memory_space<vmem>>, vector<1x8x128xf32>,
    %c12_i32 = arith.constant 12 : i32
    %c0_193 = arith.constant 0 : index
    %c0_194 = arith.constant 0 : index
    %482 = vector.load %arg5[%c0_193, %c0_194] : memref<8x128xf32, #tpu.memory_space<vmem>>, vector<8x128xf32>
    %c0_195 = arith.constant 0 : index
    %c0_196 = arith.constant 0 : index
    %483 = vector.load %arg2[%c0_195, %c0_196] : memref<128x384xf32, #tpu.memory_space<vmem>>, vector<128x384xf32>
    %cst_197 = arith.constant dense<0.000000e+00> : vector<8x384xf32>
    %484 = tpu.matmul %482, %483, %cst_197 {dimension_numbers = #tpu.dot_dimension_numbers<[1], [0], [0], [1], [0, 0, 1, 1], [], []>} : vector<8x128xf32>, vector<128x384xf32>, vector<8x384xf32> -> vector<8x384xf32>
    %c0_198 = arith.constant 0 : index
    %c0_199 = arith.constant 0 : index
    %485 = vector.load %arg3[%c0_198, %c0_199] : memref<1x384xf32, #tpu.memory_space<vmem>>, vector<1x384xf32>
    %486 = vector.broadcast %485 : vector<1x384xf32> to vector<8x384xf32>
    %487 = arith.addf %484, %486 : vector<8x384xf32>
    %488 = arith.index_cast %c12_i32 : i32 to index
    %c0_200 = arith.constant 0 : index
    %c0_201 = arith.constant 0 : index
    %489 = vector.load %arg1[%488, %c0_200, %c0_201] : memref<16x8x384xf32, #tpu.memory_space<vmem>>, vector<1x8x384xf32>
    %490 = vector.shape_cast %489 : vector<1x8x384xf32> to vector<8x384xf32>
    %491 = vector.extract_strided_slice %490 {offsets = [0, 0], sizes = [8, 128], strides = [1, 1]} : vector<8x384xf32> to vector<8x128xf32>
    %492 = vector.extract_strided_slice %487 {offsets = [0, 0], sizes = [8, 128], strides = [1, 1]} : vector<8x384xf32> to vector<8x128xf32>
    %493 = arith.addf %491, %492 : vector<8x128xf32>
    %494 = arith.negf %493 : vector<8x128xf32>
    %495 = math.exp %494 : vector<8x128xf32>
    %cst_202 = arith.constant 1.000000e+00 : f32
    %496 = vector.broadcast %cst_202 : f32 to vector<8x128xf32>
    %497 = arith.addf %496, %495 : vector<8x128xf32>
    %498 = arith.divf %496, %497 : vector<8x128xf32>
    %499 = vector.extract_strided_slice %490 {offsets = [0, 128], sizes = [8, 128], strides = [1, 1]} : vector<8x384xf32> to vector<8x128xf32>
    %500 = vector.extract_strided_slice %487 {offsets = [0, 128], sizes = [8, 128], strides = [1, 1]} : vector<8x384xf32> to vector<8x128xf32>
    %501 = arith.addf %499, %500 : vector<8x128xf32>
    %502 = arith.negf %501 : vector<8x128xf32>
    %503 = math.exp %502 : vector<8x128xf32>
    %cst_203 = arith.constant 1.000000e+00 : f32
    %504 = vector.broadcast %cst_203 : f32 to vector<8x128xf32>
    %505 = arith.addf %504, %503 : vector<8x128xf32>
    %506 = arith.divf %504, %505 : vector<8x128xf32>
    %507 = vector.extract_strided_slice %490 {offsets = [0, 256], sizes = [8, 128], strides = [1, 1]} : vector<8x384xf32> to vector<8x128xf32>
    %508 = vector.extract_strided_slice %487 {offsets = [0, 256], sizes = [8, 128], strides = [1, 1]} : vector<8x384xf32> to vector<8x128xf32>
    %509 = arith.mulf %498, %508 : vector<8x128xf32>
    %510 = arith.addf %507, %509 : vector<8x128xf32>
    %511 = math.tanh %510 : vector<8x128xf32>
    %cst_204 = arith.constant 1.000000e+00 : f32
    %512 = vector.broadcast %cst_204 : f32 to vector<8x128xf32>
    %513 = arith.subf %512, %506 : vector<8x128xf32>
    %514 = arith.mulf %513, %511 : vector<8x128xf32>
    %515 = arith.mulf %506, %482 : vector<8x128xf32>
    %516 = arith.addf %514, %515 : vector<8x128xf32>
    %c0_205 = arith.constant 0 : index
    %c0_206 = arith.constant 0 : index
    %517 = vector.load %arg5[%c0_205, %c0_206] : memref<8x128xf32, #tpu.memory_space<vmem>>, vector<8x128xf32>
    tpu.vector_store %arg5[%c0_205, %c0_206], %516 {strides = array<i32>} : memref<8x128xf32, #tpu.memory_space<vmem>>, vector<8x128xf32>,
    %518 = arith.index_cast %c12_i32 : i32 to index
    %c0_207 = arith.constant 0 : index
    %c0_208 = arith.constant 0 : index
    %519 = vector.load %arg4[%518, %c0_207, %c0_208] : memref<16x8x128xf32, #tpu.memory_space<vmem>>, vector<1x8x128xf32>
    %520 = vector.shape_cast %519 : vector<1x8x128xf32> to vector<8x128xf32>
    %521 = vector.shape_cast %516 : vector<8x128xf32> to vector<1x8x128xf32>
    tpu.vector_store %arg4[%518, %c0_207, %c0_208], %521 {strides = array<i32>} : memref<16x8x128xf32, #tpu.memory_space<vmem>>, vector<1x8x128xf32>,
    %c13_i32 = arith.constant 13 : i32
    %c0_209 = arith.constant 0 : index
    %c0_210 = arith.constant 0 : index
    %522 = vector.load %arg5[%c0_209, %c0_210] : memref<8x128xf32, #tpu.memory_space<vmem>>, vector<8x128xf32>
    %c0_211 = arith.constant 0 : index
    %c0_212 = arith.constant 0 : index
    %523 = vector.load %arg2[%c0_211, %c0_212] : memref<128x384xf32, #tpu.memory_space<vmem>>, vector<128x384xf32>
    %cst_213 = arith.constant dense<0.000000e+00> : vector<8x384xf32>
    %524 = tpu.matmul %522, %523, %cst_213 {dimension_numbers = #tpu.dot_dimension_numbers<[1], [0], [0], [1], [0, 0, 1, 1], [], []>} : vector<8x128xf32>, vector<128x384xf32>, vector<8x384xf32> -> vector<8x384xf32>
    %c0_214 = arith.constant 0 : index
    %c0_215 = arith.constant 0 : index
    %525 = vector.load %arg3[%c0_214, %c0_215] : memref<1x384xf32, #tpu.memory_space<vmem>>, vector<1x384xf32>
    %526 = vector.broadcast %525 : vector<1x384xf32> to vector<8x384xf32>
    %527 = arith.addf %524, %526 : vector<8x384xf32>
    %528 = arith.index_cast %c13_i32 : i32 to index
    %c0_216 = arith.constant 0 : index
    %c0_217 = arith.constant 0 : index
    %529 = vector.load %arg1[%528, %c0_216, %c0_217] : memref<16x8x384xf32, #tpu.memory_space<vmem>>, vector<1x8x384xf32>
    %530 = vector.shape_cast %529 : vector<1x8x384xf32> to vector<8x384xf32>
    %531 = vector.extract_strided_slice %530 {offsets = [0, 0], sizes = [8, 128], strides = [1, 1]} : vector<8x384xf32> to vector<8x128xf32>
    %532 = vector.extract_strided_slice %527 {offsets = [0, 0], sizes = [8, 128], strides = [1, 1]} : vector<8x384xf32> to vector<8x128xf32>
    %533 = arith.addf %531, %532 : vector<8x128xf32>
    %534 = arith.negf %533 : vector<8x128xf32>
    %535 = math.exp %534 : vector<8x128xf32>
    %cst_218 = arith.constant 1.000000e+00 : f32
    %536 = vector.broadcast %cst_218 : f32 to vector<8x128xf32>
    %537 = arith.addf %536, %535 : vector<8x128xf32>
    %538 = arith.divf %536, %537 : vector<8x128xf32>
    %539 = vector.extract_strided_slice %530 {offsets = [0, 128], sizes = [8, 128], strides = [1, 1]} : vector<8x384xf32> to vector<8x128xf32>
    %540 = vector.extract_strided_slice %527 {offsets = [0, 128], sizes = [8, 128], strides = [1, 1]} : vector<8x384xf32> to vector<8x128xf32>
    %541 = arith.addf %539, %540 : vector<8x128xf32>
    %542 = arith.negf %541 : vector<8x128xf32>
    %543 = math.exp %542 : vector<8x128xf32>
    %cst_219 = arith.constant 1.000000e+00 : f32
    %544 = vector.broadcast %cst_219 : f32 to vector<8x128xf32>
    %545 = arith.addf %544, %543 : vector<8x128xf32>
    %546 = arith.divf %544, %545 : vector<8x128xf32>
    %547 = vector.extract_strided_slice %530 {offsets = [0, 256], sizes = [8, 128], strides = [1, 1]} : vector<8x384xf32> to vector<8x128xf32>
    %548 = vector.extract_strided_slice %527 {offsets = [0, 256], sizes = [8, 128], strides = [1, 1]} : vector<8x384xf32> to vector<8x128xf32>
    %549 = arith.mulf %538, %548 : vector<8x128xf32>
    %550 = arith.addf %547, %549 : vector<8x128xf32>
    %551 = math.tanh %550 : vector<8x128xf32>
    %cst_220 = arith.constant 1.000000e+00 : f32
    %552 = vector.broadcast %cst_220 : f32 to vector<8x128xf32>
    %553 = arith.subf %552, %546 : vector<8x128xf32>
    %554 = arith.mulf %553, %551 : vector<8x128xf32>
    %555 = arith.mulf %546, %522 : vector<8x128xf32>
    %556 = arith.addf %554, %555 : vector<8x128xf32>
    %c0_221 = arith.constant 0 : index
    %c0_222 = arith.constant 0 : index
    %557 = vector.load %arg5[%c0_221, %c0_222] : memref<8x128xf32, #tpu.memory_space<vmem>>, vector<8x128xf32>
    tpu.vector_store %arg5[%c0_221, %c0_222], %556 {strides = array<i32>} : memref<8x128xf32, #tpu.memory_space<vmem>>, vector<8x128xf32>,
    %558 = arith.index_cast %c13_i32 : i32 to index
    %c0_223 = arith.constant 0 : index
    %c0_224 = arith.constant 0 : index
    %559 = vector.load %arg4[%558, %c0_223, %c0_224] : memref<16x8x128xf32, #tpu.memory_space<vmem>>, vector<1x8x128xf32>
    %560 = vector.shape_cast %559 : vector<1x8x128xf32> to vector<8x128xf32>
    %561 = vector.shape_cast %556 : vector<8x128xf32> to vector<1x8x128xf32>
    tpu.vector_store %arg4[%558, %c0_223, %c0_224], %561 {strides = array<i32>} : memref<16x8x128xf32, #tpu.memory_space<vmem>>, vector<1x8x128xf32>,
    %c14_i32 = arith.constant 14 : i32
    %c0_225 = arith.constant 0 : index
    %c0_226 = arith.constant 0 : index
    %562 = vector.load %arg5[%c0_225, %c0_226] : memref<8x128xf32, #tpu.memory_space<vmem>>, vector<8x128xf32>
    %c0_227 = arith.constant 0 : index
    %c0_228 = arith.constant 0 : index
    %563 = vector.load %arg2[%c0_227, %c0_228] : memref<128x384xf32, #tpu.memory_space<vmem>>, vector<128x384xf32>
    %cst_229 = arith.constant dense<0.000000e+00> : vector<8x384xf32>
    %564 = tpu.matmul %562, %563, %cst_229 {dimension_numbers = #tpu.dot_dimension_numbers<[1], [0], [0], [1], [0, 0, 1, 1], [], []>} : vector<8x128xf32>, vector<128x384xf32>, vector<8x384xf32> -> vector<8x384xf32>
    %c0_230 = arith.constant 0 : index
    %c0_231 = arith.constant 0 : index
    %565 = vector.load %arg3[%c0_230, %c0_231] : memref<1x384xf32, #tpu.memory_space<vmem>>, vector<1x384xf32>
    %566 = vector.broadcast %565 : vector<1x384xf32> to vector<8x384xf32>
    %567 = arith.addf %564, %566 : vector<8x384xf32>
    %568 = arith.index_cast %c14_i32 : i32 to index
    %c0_232 = arith.constant 0 : index
    %c0_233 = arith.constant 0 : index
    %569 = vector.load %arg1[%568, %c0_232, %c0_233] : memref<16x8x384xf32, #tpu.memory_space<vmem>>, vector<1x8x384xf32>
    %570 = vector.shape_cast %569 : vector<1x8x384xf32> to vector<8x384xf32>
    %571 = vector.extract_strided_slice %570 {offsets = [0, 0], sizes = [8, 128], strides = [1, 1]} : vector<8x384xf32> to vector<8x128xf32>
    %572 = vector.extract_strided_slice %567 {offsets = [0, 0], sizes = [8, 128], strides = [1, 1]} : vector<8x384xf32> to vector<8x128xf32>
    %573 = arith.addf %571, %572 : vector<8x128xf32>
    %574 = arith.negf %573 : vector<8x128xf32>
    %575 = math.exp %574 : vector<8x128xf32>
    %cst_234 = arith.constant 1.000000e+00 : f32
    %576 = vector.broadcast %cst_234 : f32 to vector<8x128xf32>
    %577 = arith.addf %576, %575 : vector<8x128xf32>
    %578 = arith.divf %576, %577 : vector<8x128xf32>
    %579 = vector.extract_strided_slice %570 {offsets = [0, 128], sizes = [8, 128], strides = [1, 1]} : vector<8x384xf32> to vector<8x128xf32>
    %580 = vector.extract_strided_slice %567 {offsets = [0, 128], sizes = [8, 128], strides = [1, 1]} : vector<8x384xf32> to vector<8x128xf32>
    %581 = arith.addf %579, %580 : vector<8x128xf32>
    %582 = arith.negf %581 : vector<8x128xf32>
    %583 = math.exp %582 : vector<8x128xf32>
    %cst_235 = arith.constant 1.000000e+00 : f32
    %584 = vector.broadcast %cst_235 : f32 to vector<8x128xf32>
    %585 = arith.addf %584, %583 : vector<8x128xf32>
    %586 = arith.divf %584, %585 : vector<8x128xf32>
    %587 = vector.extract_strided_slice %570 {offsets = [0, 256], sizes = [8, 128], strides = [1, 1]} : vector<8x384xf32> to vector<8x128xf32>
    %588 = vector.extract_strided_slice %567 {offsets = [0, 256], sizes = [8, 128], strides = [1, 1]} : vector<8x384xf32> to vector<8x128xf32>
    %589 = arith.mulf %578, %588 : vector<8x128xf32>
    %590 = arith.addf %587, %589 : vector<8x128xf32>
    %591 = math.tanh %590 : vector<8x128xf32>
    %cst_236 = arith.constant 1.000000e+00 : f32
    %592 = vector.broadcast %cst_236 : f32 to vector<8x128xf32>
    %593 = arith.subf %592, %586 : vector<8x128xf32>
    %594 = arith.mulf %593, %591 : vector<8x128xf32>
    %595 = arith.mulf %586, %562 : vector<8x128xf32>
    %596 = arith.addf %594, %595 : vector<8x128xf32>
    %c0_237 = arith.constant 0 : index
    %c0_238 = arith.constant 0 : index
    %597 = vector.load %arg5[%c0_237, %c0_238] : memref<8x128xf32, #tpu.memory_space<vmem>>, vector<8x128xf32>
    tpu.vector_store %arg5[%c0_237, %c0_238], %596 {strides = array<i32>} : memref<8x128xf32, #tpu.memory_space<vmem>>, vector<8x128xf32>,
    %598 = arith.index_cast %c14_i32 : i32 to index
    %c0_239 = arith.constant 0 : index
    %c0_240 = arith.constant 0 : index
    %599 = vector.load %arg4[%598, %c0_239, %c0_240] : memref<16x8x128xf32, #tpu.memory_space<vmem>>, vector<1x8x128xf32>
    %600 = vector.shape_cast %599 : vector<1x8x128xf32> to vector<8x128xf32>
    %601 = vector.shape_cast %596 : vector<8x128xf32> to vector<1x8x128xf32>
    tpu.vector_store %arg4[%598, %c0_239, %c0_240], %601 {strides = array<i32>} : memref<16x8x128xf32, #tpu.memory_space<vmem>>, vector<1x8x128xf32>,
    %c15_i32 = arith.constant 15 : i32
    %c0_241 = arith.constant 0 : index
    %c0_242 = arith.constant 0 : index
    %602 = vector.load %arg5[%c0_241, %c0_242] : memref<8x128xf32, #tpu.memory_space<vmem>>, vector<8x128xf32>
    %c0_243 = arith.constant 0 : index
    %c0_244 = arith.constant 0 : index
    %603 = vector.load %arg2[%c0_243, %c0_244] : memref<128x384xf32, #tpu.memory_space<vmem>>, vector<128x384xf32>
    %cst_245 = arith.constant dense<0.000000e+00> : vector<8x384xf32>
    %604 = tpu.matmul %602, %603, %cst_245 {dimension_numbers = #tpu.dot_dimension_numbers<[1], [0], [0], [1], [0, 0, 1, 1], [], []>} : vector<8x128xf32>, vector<128x384xf32>, vector<8x384xf32> -> vector<8x384xf32>
    %c0_246 = arith.constant 0 : index
    %c0_247 = arith.constant 0 : index
    %605 = vector.load %arg3[%c0_246, %c0_247] : memref<1x384xf32, #tpu.memory_space<vmem>>, vector<1x384xf32>
    %606 = vector.broadcast %605 : vector<1x384xf32> to vector<8x384xf32>
    %607 = arith.addf %604, %606 : vector<8x384xf32>
    %608 = arith.index_cast %c15_i32 : i32 to index
    %c0_248 = arith.constant 0 : index
    %c0_249 = arith.constant 0 : index
    %609 = vector.load %arg1[%608, %c0_248, %c0_249] : memref<16x8x384xf32, #tpu.memory_space<vmem>>, vector<1x8x384xf32>
    %610 = vector.shape_cast %609 : vector<1x8x384xf32> to vector<8x384xf32>
    %611 = vector.extract_strided_slice %610 {offsets = [0, 0], sizes = [8, 128], strides = [1, 1]} : vector<8x384xf32> to vector<8x128xf32>
    %612 = vector.extract_strided_slice %607 {offsets = [0, 0], sizes = [8, 128], strides = [1, 1]} : vector<8x384xf32> to vector<8x128xf32>
    %613 = arith.addf %611, %612 : vector<8x128xf32>
    %614 = arith.negf %613 : vector<8x128xf32>
    %615 = math.exp %614 : vector<8x128xf32>
    %cst_250 = arith.constant 1.000000e+00 : f32
    %616 = vector.broadcast %cst_250 : f32 to vector<8x128xf32>
    %617 = arith.addf %616, %615 : vector<8x128xf32>
    %618 = arith.divf %616, %617 : vector<8x128xf32>
    %619 = vector.extract_strided_slice %610 {offsets = [0, 128], sizes = [8, 128], strides = [1, 1]} : vector<8x384xf32> to vector<8x128xf32>
    %620 = vector.extract_strided_slice %607 {offsets = [0, 128], sizes = [8, 128], strides = [1, 1]} : vector<8x384xf32> to vector<8x128xf32>
    %621 = arith.addf %619, %620 : vector<8x128xf32>
    %622 = arith.negf %621 : vector<8x128xf32>
    %623 = math.exp %622 : vector<8x128xf32>
    %cst_251 = arith.constant 1.000000e+00 : f32
    %624 = vector.broadcast %cst_251 : f32 to vector<8x128xf32>
    %625 = arith.addf %624, %623 : vector<8x128xf32>
    %626 = arith.divf %624, %625 : vector<8x128xf32>
    %627 = vector.extract_strided_slice %610 {offsets = [0, 256], sizes = [8, 128], strides = [1, 1]} : vector<8x384xf32> to vector<8x128xf32>
    %628 = vector.extract_strided_slice %607 {offsets = [0, 256], sizes = [8, 128], strides = [1, 1]} : vector<8x384xf32> to vector<8x128xf32>
    %629 = arith.mulf %618, %628 : vector<8x128xf32>
    %630 = arith.addf %627, %629 : vector<8x128xf32>
    %631 = math.tanh %630 : vector<8x128xf32>
    %cst_252 = arith.constant 1.000000e+00 : f32
    %632 = vector.broadcast %cst_252 : f32 to vector<8x128xf32>
    %633 = arith.subf %632, %626 : vector<8x128xf32>
    %634 = arith.mulf %633, %631 : vector<8x128xf32>
    %635 = arith.mulf %626, %602 : vector<8x128xf32>
    %636 = arith.addf %634, %635 : vector<8x128xf32>
    %c0_253 = arith.constant 0 : index
    %c0_254 = arith.constant 0 : index
    %637 = vector.load %arg5[%c0_253, %c0_254] : memref<8x128xf32, #tpu.memory_space<vmem>>, vector<8x128xf32>
    tpu.vector_store %arg5[%c0_253, %c0_254], %636 {strides = array<i32>} : memref<8x128xf32, #tpu.memory_space<vmem>>, vector<8x128xf32>,
    %638 = arith.index_cast %c15_i32 : i32 to index
    %c0_255 = arith.constant 0 : index
    %c0_256 = arith.constant 0 : index
    %639 = vector.load %arg4[%638, %c0_255, %c0_256] : memref<16x8x128xf32, #tpu.memory_space<vmem>>, vector<1x8x128xf32>
    %640 = vector.shape_cast %639 : vector<1x8x128xf32> to vector<8x128xf32>
    %641 = vector.shape_cast %636 : vector<8x128xf32> to vector<1x8x128xf32>
    tpu.vector_store %arg4[%638, %c0_255, %c0_256], %641 {strides = array<i32>} : memref<16x8x128xf32, #tpu.memory_space<vmem>>, vector<1x8x128xf32>,
    %c16_i32 = arith.constant 16 : i32
    return
  }
  func.func @transform_0(%arg0: i32) -> (i32, i32, i32) {
    %c0_i32 = arith.constant 0 : i32
    %c0_i32_0 = arith.constant 0 : i32
    %c0_i32_1 = arith.constant 0 : i32
    %c0_i32_2 = arith.constant 0 : i32
    return %c0_i32, %c0_i32_0, %c0_i32_1 : i32, i32, i32
  }
  func.func @transform_1(%arg0: i32) -> (i32, i32) {
    %c0_i32 = arith.constant 0 : i32
    %c0_i32_0 = arith.constant 0 : i32
    %c0_i32_1 = arith.constant 0 : i32
    return %c0_i32, %c0_i32_0 : i32, i32
  }
  func.func @transform_2(%arg0: i32) -> (i32, i32) {
    %c0_i32 = arith.constant 0 : i32
    %c0_i32_0 = arith.constant 0 : i32
    %c0_i32_1 = arith.constant 0 : i32
    return %c0_i32, %c0_i32_0 : i32, i32
  }
  func.func @transform_3(%arg0: i32) -> (i32, i32, i32) {
    %c0_i32 = arith.constant 0 : i32
    %c0_i32_0 = arith.constant 0 : i32
    %c0_i32_1 = arith.constant 0 : i32
    %c0_i32_2 = arith.constant 0 : i32
    return %c0_i32, %c0_i32_0, %c0_i32_1 : i32, i32, i32
  }
}

module attributes {stable_mosaic.version = 11 : i64} {
  func.func @_head_fir_kernel(%arg0: i32, %arg1: memref<1x16x128xf32, #tpu.memory_space<vmem>>, %arg2: memref<128x128xf32, #tpu.memory_space<vmem>>, %arg3: memref<1x128xf32, #tpu.memory_space<vmem>>, %arg4: memref<16x16xf32, #tpu.memory_space<vmem>>, %arg5: memref<1x16x128xf32, #tpu.memory_space<vmem>>) attributes {dimension_semantics = [#tpu.dimension_semantics<parallel>], iteration_bounds = array<i64: 2>, scalar_prefetch = 0 : i64, scratch_operands = 0 : i64, tpu.core_type = #tpu.core_type<tc>, window_params = [{transform_indices = @transform_0, window_bounds = array<i64: 1, 16, 128>}, {pipeline_mode = #tpu.pipeline_mode<synchronous>, transform_indices = @transform_1, window_bounds = array<i64: 128, 128>}, {pipeline_mode = #tpu.pipeline_mode<synchronous>, transform_indices = @transform_2, window_bounds = array<i64: 1, 128>}, {pipeline_mode = #tpu.pipeline_mode<synchronous>, transform_indices = @transform_3, window_bounds = array<i64: 16, 16>}, {transform_indices = @transform_4, window_bounds = array<i64: 1, 16, 128>}]} {
    %c0 = arith.constant 0 : index
    %c0_0 = arith.constant 0 : index
    %c0_1 = arith.constant 0 : index
    %0 = vector.load %arg1[%c0, %c0_0, %c0_1] : memref<1x16x128xf32, #tpu.memory_space<vmem>>, vector<1x16x128xf32>
    %1 = vector.shape_cast %0 : vector<1x16x128xf32> to vector<16x128xf32>
    %c0_2 = arith.constant 0 : index
    %c0_3 = arith.constant 0 : index
    %2 = vector.load %arg2[%c0_2, %c0_3] : memref<128x128xf32, #tpu.memory_space<vmem>>, vector<128x128xf32>
    %cst = arith.constant dense<0.000000e+00> : vector<16x128xf32>
    %3 = tpu.matmul %1, %2, %cst {dimension_numbers = #tpu.dot_dimension_numbers<[1], [0], [0], [1], [0, 0, 1, 1], [], []>} : vector<16x128xf32>, vector<128x128xf32>, vector<16x128xf32> -> vector<16x128xf32>
    %c0_4 = arith.constant 0 : index
    %c0_5 = arith.constant 0 : index
    %4 = vector.load %arg3[%c0_4, %c0_5] : memref<1x128xf32, #tpu.memory_space<vmem>>, vector<1x128xf32>
    %5 = vector.broadcast %4 : vector<1x128xf32> to vector<16x128xf32>
    %6 = arith.addf %3, %5 : vector<16x128xf32>
    %c0_6 = arith.constant 0 : index
    %c0_7 = arith.constant 0 : index
    %7 = vector.load %arg4[%c0_6, %c0_7] : memref<16x16xf32, #tpu.memory_space<vmem>>, vector<16x16xf32>
    %cst_8 = arith.constant dense<0.000000e+00> : vector<16x128xf32>
    %8 = tpu.matmul %7, %6, %cst_8 {dimension_numbers = #tpu.dot_dimension_numbers<[1], [0], [0], [1], [0, 0, 1, 1], [], []>} : vector<16x16xf32>, vector<16x128xf32>, vector<16x128xf32> -> vector<16x128xf32>
    %c0_9 = arith.constant 0 : index
    %c0_10 = arith.constant 0 : index
    %c0_11 = arith.constant 0 : index
    %9 = vector.load %arg5[%c0_9, %c0_10, %c0_11] : memref<1x16x128xf32, #tpu.memory_space<vmem>>, vector<1x16x128xf32>
    %10 = vector.shape_cast %9 : vector<1x16x128xf32> to vector<16x128xf32>
    %11 = vector.shape_cast %8 : vector<16x128xf32> to vector<1x16x128xf32>
    tpu.vector_store %arg5[%c0_9, %c0_10, %c0_11], %11 {strides = array<i32>} : memref<1x16x128xf32, #tpu.memory_space<vmem>>, vector<1x16x128xf32>,
    return
  }
  func.func @transform_0(%arg0: i32) -> (i32, i32, i32) {
    %c0_i32 = arith.constant 0 : i32
    %c0_i32_0 = arith.constant 0 : i32
    %c0_i32_1 = arith.constant 0 : i32
    return %arg0, %c0_i32, %c0_i32_0 : i32, i32, i32
  }
  func.func @transform_1(%arg0: i32) -> (i32, i32) {
    %c0_i32 = arith.constant 0 : i32
    %c0_i32_0 = arith.constant 0 : i32
    %c0_i32_1 = arith.constant 0 : i32
    return %c0_i32, %c0_i32_0 : i32, i32
  }
  func.func @transform_2(%arg0: i32) -> (i32, i32) {
    %c0_i32 = arith.constant 0 : i32
    %c0_i32_0 = arith.constant 0 : i32
    %c0_i32_1 = arith.constant 0 : i32
    return %c0_i32, %c0_i32_0 : i32, i32
  }
  func.func @transform_3(%arg0: i32) -> (i32, i32) {
    %c0_i32 = arith.constant 0 : i32
    %c0_i32_0 = arith.constant 0 : i32
    %c0_i32_1 = arith.constant 0 : i32
    return %c0_i32, %c0_i32_0 : i32, i32
  }
  func.func @transform_4(%arg0: i32) -> (i32, i32, i32) {
    %c0_i32 = arith.constant 0 : i32
    %c0_i32_0 = arith.constant 0 : i32
    %c0_i32_1 = arith.constant 0 : i32
    return %arg0, %c0_i32, %c0_i32_0 : i32, i32, i32
  }
}

</mosaic_0001>

<llo_original>
// kernel: force_aptai_forward.5
$region0: #{force_aptai_forward.5}
  #allocation0 [shape = 'u32[]', space=smem, size = 0x4, offset = 0x4, fixed_abs, tag = 'smem constant byte address 0x4 - core index']
  #allocation1 [shape = 'u32[144,128]{1,0:T(1,128)}', space=vmem, size = 0x12000, scoped, tag = 'internal scratch']
  %s0 = inlined_call_operand.vmem [shape: f32[2,16,128], index: 0, kind: input, shape index: {}]
  %s1 = inlined_call_operand.vmem [shape: f32[128,128], index: 1, kind: input, shape index: {}]
  %s2 = inlined_call_operand.vmem [shape: f32[1,128], index: 2, kind: input, shape index: {}]
  %s3 = inlined_call_operand.vmem [shape: f32[16,16], index: 3, kind: input, shape index: {}]
  %s4 = inlined_call_operand.vmem [shape: f32[2,16,128], index: 4, kind: output, shape index: {}]
  %s5 = sld [smem:[#allocation0]]
  $region49: #{force_aptai_forward.5} parent=0
    _
  %s7 = ssub.s32 1, %s5
  %s8 = scalar_select 0, %s7, %s5
  loop: start=0, step=1, limit=4
  $region2: #{force_aptai_forward.5} parent=0 // loop_pre_header
    _
  $region3: #{force_aptai_forward.5} parent=0 // loop_header
    %s10 = sphi 0, %s14
    %p11 = scmp.ge.s32.totalorder %s10, 4
    %s20 = sphi 0, %s22
    %s23 = sphi 0, %s20
    %s24 = sphi 0, %s23
    %s40 = sphi 0, %s24
    %s44 = sphi 0, %s44
    %s46 = sphi 0, %s44
    %s47 = sphi 0, %s46
    %s61 = sphi 0, %s47
    %s65 = sphi 0, %s65
    %s67 = sphi 0, %s65
    %s68 = sphi 0, %s67
    %s82 = sphi 0, %s68
    %s86 = sphi 0, %s86
    %s88 = sphi 0, %s86
    %s89 = sphi 0, %s88
    %s103 = sphi 0, %s89
    %s109 = sphi 0, %s111
    %s112 = sphi 0, %s109
    %s113 = sphi 0, %s112
    %s129 = sphi 0, %s113
  $region4: #{force_aptai_forward.5} parent=0 // loop_header_branch
    %13 = sbr.rel (%p11) target = $region8
  $region5: #{force_aptai_forward.5} parent=0 // loop_body
    %s15 = ssub.s32 %s10, 1
    %s16 = ssub.s32 %s10, 2
    %s17 = sadd.s32 %s10, 1
    %s18 = ssub.s32 %s10, %s17
    %p19 = scmp.eq.s32.totalorder %s18, 0
    %s21 = sadd.s32 %s20, 1
    %s22 = scalar_select %p19, %s20, %s21
    %p25 = pneg %p19
    %p26 = scmp.eq.s32.totalorder %s10, 1
    %p27 = por %p25, %p26
    %p28 = scmp.ne.s32.totalorder %s20, %s23
    %p29 = scmp.eq.s32.totalorder %s10, 0
    %p30 = por %p28, %p29
    %p31 = scmp.ne.s32.totalorder %s20, %s23
    %p32 = scmp.eq.s32.totalorder %s15, 1
    %p33 = por %p31, %p32
    %p34 = scmp.ne.s32.totalorder %s23, %s24
    %p35 = scmp.eq.s32.totalorder %s15, 0
    %p36 = por %p34, %p35
    %p37 = scmp.ne.s32.totalorder %s23, %s24
    %p38 = scmp.eq.s32.totalorder %s16, 1
    %p39 = por %p37, %p38
    %p41 = scmp.ne.s32.totalorder %s24, %s40
    %p42 = scmp.eq.s32.totalorder %s16, 0
    %p43 = por %p41, %p42
    %s45 = sadd.s32 %s44, 1
    %p48 = scmp.eq.s32.totalorder %s10, 1
    %p49 = scmp.ne.s32.totalorder %s44, %s46
    %p50 = scmp.eq.s32.totalorder %s10, 0
    %p51 = por %p49, %p50
    %p52 = scmp.ne.s32.totalorder %s44, %s46
    %p53 = scmp.eq.s32.totalorder %s15, 1
    %p54 = por %p52, %p53
    %p55 = scmp.ne.s32.totalorder %s46, %s47
    %p56 = scmp.eq.s32.totalorder %s15, 0
    %p57 = por %p55, %p56
    %p58 = scmp.ne.s32.totalorder %s46, %s47
    %p59 = scmp.eq.s32.totalorder %s16, 1
    %p60 = por %p58, %p59
    %p62 = scmp.ne.s32.totalorder %s47, %s61
    %p63 = scmp.eq.s32.totalorder %s16, 0
    %p64 = por %p62, %p63
    %s66 = sadd.s32 %s65, 1
    %p69 = scmp.eq.s32.totalorder %s10, 1
    %p70 = scmp.ne.s32.totalorder %s65, %s67
    %p71 = scmp.eq.s32.totalorder %s10, 0
    %p72 = por %p70, %p71
    %p73 = scmp.ne.s32.totalorder %s65, %s67
    %p74 = scmp.eq.s32.totalorder %s15, 1
    %p75 = por %p73, %p74
    %p76 = scmp.ne.s32.totalorder %s67, %s68
    %p77 = scmp.eq.s32.totalorder %s15, 0
    %p78 = por %p76, %p77
    %p79 = scmp.ne.s32.totalorder %s67, %s68
    %p80 = scmp.eq.s32.totalorder %s16, 1
    %p81 = por %p79, %p80
    %p83 = scmp.ne.s32.totalorder %s68, %s82
    %p84 = scmp.eq.s32.totalorder %s16, 0
    %p85 = por %p83, %p84
    %s87 = sadd.s32 %s86, 1
    %p90 = scmp.eq.s32.totalorder %s10, 1
    %p91 = scmp.ne.s32.totalorder %s86, %s88
    %p92 = scmp.eq.s32.totalorder %s10, 0
    %p93 = por %p91, %p92
    %p94 = scmp.ne.s32.totalorder %s86, %s88
    %p95 = scmp.eq.s32.totalorder %s15, 1
    %p96 = por %p94, %p95
    %p97 = scmp.ne.s32.totalorder %s88, %s89
    %p98 = scmp.eq.s32.totalorder %s15, 0
    %p99 = por %p97, %p98
    %p100 = scmp.ne.s32.totalorder %s88, %s89
    %p101 = scmp.eq.s32.totalorder %s16, 1
    %p102 = por %p100, %p101
    %p104 = scmp.ne.s32.totalorder %s89, %s103
    %p105 = scmp.eq.s32.totalorder %s16, 0
    %p106 = por %p104, %p105
    %s107 = ssub.s32 %s10, %s17
    %p108 = scmp.eq.s32.totalorder %s107, 0
    %s110 = sadd.s32 %s109, 1
    %s111 = scalar_select %p108, %s109, %s110
    %p114 = pneg %p108
    %p115 = scmp.eq.s32.totalorder %s10, 1
    %p116 = por %p114, %p115
    %p117 = scmp.ne.s32.totalorder %s109, %s112
    %p118 = scmp.eq.s32.totalorder %s10, 0
    %p119 = por %p117, %p118
    %p120 = scmp.ne.s32.totalorder %s109, %s112
    %p121 = scmp.eq.s32.totalorder %s15, 1
    %p122 = por %p120, %p121
    %p123 = scmp.ne.s32.totalorder %s112, %s113
    %p124 = scmp.eq.s32.totalorder %s15, 0
    %p125 = por %p123, %p124
    %p126 = scmp.ne.s32.totalorder %s112, %s113
    %p127 = scmp.eq.s32.totalorder %s16, 1
    %p128 = por %p126, %p127
    %p130 = scmp.ne.s32.totalorder %s113, %s129
    %p131 = scmp.eq.s32.totalorder %s16, 0
    %p132 = por %p130, %p131
    %p133 = scmp.le.s32.totalorder 1, %s10
    %p134 = scmp.lt.s32.totalorder %s10, 3
    %p135 = pnand %p133, %p134
    %p136 = pneg %p135
    // Predicated region
    $region9: #{force_aptai_forward.5} parent=5 // pred_check
      _
    $region10: #{force_aptai_forward.5} parent=5 // pred_check_branch
      %138 = sbr.rel (%p135) target = $region12
    $region11: #{force_aptai_forward.5} parent=5 // pred_region
      %s139 = ssub.s32 %s10, 1
      // Predicated region
      $region13: #{force_aptai_forward.5} parent=11 // pred_check
        %p140 = pneg %p57
      $region14: #{force_aptai_forward.5} parent=11 // pred_check_branch
        %142 = sbr.rel (%p140) target = $region16
      $region15: #{force_aptai_forward.5} parent=11 // pred_region
        _
      $region16: #{force_aptai_forward.5} parent=11 // pred_fallthru
        _
      // Predicated region
      $region17: #{force_aptai_forward.5} parent=11 // pred_check
        %p143 = pneg %p78
      $region18: #{force_aptai_forward.5} parent=11 // pred_check_branch
        %145 = sbr.rel (%p143) target = $region20
      $region19: #{force_aptai_forward.5} parent=11 // pred_region
        _
      $region20: #{force_aptai_forward.5} parent=11 // pred_fallthru
        _
      // Predicated region
      $region21: #{force_aptai_forward.5} parent=11 // pred_check
        %p146 = pneg %p99
      $region22: #{force_aptai_forward.5} parent=11 // pred_check_branch
        %148 = sbr.rel (%p146) target = $region24
      $region23: #{force_aptai_forward.5} parent=11 // pred_region
        _
      $region24: #{force_aptai_forward.5} parent=11 // pred_fallthru
        _
    $region12: #{force_aptai_forward.5} parent=5 // pred_fallthru
      _
    %p149 = scmp.lt.s32.totalorder %s10, 2
    // Predicated region
    $region25: #{force_aptai_forward.5} parent=5 // pred_check
      %p150 = pneg %p149
    $region26: #{force_aptai_forward.5} parent=5 // pred_check_branch
      %152 = sbr.rel (%p150) target = $region28
    $region27: #{force_aptai_forward.5} parent=5 // pred_region
      // Predicated region
      $region29: #{force_aptai_forward.5} parent=27 // pred_check
        %p153 = pneg %p30
      $region30: #{force_aptai_forward.5} parent=27 // pred_check_branch
        %155 = sbr.rel (%p153) target = $region32
      $region31: #{force_aptai_forward.5} parent=27 // pred_region
        %p156 = scmp.lt.s32.totalorder %s10, 1
        %s157 = scalar_select %p156, %s10, 1
        %s158 = smul.addr %s157, 2
        %s159 = smul.addr %s158, 8
        %s160 = scalar_lea.vmem %s0, %s159
      $region32: #{force_aptai_forward.5} parent=27 // pred_fallthru
        _
    $region28: #{force_aptai_forward.5} parent=5 // pred_fallthru
      _
    %p161 = scmp.le.s32.totalorder 1, %s10
    %p162 = scmp.lt.s32.totalorder %s10, 3
    %p163 = pnand %p161, %p162
    %p164 = pneg %p163
    // Predicated region
    $region33: #{force_aptai_forward.5} parent=5 // pred_check
      _
    $region34: #{force_aptai_forward.5} parent=5 // pred_check_branch
      %166 = sbr.rel (%p163) target = $region36
    $region35: #{force_aptai_forward.5} parent=5 // pred_region
      %s167 = ssub.s32 %s10, 1
      %p168 = scmp.lt.s32.totalorder %s15, 1
      %s169 = scalar_select %p168, %s15, 1
      %s170 = smul.addr %s169, 2
      %s171 = smul.addr %s170, 8
      %s172 = scalar_lea.vmem %s0, %s171
      %p173 = pneg %p36
      %p174 = pneg %p33
      %p175 = pneg %p57
      %p176 = pneg %p54
      %p177 = pneg %p78
      %p178 = pneg %p75
      %p179 = pneg %p99
      %p180 = pneg %p96
      %p181 = pneg %p125
      %p182 = pneg %p122
      %p183 = scmp.lt.s32.totalorder %s15, 1
      %s184 = scalar_select %p183, %s15, 1
      %s185 = smul.addr %s184, 2
      %s186 = smul.addr %s185, 8
      %s187 = scalar_lea.vmem %s4, %s186
      %p188 = scmp.lt.s32.totalorder %s15, 1
      %s189 = scalar_select %p188, %s15, 1
      %s190 = smul.addr %s189, 2
      %s191 = smul.addr %s190, 8
      %s192 = scalar_lea.vmem %s0, %s191
      %p193 = scmp.lt.s32.totalorder %s15, 1
      %s194 = scalar_select %p193, %s15, 1
      %s195 = smul.addr %s194, 2
      %s196 = smul.addr %s195, 8
      %s197 = scalar_lea.vmem %s4, %s196
      %v198 = vld [vmem:[%s192] sm:$0xff]
      %v199 = vld [vmem:[%s192 + $0x8] sm:$0xff]
      %v200 = vld [vmem:[%s1] sm:$0xff]
      %v201 = vld [vmem:[%s1 + $0x8] sm:$0xff]
      %v202 = vld [vmem:[%s1 + $0x10] sm:$0xff]
      %v203 = vld [vmem:[%s1 + $0x18] sm:$0xff]
      %v204 = vld [vmem:[%s1 + $0x20] sm:$0xff]
      %v205 = vld [vmem:[%s1 + $0x28] sm:$0xff]
      %v206 = vld [vmem:[%s1 + $0x30] sm:$0xff]
      %v207 = vld [vmem:[%s1 + $0x38] sm:$0xff]
      %v208 = vld [vmem:[%s1 + $0x40] sm:$0xff]
      %v209 = vld [vmem:[%s1 + $0x48] sm:$0xff]
      %v210 = vld [vmem:[%s1 + $0x50] sm:$0xff]
      %v211 = vld [vmem:[%s1 + $0x58] sm:$0xff]
      %v212 = vld [vmem:[%s1 + $0x60] sm:$0xff]
      %v213 = vld [vmem:[%s1 + $0x68] sm:$0xff]
      %v214 = vld [vmem:[%s1 + $0x70] sm:$0xff]
      %v215 = vld [vmem:[%s1 + $0x78] sm:$0xff]
      %v216 = vld [vmem:[%s2] sm:$0x1]
      %v218 = vlaneseq
      %v219 = vshrl.u32 %v218, 7
      %v220 = vsub.s32 0, %v219
      %v221 = vrot.slane %v216, %v220
      %223 = vmatprep.subr.mxu0 0.0
      %224 = vmatpush1.msra.mxu0 %v200
      %225 = vmatprep.subr.mxu0 0.0
      %226 = vmatpush1.msra.mxu0 %v201
      %227 = vmatprep.subr.mxu0 0.0
      %228 = vmatpush1.msra.mxu0 %v202
      %229 = vmatprep.subr.mxu0 0.0
      %230 = vmatpush1.msra.mxu0 %v203
      %231 = vmatprep.subr.mxu0 0.0
      %232 = vmatpush1.msra.mxu0 %v204
      %233 = vmatprep.subr.mxu0 0.0
      %234 = vmatpush1.msra.mxu0 %v205
      %235 = vmatprep.subr.mxu0 0.0
      %236 = vmatpush1.msra.mxu0 %v206
      %237 = vmatprep.subr.mxu0 0.0
      %238 = vmatpush1.msra.mxu0 %v207
      %239 = vmatprep.subr.mxu0 0.0
      %240 = vmatpush1.msra.mxu0 %v208
      %241 = vmatprep.subr.mxu0 0.0
      %242 = vmatpush1.msra.mxu0 %v209
      %243 = vmatprep.subr.mxu0 0.0
      %244 = vmatpush1.msra.mxu0 %v210
      %245 = vmatprep.subr.mxu0 0.0
      %246 = vmatpush1.msra.mxu0 %v211
      %247 = vmatprep.subr.mxu0 0.0
      %248 = vmatpush1.msra.mxu0 %v212
      %249 = vmatprep.subr.mxu0 0.0
      %250 = vmatpush1.msra.mxu0 %v213
      %251 = vmatprep.subr.mxu0 0.0
      %252 = vmatpush1.msra.mxu0 %v214
      %253 = vmatprep.subr.mxu0 0.0
      %254 = vmatpush1.msra.mxu0 %v215
      %255 = vmatprep.subr.mxu0 0.0
      %256 = vmatpush1.msra.mxu0 0.0
      %257 = vmatprep.subr.mxu0 0.0
      %258 = vmatpush1.msra.mxu0 0.0
      %259 = vmatprep.subr.mxu0 0.0
      %260 = vmatpush1.msra.mxu0 0.0
      %261 = vmatprep.subr.mxu0 0.0
      %262 = vmatpush1.msra.mxu0 0.0
      %263 = vmatprep.subr.mxu0 0.0
      %264 = vmatpush1.msra.mxu0 0.0
      %265 = vmatprep.subr.mxu0 0.0
      %266 = vmatpush1.msra.mxu0 0.0
      %267 = vmatprep.subr.mxu0 0.0
      %268 = vmatpush1.msra.mxu0 0.0
      %269 = vmatprep.subr.mxu0 0.0
      %270 = vmatpush1.msra.mxu0 0.0
      %271 = vmatprep.subr.mxu0 0.0
      %272 = vmatpush1.msra.mxu0 0.0
      %273 = vmatprep.subr.mxu0 0.0
      %274 = vmatpush1.msra.mxu0 0.0
      %275 = vmatprep.subr.mxu0 0.0
      %276 = vmatpush1.msra.mxu0 0.0
      %277 = vmatprep.subr.mxu0 0.0
      %278 = vmatpush1.msra.mxu0 0.0
      %279 = vmatprep.subr.mxu0 0.0
      %280 = vmatpush1.msra.mxu0 0.0
      %281 = vmatprep.subr.mxu0 0.0
      %282 = vmatpush1.msra.mxu0 0.0
      %283 = vmatprep.subr.mxu0 0.0
      %284 = vmatpush1.msra.mxu0 0.0
      %285 = vmatprep.subr.mxu0 0.0
      %286 = vmatpush1.msra.mxu0 0.0
      %287 = vmatprep.mubr.f32.mxu0 0.0
      %288 = vmatmul.mubr.f32.gmra.mrb[0].mxu0 %v198
      %v289 = vpop.f32.mrb[0].mxu0
      %v290 = vadd.f32 %v221, %v289
      %v291 = vpop.f32.mrb[0].mxu0
      %292 = vmatprep.mubr.f32.mxu0 0.0
      %293 = vmatmul.mubr.f32.gmra.mrb[0].mxu0 %v199
      %v294 = vpop.f32.mrb[0].mxu0
      %v295 = vadd.f32 %v221, %v294
      %v296 = vpop.f32.mrb[0].mxu0
      %297 = vdwg.mxu0
      %v298 = vld [vmem:[%s3] sm:$0xff]
      %v299 = vld [vmem:[%s3 + $0x8] sm:$0xff]
      %vm300 = vcmask 130048
      %v302 = vsel %vm300, %v298, 0
      %v305 = vsel %vm300, %v299, 0
      %307 = vmatprep.subr.mxu0 0.0
      %308 = vmatpush1.msra.mxu0 %v290
      %309 = vmatprep.subr.mxu0 0.0
      %310 = vmatpush1.msra.mxu0 %v295
      %311 = vmatprep.subr.mxu0 0.0
      %312 = vmatpush1.msra.mxu0 0.0
      %313 = vmatprep.subr.mxu0 0.0
      %314 = vmatpush1.msra.mxu0 0.0
      %315 = vmatprep.subr.mxu0 0.0
      %316 = vmatpush1.msra.mxu0 0.0
      %317 = vmatprep.subr.mxu0 0.0
      %318 = vmatpush1.msra.mxu0 0.0
      %319 = vmatprep.subr.mxu0 0.0
      %320 = vmatpush1.msra.mxu0 0.0
      %321 = vmatprep.subr.mxu0 0.0
      %322 = vmatpush1.msra.mxu0 0.0
      %323 = vmatprep.subr.mxu0 0.0
      %324 = vmatpush1.msra.mxu0 0.0
      %325 = vmatprep.subr.mxu0 0.0
      %326 = vmatpush1.msra.mxu0 0.0
      %327 = vmatprep.subr.mxu0 0.0
      %328 = vmatpush1.msra.mxu0 0.0
      %329 = vmatprep.subr.mxu0 0.0
      %330 = vmatpush1.msra.mxu0 0.0
      %331 = vmatprep.subr.mxu0 0.0
      %332 = vmatpush1.msra.mxu0 0.0
      %333 = vmatprep.subr.mxu0 0.0
      %334 = vmatpush1.msra.mxu0 0.0
      %335 = vmatprep.subr.mxu0 0.0
      %336 = vmatpush1.msra.mxu0 0.0
      %337 = vmatprep.subr.mxu0 0.0
      %338 = vmatpush1.msra.mxu0 0.0
      %339 = vmatprep.subr.mxu0 0.0
      %340 = vmatpush1.msra.mxu0 0.0
      %341 = vmatprep.subr.mxu0 0.0
      %342 = vmatpush1.msra.mxu0 0.0
      %343 = vmatprep.subr.mxu0 0.0
      %344 = vmatpush1.msra.mxu0 0.0
      %345 = vmatprep.subr.mxu0 0.0
      %346 = vmatpush1.msra.mxu0 0.0
      %347 = vmatprep.subr.mxu0 0.0
      %348 = vmatpush1.msra.mxu0 0.0
      %349 = vmatprep.subr.mxu0 0.0
      %350 = vmatpush1.msra.mxu0 0.0
      %351 = vmatprep.subr.mxu0 0.0
      %352 = vmatpush1.msra.mxu0 0.0
      %353 = vmatprep.subr.mxu0 0.0
      %354 = vmatpush1.msra.mxu0 0.0
      %355 = vmatprep.subr.mxu0 0.0
      %356 = vmatpush1.msra.mxu0 0.0
      %357 = vmatprep.subr.mxu0 0.0
      %358 = vmatpush1.msra.mxu0 0.0
      %359 = vmatprep.subr.mxu0 0.0
      %360 = vmatpush1.msra.mxu0 0.0
      %361 = vmatprep.subr.mxu0 0.0
      %362 = vmatpush1.msra.mxu0 0.0
      %363 = vmatprep.subr.mxu0 0.0
      %364 = vmatpush1.msra.mxu0 0.0
      %365 = vmatprep.subr.mxu0 0.0
      %366 = vmatpush1.msra.mxu0 0.0
      %367 = vmatprep.subr.mxu0 0.0
      %368 = vmatpush1.msra.mxu0 0.0
      %369 = vmatprep.subr.mxu0 0.0
      %370 = vmatpush1.msra.mxu0 0.0
      %371 = vmatprep.mubr.f32.mxu0 0.0
      %372 = vmatmul.mubr.f32.gmra.mrb[0].mxu0 %v302
      %v373 = vpop.f32.mrb[0].mxu0
      %v374 = vadd.f32 0.0, %v373
      %v375 = vpop.f32.mrb[0].mxu0
      %376 = vmatprep.mubr.f32.mxu0 0.0
      %377 = vmatmul.mubr.f32.gmra.mrb[0].mxu0 %v305
      %v378 = vpop.f32.mrb[0].mxu0
      %v379 = vadd.f32 0.0, %v378
      %v380 = vpop.f32.mrb[0].mxu0
      %381 = vdwg.mxu0
      %382 = vst [vmem:[%s197] sm:$0xff] %v374
      %383 = vst [vmem:[%s197 + $0x8] sm:$0xff] %v379
      %p384 = scmp.lt.s32.totalorder %s15, 1
      %s385 = scalar_select %p384, %s15, 1
      %s386 = smul.addr %s385, 2
      %s387 = smul.addr %s386, 8
      %s388 = scalar_lea.vmem %s4, %s387
      // Predicated region
      $region37: #{force_aptai_forward.5} parent=35 // pred_check
        %p389 = pneg %p122
      $region38: #{force_aptai_forward.5} parent=35 // pred_check_branch
        %391 = sbr.rel (%p389) target = $region40
      $region39: #{force_aptai_forward.5} parent=35 // pred_region
        _
      $region40: #{force_aptai_forward.5} parent=35 // pred_fallthru
        _
    $region36: #{force_aptai_forward.5} parent=5 // pred_fallthru
      _
    %p392 = scmp.le.s32.totalorder 2, %s10
    // Predicated region
    $region41: #{force_aptai_forward.5} parent=5 // pred_check
      %p393 = pneg %p392
    $region42: #{force_aptai_forward.5} parent=5 // pred_check_branch
      %395 = sbr.rel (%p393) target = $region44
    $region43: #{force_aptai_forward.5} parent=5 // pred_region
      %s396 = ssub.s32 %s10, 2
      // Predicated region
      $region45: #{force_aptai_forward.5} parent=43 // pred_check
        %p397 = pneg %p128
      $region46: #{force_aptai_forward.5} parent=43 // pred_check_branch
        %399 = sbr.rel (%p397) target = $region48
      $region47: #{force_aptai_forward.5} parent=43 // pred_region
        %p400 = scmp.lt.s32.totalorder %s16, 1
        %s401 = scalar_select %p400, %s16, 1
        %s402 = smul.addr %s401, 2
        %s403 = smul.addr %s402, 8
        %s404 = scalar_lea.vmem %s4, %s403
      $region48: #{force_aptai_forward.5} parent=43 // pred_fallthru
        _
    $region44: #{force_aptai_forward.5} parent=5 // pred_fallthru
      _
  $region6: #{force_aptai_forward.5} parent=0 // loop_footer
    %s14 = sadd.s32 1, %s10
  $region7: #{force_aptai_forward.5} parent=0 // loop_footer_branch
    %9 = sbr.rel target = $region3
  $region8: #{force_aptai_forward.5} parent=0 // loop_exit
    _

// kernel: force_aptai_forward.3
$region0: #{force_aptai_forward.3}
  #allocation0 [shape = 'u32[]', space=smem, size = 0x4, offset = 0x4, fixed_abs, tag = 'smem constant byte address 0x4 - core index']
  #allocation1 [shape = 'u32[144,128]{1,0:T(1,128)}', space=vmem, size = 0x12000, scoped, tag = 'internal scratch']
  %s0 = inlined_call_operand.vmem [shape: bf16[2,16,1024], index: 0, kind: input, shape index: {}]
  %s1 = inlined_call_operand.vmem [shape: bf16[2,128,128], index: 1, kind: input, shape index: {}]
  %s2 = inlined_call_operand.vmem [shape: f32[2,1,128], index: 2, kind: input, shape index: {}]
  %s3 = inlined_call_operand.vmem [shape: bf16[1024,128], index: 3, kind: input, shape index: {}]
  %s4 = inlined_call_operand.vmem [shape: f32[1,128], index: 4, kind: input, shape index: {}]
  %s5 = inlined_call_operand.vmem [shape: bf16[128,128], index: 5, kind: input, shape index: {}]
  %s6 = inlined_call_operand.vmem [shape: f32[1,128], index: 6, kind: input, shape index: {}]
  %s7 = inlined_call_operand.vmem [shape: bf16[128,256], index: 7, kind: input, shape index: {}]
  %s8 = inlined_call_operand.vmem [shape: f32[1,256], index: 8, kind: input, shape index: {}]
  %s9 = inlined_call_operand.vmem [shape: bf16[256,384], index: 9, kind: input, shape index: {}]
  %s10 = inlined_call_operand.vmem [shape: f32[1,384], index: 10, kind: input, shape index: {}]
  %s11 = inlined_call_operand.hbm [shape: f32[2,16,256], index: 11, kind: output, shape index: {0}]
  %s12 = inlined_call_operand.vmem [shape: f32[2,16,384], index: 12, kind: output, shape index: {1}]
  %s13 = inlined_call_operand.hbm [shape: f32[2,16,128], index: 13, kind: output, shape index: {2}]
  %s14 = inlined_call_operand.vmem [shape: f32[2,16,128], index: 14, kind: output, shape index: {3}]
  %15 = xla_tuple %s11, %s12, %s13, %s14
  %s16 = sld [smem:[#allocation0]]
  $region101: #{force_aptai_forward.3} parent=0
    _
  %s18 = ssub.s32 1, %s16
  %s19 = scalar_select 0, %s18, %s16
  $region1: #{force_aptai_forward.3} parent=0
    #allocation2 [shape = 'u8[32768]{0}', space=vmem, size = 0x8000, scoped, tag = 'output window, operand 0']
    #allocation3 [shape = 's32[2]{0}', space=sflag, size = 0x8, scoped, tag = 'scoped memory for force_aptai_forward.3']
    #allocation4 [shape = 'u8[16384]{0}', space=vmem, size = 0x4000, scoped, tag = 'output window, operand 2']
    #allocation5 [shape = 's32[2]{0}', space=sflag, size = 0x8, scoped, tag = 'scoped memory for force_aptai_forward.3']
    %20 = vsyncpa [#allocation3], 0
    %s21 = scalar_lea.sflag [#allocation3], 1
    %22 = vsyncpa %s21, 0
    %23 = vsyncpa [#allocation5], 0
    %s24 = scalar_lea.sflag [#allocation5], 1
    %25 = vsyncpa %s24, 0
    loop: start=0, step=1, limit=4
    $region2: #{force_aptai_forward.3} parent=1 // loop_pre_header
      _
    $region3: #{force_aptai_forward.3} parent=1 // loop_header
      %s27 = sphi 0, %s31
      %p28 = scmp.ge.s32.totalorder %s27, 4
      %s37 = sphi 0, %s39
      %s40 = sphi 0, %s37
      %s41 = sphi 0, %s40
      %s57 = sphi 0, %s41
      %s63 = sphi 0, %s65
      %s66 = sphi 0, %s63
      %s67 = sphi 0, %s66
      %s83 = sphi 0, %s67
      %s89 = sphi 0, %s91
      %s92 = sphi 0, %s89
      %s93 = sphi 0, %s92
      %s109 = sphi 0, %s93
      %s113 = sphi 0, %s113
      %s115 = sphi 0, %s113
      %s116 = sphi 0, %s115
      %s130 = sphi 0, %s116
      %s134 = sphi 0, %s134
      %s136 = sphi 0, %s134
      %s137 = sphi 0, %s136
      %s151 = sphi 0, %s137
      %s155 = sphi 0, %s155
      %s157 = sphi 0, %s155
      %s158 = sphi 0, %s157
      %s172 = sphi 0, %s158
      %s176 = sphi 0, %s176
      %s178 = sphi 0, %s176
      %s179 = sphi 0, %s178
      %s193 = sphi 0, %s179
      %s197 = sphi 0, %s197
      %s199 = sphi 0, %s197
      %s200 = sphi 0, %s199
      %s214 = sphi 0, %s200
      %s218 = sphi 0, %s218
      %s220 = sphi 0, %s218
      %s221 = sphi 0, %s220
      %s235 = sphi 0, %s221
      %s239 = sphi 0, %s239
      %s241 = sphi 0, %s239
      %s242 = sphi 0, %s241
      %s256 = sphi 0, %s242
      %s260 = sphi 0, %s260
      %s262 = sphi 0, %s260
      %s263 = sphi 0, %s262
      %s277 = sphi 0, %s263
      %s283 = sphi 0, %s285
      %s286 = sphi 0, %s283
      %s287 = sphi 0, %s286
      %s303 = sphi 0, %s287
      %s309 = sphi 0, %s311
      %s312 = sphi 0, %s309
      %s313 = sphi 0, %s312
      %s329 = sphi 0, %s313
      %s335 = sphi 0, %s337
      %s338 = sphi 0, %s335
      %s339 = sphi 0, %s338
      %s355 = sphi 0, %s339
      %s361 = sphi 0, %s363
      %s364 = sphi 0, %s361
      %s365 = sphi 0, %s364
      %s381 = sphi 0, %s365
    $region4: #{force_aptai_forward.3} parent=1 // loop_header_branch
      %30 = sbr.rel (%p28) target = $region8
    $region5: #{force_aptai_forward.3} parent=1 // loop_body
      %s32 = ssub.s32 %s27, 1
      %s33 = ssub.s32 %s27, 2
      %s34 = sadd.s32 %s27, 1
      %s35 = ssub.s32 %s27, %s34
      %p36 = scmp.eq.s32.totalorder %s35, 0
      %s38 = sadd.s32 %s37, 1
      %s39 = scalar_select %p36, %s37, %s38
      %p42 = pneg %p36
      %p43 = scmp.eq.s32.totalorder %s27, 1
      %p44 = por %p42, %p43
      %p45 = scmp.ne.s32.totalorder %s37, %s40
      %p46 = scmp.eq.s32.totalorder %s27, 0
      %p47 = por %p45, %p46
      %p48 = scmp.ne.s32.totalorder %s37, %s40
      %p49 = scmp.eq.s32.totalorder %s32, 1
      %p50 = por %p48, %p49
      %p51 = scmp.ne.s32.totalorder %s40, %s41
      %p52 = scmp.eq.s32.totalorder %s32, 0
      %p53 = por %p51, %p52
      %p54 = scmp.ne.s32.totalorder %s40, %s41
      %p55 = scmp.eq.s32.totalorder %s33, 1
      %p56 = por %p54, %p55
      %p58 = scmp.ne.s32.totalorder %s41, %s57
      %p59 = scmp.eq.s32.totalorder %s33, 0
      %p60 = por %p58, %p59
      %s61 = ssub.s32 %s27, %s34
      %p62 = scmp.eq.s32.totalorder %s61, 0
      %s64 = sadd.s32 %s63, 1
      %s65 = scalar_select %p62, %s63, %s64
      %p68 = pneg %p62
      %p69 = scmp.eq.s32.totalorder %s27, 1
      %p70 = por %p68, %p69
      %p71 = scmp.ne.s32.totalorder %s63, %s66
      %p72 = scmp.eq.s32.totalorder %s27, 0
      %p73 = por %p71, %p72
      %p74 = scmp.ne.s32.totalorder %s63, %s66
      %p75 = scmp.eq.s32.totalorder %s32, 1
      %p76 = por %p74, %p75
      %p77 = scmp.ne.s32.totalorder %s66, %s67
      %p78 = scmp.eq.s32.totalorder %s32, 0
      %p79 = por %p77, %p78
      %p80 = scmp.ne.s32.totalorder %s66, %s67
      %p81 = scmp.eq.s32.totalorder %s33, 1
      %p82 = por %p80, %p81
      %p84 = scmp.ne.s32.totalorder %s67, %s83
      %p85 = scmp.eq.s32.totalorder %s33, 0
      %p86 = por %p84, %p85
      %s87 = ssub.s32 %s27, %s34
      %p88 = scmp.eq.s32.totalorder %s87, 0
      %s90 = sadd.s32 %s89, 1
      %s91 = scalar_select %p88, %s89, %s90
      %p94 = pneg %p88
      %p95 = scmp.eq.s32.totalorder %s27, 1
      %p96 = por %p94, %p95
      %p97 = scmp.ne.s32.totalorder %s89, %s92
      %p98 = scmp.eq.s32.totalorder %s27, 0
      %p99 = por %p97, %p98
      %p100 = scmp.ne.s32.totalorder %s89, %s92
      %p101 = scmp.eq.s32.totalorder %s32, 1
      %p102 = por %p100, %p101
      %p103 = scmp.ne.s32.totalorder %s92, %s93
      %p104 = scmp.eq.s32.totalorder %s32, 0
      %p105 = por %p103, %p104
      %p106 = scmp.ne.s32.totalorder %s92, %s93
      %p107 = scmp.eq.s32.totalorder %s33, 1
      %p108 = por %p106, %p107
      %p110 = scmp.ne.s32.totalorder %s93, %s109
      %p111 = scmp.eq.s32.totalorder %s33, 0
      %p112 = por %p110, %p111
      %s114 = sadd.s32 %s113, 1
      %p117 = scmp.eq.s32.totalorder %s27, 1
      %p118 = scmp.ne.s32.totalorder %s113, %s115
      %p119 = scmp.eq.s32.totalorder %s27, 0
      %p120 = por %p118, %p119
      %p121 = scmp.ne.s32.totalorder %s113, %s115
      %p122 = scmp.eq.s32.totalorder %s32, 1
      %p123 = por %p121, %p122
      %p124 = scmp.ne.s32.totalorder %s115, %s116
      %p125 = scmp.eq.s32.totalorder %s32, 0
      %p126 = por %p124, %p125
      %p127 = scmp.ne.s32.totalorder %s115, %s116
      %p128 = scmp.eq.s32.totalorder %s33, 1
      %p129 = por %p127, %p128
      %p131 = scmp.ne.s32.totalorder %s116, %s130
      %p132 = scmp.eq.s32.totalorder %s33, 0
      %p133 = por %p131, %p132
      %s135 = sadd.s32 %s134, 1
      %p138 = scmp.eq.s32.totalorder %s27, 1
      %p139 = scmp.ne.s32.totalorder %s134, %s136
      %p140 = scmp.eq.s32.totalorder %s27, 0
      %p141 = por %p139, %p140
      %p142 = scmp.ne.s32.totalorder %s134, %s136
      %p143 = scmp.eq.s32.totalorder %s32, 1
      %p144 = por %p142, %p143
      %p145 = scmp.ne.s32.totalorder %s136, %s137
      %p146 = scmp.eq.s32.totalorder %s32, 0
      %p147 = por %p145, %p146
      %p148 = scmp.ne.s32.totalorder %s136, %s137
      %p149 = scmp.eq.s32.totalorder %s33, 1
      %p150 = por %p148, %p149
      %p152 = scmp.ne.s32.totalorder %s137, %s151
      %p153 = scmp.eq.s32.totalorder %s33, 0
      %p154 = por %p152, %p153
      %s156 = sadd.s32 %s155, 1
      %p159 = scmp.eq.s32.totalorder %s27, 1
      %p160 = scmp.ne.s32.totalorder %s155, %s157
      %p161 = scmp.eq.s32.totalorder %s27, 0
      %p162 = por %p160, %p161
      %p163 = scmp.ne.s32.totalorder %s155, %s157
      %p164 = scmp.eq.s32.totalorder %s32, 1
      %p165 = por %p163, %p164
      %p166 = scmp.ne.s32.totalorder %s157, %s158
      %p167 = scmp.eq.s32.totalorder %s32, 0
      %p168 = por %p166, %p167
      %p169 = scmp.ne.s32.totalorder %s157, %s158
      %p170 = scmp.eq.s32.totalorder %s33, 1
      %p171 = por %p169, %p170
      %p173 = scmp.ne.s32.totalorder %s158, %s172
      %p174 = scmp.eq.s32.totalorder %s33, 0
      %p175 = por %p173, %p174
      %s177 = sadd.s32 %s176, 1
      %p180 = scmp.eq.s32.totalorder %s27, 1
      %p181 = scmp.ne.s32.totalorder %s176, %s178
      %p182 = scmp.eq.s32.totalorder %s27, 0
      %p183 = por %p181, %p182
      %p184 = scmp.ne.s32.totalorder %s176, %s178
      %p185 = scmp.eq.s32.totalorder %s32, 1
      %p186 = por %p184, %p185
      %p187 = scmp.ne.s32.totalorder %s178, %s179
      %p188 = scmp.eq.s32.totalorder %s32, 0
      %p189 = por %p187, %p188
      %p190 = scmp.ne.s32.totalorder %s178, %s179
      %p191 = scmp.eq.s32.totalorder %s33, 1
      %p192 = por %p190, %p191
      %p194 = scmp.ne.s32.totalorder %s179, %s193
      %p195 = scmp.eq.s32.totalorder %s33, 0
      %p196 = por %p194, %p195
      %s198 = sadd.s32 %s197, 1
      %p201 = scmp.eq.s32.totalorder %s27, 1
      %p202 = scmp.ne.s32.totalorder %s197, %s199
      %p203 = scmp.eq.s32.totalorder %s27, 0
      %p204 = por %p202, %p203
      %p205 = scmp.ne.s32.totalorder %s197, %s199
      %p206 = scmp.eq.s32.totalorder %s32, 1
      %p207 = por %p205, %p206
      %p208 = scmp.ne.s32.totalorder %s199, %s200
      %p209 = scmp.eq.s32.totalorder %s32, 0
      %p210 = por %p208, %p209
      %p211 = scmp.ne.s32.totalorder %s199, %s200
      %p212 = scmp.eq.s32.totalorder %s33, 1
      %p213 = por %p211, %p212
      %p215 = scmp.ne.s32.totalorder %s200, %s214
      %p216 = scmp.eq.s32.totalorder %s33, 0
      %p217 = por %p215, %p216
      %s219 = sadd.s32 %s218, 1
      %p222 = scmp.eq.s32.totalorder %s27, 1
      %p223 = scmp.ne.s32.totalorder %s218, %s220
      %p224 = scmp.eq.s32.totalorder %s27, 0
      %p225 = por %p223, %p224
      %p226 = scmp.ne.s32.totalorder %s218, %s220
      %p227 = scmp.eq.s32.totalorder %s32, 1
      %p228 = por %p226, %p227
      %p229 = scmp.ne.s32.totalorder %s220, %s221
      %p230 = scmp.eq.s32.totalorder %s32, 0
      %p231 = por %p229, %p230
      %p232 = scmp.ne.s32.totalorder %s220, %s221
      %p233 = scmp.eq.s32.totalorder %s33, 1
      %p234 = por %p232, %p233
      %p236 = scmp.ne.s32.totalorder %s221, %s235
      %p237 = scmp.eq.s32.totalorder %s33, 0
      %p238 = por %p236, %p237
      %s240 = sadd.s32 %s239, 1
      %p243 = scmp.eq.s32.totalorder %s27, 1
      %p244 = scmp.ne.s32.totalorder %s239, %s241
      %p245 = scmp.eq.s32.totalorder %s27, 0
      %p246 = por %p244, %p245
      %p247 = scmp.ne.s32.totalorder %s239, %s241
      %p248 = scmp.eq.s32.totalorder %s32, 1
      %p249 = por %p247, %p248
      %p250 = scmp.ne.s32.totalorder %s241, %s242
      %p251 = scmp.eq.s32.totalorder %s32, 0
      %p252 = por %p250, %p251
      %p253 = scmp.ne.s32.totalorder %s241, %s242
      %p254 = scmp.eq.s32.totalorder %s33, 1
      %p255 = por %p253, %p254
      %p257 = scmp.ne.s32.totalorder %s242, %s256
      %p258 = scmp.eq.s32.totalorder %s33, 0
      %p259 = por %p257, %p258
      %s261 = sadd.s32 %s260, 1
      %p264 = scmp.eq.s32.totalorder %s27, 1
      %p265 = scmp.ne.s32.totalorder %s260, %s262
      %p266 = scmp.eq.s32.totalorder %s27, 0
      %p267 = por %p265, %p266
      %p268 = scmp.ne.s32.totalorder %s260, %s262
      %p269 = scmp.eq.s32.totalorder %s32, 1
      %p270 = por %p268, %p269
      %p271 = scmp.ne.s32.totalorder %s262, %s263
      %p272 = scmp.eq.s32.totalorder %s32, 0
      %p273 = por %p271, %p272
      %p274 = scmp.ne.s32.totalorder %s262, %s263
      %p275 = scmp.eq.s32.totalorder %s33, 1
      %p276 = por %p274, %p275
      %p278 = scmp.ne.s32.totalorder %s263, %s277
      %p279 = scmp.eq.s32.totalorder %s33, 0
      %p280 = por %p278, %p279
      %s281 = ssub.s32 %s27, %s34
      %p282 = scmp.eq.s32.totalorder %s281, 0
      %s284 = sadd.s32 %s283, 1
      %s285 = scalar_select %p282, %s283, %s284
      %p288 = pneg %p282
      %p289 = scmp.eq.s32.totalorder %s27, 1
      %p290 = por %p288, %p289
      %p291 = scmp.ne.s32.totalorder %s283, %s286
      %p292 = scmp.eq.s32.totalorder %s27, 0
      %p293 = por %p291, %p292
      %p294 = scmp.ne.s32.totalorder %s283, %s286
      %p295 = scmp.eq.s32.totalorder %s32, 1
      %p296 = por %p294, %p295
      %p297 = scmp.ne.s32.totalorder %s286, %s287
      %p298 = scmp.eq.s32.totalorder %s32, 0
      %p299 = por %p297, %p298
      %p300 = scmp.ne.s32.totalorder %s286, %s287
      %p301 = scmp.eq.s32.totalorder %s33, 1
      %p302 = por %p300, %p301
      %p304 = scmp.ne.s32.totalorder %s287, %s303
      %p305 = scmp.eq.s32.totalorder %s33, 0
      %p306 = por %p304, %p305
      %s307 = ssub.s32 %s27, %s34
      %p308 = scmp.eq.s32.totalorder %s307, 0
      %s310 = sadd.s32 %s309, 1
      %s311 = scalar_select %p308, %s309, %s310
      %p314 = pneg %p308
      %p315 = scmp.eq.s32.totalorder %s27, 1
      %p316 = por %p314, %p315
      %p317 = scmp.ne.s32.totalorder %s309, %s312
      %p318 = scmp.eq.s32.totalorder %s27, 0
      %p319 = por %p317, %p318
      %p320 = scmp.ne.s32.totalorder %s309, %s312
      %p321 = scmp.eq.s32.totalorder %s32, 1
      %p322 = por %p320, %p321
      %p323 = scmp.ne.s32.totalorder %s312, %s313
      %p324 = scmp.eq.s32.totalorder %s32, 0
      %p325 = por %p323, %p324
      %p326 = scmp.ne.s32.totalorder %s312, %s313
      %p327 = scmp.eq.s32.totalorder %s33, 1
      %p328 = por %p326, %p327
      %p330 = scmp.ne.s32.totalorder %s313, %s329
      %p331 = scmp.eq.s32.totalorder %s33, 0
      %p332 = por %p330, %p331
      %s333 = ssub.s32 %s27, %s34
      %p334 = scmp.eq.s32.totalorder %s333, 0
      %s336 = sadd.s32 %s335, 1
      %s337 = scalar_select %p334, %s335, %s336
      %p340 = pneg %p334
      %p341 = scmp.eq.s32.totalorder %s27, 1
      %p342 = por %p340, %p341
      %p343 = scmp.ne.s32.totalorder %s335, %s338
      %p344 = scmp.eq.s32.totalorder %s27, 0
      %p345 = por %p343, %p344
      %p346 = scmp.ne.s32.totalorder %s335, %s338
      %p347 = scmp.eq.s32.totalorder %s32, 1
      %p348 = por %p346, %p347
      %p349 = scmp.ne.s32.totalorder %s338, %s339
      %p350 = scmp.eq.s32.totalorder %s32, 0
      %p351 = por %p349, %p350
      %p352 = scmp.ne.s32.totalorder %s338, %s339
      %p353 = scmp.eq.s32.totalorder %s33, 1
      %p354 = por %p352, %p353
      %p356 = scmp.ne.s32.totalorder %s339, %s355
      %p357 = scmp.eq.s32.totalorder %s33, 0
      %p358 = por %p356, %p357
      %s359 = ssub.s32 %s27, %s34
      %p360 = scmp.eq.s32.totalorder %s359, 0
      %s362 = sadd.s32 %s361, 1
      %s363 = scalar_select %p360, %s361, %s362
      %p366 = pneg %p360
      %p367 = scmp.eq.s32.totalorder %s27, 1
      %p368 = por %p366, %p367
      %p369 = scmp.ne.s32.totalorder %s361, %s364
      %p370 = scmp.eq.s32.totalorder %s27, 0
      %p371 = por %p369, %p370
      %p372 = scmp.ne.s32.totalorder %s361, %s364
      %p373 = scmp.eq.s32.totalorder %s32, 1
      %p374 = por %p372, %p373
      %p375 = scmp.ne.s32.totalorder %s364, %s365
      %p376 = scmp.eq.s32.totalorder %s32, 0
      %p377 = por %p375, %p376
      %p378 = scmp.ne.s32.totalorder %s364, %s365
      %p379 = scmp.eq.s32.totalorder %s33, 1
      %p380 = por %p378, %p379
      %p382 = scmp.ne.s32.totalorder %s365, %s381
      %p383 = scmp.eq.s32.totalorder %s33, 0
      %p384 = por %p382, %p383
      %p385 = scmp.le.s32.totalorder 1, %s27
      %p386 = scmp.lt.s32.totalorder %s27, 3
      %p387 = pnand %p385, %p386
      %p388 = pneg %p387
      // Predicated region
      $region9: #{force_aptai_forward.3} parent=5 // pred_check
        _
      $region10: #{force_aptai_forward.3} parent=5 // pred_check_branch
        %390 = sbr.rel (%p387) target = $region12
      $region11: #{force_aptai_forward.3} parent=5 // pred_region
        %s391 = ssub.s32 %s27, 1
        // Predicated region
        $region13: #{force_aptai_forward.3} parent=11 // pred_check
          %p392 = pneg %p126
        $region14: #{force_aptai_forward.3} parent=11 // pred_check_branch
          %394 = sbr.rel (%p392) target = $region16
        $region15: #{force_aptai_forward.3} parent=11 // pred_region
          _
        $region16: #{force_aptai_forward.3} parent=11 // pred_fallthru
          _
        // Predicated region
        $region17: #{force_aptai_forward.3} parent=11 // pred_check
          %p395 = pneg %p147
        $region18: #{force_aptai_forward.3} parent=11 // pred_check_branch
          %397 = sbr.rel (%p395) target = $region20
        $region19: #{force_aptai_forward.3} parent=11 // pred_region
          _
        $region20: #{force_aptai_forward.3} parent=11 // pred_fallthru
          _
        // Predicated region
        $region21: #{force_aptai_forward.3} parent=11 // pred_check
          %p398 = pneg %p168
        $region22: #{force_aptai_forward.3} parent=11 // pred_check_branch
          %400 = sbr.rel (%p398) target = $region24
        $region23: #{force_aptai_forward.3} parent=11 // pred_region
          _
        $region24: #{force_aptai_forward.3} parent=11 // pred_fallthru
          _
        // Predicated region
        $region25: #{force_aptai_forward.3} parent=11 // pred_check
          %p401 = pneg %p189
        $region26: #{force_aptai_forward.3} parent=11 // pred_check_branch
          %403 = sbr.rel (%p401) target = $region28
        $region27: #{force_aptai_forward.3} parent=11 // pred_region
          _
        $region28: #{force_aptai_forward.3} parent=11 // pred_fallthru
          _
        // Predicated region
        $region29: #{force_aptai_forward.3} parent=11 // pred_check
          %p404 = pneg %p210
        $region30: #{force_aptai_forward.3} parent=11 // pred_check_branch
          %406 = sbr.rel (%p404) target = $region32
        $region31: #{force_aptai_forward.3} parent=11 // pred_region
          _
        $region32: #{force_aptai_forward.3} parent=11 // pred_fallthru
          _
        // Predicated region
        $region33: #{force_aptai_forward.3} parent=11 // pred_check
          %p407 = pneg %p231
        $region34: #{force_aptai_forward.3} parent=11 // pred_check_branch
          %409 = sbr.rel (%p407) target = $region36
        $region35: #{force_aptai_forward.3} parent=11 // pred_region
          _
        $region36: #{force_aptai_forward.3} parent=11 // pred_fallthru
          _
        // Predicated region
        $region37: #{force_aptai_forward.3} parent=11 // pred_check
          %p410 = pneg %p252
        $region38: #{force_aptai_forward.3} parent=11 // pred_check_branch
          %412 = sbr.rel (%p410) target = $region40
        $region39: #{force_aptai_forward.3} parent=11 // pred_region
          _
        $region40: #{force_aptai_forward.3} parent=11 // pred_fallthru
          _
        // Predicated region
        $region41: #{force_aptai_forward.3} parent=11 // pred_check
          %p413 = pneg %p273
        $region42: #{force_aptai_forward.3} parent=11 // pred_check_branch
          %415 = sbr.rel (%p413) target = $region44
        $region43: #{force_aptai_forward.3} parent=11 // pred_region
          _
        $region44: #{force_aptai_forward.3} parent=11 // pred_fallthru
          _
      $region12: #{force_aptai_forward.3} parent=5 // pred_fallthru
        _
      %p416 = scmp.lt.s32.totalorder %s27, 2
      // Predicated region
      $region45: #{force_aptai_forward.3} parent=5 // pred_check
        %p417 = pneg %p416
      $region46: #{force_aptai_forward.3} parent=5 // pred_check_branch
        %419 = sbr.rel (%p417) target = $region48
      $region47: #{force_aptai_forward.3} parent=5 // pred_region
        // Predicated region
        $region49: #{force_aptai_forward.3} parent=47 // pred_check
          %p420 = pneg %p47
        $region50: #{force_aptai_forward.3} parent=47 // pred_check_branch
          %422 = sbr.rel (%p420) target = $region52
        $region51: #{force_aptai_forward.3} parent=47 // pred_region
          %p423 = scmp.lt.s32.totalorder %s27, 1
          %s424 = scalar_select %p423, %s27, 1
          %s425 = smul.addr %s424, 16
          %s426 = smul.addr %s425, 4
          %s427 = scalar_lea.vmem %s0, %s426
        $region52: #{force_aptai_forward.3} parent=47 // pred_fallthru
          _
        // Predicated region
        $region53: #{force_aptai_forward.3} parent=47 // pred_check
          %p428 = pneg %p73
        $region54: #{force_aptai_forward.3} parent=47 // pred_check_branch
          %430 = sbr.rel (%p428) target = $region56
        $region55: #{force_aptai_forward.3} parent=47 // pred_region
          %p431 = scmp.lt.s32.totalorder %s27, 1
          %s432 = scalar_select %p431, %s27, 1
          %s433 = smul.addr %s432, 16
          %s434 = smul.addr %s433, 4
          %s435 = scalar_lea.vmem %s1, %s434
        $region56: #{force_aptai_forward.3} parent=47 // pred_fallthru
          _
        // Predicated region
        $region57: #{force_aptai_forward.3} parent=47 // pred_check
          %p436 = pneg %p99
        $region58: #{force_aptai_forward.3} parent=47 // pred_check_branch
          %438 = sbr.rel (%p436) target = $region60
        $region59: #{force_aptai_forward.3} parent=47 // pred_region
          %p439 = scmp.lt.s32.totalorder %s27, 1
          %s440 = scalar_select %p439, %s27, 1
          %s441 = scalar_lea.vmem %s2, %s440
        $region60: #{force_aptai_forward.3} parent=47 // pred_fallthru
          _
      $region48: #{force_aptai_forward.3} parent=5 // pred_fallthru
        _
      %p442 = scmp.le.s32.totalorder 1, %s27
      %p443 = scmp.lt.s32.totalorder %s27, 3
      %p444 = pnand %p442, %p443
      %p445 = pneg %p444
      // Predicated region
      $region61: #{force_aptai_forward.3} parent=5 // pred_check
        _
      $region62: #{force_aptai_forward.3} parent=5 // pred_check_branch
        %447 = sbr.rel (%p444) target = $region64
      $region63: #{force_aptai_forward.3} parent=5 // pred_region
        %s448 = ssub.s32 %s27, 1
        %p449 = scmp.lt.s32.totalorder %s32, 1
        %s450 = scalar_select %p449, %s32, 1
        %s451 = smul.addr %s450, 16
        %s452 = smul.addr %s451, 4
        %s453 = scalar_lea.vmem %s0, %s452
        %p454 = pneg %p53
        %p455 = pneg %p50
        %p456 = scmp.lt.s32.totalorder %s32, 1
        %s457 = scalar_select %p456, %s32, 1
        %s458 = smul.addr %s457, 16
        %s459 = smul.addr %s458, 4
        %s460 = scalar_lea.vmem %s1, %s459
        %p461 = pneg %p79
        %p462 = pneg %p76
        %p463 = scmp.lt.s32.totalorder %s32, 1
        %s464 = scalar_select %p463, %s32, 1
        %s465 = scalar_lea.vmem %s2, %s464
        %p466 = pneg %p105
        %p467 = pneg %p102
        %p468 = pneg %p126
        %p469 = pneg %p123
        %p470 = pneg %p147
        %p471 = pneg %p144
        %p472 = pneg %p168
        %p473 = pneg %p165
        %p474 = pneg %p189
        %p475 = pneg %p186
        %p476 = pneg %p210
        %p477 = pneg %p207
        %p478 = pneg %p231
        %p479 = pneg %p228
        %p480 = pneg %p252
        %p481 = pneg %p249
        %p482 = pneg %p273
        %p483 = pneg %p270
        %p484 = pneg %p299
        %p485 = pneg %p296
        %s486 = sand.u32 %s286, 1
        %s487 = scalar_lea.sflag [#allocation3], %s486
        %s488 = sand.u32 %s286, 1
        %s489 = smul.addr %s488, 32
        %s490 = scalar_lea.vmem [#allocation2], %s489
        %p491 = pneg %p325
        %p492 = pneg %p322
        %p493 = scmp.lt.s32.totalorder %s32, 1
        %s494 = scalar_select %p493, %s32, 1
        %s495 = smul.addr %s494, 6
        %s496 = smul.addr %s495, 8
        %s497 = scalar_lea.vmem %s12, %s496
        %p498 = pneg %p351
        %p499 = pneg %p348
        %s500 = sand.u32 %s338, 1
        %s501 = scalar_lea.sflag [#allocation5], %s500
        %s502 = sand.u32 %s338, 1
        %s503 = smul.addr %s502, 16
        %s504 = scalar_lea.vmem [#allocation4], %s503
        %p505 = pneg %p377
        %p506 = pneg %p374
        %p507 = scmp.lt.s32.totalorder %s32, 1
        %s508 = scalar_select %p507, %s32, 1
        %s509 = smul.addr %s508, 2
        %s510 = smul.addr %s509, 8
        %s511 = scalar_lea.vmem %s14, %s510
        %p512 = scmp.lt.s32.totalorder %s32, 1
        %s513 = scalar_select %p512, %s32, 1
        %s514 = smul.addr %s513, 16
        %s515 = smul.addr %s514, 4
        %s516 = scalar_lea.vmem %s0, %s515
        %p517 = scmp.lt.s32.totalorder %s32, 1
        %s518 = scalar_select %p517, %s32, 1
        %s519 = smul.addr %s518, 16
        %s520 = smul.addr %s519, 4
        %s521 = scalar_lea.vmem %s1, %s520
        %p522 = scmp.lt.s32.totalorder %s32, 1
        %s523 = scalar_select %p522, %s32, 1
        %s524 = scalar_lea.vmem %s2, %s523
        %p525 = scmp.lt.s32.totalorder %s32, 1
        %s526 = scalar_select %p525, %s32, 1
        %s527 = smul.addr %s526, 6
        %s528 = smul.addr %s527, 8
        %s529 = scalar_lea.vmem %s12, %s528
        %p530 = scmp.lt.s32.totalorder %s32, 1
        %s531 = scalar_select %p530, %s32, 1
        %s532 = smul.addr %s531, 2
        %s533 = smul.addr %s532, 8
        %s534 = scalar_lea.vmem %s14, %s533
        %v536 = vld [vmem:[%s516] sm:$0xff]
        %v537 = vld [vmem:[%s516 + $0x8] sm:$0xff]
        %v538 = vld [vmem:[%s516 + $0x10] sm:$0xff]
        %v539 = vld [vmem:[%s516 + $0x18] sm:$0xff]
        %v540 = vld [vmem:[%s516 + $0x20] sm:$0xff]
        %v541 = vld [vmem:[%s516 + $0x28] sm:$0xff]
        %v542 = vld [vmem:[%s516 + $0x30] sm:$0xff]
        %v543 = vld [vmem:[%s516 + $0x38] sm:$0xff]
        %v544 = vld [vmem:[%s521] sm:$0xf]
        %v545 = vld [vmem:[%s521 + $0x4] sm:$0xf]
        %v546 = vld [vmem:[%s521 + $0x8] sm:$0xf]
        %v547 = vld [vmem:[%s521 + $0xc] sm:$0xf]
        %v548 = vld [vmem:[%s521 + $0x10] sm:$0xf]
        %v549 = vld [vmem:[%s521 + $0x14] sm:$0xf]
        %v550 = vld [vmem:[%s521 + $0x18] sm:$0xf]
        %v551 = vld [vmem:[%s521 + $0x1c] sm:$0xf]
        %v552 = vld [vmem:[%s521 + $0x20] sm:$0xf]
        %v553 = vld [vmem:[%s521 + $0x24] sm:$0xf]
        %v554 = vld [vmem:[%s521 + $0x28] sm:$0xf]
        %v555 = vld [vmem:[%s521 + $0x2c] sm:$0xf]
        %v556 = vld [vmem:[%s521 + $0x30] sm:$0xf]
        %v557 = vld [vmem:[%s521 + $0x34] sm:$0xf]
        %v558 = vld [vmem:[%s521 + $0x38] sm:$0xf]
        %v559 = vld [vmem:[%s521 + $0x3c] sm:$0xf]
        %v560 = vld [vmem:[%s524] sm:$0x1]
        %v561 = vld [vmem:[%s3] sm:$0xf]
        %v562 = vld [vmem:[%s3 + $0x4] sm:$0xf]
        %v563 = vld [vmem:[%s3 + $0x8] sm:$0xf]
        %v564 = vld [vmem:[%s3 + $0xc] sm:$0xf]
        %v565 = vld [vmem:[%s3 + $0x10] sm:$0xf]
        %v566 = vld [vmem:[%s3 + $0x14] sm:$0xf]
        %v567 = vld [vmem:[%s3 + $0x18] sm:$0xf]
        %v568 = vld [vmem:[%s3 + $0x1c] sm:$0xf]
        %v569 = vld [vmem:[%s3 + $0x20] sm:$0xf]
        %v570 = vld [vmem:[%s3 + $0x24] sm:$0xf]
        %v571 = vld [vmem:[%s3 + $0x28] sm:$0xf]
        %v572 = vld [vmem:[%s3 + $0x2c] sm:$0xf]
        %v573 = vld [vmem:[%s3 + $0x30] sm:$0xf]
        %v574 = vld [vmem:[%s3 + $0x34] sm:$0xf]
        %v575 = vld [vmem:[%s3 + $0x38] sm:$0xf]
        %v576 = vld [vmem:[%s3 + $0x3c] sm:$0xf]
        %v577 = vld [vmem:[%s3 + $0x40] sm:$0xf]
        %v578 = vld [vmem:[%s3 + $0x44] sm:$0xf]
        %v579 = vld [vmem:[%s3 + $0x48] sm:$0xf]
        %v580 = vld [vmem:[%s3 + $0x4c] sm:$0xf]
        %v581 = vld [vmem:[%s3 + $0x50] sm:$0xf]
        %v582 = vld [vmem:[%s3 + $0x54] sm:$0xf]
        %v583 = vld [vmem:[%s3 + $0x58] sm:$0xf]
        %v584 = vld [vmem:[%s3 + $0x5c] sm:$0xf]
        %v585 = vld [vmem:[%s3 + $0x60] sm:$0xf]
        %v586 = vld [vmem:[%s3 + $0x64] sm:$0xf]
        %v587 = vld [vmem:[%s3 + $0x68] sm:$0xf]
        %v588 = vld [vmem:[%s3 + $0x6c] sm:$0xf]
        %v589 = vld [vmem:[%s3 + $0x70] sm:$0xf]
        %v590 = vld [vmem:[%s3 + $0x74] sm:$0xf]
        %v591 = vld [vmem:[%s3 + $0x78] sm:$0xf]
        %v592 = vld [vmem:[%s3 + $0x7c] sm:$0xf]
        %v593 = vld [vmem:[%s3 + $0x80] sm:$0xf]
        %v594 = vld [vmem:[%s3 + $0x84] sm:$0xf]
        %v595 = vld [vmem:[%s3 + $0x88] sm:$0xf]
        %v596 = vld [vmem:[%s3 + $0x8c] sm:$0xf]
        %v597 = vld [vmem:[%s3 + $0x90] sm:$0xf]
        %v598 = vld [vmem:[%s3 + $0x94] sm:$0xf]
        %v599 = vld [vmem:[%s3 + $0x98] sm:$0xf]
        %v600 = vld [vmem:[%s3 + $0x9c] sm:$0xf]
        %v601 = vld [vmem:[%s3 + $0xa0] sm:$0xf]
        %v602 = vld [vmem:[%s3 + $0xa4] sm:$0xf]
        %v603 = vld [vmem:[%s3 + $0xa8] sm:$0xf]
        %v604 = vld [vmem:[%s3 + $0xac] sm:$0xf]
        %v605 = vld [vmem:[%s3 + $0xb0] sm:$0xf]
        %v606 = vld [vmem:[%s3 + $0xb4] sm:$0xf]
        %v607 = vld [vmem:[%s3 + $0xb8] sm:$0xf]
        %v608 = vld [vmem:[%s3 + $0xbc] sm:$0xf]
        %v609 = vld [vmem:[%s3 + $0xc0] sm:$0xf]
        %v610 = vld [vmem:[%s3 + $0xc4] sm:$0xf]
        %v611 = vld [vmem:[%s3 + $0xc8] sm:$0xf]
        %v612 = vld [vmem:[%s3 + $0xcc] sm:$0xf]
        %v613 = vld [vmem:[%s3 + $0xd0] sm:$0xf]
        %v614 = vld [vmem:[%s3 + $0xd4] sm:$0xf]
        %v615 = vld [vmem:[%s3 + $0xd8] sm:$0xf]
        %v616 = vld [vmem:[%s3 + $0xdc] sm:$0xf]
        %v617 = vld [vmem:[%s3 + $0xe0] sm:$0xf]
        %v618 = vld [vmem:[%s3 + $0xe4] sm:$0xf]
        %v619 = vld [vmem:[%s3 + $0xe8] sm:$0xf]
        %v620 = vld [vmem:[%s3 + $0xec] sm:$0xf]
        %v621 = vld [vmem:[%s3 + $0xf0] sm:$0xf]
        %v622 = vld [vmem:[%s3 + $0xf4] sm:$0xf]
        %v623 = vld [vmem:[%s3 + $0xf8] sm:$0xf]
        %v624 = vld [vmem:[%s3 + $0xfc] sm:$0xf]
        %v625 = vld [vmem:[%s3 + $0x100] sm:$0xf]
        %v626 = vld [vmem:[%s3 + $0x104] sm:$0xf]
        %v627 = vld [vmem:[%s3 + $0x108] sm:$0xf]
        %v628 = vld [vmem:[%s3 + $0x10c] sm:$0xf]
        %v629 = vld [vmem:[%s3 + $0x110] sm:$0xf]
        %v630 = vld [vmem:[%s3 + $0x114] sm:$0xf]
        %v631 = vld [vmem:[%s3 + $0x118] sm:$0xf]
        %v632 = vld [vmem:[%s3 + $0x11c] sm:$0xf]
        %v633 = vld [vmem:[%s3 + $0x120] sm:$0xf]
        %v634 = vld [vmem:[%s3 + $0x124] sm:$0xf]
        %v635 = vld [vmem:[%s3 + $0x128] sm:$0xf]
        %v636 = vld [vmem:[%s3 + $0x12c] sm:$0xf]
        %v637 = vld [vmem:[%s3 + $0x130] sm:$0xf]
        %v638 = vld [vmem:[%s3 + $0x134] sm:$0xf]
        %v639 = vld [vmem:[%s3 + $0x138] sm:$0xf]
        %v640 = vld [vmem:[%s3 + $0x13c] sm:$0xf]
        %v641 = vld [vmem:[%s3 + $0x140] sm:$0xf]
        %v642 = vld [vmem:[%s3 + $0x144] sm:$0xf]
        %v643 = vld [vmem:[%s3 + $0x148] sm:$0xf]
        %v644 = vld [vmem:[%s3 + $0x14c] sm:$0xf]
        %v645 = vld [vmem:[%s3 + $0x150] sm:$0xf]
        %v646 = vld [vmem:[%s3 + $0x154] sm:$0xf]
        %v647 = vld [vmem:[%s3 + $0x158] sm:$0xf]
        %v648 = vld [vmem:[%s3 + $0x15c] sm:$0xf]
        %v649 = vld [vmem:[%s3 + $0x160] sm:$0xf]
        %v650 = vld [vmem:[%s3 + $0x164] sm:$0xf]
        %v651 = vld [vmem:[%s3 + $0x168] sm:$0xf]
        %v652 = vld [vmem:[%s3 + $0x16c] sm:$0xf]
        %v653 = vld [vmem:[%s3 + $0x170] sm:$0xf]
        %v654 = vld [vmem:[%s3 + $0x174] sm:$0xf]
        %v655 = vld [vmem:[%s3 + $0x178] sm:$0xf]
        %v656 = vld [vmem:[%s3 + $0x17c] sm:$0xf]
        %v657 = vld [vmem:[%s3 + $0x180] sm:$0xf]
        %v658 = vld [vmem:[%s3 + $0x184] sm:$0xf]
        %v659 = vld [vmem:[%s3 + $0x188] sm:$0xf]
        %v660 = vld [vmem:[%s3 + $0x18c] sm:$0xf]
        %v661 = vld [vmem:[%s3 + $0x190] sm:$0xf]
        %v662 = vld [vmem:[%s3 + $0x194] sm:$0xf]
        %v663 = vld [vmem:[%s3 + $0x198] sm:$0xf]
        %v664 = vld [vmem:[%s3 + $0x19c] sm:$0xf]
        %v665 = vld [vmem:[%s3 + $0x1a0] sm:$0xf]
        %v666 = vld [vmem:[%s3 + $0x1a4] sm:$0xf]
        %v667 = vld [vmem:[%s3 + $0x1a8] sm:$0xf]
        %v668 = vld [vmem:[%s3 + $0x1ac] sm:$0xf]
        %v669 = vld [vmem:[%s3 + $0x1b0] sm:$0xf]
        %v670 = vld [vmem:[%s3 + $0x1b4] sm:$0xf]
        %v671 = vld [vmem:[%s3 + $0x1b8] sm:$0xf]
        %v672 = vld [vmem:[%s3 + $0x1bc] sm:$0xf]
        %v673 = vld [vmem:[%s3 + $0x1c0] sm:$0xf]
        %v674 = vld [vmem:[%s3 + $0x1c4] sm:$0xf]
        %v675 = vld [vmem:[%s3 + $0x1c8] sm:$0xf]
        %v676 = vld [vmem:[%s3 + $0x1cc] sm:$0xf]
        %v677 = vld [vmem:[%s3 + $0x1d0] sm:$0xf]
        %v678 = vld [vmem:[%s3 + $0x1d4] sm:$0xf]
        %v679 = vld [vmem:[%s3 + $0x1d8] sm:$0xf]
        %v680 = vld [vmem:[%s3 + $0x1dc] sm:$0xf]
        %v681 = vld [vmem:[%s3 + $0x1e0] sm:$0xf]
        %v682 = vld [vmem:[%s3 + $0x1e4] sm:$0xf]
        %v683 = vld [vmem:[%s3 + $0x1e8] sm:$0xf]
        %v684 = vld [vmem:[%s3 + $0x1ec] sm:$0xf]
        %v685 = vld [vmem:[%s3 + $0x1f0] sm:$0xf]
        %v686 = vld [vmem:[%s3 + $0x1f4] sm:$0xf]
        %v687 = vld [vmem:[%s3 + $0x1f8] sm:$0xf]
        %v688 = vld [vmem:[%s3 + $0x1fc] sm:$0xf]
        %v689 = vld [vmem:[%s4] sm:$0x1]
        %v691 = vlaneseq
        %v692 = vshrl.u32 %v691, 7
        %v693 = vsub.s32 0, %v692
        %v694 = vrot.slane %v689, %v693
        %v704 = vunpack.c.l.b16 %v536
        %v705 = vunpack.c.h.b16 %v536
        %v706 = vunpack.c.l.b16 %v537
        %v707 = vunpack.c.h.b16 %v537
        %v708 = vunpack.c.l.b16 %v538
        %v709 = vunpack.c.h.b16 %v538
        %v710 = vunpack.c.l.b16 %v539
        %v711 = vunpack.c.h.b16 %v539
        %v712 = vunpack.c.l.b16 %v540
        %v713 = vunpack.c.h.b16 %v540
        %v714 = vunpack.c.l.b16 %v541
        %v715 = vunpack.c.h.b16 %v541
        %v716 = vunpack.c.l.b16 %v542
        %v717 = vunpack.c.h.b16 %v542
        %v718 = vunpack.c.l.b16 %v543
        %v719 = vunpack.c.h.b16 %v543
        %v720 = vpack.c.b16 %v712, %v704
        %v721 = vpack.c.b16 %v713, %v705
        %v722 = vpack.c.b16 %v714, %v706
        %v723 = vpack.c.b16 %v715, %v707
        %v724 = vpack.c.b16 %v716, %v708
        %v725 = vpack.c.b16 %v717, %v709
        %v726 = vpack.c.b16 %v718, %v710
        %v727 = vpack.c.b16 %v719, %v711
        %v864 = vunpack.c.l.b16 %v561
        %v865 = vunpack.c.l.b16 %v562
        %v866 = vunpack.c.l.b16 %v563
        %v867 = vunpack.c.l.b16 %v564
        %v868 = vunpack.c.l.b16 %v565
        %v869 = vunpack.c.l.b16 %v566
        %v870 = vunpack.c.l.b16 %v567
        %v871 = vunpack.c.l.b16 %v568
        %v872 = vunpack.c.l.b16 %v569
        %v873 = vunpack.c.l.b16 %v570
        %v874 = vunpack.c.l.b16 %v571
        %v875 = vunpack.c.l.b16 %v572
        %v876 = vunpack.c.l.b16 %v573
        %v877 = vunpack.c.l.b16 %v574
        %v878 = vunpack.c.l.b16 %v575
        %v879 = vunpack.c.l.b16 %v576
        %v880 = vunpack.c.l.b16 %v577
        %v881 = vunpack.c.l.b16 %v578
        %v882 = vunpack.c.l.b16 %v579
        %v883 = vunpack.c.l.b16 %v580
        %v884 = vunpack.c.l.b16 %v581
        %v885 = vunpack.c.l.b16 %v582
        %v886 = vunpack.c.l.b16 %v583
        %v887 = vunpack.c.l.b16 %v584
        %v888 = vunpack.c.l.b16 %v585
        %v889 = vunpack.c.l.b16 %v586
        %v890 = vunpack.c.l.b16 %v587
        %v891 = vunpack.c.l.b16 %v588
        %v892 = vunpack.c.l.b16 %v589
        %v893 = vunpack.c.l.b16 %v590
        %v894 = vunpack.c.l.b16 %v591
        %v895 = vunpack.c.l.b16 %v592
        %v896 = vunpack.c.l.b16 %v593
        %v897 = vunpack.c.l.b16 %v594
        %v898 = vunpack.c.l.b16 %v595
        %v899 = vunpack.c.l.b16 %v596
        %v900 = vunpack.c.l.b16 %v597
        %v901 = vunpack.c.l.b16 %v598
        %v902 = vunpack.c.l.b16 %v599
        %v903 = vunpack.c.l.b16 %v600
        %v904 = vunpack.c.l.b16 %v601
        %v905 = vunpack.c.l.b16 %v602
        %v906 = vunpack.c.l.b16 %v603
        %v907 = vunpack.c.l.b16 %v604
        %v908 = vunpack.c.l.b16 %v605
        %v909 = vunpack.c.l.b16 %v606
        %v910 = vunpack.c.l.b16 %v607
        %v911 = vunpack.c.l.b16 %v608
        %v912 = vunpack.c.l.b16 %v609
        %v913 = vunpack.c.l.b16 %v610
        %v914 = vunpack.c.l.b16 %v611
        %v915 = vunpack.c.l.b16 %v612
        %v916 = vunpack.c.l.b16 %v613
        %v917 = vunpack.c.l.b16 %v614
        %v918 = vunpack.c.l.b16 %v615
        %v919 = vunpack.c.l.b16 %v616
        %v920 = vunpack.c.l.b16 %v617
        %v921 = vunpack.c.l.b16 %v618
        %v922 = vunpack.c.l.b16 %v619
        %v923 = vunpack.c.l.b16 %v620
        %v924 = vunpack.c.l.b16 %v621
        %v925 = vunpack.c.l.b16 %v622
        %v926 = vunpack.c.l.b16 %v623
        %v927 = vunpack.c.l.b16 %v624
        %v928 = vunpack.c.l.b16 %v625
        %v929 = vunpack.c.l.b16 %v626
        %v930 = vunpack.c.l.b16 %v627
        %v931 = vunpack.c.l.b16 %v628
        %v932 = vunpack.c.l.b16 %v629
        %v933 = vunpack.c.l.b16 %v630
        %v934 = vunpack.c.l.b16 %v631
        %v935 = vunpack.c.l.b16 %v632
        %v936 = vunpack.c.l.b16 %v633
        %v937 = vunpack.c.l.b16 %v634
        %v938 = vunpack.c.l.b16 %v635
        %v939 = vunpack.c.l.b16 %v636
        %v940 = vunpack.c.l.b16 %v637
        %v941 = vunpack.c.l.b16 %v638
        %v942 = vunpack.c.l.b16 %v639
        %v943 = vunpack.c.l.b16 %v640
        %v944 = vunpack.c.l.b16 %v641
        %v945 = vunpack.c.l.b16 %v642
        %v946 = vunpack.c.l.b16 %v643
        %v947 = vunpack.c.l.b16 %v644
        %v948 = vunpack.c.l.b16 %v645
        %v949 = vunpack.c.l.b16 %v646
        %v950 = vunpack.c.l.b16 %v647
        %v951 = vunpack.c.l.b16 %v648
        %v952 = vunpack.c.l.b16 %v649
        %v953 = vunpack.c.l.b16 %v650
        %v954 = vunpack.c.l.b16 %v651
        %v955 = vunpack.c.l.b16 %v652
        %v956 = vunpack.c.l.b16 %v653
        %v957 = vunpack.c.l.b16 %v654
        %v958 = vunpack.c.l.b16 %v655
        %v959 = vunpack.c.l.b16 %v656
        %v960 = vunpack.c.l.b16 %v657
        %v961 = vunpack.c.l.b16 %v658
        %v962 = vunpack.c.l.b16 %v659
        %v963 = vunpack.c.l.b16 %v660
        %v964 = vunpack.c.l.b16 %v661
        %v965 = vunpack.c.l.b16 %v662
        %v966 = vunpack.c.l.b16 %v663
        %v967 = vunpack.c.l.b16 %v664
        %v968 = vunpack.c.l.b16 %v665
        %v969 = vunpack.c.l.b16 %v666
        %v970 = vunpack.c.l.b16 %v667
        %v971 = vunpack.c.l.b16 %v668
        %v972 = vunpack.c.l.b16 %v669
        %v973 = vunpack.c.l.b16 %v670
        %v974 = vunpack.c.l.b16 %v671
        %v975 = vunpack.c.l.b16 %v672
        %v976 = vunpack.c.l.b16 %v673
        %v977 = vunpack.c.l.b16 %v674
        %v978 = vunpack.c.l.b16 %v675
        %v979 = vunpack.c.l.b16 %v676
        %v980 = vunpack.c.l.b16 %v677
        %v981 = vunpack.c.l.b16 %v678
        %v982 = vunpack.c.l.b16 %v679
        %v983 = vunpack.c.l.b16 %v680
        %v984 = vunpack.c.l.b16 %v681
        %v985 = vunpack.c.l.b16 %v682
        %v986 = vunpack.c.l.b16 %v683
        %v987 = vunpack.c.l.b16 %v684
        %v988 = vunpack.c.l.b16 %v685
        %v989 = vunpack.c.l.b16 %v686
        %v990 = vunpack.c.l.b16 %v687
        %v991 = vunpack.c.l.b16 %v688
        %v992 = vpack.c.b16 %v865, %v864
        %v993 = vpack.c.b16 %v867, %v866
        %v994 = vpack.c.b16 %v869, %v868
        %v995 = vpack.c.b16 %v871, %v870
        %v996 = vpack.c.b16 %v873, %v872
        %v997 = vpack.c.b16 %v875, %v874
        %v998 = vpack.c.b16 %v877, %v876
        %v999 = vpack.c.b16 %v879, %v878
        %v1000 = vpack.c.b16 %v881, %v880
        %v1001 = vpack.c.b16 %v883, %v882
        %v1002 = vpack.c.b16 %v885, %v884
        %v1003 = vpack.c.b16 %v887, %v886
        %v1004 = vpack.c.b16 %v889, %v888
        %v1005 = vpack.c.b16 %v891, %v890
        %v1006 = vpack.c.b16 %v893, %v892
        %v1007 = vpack.c.b16 %v895, %v894
        %v1008 = vpack.c.b16 %v897, %v896
        %v1009 = vpack.c.b16 %v899, %v898
        %v1010 = vpack.c.b16 %v901, %v900
        %v1011 = vpack.c.b16 %v903, %v902
        %v1012 = vpack.c.b16 %v905, %v904
        %v1013 = vpack.c.b16 %v907, %v906
        %v1014 = vpack.c.b16 %v909, %v908
        %v1015 = vpack.c.b16 %v911, %v910
        %v1016 = vpack.c.b16 %v913, %v912
        %v1017 = vpack.c.b16 %v915, %v914
        %v1018 = vpack.c.b16 %v917, %v916
        %v1019 = vpack.c.b16 %v919, %v918
        %v1020 = vpack.c.b16 %v921, %v920
        %v1021 = vpack.c.b16 %v923, %v922
        %v1022 = vpack.c.b16 %v925, %v924
        %v1023 = vpack.c.b16 %v927, %v926
        %v1024 = vpack.c.b16 %v929, %v928
        %v1025 = vpack.c.b16 %v931, %v930
        %v1026 = vpack.c.b16 %v933, %v932
        %v1027 = vpack.c.b16 %v935, %v934
        %v1028 = vpack.c.b16 %v937, %v936
        %v1029 = vpack.c.b16 %v939, %v938
        %v1030 = vpack.c.b16 %v941, %v940
        %v1031 = vpack.c.b16 %v943, %v942
        %v1032 = vpack.c.b16 %v945, %v944
        %v1033 = vpack.c.b16 %v947, %v946
        %v1034 = vpack.c.b16 %v949, %v948
        %v1035 = vpack.c.b16 %v951, %v950
        %v1036 = vpack.c.b16 %v953, %v952
        %v1037 = vpack.c.b16 %v955, %v954
        %v1038 = vpack.c.b16 %v957, %v956
        %v1039 = vpack.c.b16 %v959, %v958
        %v1040 = vpack.c.b16 %v961, %v960
        %v1041 = vpack.c.b16 %v963, %v962
        %v1042 = vpack.c.b16 %v965, %v964
        %v1043 = vpack.c.b16 %v967, %v966
        %v1044 = vpack.c.b16 %v969, %v968
        %v1045 = vpack.c.b16 %v971, %v970
        %v1046 = vpack.c.b16 %v973, %v972
        %v1047 = vpack.c.b16 %v975, %v974
        %v1048 = vpack.c.b16 %v977, %v976
        %v1049 = vpack.c.b16 %v979, %v978
        %v1050 = vpack.c.b16 %v981, %v980
        %v1051 = vpack.c.b16 %v983, %v982
        %v1052 = vpack.c.b16 %v985, %v984
        %v1053 = vpack.c.b16 %v987, %v986
        %v1054 = vpack.c.b16 %v989, %v988
        %v1055 = vpack.c.b16 %v991, %v990
        %1120 = vmatprep.subr.bf16.mxu0 0
        %1121 = vmatpush1.bf16.msra.mxu0 %v992
        %1122 = vmatprep.subr.bf16.mxu0 0
        %1123 = vmatpush1.bf16.msra.mxu0 %v993
        %1124 = vmatprep.subr.bf16.mxu0 0
        %1125 = vmatpush1.bf16.msra.mxu0 %v994
        %1126 = vmatprep.subr.bf16.mxu0 0
        %1127 = vmatpush1.bf16.msra.mxu0 %v995
        %1128 = vmatprep.subr.bf16.mxu0 0
        %1129 = vmatpush1.bf16.msra.mxu0 %v996
        %1130 = vmatprep.subr.bf16.mxu0 0
        %1131 = vmatpush1.bf16.msra.mxu0 %v997
        %1132 = vmatprep.subr.bf16.mxu0 0
        %1133 = vmatpush1.bf16.msra.mxu0 %v998
        %1134 = vmatprep.subr.bf16.mxu0 0
        %1135 = vmatpush1.bf16.msra.mxu0 %v999
        %1136 = vmatprep.subr.bf16.mxu0 0
        %1137 = vmatpush1.bf16.msra.mxu0 %v1000
        %1138 = vmatprep.subr.bf16.mxu0 0
        %1139 = vmatpush1.bf16.msra.mxu0 %v1001
        %1140 = vmatprep.subr.bf16.mxu0 0
        %1141 = vmatpush1.bf16.msra.mxu0 %v1002
        %1142 = vmatprep.subr.bf16.mxu0 0
        %1143 = vmatpush1.bf16.msra.mxu0 %v1003
        %1144 = vmatprep.subr.bf16.mxu0 0
        %1145 = vmatpush1.bf16.msra.mxu0 %v1004
        %1146 = vmatprep.subr.bf16.mxu0 0
        %1147 = vmatpush1.bf16.msra.mxu0 %v1005
        %1148 = vmatprep.subr.bf16.mxu0 0
        %1149 = vmatpush1.bf16.msra.mxu0 %v1006
        %1150 = vmatprep.subr.bf16.mxu0 0
        %1151 = vmatpush1.bf16.msra.mxu0 %v1007
        %1152 = vmatprep.mubr.bf16.mxu0 %v721
        %1153 = vmatmul.mubr.bf16.gmra.mrb[0].mxu0 %v720
        %v1154 = vpop.f32.mrb[0].mxu0
        %v1155 = vadd.f32 %v694, %v1154
        %v1156 = vpop.f32.mrb[0].mxu0
        %v1157 = vpop.f32.mrb[0].mxu0
        %v1158 = vadd.f32 %v694, %v1157
        %v1159 = vpop.f32.mrb[0].mxu0
        %1160 = vdwg.mxu0
        %1161 = vmatprep.subr.bf16.mxu0 0
        %1162 = vmatpush1.bf16.msra.mxu0 %v1008
        %1163 = vmatprep.subr.bf16.mxu0 0
        %1164 = vmatpush1.bf16.msra.mxu0 %v1009
        %1165 = vmatprep.subr.bf16.mxu0 0
        %1166 = vmatpush1.bf16.msra.mxu0 %v1010
        %1167 = vmatprep.subr.bf16.mxu0 0
        %1168 = vmatpush1.bf16.msra.mxu0 %v1011
        %1169 = vmatprep.subr.bf16.mxu0 0
        %1170 = vmatpush1.bf16.msra.mxu0 %v1012
        %1171 = vmatprep.subr.bf16.mxu0 0
        %1172 = vmatpush1.bf16.msra.mxu0 %v1013
        %1173 = vmatprep.subr.bf16.mxu0 0
        %1174 = vmatpush1.bf16.msra.mxu0 %v1014
        %1175 = vmatprep.subr.bf16.mxu0 0
        %1176 = vmatpush1.bf16.msra.mxu0 %v1015
        %1177 = vmatprep.subr.bf16.mxu0 0
        %1178 = vmatpush1.bf16.msra.mxu0 %v1016
        %1179 = vmatprep.subr.bf16.mxu0 0
        %1180 = vmatpush1.bf16.msra.mxu0 %v1017
        %1181 = vmatprep.subr.bf16.mxu0 0
        %1182 = vmatpush1.bf16.msra.mxu0 %v1018
        %1183 = vmatprep.subr.bf16.mxu0 0
        %1184 = vmatpush1.bf16.msra.mxu0 %v1019
        %1185 = vmatprep.subr.bf16.mxu0 0
        %1186 = vmatpush1.bf16.msra.mxu0 %v1020
        %1187 = vmatprep.subr.bf16.mxu0 0
        %1188 = vmatpush1.bf16.msra.mxu0 %v1021
        %1189 = vmatprep.subr.bf16.mxu0 0
        %1190 = vmatpush1.bf16.msra.mxu0 %v1022
        %1191 = vmatprep.subr.bf16.mxu0 0
        %1192 = vmatpush1.bf16.msra.mxu0 %v1023
        %1193 = vmatprep.mubr.bf16.mxu0 %v723
        %1194 = vmatmul.mubr.bf16.gmra.mrb[0].mxu0 %v722
        %v1195 = vpop.f32.mrb[0].mxu0
        %v1196 = vadd.f32 %v1155, %v1195
        %v1197 = vpop.f32.mrb[0].mxu0
        %v1198 = vpop.f32.mrb[0].mxu0
        %v1199 = vadd.f32 %v1158, %v1198
        %v1200 = vpop.f32.mrb[0].mxu0
        %1201 = vdwg.mxu0
        %1202 = vmatprep.subr.bf16.mxu0 0
        %1203 = vmatpush1.bf16.msra.mxu0 %v1024
        %1204 = vmatprep.subr.bf16.mxu0 0
        %1205 = vmatpush1.bf16.msra.mxu0 %v1025
        %1206 = vmatprep.subr.bf16.mxu0 0
        %1207 = vmatpush1.bf16.msra.mxu0 %v1026
        %1208 = vmatprep.subr.bf16.mxu0 0
        %1209 = vmatpush1.bf16.msra.mxu0 %v1027
        %1210 = vmatprep.subr.bf16.mxu0 0
        %1211 = vmatpush1.bf16.msra.mxu0 %v1028
        %1212 = vmatprep.subr.bf16.mxu0 0
        %1213 = vmatpush1.bf16.msra.mxu0 %v1029
        %1214 = vmatprep.subr.bf16.mxu0 0
        %1215 = vmatpush1.bf16.msra.mxu0 %v1030
        %1216 = vmatprep.subr.bf16.mxu0 0
        %1217 = vmatpush1.bf16.msra.mxu0 %v1031
        %1218 = vmatprep.subr.bf16.mxu0 0
        %1219 = vmatpush1.bf16.msra.mxu0 %v1032
        %1220 = vmatprep.subr.bf16.mxu0 0
        %1221 = vmatpush1.bf16.msra.mxu0 %v1033
        %1222 = vmatprep.subr.bf16.mxu0 0
        %1223 = vmatpush1.bf16.msra.mxu0 %v1034
        %1224 = vmatprep.subr.bf16.mxu0 0
        %1225 = vmatpush1.bf16.msra.mxu0 %v1035
        %1226 = vmatprep.subr.bf16.mxu0 0
        %1227 = vmatpush1.bf16.msra.mxu0 %v1036
        %1228 = vmatprep.subr.bf16.mxu0 0
        %1229 = vmatpush1.bf16.msra.mxu0 %v1037
        %1230 = vmatprep.subr.bf16.mxu0 0
        %1231 = vmatpush1.bf16.msra.mxu0 %v1038
        %1232 = vmatprep.subr.bf16.mxu0 0
        %1233 = vmatpush1.bf16.msra.mxu0 %v1039
        %1234 = vmatprep.mubr.bf16.mxu0 %v725
        %1235 = vmatmul.mubr.bf16.gmra.mrb[0].mxu0 %v724
        %v1236 = vpop.f32.mrb[0].mxu0
        %v1237 = vadd.f32 %v1196, %v1236
        %v1238 = vpop.f32.mrb[0].mxu0
        %v1239 = vpop.f32.mrb[0].mxu0
        %v1240 = vadd.f32 %v1199, %v1239
        %v1241 = vpop.f32.mrb[0].mxu0
        %1242 = vdwg.mxu0
        %1243 = vmatprep.subr.bf16.mxu0 0
        %1244 = vmatpush1.bf16.msra.mxu0 %v1040
        %1245 = vmatprep.subr.bf16.mxu0 0
        %1246 = vmatpush1.bf16.msra.mxu0 %v1041
        %1247 = vmatprep.subr.bf16.mxu0 0
        %1248 = vmatpush1.bf16.msra.mxu0 %v1042
        %1249 = vmatprep.subr.bf16.mxu0 0
        %1250 = vmatpush1.bf16.msra.mxu0 %v1043
        %1251 = vmatprep.subr.bf16.mxu0 0
        %1252 = vmatpush1.bf16.msra.mxu0 %v1044
        %1253 = vmatprep.subr.bf16.mxu0 0
        %1254 = vmatpush1.bf16.msra.mxu0 %v1045
        %1255 = vmatprep.subr.bf16.mxu0 0
        %1256 = vmatpush1.bf16.msra.mxu0 %v1046
        %1257 = vmatprep.subr.bf16.mxu0 0
        %1258 = vmatpush1.bf16.msra.mxu0 %v1047
        %1259 = vmatprep.subr.bf16.mxu0 0
        %1260 = vmatpush1.bf16.msra.mxu0 %v1048
        %1261 = vmatprep.subr.bf16.mxu0 0
        %1262 = vmatpush1.bf16.msra.mxu0 %v1049
        %1263 = vmatprep.subr.bf16.mxu0 0
        %1264 = vmatpush1.bf16.msra.mxu0 %v1050
        %1265 = vmatprep.subr.bf16.mxu0 0
        %1266 = vmatpush1.bf16.msra.mxu0 %v1051
        %1267 = vmatprep.subr.bf16.mxu0 0
        %1268 = vmatpush1.bf16.msra.mxu0 %v1052
        %1269 = vmatprep.subr.bf16.mxu0 0
        %1270 = vmatpush1.bf16.msra.mxu0 %v1053
        %1271 = vmatprep.subr.bf16.mxu0 0
        %1272 = vmatpush1.bf16.msra.mxu0 %v1054
        %1273 = vmatprep.subr.bf16.mxu0 0
        %1274 = vmatpush1.bf16.msra.mxu0 %v1055
        %1275 = vmatprep.mubr.bf16.mxu0 %v727
        %1276 = vmatmul.mubr.bf16.gmra.mrb[0].mxu0 %v726
        %v1277 = vpop.f32.mrb[0].mxu0
        %v1278 = vadd.f32 %v1237, %v1277
        %v1279 = vpop.f32.mrb[0].mxu0
        %v1280 = vpop.f32.mrb[0].mxu0
        %v1281 = vadd.f32 %v1240, %v1280
        %v1282 = vpop.f32.mrb[0].mxu0
        %1283 = vdwg.mxu0
        %v1284 = vpack.c.bf16 %v1281, %v1278
        %v1285 = vld [vmem:[%s5] sm:$0xf]
        %v1286 = vld [vmem:[%s5 + $0x4] sm:$0xf]
        %v1287 = vld [vmem:[%s5 + $0x8] sm:$0xf]
        %v1288 = vld [vmem:[%s5 + $0xc] sm:$0xf]
        %v1289 = vld [vmem:[%s5 + $0x10] sm:$0xf]
        %v1290 = vld [vmem:[%s5 + $0x14] sm:$0xf]
        %v1291 = vld [vmem:[%s5 + $0x18] sm:$0xf]
        %v1292 = vld [vmem:[%s5 + $0x1c] sm:$0xf]
        %v1293 = vld [vmem:[%s5 + $0x20] sm:$0xf]
        %v1294 = vld [vmem:[%s5 + $0x24] sm:$0xf]
        %v1295 = vld [vmem:[%s5 + $0x28] sm:$0xf]
        %v1296 = vld [vmem:[%s5 + $0x2c] sm:$0xf]
        %v1297 = vld [vmem:[%s5 + $0x30] sm:$0xf]
        %v1298 = vld [vmem:[%s5 + $0x34] sm:$0xf]
        %v1299 = vld [vmem:[%s5 + $0x38] sm:$0xf]
        %v1300 = vld [vmem:[%s5 + $0x3c] sm:$0xf]
        %v1301 = vld [vmem:[%s6] sm:$0x1]
        %v1303 = vlaneseq
        %v1304 = vshrl.u32 %v1303, 7
        %v1305 = vsub.s32 0, %v1304
        %v1306 = vrot.slane %v1301, %v1305
        %v1324 = vunpack.c.l.b16 %v1285
        %v1325 = vunpack.c.l.b16 %v1286
        %v1326 = vunpack.c.l.b16 %v1287
        %v1327 = vunpack.c.l.b16 %v1288
        %v1328 = vunpack.c.l.b16 %v1289
        %v1329 = vunpack.c.l.b16 %v1290
        %v1330 = vunpack.c.l.b16 %v1291
        %v1331 = vunpack.c.l.b16 %v1292
        %v1332 = vunpack.c.l.b16 %v1293
        %v1333 = vunpack.c.l.b16 %v1294
        %v1334 = vunpack.c.l.b16 %v1295
        %v1335 = vunpack.c.l.b16 %v1296
        %v1336 = vunpack.c.l.b16 %v1297
        %v1337 = vunpack.c.l.b16 %v1298
        %v1338 = vunpack.c.l.b16 %v1299
        %v1339 = vunpack.c.l.b16 %v1300
        %v1340 = vpack.c.b16 %v1325, %v1324
        %v1341 = vpack.c.b16 %v1327, %v1326
        %v1342 = vpack.c.b16 %v1329, %v1328
        %v1343 = vpack.c.b16 %v1331, %v1330
        %v1344 = vpack.c.b16 %v1333, %v1332
        %v1345 = vpack.c.b16 %v1335, %v1334
        %v1346 = vpack.c.b16 %v1337, %v1336
        %v1347 = vpack.c.b16 %v1339, %v1338
        %1356 = vmatprep.subr.bf16.mxu0 0
        %1357 = vmatpush1.bf16.msra.mxu0 %v1340
        %1358 = vmatprep.subr.bf16.mxu0 0
        %1359 = vmatpush1.bf16.msra.mxu0 %v1341
        %1360 = vmatprep.subr.bf16.mxu0 0
        %1361 = vmatpush1.bf16.msra.mxu0 %v1342
        %1362 = vmatprep.subr.bf16.mxu0 0
        %1363 = vmatpush1.bf16.msra.mxu0 %v1343
        %1364 = vmatprep.subr.bf16.mxu0 0
        %1365 = vmatpush1.bf16.msra.mxu0 %v1344
        %1366 = vmatprep.subr.bf16.mxu0 0
        %1367 = vmatpush1.bf16.msra.mxu0 %v1345
        %1368 = vmatprep.subr.bf16.mxu0 0
        %1369 = vmatpush1.bf16.msra.mxu0 %v1346
        %1370 = vmatprep.subr.bf16.mxu0 0
        %1371 = vmatpush1.bf16.msra.mxu0 %v1347
        %1372 = vmatprep.subr.bf16.mxu0 0
        %1373 = vmatpush1.bf16.msra.mxu0 0
        %1374 = vmatprep.subr.bf16.mxu0 0
        %1375 = vmatpush1.bf16.msra.mxu0 0
        %1376 = vmatprep.subr.bf16.mxu0 0
        %1377 = vmatpush1.bf16.msra.mxu0 0
        %1378 = vmatprep.subr.bf16.mxu0 0
        %1379 = vmatpush1.bf16.msra.mxu0 0
        %1380 = vmatprep.subr.bf16.mxu0 0
        %1381 = vmatpush1.bf16.msra.mxu0 0
        %1382 = vmatprep.subr.bf16.mxu0 0
        %1383 = vmatpush1.bf16.msra.mxu0 0
        %1384 = vmatprep.subr.bf16.mxu0 0
        %1385 = vmatpush1.bf16.msra.mxu0 0
        %1386 = vmatprep.subr.bf16.mxu0 0
        %1387 = vmatpush1.bf16.msra.mxu0 0
        %1388 = vmatprep.mubr.bf16.mxu0 0
        %1389 = vmatmul.mubr.bf16.gmra.mrb[0].mxu0 %v1284
        %v1390 = vpop.f32.mrb[0].mxu0
        %v1391 = vadd.f32 %v1306, %v1390
        %v1392 = vpop.f32.mrb[0].mxu0
        %v1393 = vpop.f32.mrb[0].mxu0
        %v1394 = vadd.f32 %v1306, %v1393
        %v1395 = vpop.f32.mrb[0].mxu0
        %1396 = vdwg.mxu0
        %v1397 = vld [vmem:[%s7] sm:$0xff]
        %v1398 = vld [vmem:[%s7 + $0x8] sm:$0xff]
        %v1399 = vld [vmem:[%s7 + $0x10] sm:$0xff]
        %v1400 = vld [vmem:[%s7 + $0x18] sm:$0xff]
        %v1401 = vld [vmem:[%s7 + $0x20] sm:$0xff]
        %v1402 = vld [vmem:[%s7 + $0x28] sm:$0xff]
        %v1403 = vld [vmem:[%s7 + $0x30] sm:$0xff]
        %v1404 = vld [vmem:[%s7 + $0x38] sm:$0xff]
        %v1405 = vld [vmem:[%s7 + $0x40] sm:$0xff]
        %v1406 = vld [vmem:[%s7 + $0x48] sm:$0xff]
        %v1407 = vld [vmem:[%s7 + $0x50] sm:$0xff]
        %v1408 = vld [vmem:[%s7 + $0x58] sm:$0xff]
        %v1409 = vld [vmem:[%s7 + $0x60] sm:$0xff]
        %v1410 = vld [vmem:[%s7 + $0x68] sm:$0xff]
        %v1411 = vld [vmem:[%s7 + $0x70] sm:$0xff]
        %v1412 = vld [vmem:[%s7 + $0x78] sm:$0xff]
        %v1413 = vld [vmem:[%s8] sm:$0x3]
        %v1415 = vlaneseq
        %v1416 = vshrl.u32 %v1415, 7
        %v1417 = vsub.s32 0, %v1416
        %v1418 = vrot.slane %v1413, %v1417
        %v1419 = vlaneseq
        %v1420 = vshrl.u32 %v1419, 7
        %v1421 = vsub.s32 1, %v1420
        %v1422 = vrot.slane %v1413, %v1421
        %v1441 = vunpack.c.l.b16 %v544
        %v1442 = vunpack.c.l.b16 %v545
        %v1443 = vunpack.c.l.b16 %v546
        %v1444 = vunpack.c.l.b16 %v547
        %v1445 = vunpack.c.l.b16 %v548
        %v1446 = vunpack.c.l.b16 %v549
        %v1447 = vunpack.c.l.b16 %v550
        %v1448 = vunpack.c.l.b16 %v551
        %v1449 = vunpack.c.l.b16 %v552
        %v1450 = vunpack.c.l.b16 %v553
        %v1451 = vunpack.c.l.b16 %v554
        %v1452 = vunpack.c.l.b16 %v555
        %v1453 = vunpack.c.l.b16 %v556
        %v1454 = vunpack.c.l.b16 %v557
        %v1455 = vunpack.c.l.b16 %v558
        %v1456 = vunpack.c.l.b16 %v559
        %v1457 = vpack.c.b16 %v1442, %v1441
        %v1458 = vpack.c.b16 %v1444, %v1443
        %v1459 = vpack.c.b16 %v1446, %v1445
        %v1460 = vpack.c.b16 %v1448, %v1447
        %v1461 = vpack.c.b16 %v1450, %v1449
        %v1462 = vpack.c.b16 %v1452, %v1451
        %v1463 = vpack.c.b16 %v1454, %v1453
        %v1464 = vpack.c.b16 %v1456, %v1455
        %v1489 = vunpack.c.l.b16 %v1397
        %v1490 = vunpack.c.h.b16 %v1397
        %v1491 = vunpack.c.l.b16 %v1398
        %v1492 = vunpack.c.h.b16 %v1398
        %v1493 = vunpack.c.l.b16 %v1399
        %v1494 = vunpack.c.h.b16 %v1399
        %v1495 = vunpack.c.l.b16 %v1400
        %v1496 = vunpack.c.h.b16 %v1400
        %v1497 = vunpack.c.l.b16 %v1401
        %v1498 = vunpack.c.h.b16 %v1401
        %v1499 = vunpack.c.l.b16 %v1402
        %v1500 = vunpack.c.h.b16 %v1402
        %v1501 = vunpack.c.l.b16 %v1403
        %v1502 = vunpack.c.h.b16 %v1403
        %v1503 = vunpack.c.l.b16 %v1404
        %v1504 = vunpack.c.h.b16 %v1404
        %v1505 = vunpack.c.l.b16 %v1405
        %v1506 = vunpack.c.h.b16 %v1405
        %v1507 = vunpack.c.l.b16 %v1406
        %v1508 = vunpack.c.h.b16 %v1406
        %v1509 = vunpack.c.l.b16 %v1407
        %v1510 = vunpack.c.h.b16 %v1407
        %v1511 = vunpack.c.l.b16 %v1408
        %v1512 = vunpack.c.h.b16 %v1408
        %v1513 = vunpack.c.l.b16 %v1409
        %v1514 = vunpack.c.h.b16 %v1409
        %v1515 = vunpack.c.l.b16 %v1410
        %v1516 = vunpack.c.h.b16 %v1410
        %v1517 = vunpack.c.l.b16 %v1411
        %v1518 = vunpack.c.h.b16 %v1411
        %v1519 = vunpack.c.l.b16 %v1412
        %v1520 = vunpack.c.h.b16 %v1412
        %v1521 = vpack.c.b16 %v1491, %v1489
        %v1522 = vpack.c.b16 %v1492, %v1490
        %v1523 = vpack.c.b16 %v1495, %v1493
        %v1524 = vpack.c.b16 %v1496, %v1494
        %v1525 = vpack.c.b16 %v1499, %v1497
        %v1526 = vpack.c.b16 %v1500, %v1498
        %v1527 = vpack.c.b16 %v1503, %v1501
        %v1528 = vpack.c.b16 %v1504, %v1502
        %v1529 = vpack.c.b16 %v1507, %v1505
        %v1530 = vpack.c.b16 %v1508, %v1506
        %v1531 = vpack.c.b16 %v1511, %v1509
        %v1532 = vpack.c.b16 %v1512, %v1510
        %v1533 = vpack.c.b16 %v1515, %v1513
        %v1534 = vpack.c.b16 %v1516, %v1514
        %v1535 = vpack.c.b16 %v1519, %v1517
        %v1536 = vpack.c.b16 %v1520, %v1518
        %1553 = vmatprep.subr.bf16.mxu0 %v1522
        %1554 = vmatpush1.bf16.msra.mxu0 %v1521
        %1555 = vmatprep.subr.bf16.mxu0 %v1524
        %1556 = vmatpush1.bf16.msra.mxu0 %v1523
        %1557 = vmatprep.subr.bf16.mxu0 %v1526
        %1558 = vmatpush1.bf16.msra.mxu0 %v1525
        %1559 = vmatprep.subr.bf16.mxu0 %v1528
        %1560 = vmatpush1.bf16.msra.mxu0 %v1527
        %1561 = vmatprep.subr.bf16.mxu0 %v1530
        %1562 = vmatpush1.bf16.msra.mxu0 %v1529
        %1563 = vmatprep.subr.bf16.mxu0 %v1532
        %1564 = vmatpush1.bf16.msra.mxu0 %v1531
        %1565 = vmatprep.subr.bf16.mxu0 %v1534
        %1566 = vmatpush1.bf16.msra.mxu0 %v1533
        %1567 = vmatprep.subr.bf16.mxu0 %v1536
        %1568 = vmatpush1.bf16.msra.mxu0 %v1535
        %1569 = vmatprep.subr.bf16.mxu0 0
        %1570 = vmatpush1.bf16.msra.mxu0 0
        %1571 = vmatprep.subr.bf16.mxu0 0
        %1572 = vmatpush1.bf16.msra.mxu0 0
        %1573 = vmatprep.subr.bf16.mxu0 0
        %1574 = vmatpush1.bf16.msra.mxu0 0
        %1575 = vmatprep.subr.bf16.mxu0 0
        %1576 = vmatpush1.bf16.msra.mxu0 0
        %1577 = vmatprep.subr.bf16.mxu0 0
        %1578 = vmatpush1.bf16.msra.mxu0 0
        %1579 = vmatprep.subr.bf16.mxu0 0
        %1580 = vmatpush1.bf16.msra.mxu0 0
        %1581 = vmatprep.subr.bf16.mxu0 0
        %1582 = vmatpush1.bf16.msra.mxu0 0
        %1583 = vmatprep.subr.bf16.mxu0 0
        %1584 = vmatpush1.bf16.msra.mxu0 0
        %1585 = vmatprep.mubr.bf16.mxu0 0
        %1586 = vmatmul.mubr.bf16.gmra.mrb[0].mxu0 %v1457
        %v1587 = vpop.f32.mrb[0].mxu0
        %v1588 = vadd.f32 %v1418, %v1587
        %v1589 = vpop.f32.mrb[0].mxu0
        %v1590 = vadd.f32 %v1422, %v1589
        %v1591 = vpop.f32.mrb[0].mxu0
        %v1592 = vadd.f32 %v1418, %v1591
        %v1593 = vpop.f32.mrb[0].mxu0
        %v1594 = vadd.f32 %v1422, %v1593
        %1595 = vmatprep.mubr.bf16.mxu0 0
        %1596 = vmatmul.mubr.bf16.gmra.mrb[0].mxu0 %v1458
        %v1597 = vpop.f32.mrb[0].mxu0
        %v1598 = vadd.f32 %v1418, %v1597
        %v1599 = vpop.f32.mrb[0].mxu0
        %v1600 = vadd.f32 %v1422, %v1599
        %v1601 = vpop.f32.mrb[0].mxu0
        %v1602 = vadd.f32 %v1418, %v1601
        %v1603 = vpop.f32.mrb[0].mxu0
        %v1604 = vadd.f32 %v1422, %v1603
        %1605 = vmatprep.mubr.bf16.mxu0 0
        %1606 = vmatmul.mubr.bf16.gmra.mrb[0].mxu0 %v1459
        %v1607 = vpop.f32.mrb[0].mxu0
        %v1608 = vadd.f32 %v1418, %v1607
        %v1609 = vpop.f32.mrb[0].mxu0
        %v1610 = vadd.f32 %v1422, %v1609
        %v1611 = vpop.f32.mrb[0].mxu0
        %v1612 = vadd.f32 %v1418, %v1611
        %v1613 = vpop.f32.mrb[0].mxu0
        %v1614 = vadd.f32 %v1422, %v1613
        %1615 = vmatprep.mubr.bf16.mxu0 0
        %1616 = vmatmul.mubr.bf16.gmra.mrb[0].mxu0 %v1460
        %v1617 = vpop.f32.mrb[0].mxu0
        %v1618 = vadd.f32 %v1418, %v1617
        %v1619 = vpop.f32.mrb[0].mxu0
        %v1620 = vadd.f32 %v1422, %v1619
        %v1621 = vpop.f32.mrb[0].mxu0
        %v1622 = vadd.f32 %v1418, %v1621
        %v1623 = vpop.f32.mrb[0].mxu0
        %v1624 = vadd.f32 %v1422, %v1623
        %1625 = vmatprep.mubr.bf16.mxu0 0
        %1626 = vmatmul.mubr.bf16.gmra.mrb[0].mxu0 %v1461
        %v1627 = vpop.f32.mrb[0].mxu0
        %v1628 = vadd.f32 %v1418, %v1627
        %v1629 = vpop.f32.mrb[0].mxu0
        %v1630 = vadd.f32 %v1422, %v1629
        %v1631 = vpop.f32.mrb[0].mxu0
        %v1632 = vadd.f32 %v1418, %v1631
        %v1633 = vpop.f32.mrb[0].mxu0
        %v1634 = vadd.f32 %v1422, %v1633
        %1635 = vmatprep.mubr.bf16.mxu0 0
        %1636 = vmatmul.mubr.bf16.gmra.mrb[0].mxu0 %v1462
        %v1637 = vpop.f32.mrb[0].mxu0
        %v1638 = vadd.f32 %v1418, %v1637
        %v1639 = vpop.f32.mrb[0].mxu0
        %v1640 = vadd.f32 %v1422, %v1639
        %v1641 = vpop.f32.mrb[0].mxu0
        %v1642 = vadd.f32 %v1418, %v1641
        %v1643 = vpop.f32.mrb[0].mxu0
        %v1644 = vadd.f32 %v1422, %v1643
        %1645 = vmatprep.mubr.bf16.mxu0 0
        %1646 = vmatmul.mubr.bf16.gmra.mrb[0].mxu0 %v1463
        %v1647 = vpop.f32.mrb[0].mxu0
        %v1648 = vadd.f32 %v1418, %v1647
        %v1649 = vpop.f32.mrb[0].mxu0
        %v1650 = vadd.f32 %v1422, %v1649
        %v1651 = vpop.f32.mrb[0].mxu0
        %v1652 = vadd.f32 %v1418, %v1651
        %v1653 = vpop.f32.mrb[0].mxu0
        %v1654 = vadd.f32 %v1422, %v1653
        %1655 = vmatprep.mubr.bf16.mxu0 0
        %1656 = vmatmul.mubr.bf16.gmra.mrb[0].mxu0 %v1464
        %v1657 = vpop.f32.mrb[0].mxu0
        %v1658 = vadd.f32 %v1418, %v1657
        %v1659 = vpop.f32.mrb[0].mxu0
        %v1660 = vadd.f32 %v1422, %v1659
        %v1661 = vpop.f32.mrb[0].mxu0
        %v1662 = vadd.f32 %v1418, %v1661
        %v1663 = vpop.f32.mrb[0].mxu0
        %v1664 = vadd.f32 %v1422, %v1663
        %1665 = vdwg.mxu0
        %v1666 = vpack.c.bf16 %v1394, %v1391
        %v1667 = vpack.c.bf16 %v1592, %v1588
        %v1668 = vpack.c.bf16 %v1602, %v1598
        %v1669 = vpack.c.bf16 %v1612, %v1608
        %v1670 = vpack.c.bf16 %v1622, %v1618
        %v1671 = vpack.c.bf16 %v1632, %v1628
        %v1672 = vpack.c.bf16 %v1642, %v1638
        %v1673 = vpack.c.bf16 %v1652, %v1648
        %v1674 = vpack.c.bf16 %v1662, %v1658
        %1675 = vmatprep.subr.bf16.mxu0 0
        %1676 = vmatpush1.bf16.xpose.msra.mxu0 %v1667
        %1677 = vmatprep.subr.bf16.mxu0 0
        %1678 = vmatpush1.bf16.xpose.msra.mxu0 %v1668
        %1679 = vmatprep.subr.bf16.mxu0 0
        %1680 = vmatpush1.bf16.xpose.msra.mxu0 %v1669
        %1681 = vmatprep.subr.bf16.mxu0 0
        %1682 = vmatpush1.bf16.xpose.msra.mxu0 %v1670
        %1683 = vmatprep.subr.bf16.mxu0 0
        %1684 = vmatpush1.bf16.xpose.msra.mxu0 %v1671
        %1685 = vmatprep.subr.bf16.mxu0 0
        %1686 = vmatpush1.bf16.xpose.msra.mxu0 %v1672
        %1687 = vmatprep.subr.bf16.mxu0 0
        %1688 = vmatpush1.bf16.xpose.msra.mxu0 %v1673
        %1689 = vmatprep.subr.bf16.mxu0 0
        %1690 = vmatpush1.bf16.xpose.msra.mxu0 %v1674
        %1691 = vmatprep.subr.bf16.mxu0 0
        %1692 = vmatpush1.bf16.xpose.msra.mxu0 0
        %1693 = vmatprep.subr.bf16.mxu0 0
        %1694 = vmatpush1.bf16.xpose.msra.mxu0 0
        %1695 = vmatprep.subr.bf16.mxu0 0
        %1696 = vmatpush1.bf16.xpose.msra.mxu0 0
        %1697 = vmatprep.subr.bf16.mxu0 0
        %1698 = vmatpush1.bf16.xpose.msra.mxu0 0
        %1699 = vmatprep.subr.bf16.mxu0 0
        %1700 = vmatpush1.bf16.xpose.msra.mxu0 0
        %1701 = vmatprep.subr.bf16.mxu0 0
        %1702 = vmatpush1.bf16.xpose.msra.mxu0 0
        %1703 = vmatprep.subr.bf16.mxu0 0
        %1704 = vmatpush1.bf16.xpose.msra.mxu0 0
        %1705 = vmatprep.subr.bf16.mxu0 0
        %1706 = vmatpush1.bf16.xpose.msra.mxu0 0
        %1707 = vmatprep.mubr.bf16.mxu0 0
        %1708 = vmatmul.mubr.bf16.gmra.mrb[0].mxu0 %v1666
        %v1709 = vpop.f32.mrb[0].mxu0
        %v1710 = vadd.f32 0.0, %v1709
        %v1711 = vpop.f32.mrb[0].mxu0
        %v1712 = vpop.f32.mrb[0].mxu0
        %v1713 = vadd.f32 0.0, %v1712
        %v1714 = vpop.f32.mrb[0].mxu0
        %1715 = vdwg.mxu0
        %v1716 = vmul.f32 %v1710, 0.088388346
        %v1717 = vmul.f32 %v1713, 0.088388346
        %1718 = vst [vmem:[%s504] sm:$0xff] %v1716
        %1719 = vst [vmem:[%s504 + $0x8] sm:$0xff] %v1717
        %v1720 = vsub.f32 1.0, %v560
        %v1721 = vmul.f32 %v1720, -1000.0
        %v1723 = vlaneseq
        %v1724 = vshrl.u32 %v1723, 7
        %v1725 = vsub.s32 0, %v1724
        %v1726 = vrot.slane %v1721, %v1725
        %v1728 = vadd.f32 %v1716, %v1726
        %v1729 = vadd.f32 %v1717, %v1726
        %1730 = vmax.xlane.f32.xlu0 %v1728
        %v1731 = vpop.xlane.xlu0 %1730
        %1732 = vmax.xlane.f32.xlu0 %v1729
        %v1733 = vpop.xlane.xlu0 %1732
        %v1734 = vsub.f32 %v1728, %v1731
        %v1735 = vsub.f32 %v1729, %v1733
        %v1736 = vmul.f32 %v1734, 1.442695
        %v1737 = vpow.pop %v1736
        %v1738 = vmul.f32 %v1735, 1.442695
        %v1739 = vpow.pop %v1738
        %1740 = vadd.xlane.f32.xlu0 %v1737
        %v1741 = vpop.xlane.xlu0 %1740
        %1742 = vadd.xlane.f32.xlu0 %v1739
        %v1743 = vpop.xlane.xlu0 %1742
        %v1744 = vrcp.pop %v1741
        %v1745 = vrcp.pop %v1743
        %v1746 = vmul.f32 %v1737, %v1744
        %v1747 = vmul.f32 %v1739, %v1745
        %v1748 = vpack.c.bf16 %v1747, %v1746
        %v1749 = vpack.c.bf16 %v1594, %v1590
        %v1750 = vpack.c.bf16 %v1604, %v1600
        %v1751 = vpack.c.bf16 %v1614, %v1610
        %v1752 = vpack.c.bf16 %v1624, %v1620
        %v1753 = vpack.c.bf16 %v1634, %v1630
        %v1754 = vpack.c.bf16 %v1644, %v1640
        %v1755 = vpack.c.bf16 %v1654, %v1650
        %v1756 = vpack.c.bf16 %v1664, %v1660
        %1757 = vmatprep.subr.bf16.mxu0 0
        %1758 = vmatpush1.bf16.msra.mxu0 %v1749
        %1759 = vmatprep.subr.bf16.mxu0 0
        %1760 = vmatpush1.bf16.msra.mxu0 %v1750
        %1761 = vmatprep.subr.bf16.mxu0 0
        %1762 = vmatpush1.bf16.msra.mxu0 %v1751
        %1763 = vmatprep.subr.bf16.mxu0 0
        %1764 = vmatpush1.bf16.msra.mxu0 %v1752
        %1765 = vmatprep.subr.bf16.mxu0 0
        %1766 = vmatpush1.bf16.msra.mxu0 %v1753
        %1767 = vmatprep.subr.bf16.mxu0 0
        %1768 = vmatpush1.bf16.msra.mxu0 %v1754
        %1769 = vmatprep.subr.bf16.mxu0 0
        %1770 = vmatpush1.bf16.msra.mxu0 %v1755
        %1771 = vmatprep.subr.bf16.mxu0 0
        %1772 = vmatpush1.bf16.msra.mxu0 %v1756
        %1773 = vmatprep.subr.bf16.mxu0 0
        %1774 = vmatpush1.bf16.msra.mxu0 0
        %1775 = vmatprep.subr.bf16.mxu0 0
        %1776 = vmatpush1.bf16.msra.mxu0 0
        %1777 = vmatprep.subr.bf16.mxu0 0
        %1778 = vmatpush1.bf16.msra.mxu0 0
        %1779 = vmatprep.subr.bf16.mxu0 0
        %1780 = vmatpush1.bf16.msra.mxu0 0
        %1781 = vmatprep.subr.bf16.mxu0 0
        %1782 = vmatpush1.bf16.msra.mxu0 0
        %1783 = vmatprep.subr.bf16.mxu0 0
        %1784 = vmatpush1.bf16.msra.mxu0 0
        %1785 = vmatprep.subr.bf16.mxu0 0
        %1786 = vmatpush1.bf16.msra.mxu0 0
        %1787 = vmatprep.subr.bf16.mxu0 0
        %1788 = vmatpush1.bf16.msra.mxu0 0
        %1789 = vmatprep.mubr.bf16.mxu0 0
        %1790 = vmatmul.mubr.bf16.gmra.mrb[0].mxu0 %v1748
        %v1791 = vpop.f32.mrb[0].mxu0
        %v1792 = vadd.f32 0.0, %v1791
        %v1793 = vpop.f32.mrb[0].mxu0
        %v1794 = vpop.f32.mrb[0].mxu0
        %v1795 = vadd.f32 0.0, %v1794
        %v1796 = vpop.f32.mrb[0].mxu0
        %1797 = vdwg.mxu0
        %1798 = vst [vmem:[%s490] sm:$0xff] %v1391
        %1799 = vst [vmem:[%s490 + $0x10] sm:$0xff] %v1394
        %1800 = vst [vmem:[%s490 + $0x8] sm:$0xff] %v1792
        %1801 = vst [vmem:[%s490 + $0x18] sm:$0xff] %v1795
        %v1802 = vlog2.pop %v1741
        %v1803 = vmul.f32 %v1802, 0.6931472
        %v1804 = vlog2.pop %v1743
        %v1805 = vmul.f32 %v1804, 0.6931472
        %v1806 = vsub.f32 %v1734, %v1803
        %v1807 = vsub.f32 %v1735, %v1805
        %1808 = vst [vmem:[%s534] sm:$0xff] %v1806
        %1809 = vst [vmem:[%s534 + $0x8] sm:$0xff] %v1807
        %v1810 = vld [vmem:[%s9] sm:$0xff]
        %v1811 = vld [vmem:[%s9 + $0x8] sm:$0xf]
        %v1812 = vld [vmem:[%s9 + $0xc] sm:$0xff]
        %v1813 = vld [vmem:[%s9 + $0x14] sm:$0xf]
        %v1814 = vld [vmem:[%s9 + $0x18] sm:$0xff]
        %v1815 = vld [vmem:[%s9 + $0x20] sm:$0xf]
        %v1816 = vld [vmem:[%s9 + $0x24] sm:$0xff]
        %v1817 = vld [vmem:[%s9 + $0x2c] sm:$0xf]
        %v1818 = vld [vmem:[%s9 + $0x30] sm:$0xff]
        %v1819 = vld [vmem:[%s9 + $0x38] sm:$0xf]
        %v1820 = vld [vmem:[%s9 + $0x3c] sm:$0xff]
        %v1821 = vld [vmem:[%s9 + $0x44] sm:$0xf]
        %v1822 = vld [vmem:[%s9 + $0x48] sm:$0xff]
        %v1823 = vld [vmem:[%s9 + $0x50] sm:$0xf]
        %v1824 = vld [vmem:[%s9 + $0x54] sm:$0xff]
        %v1825 = vld [vmem:[%s9 + $0x5c] sm:$0xf]
        %v1826 = vld [vmem:[%s9 + $0x60] sm:$0xff]
        %v1827 = vld [vmem:[%s9 + $0x68] sm:$0xf]
        %v1828 = vld [vmem:[%s9 + $0x6c] sm:$0xff]
        %v1829 = vld [vmem:[%s9 + $0x74] sm:$0xf]
        %v1830 = vld [vmem:[%s9 + $0x78] sm:$0xff]
        %v1831 = vld [vmem:[%s9 + $0x80] sm:$0xf]
        %v1832 = vld [vmem:[%s9 + $0x84] sm:$0xff]
        %v1833 = vld [vmem:[%s9 + $0x8c] sm:$0xf]
        %v1834 = vld [vmem:[%s9 + $0x90] sm:$0xff]
        %v1835 = vld [vmem:[%s9 + $0x98] sm:$0xf]
        %v1836 = vld [vmem:[%s9 + $0x9c] sm:$0xff]
        %v1837 = vld [vmem:[%s9 + $0xa4] sm:$0xf]
        %v1838 = vld [vmem:[%s9 + $0xa8] sm:$0xff]
        %v1839 = vld [vmem:[%s9 + $0xb0] sm:$0xf]
        %v1840 = vld [vmem:[%s9 + $0xb4] sm:$0xff]
        %v1841 = vld [vmem:[%s9 + $0xbc] sm:$0xf]
        %v1842 = vld [vmem:[%s9 + $0xc0] sm:$0xff]
        %v1843 = vld [vmem:[%s9 + $0xc8] sm:$0xf]
        %v1844 = vld [vmem:[%s9 + $0xcc] sm:$0xff]
        %v1845 = vld [vmem:[%s9 + $0xd4] sm:$0xf]
        %v1846 = vld [vmem:[%s9 + $0xd8] sm:$0xff]
        %v1847 = vld [vmem:[%s9 + $0xe0] sm:$0xf]
        %v1848 = vld [vmem:[%s9 + $0xe4] sm:$0xff]
        %v1849 = vld [vmem:[%s9 + $0xec] sm:$0xf]
        %v1850 = vld [vmem:[%s9 + $0xf0] sm:$0xff]
        %v1851 = vld [vmem:[%s9 + $0xf8] sm:$0xf]
        %v1852 = vld [vmem:[%s9 + $0xfc] sm:$0xff]
        %v1853 = vld [vmem:[%s9 + $0x104] sm:$0xf]
        %v1854 = vld [vmem:[%s9 + $0x108] sm:$0xff]
        %v1855 = vld [vmem:[%s9 + $0x110] sm:$0xf]
        %v1856 = vld [vmem:[%s9 + $0x114] sm:$0xff]
        %v1857 = vld [vmem:[%s9 + $0x11c] sm:$0xf]
        %v1858 = vld [vmem:[%s9 + $0x120] sm:$0xff]
        %v1859 = vld [vmem:[%s9 + $0x128] sm:$0xf]
        %v1860 = vld [vmem:[%s9 + $0x12c] sm:$0xff]
        %v1861 = vld [vmem:[%s9 + $0x134] sm:$0xf]
        %v1862 = vld [vmem:[%s9 + $0x138] sm:$0xff]
        %v1863 = vld [vmem:[%s9 + $0x140] sm:$0xf]
        %v1864 = vld [vmem:[%s9 + $0x144] sm:$0xff]
        %v1865 = vld [vmem:[%s9 + $0x14c] sm:$0xf]
        %v1866 = vld [vmem:[%s9 + $0x150] sm:$0xff]
        %v1867 = vld [vmem:[%s9 + $0x158] sm:$0xf]
        %v1868 = vld [vmem:[%s9 + $0x15c] sm:$0xff]
        %v1869 = vld [vmem:[%s9 + $0x164] sm:$0xf]
        %v1870 = vld [vmem:[%s9 + $0x168] sm:$0xff]
        %v1871 = vld [vmem:[%s9 + $0x170] sm:$0xf]
        %v1872 = vld [vmem:[%s9 + $0x174] sm:$0xff]
        %v1873 = vld [vmem:[%s9 + $0x17c] sm:$0xf]
        %v1874 = vpack.c.bf16 %v1795, %v1792
        %v1907 = vunpack.c.l.b16 %v1842
        %v1908 = vunpack.c.h.b16 %v1842
        %v1909 = vunpack.c.l.b16 %v1843
        %v1910 = vunpack.c.l.b16 %v1844
        %v1911 = vunpack.c.h.b16 %v1844
        %v1912 = vunpack.c.l.b16 %v1845
        %v1913 = vunpack.c.l.b16 %v1846
        %v1914 = vunpack.c.h.b16 %v1846
        %v1915 = vunpack.c.l.b16 %v1847
        %v1916 = vunpack.c.l.b16 %v1848
        %v1917 = vunpack.c.h.b16 %v1848
        %v1918 = vunpack.c.l.b16 %v1849
        %v1919 = vunpack.c.l.b16 %v1850
        %v1920 = vunpack.c.h.b16 %v1850
        %v1921 = vunpack.c.l.b16 %v1851
        %v1922 = vunpack.c.l.b16 %v1852
        %v1923 = vunpack.c.h.b16 %v1852
        %v1924 = vunpack.c.l.b16 %v1853
        %v1925 = vunpack.c.l.b16 %v1854
        %v1926 = vunpack.c.h.b16 %v1854
        %v1927 = vunpack.c.l.b16 %v1855
        %v1928 = vunpack.c.l.b16 %v1856
        %v1929 = vunpack.c.h.b16 %v1856
        %v1930 = vunpack.c.l.b16 %v1857
        %v1931 = vunpack.c.l.b16 %v1858
        %v1932 = vunpack.c.h.b16 %v1858
        %v1933 = vunpack.c.l.b16 %v1859
        %v1934 = vunpack.c.l.b16 %v1860
        %v1935 = vunpack.c.h.b16 %v1860
        %v1936 = vunpack.c.l.b16 %v1861
        %v1937 = vunpack.c.l.b16 %v1862
        %v1938 = vunpack.c.h.b16 %v1862
        %v1939 = vunpack.c.l.b16 %v1863
        %v1940 = vunpack.c.l.b16 %v1864
        %v1941 = vunpack.c.h.b16 %v1864
        %v1942 = vunpack.c.l.b16 %v1865
        %v1943 = vunpack.c.l.b16 %v1866
        %v1944 = vunpack.c.h.b16 %v1866
        %v1945 = vunpack.c.l.b16 %v1867
        %v1946 = vunpack.c.l.b16 %v1868
        %v1947 = vunpack.c.h.b16 %v1868
        %v1948 = vunpack.c.l.b16 %v1869
        %v1949 = vunpack.c.l.b16 %v1870
        %v1950 = vunpack.c.h.b16 %v1870
        %v1951 = vunpack.c.l.b16 %v1871
        %v1952 = vunpack.c.l.b16 %v1872
        %v1953 = vunpack.c.h.b16 %v1872
        %v1954 = vunpack.c.l.b16 %v1873
        %v1955 = vpack.c.b16 %v1910, %v1907
        %v1956 = vpack.c.b16 %v1911, %v1908
        %v1957 = vpack.c.b16 %v1912, %v1909
        %v1958 = vpack.c.b16 %v1916, %v1913
        %v1959 = vpack.c.b16 %v1917, %v1914
        %v1960 = vpack.c.b16 %v1918, %v1915
        %v1961 = vpack.c.b16 %v1922, %v1919
        %v1962 = vpack.c.b16 %v1923, %v1920
        %v1963 = vpack.c.b16 %v1924, %v1921
        %v1964 = vpack.c.b16 %v1928, %v1925
        %v1965 = vpack.c.b16 %v1929, %v1926
        %v1966 = vpack.c.b16 %v1930, %v1927
        %v1967 = vpack.c.b16 %v1934, %v1931
        %v1968 = vpack.c.b16 %v1935, %v1932
        %v1969 = vpack.c.b16 %v1936, %v1933
        %v1970 = vpack.c.b16 %v1940, %v1937
        %v1971 = vpack.c.b16 %v1941, %v1938
        %v1972 = vpack.c.b16 %v1942, %v1939
        %v1973 = vpack.c.b16 %v1946, %v1943
        %v1974 = vpack.c.b16 %v1947, %v1944
        %v1975 = vpack.c.b16 %v1948, %v1945
        %v1976 = vpack.c.b16 %v1952, %v1949
        %v1977 = vpack.c.b16 %v1953, %v1950
        %v1978 = vpack.c.b16 %v1954, %v1951
        %2003 = vmatprep.subr.bf16.mxu0 %v1956
        %2004 = vmatpush1.bf16.msra.mxu0 %v1955
        %2005 = vmatprep.subr.bf16.mxu0 %v1959
        %2006 = vmatpush1.bf16.msra.mxu0 %v1958
        %2007 = vmatprep.subr.bf16.mxu0 %v1962
        %2008 = vmatpush1.bf16.msra.mxu0 %v1961
        %2009 = vmatprep.subr.bf16.mxu0 %v1965
        %2010 = vmatpush1.bf16.msra.mxu0 %v1964
        %2011 = vmatprep.subr.bf16.mxu0 %v1968
        %2012 = vmatpush1.bf16.msra.mxu0 %v1967
        %2013 = vmatprep.subr.bf16.mxu0 %v1971
        %2014 = vmatpush1.bf16.msra.mxu0 %v1970
        %2015 = vmatprep.subr.bf16.mxu0 %v1974
        %2016 = vmatpush1.bf16.msra.mxu0 %v1973
        %2017 = vmatprep.subr.bf16.mxu0 %v1977
        %2018 = vmatpush1.bf16.msra.mxu0 %v1976
        %2019 = vmatprep.subr.bf16.mxu0 0
        %2020 = vmatpush1.bf16.msra.mxu0 0
        %2021 = vmatprep.subr.bf16.mxu0 0
        %2022 = vmatpush1.bf16.msra.mxu0 0
        %2023 = vmatprep.subr.bf16.mxu0 0
        %2024 = vmatpush1.bf16.msra.mxu0 0
        %2025 = vmatprep.subr.bf16.mxu0 0
        %2026 = vmatpush1.bf16.msra.mxu0 0
        %2027 = vmatprep.subr.bf16.mxu0 0
        %2028 = vmatpush1.bf16.msra.mxu0 0
        %2029 = vmatprep.subr.bf16.mxu0 0
        %2030 = vmatpush1.bf16.msra.mxu0 0
        %2031 = vmatprep.subr.bf16.mxu0 0
        %2032 = vmatpush1.bf16.msra.mxu0 0
        %2033 = vmatprep.subr.bf16.mxu0 0
        %2034 = vmatpush1.bf16.msra.mxu0 0
        %2035 = vmatprep.mubr.bf16.mxu0 0
        %2036 = vmatmul.mubr.bf16.gmra.mrb[0].mxu0 %v1874
        %v2037 = vpop.f32.mrb[0].mxu0
        %v2038 = vadd.f32 0.0, %v2037
        %v2039 = vpop.f32.mrb[0].mxu0
        %v2040 = vadd.f32 0.0, %v2039
        %v2041 = vpop.f32.mrb[0].mxu0
        %v2042 = vadd.f32 0.0, %v2041
        %v2043 = vpop.f32.mrb[0].mxu0
        %v2044 = vadd.f32 0.0, %v2043
        %2045 = vdwg.mxu0
        %2046 = vmatprep.subr.bf16.mxu0 0
        %2047 = vmatpush1.bf16.msra.mxu0 %v1957
        %2048 = vmatprep.subr.bf16.mxu0 0
        %2049 = vmatpush1.bf16.msra.mxu0 %v1960
        %2050 = vmatprep.subr.bf16.mxu0 0
        %2051 = vmatpush1.bf16.msra.mxu0 %v1963
        %2052 = vmatprep.subr.bf16.mxu0 0
        %2053 = vmatpush1.bf16.msra.mxu0 %v1966
        %2054 = vmatprep.subr.bf16.mxu0 0
        %2055 = vmatpush1.bf16.msra.mxu0 %v1969
        %2056 = vmatprep.subr.bf16.mxu0 0
        %2057 = vmatpush1.bf16.msra.mxu0 %v1972
        %2058 = vmatprep.subr.bf16.mxu0 0
        %2059 = vmatpush1.bf16.msra.mxu0 %v1975
        %2060 = vmatprep.subr.bf16.mxu0 0
        %2061 = vmatpush1.bf16.msra.mxu0 %v1978
        %2062 = vmatprep.subr.bf16.mxu0 0
        %2063 = vmatpush1.bf16.msra.mxu0 0
        %2064 = vmatprep.subr.bf16.mxu0 0
        %2065 = vmatpush1.bf16.msra.mxu0 0
        %2066 = vmatprep.subr.bf16.mxu0 0
        %2067 = vmatpush1.bf16.msra.mxu0 0
        %2068 = vmatprep.subr.bf16.mxu0 0
        %2069 = vmatpush1.bf16.msra.mxu0 0
        %2070 = vmatprep.subr.bf16.mxu0 0
        %2071 = vmatpush1.bf16.msra.mxu0 0
        %2072 = vmatprep.subr.bf16.mxu0 0
        %2073 = vmatpush1.bf16.msra.mxu0 0
        %2074 = vmatprep.subr.bf16.mxu0 0
        %2075 = vmatpush1.bf16.msra.mxu0 0
        %2076 = vmatprep.subr.bf16.mxu0 0
        %2077 = vmatpush1.bf16.msra.mxu0 0
        %2078 = vmatprep.mubr.bf16.mxu0 0
        %2079 = vmatmul.mubr.bf16.gmra.mrb[0].mxu0 %v1874
        %v2080 = vpop.f32.mrb[0].mxu0
        %v2081 = vadd.f32 0.0, %v2080
        %v2082 = vpop.f32.mrb[0].mxu0
        %v2083 = vpop.f32.mrb[0].mxu0
        %v2084 = vadd.f32 0.0, %v2083
        %v2085 = vpop.f32.mrb[0].mxu0
        %2086 = vdwg.mxu0
        %v2119 = vunpack.c.l.b16 %v1810
        %v2120 = vunpack.c.h.b16 %v1810
        %v2121 = vunpack.c.l.b16 %v1811
        %v2122 = vunpack.c.l.b16 %v1812
        %v2123 = vunpack.c.h.b16 %v1812
        %v2124 = vunpack.c.l.b16 %v1813
        %v2125 = vunpack.c.l.b16 %v1814
        %v2126 = vunpack.c.h.b16 %v1814
        %v2127 = vunpack.c.l.b16 %v1815
        %v2128 = vunpack.c.l.b16 %v1816
        %v2129 = vunpack.c.h.b16 %v1816
        %v2130 = vunpack.c.l.b16 %v1817
        %v2131 = vunpack.c.l.b16 %v1818
        %v2132 = vunpack.c.h.b16 %v1818
        %v2133 = vunpack.c.l.b16 %v1819
        %v2134 = vunpack.c.l.b16 %v1820
        %v2135 = vunpack.c.h.b16 %v1820
        %v2136 = vunpack.c.l.b16 %v1821
        %v2137 = vunpack.c.l.b16 %v1822
        %v2138 = vunpack.c.h.b16 %v1822
        %v2139 = vunpack.c.l.b16 %v1823
        %v2140 = vunpack.c.l.b16 %v1824
        %v2141 = vunpack.c.h.b16 %v1824
        %v2142 = vunpack.c.l.b16 %v1825
        %v2143 = vunpack.c.l.b16 %v1826
        %v2144 = vunpack.c.h.b16 %v1826
        %v2145 = vunpack.c.l.b16 %v1827
        %v2146 = vunpack.c.l.b16 %v1828
        %v2147 = vunpack.c.h.b16 %v1828
        %v2148 = vunpack.c.l.b16 %v1829
        %v2149 = vunpack.c.l.b16 %v1830
        %v2150 = vunpack.c.h.b16 %v1830
        %v2151 = vunpack.c.l.b16 %v1831
        %v2152 = vunpack.c.l.b16 %v1832
        %v2153 = vunpack.c.h.b16 %v1832
        %v2154 = vunpack.c.l.b16 %v1833
        %v2155 = vunpack.c.l.b16 %v1834
        %v2156 = vunpack.c.h.b16 %v1834
        %v2157 = vunpack.c.l.b16 %v1835
        %v2158 = vunpack.c.l.b16 %v1836
        %v2159 = vunpack.c.h.b16 %v1836
        %v2160 = vunpack.c.l.b16 %v1837
        %v2161 = vunpack.c.l.b16 %v1838
        %v2162 = vunpack.c.h.b16 %v1838
        %v2163 = vunpack.c.l.b16 %v1839
        %v2164 = vunpack.c.l.b16 %v1840
        %v2165 = vunpack.c.h.b16 %v1840
        %v2166 = vunpack.c.l.b16 %v1841
        %v2167 = vpack.c.b16 %v2122, %v2119
        %v2168 = vpack.c.b16 %v2123, %v2120
        %v2169 = vpack.c.b16 %v2124, %v2121
        %v2170 = vpack.c.b16 %v2128, %v2125
        %v2171 = vpack.c.b16 %v2129, %v2126
        %v2172 = vpack.c.b16 %v2130, %v2127
        %v2173 = vpack.c.b16 %v2134, %v2131
        %v2174 = vpack.c.b16 %v2135, %v2132
        %v2175 = vpack.c.b16 %v2136, %v2133
        %v2176 = vpack.c.b16 %v2140, %v2137
        %v2177 = vpack.c.b16 %v2141, %v2138
        %v2178 = vpack.c.b16 %v2142, %v2139
        %v2179 = vpack.c.b16 %v2146, %v2143
        %v2180 = vpack.c.b16 %v2147, %v2144
        %v2181 = vpack.c.b16 %v2148, %v2145
        %v2182 = vpack.c.b16 %v2152, %v2149
        %v2183 = vpack.c.b16 %v2153, %v2150
        %v2184 = vpack.c.b16 %v2154, %v2151
        %v2185 = vpack.c.b16 %v2158, %v2155
        %v2186 = vpack.c.b16 %v2159, %v2156
        %v2187 = vpack.c.b16 %v2160, %v2157
        %v2188 = vpack.c.b16 %v2164, %v2161
        %v2189 = vpack.c.b16 %v2165, %v2162
        %v2190 = vpack.c.b16 %v2166, %v2163
        %2215 = vmatprep.subr.bf16.mxu0 %v2168
        %2216 = vmatpush1.bf16.msra.mxu0 %v2167
        %2217 = vmatprep.subr.bf16.mxu0 %v2171
        %2218 = vmatpush1.bf16.msra.mxu0 %v2170
        %2219 = vmatprep.subr.bf16.mxu0 %v2174
        %2220 = vmatpush1.bf16.msra.mxu0 %v2173
        %2221 = vmatprep.subr.bf16.mxu0 %v2177
        %2222 = vmatpush1.bf16.msra.mxu0 %v2176
        %2223 = vmatprep.subr.bf16.mxu0 %v2180
        %2224 = vmatpush1.bf16.msra.mxu0 %v2179
        %2225 = vmatprep.subr.bf16.mxu0 %v2183
        %2226 = vmatpush1.bf16.msra.mxu0 %v2182
        %2227 = vmatprep.subr.bf16.mxu0 %v2186
        %2228 = vmatpush1.bf16.msra.mxu0 %v2185
        %2229 = vmatprep.subr.bf16.mxu0 %v2189
        %2230 = vmatpush1.bf16.msra.mxu0 %v2188
        %2231 = vmatprep.subr.bf16.mxu0 0
        %2232 = vmatpush1.bf16.msra.mxu0 0
        %2233 = vmatprep.subr.bf16.mxu0 0
        %2234 = vmatpush1.bf16.msra.mxu0 0
        %2235 = vmatprep.subr.bf16.mxu0 0
        %2236 = vmatpush1.bf16.msra.mxu0 0
        %2237 = vmatprep.subr.bf16.mxu0 0
        %2238 = vmatpush1.bf16.msra.mxu0 0
        %2239 = vmatprep.subr.bf16.mxu0 0
        %2240 = vmatpush1.bf16.msra.mxu0 0
        %2241 = vmatprep.subr.bf16.mxu0 0
        %2242 = vmatpush1.bf16.msra.mxu0 0
        %2243 = vmatprep.subr.bf16.mxu0 0
        %2244 = vmatpush1.bf16.msra.mxu0 0
        %2245 = vmatprep.subr.bf16.mxu0 0
        %2246 = vmatpush1.bf16.msra.mxu0 0
        %2247 = vmatprep.mubr.bf16.mxu0 0
        %2248 = vmatmul.mubr.bf16.gmra.mrb[0].mxu0 %v1666
        %v2249 = vpop.f32.mrb[0].mxu0
        %v2250 = vadd.f32 %v2038, %v2249
        %v2251 = vpop.f32.mrb[0].mxu0
        %v2252 = vadd.f32 %v2040, %v2251
        %v2253 = vpop.f32.mrb[0].mxu0
        %v2254 = vadd.f32 %v2042, %v2253
        %v2255 = vpop.f32.mrb[0].mxu0
        %v2256 = vadd.f32 %v2044, %v2255
        %2257 = vdwg.mxu0
        %2258 = vmatprep.subr.bf16.mxu0 0
        %2259 = vmatpush1.bf16.msra.mxu0 %v2169
        %2260 = vmatprep.subr.bf16.mxu0 0
        %2261 = vmatpush1.bf16.msra.mxu0 %v2172
        %2262 = vmatprep.subr.bf16.mxu0 0
        %2263 = vmatpush1.bf16.msra.mxu0 %v2175
        %2264 = vmatprep.subr.bf16.mxu0 0
        %2265 = vmatpush1.bf16.msra.mxu0 %v2178
        %2266 = vmatprep.subr.bf16.mxu0 0
        %2267 = vmatpush1.bf16.msra.mxu0 %v2181
        %2268 = vmatprep.subr.bf16.mxu0 0
        %2269 = vmatpush1.bf16.msra.mxu0 %v2184
        %2270 = vmatprep.subr.bf16.mxu0 0
        %2271 = vmatpush1.bf16.msra.mxu0 %v2187
        %2272 = vmatprep.subr.bf16.mxu0 0
        %2273 = vmatpush1.bf16.msra.mxu0 %v2190
        %2274 = vmatprep.subr.bf16.mxu0 0
        %2275 = vmatpush1.bf16.msra.mxu0 0
        %2276 = vmatprep.subr.bf16.mxu0 0
        %2277 = vmatpush1.bf16.msra.mxu0 0
        %2278 = vmatprep.subr.bf16.mxu0 0
        %2279 = vmatpush1.bf16.msra.mxu0 0
        %2280 = vmatprep.subr.bf16.mxu0 0
        %2281 = vmatpush1.bf16.msra.mxu0 0
        %2282 = vmatprep.subr.bf16.mxu0 0
        %2283 = vmatpush1.bf16.msra.mxu0 0
        %2284 = vmatprep.subr.bf16.mxu0 0
        %2285 = vmatpush1.bf16.msra.mxu0 0
        %2286 = vmatprep.subr.bf16.mxu0 0
        %2287 = vmatpush1.bf16.msra.mxu0 0
        %2288 = vmatprep.subr.bf16.mxu0 0
        %2289 = vmatpush1.bf16.msra.mxu0 0
        %2290 = vmatprep.mubr.bf16.mxu0 0
        %2291 = vmatmul.mubr.bf16.gmra.mrb[0].mxu0 %v1666
        %v2292 = vpop.f32.mrb[0].mxu0
        %v2293 = vadd.f32 %v2081, %v2292
        %v2294 = vpop.f32.mrb[0].mxu0
        %v2295 = vpop.f32.mrb[0].mxu0
        %v2296 = vadd.f32 %v2084, %v2295
        %v2297 = vpop.f32.mrb[0].mxu0
        %2298 = vdwg.mxu0
        %v2299 = vld [vmem:[%s10] sm:$0x7]
        %v2301 = vlaneseq
        %v2302 = vshrl.u32 %v2301, 7
        %v2303 = vsub.s32 0, %v2302
        %v2304 = vrot.slane %v2299, %v2303
        %v2305 = vlaneseq
        %v2306 = vshrl.u32 %v2305, 7
        %v2307 = vsub.s32 1, %v2306
        %v2308 = vrot.slane %v2299, %v2307
        %v2309 = vlaneseq
        %v2310 = vshrl.u32 %v2309, 7
        %v2311 = vsub.s32 2, %v2310
        %v2312 = vrot.slane %v2299, %v2311
        %v2316 = vadd.f32 %v2250, %v2304
        %v2317 = vadd.f32 %v2252, %v2308
        %v2318 = vadd.f32 %v2293, %v2312
        %v2319 = vadd.f32 %v2254, %v2304
        %v2320 = vadd.f32 %v2256, %v2308
        %v2321 = vadd.f32 %v2296, %v2312
        %2322 = vst [vmem:[%s529] sm:$0xff] %v2316
        %2323 = vst [vmem:[%s529 + $0x8] sm:$0xff] %v2317
        %2324 = vst [vmem:[%s529 + $0x10] sm:$0xff] %v2318
        %2325 = vst [vmem:[%s529 + $0x18] sm:$0xff] %v2319
        %2326 = vst [vmem:[%s529 + $0x20] sm:$0xff] %v2320
        %2327 = vst [vmem:[%s529 + $0x28] sm:$0xff] %v2321
        %s2328 = sand.u32 %s286, 1
        %s2329 = scalar_lea.sflag [#allocation3], %s2328
        %s2330 = sand.u32 %s286, 1
        %s2331 = smul.addr %s2330, 32
        %s2332 = scalar_lea.vmem [#allocation2], %s2331
        %p2333 = scmp.lt.s32.totalorder %s32, 1
        %s2334 = scalar_select %p2333, %s32, 1
        %s2335 = smul.addr %s2334, 6
        %s2336 = smul.addr %s2335, 8
        %s2337 = scalar_lea.vmem %s12, %s2336
        %s2338 = sand.u32 %s338, 1
        %s2339 = scalar_lea.sflag [#allocation5], %s2338
        %s2340 = sand.u32 %s338, 1
        %s2341 = smul.addr %s2340, 16
        %s2342 = scalar_lea.vmem [#allocation4], %s2341
        %p2343 = scmp.lt.s32.totalorder %s32, 1
        %s2344 = scalar_select %p2343, %s32, 1
        %s2345 = smul.addr %s2344, 2
        %s2346 = smul.addr %s2345, 8
        %s2347 = scalar_lea.vmem %s14, %s2346
        // Predicated region
        $region65: #{force_aptai_forward.3} parent=63 // pred_check
          %p2348 = pneg %p296
        $region66: #{force_aptai_forward.3} parent=63 // pred_check_branch
          %2350 = sbr.rel (%p2348) target = $region68
        $region67: #{force_aptai_forward.3} parent=63 // pred_region
          %s2352 = ssub.s32 512, 512
          %2353 = vsyncadd %s2329, %s2352
          %s2354 = smul.addr %s32, 4
          %s2355 = smul.addr %s2354, 128
          %s2356 = scalar_lea.hbm %s11, %s2355
          %s2357 = sshll.u32 %s2332, 4
          %s2358 = int_to_ptr.vmem [resolvable:$true] %s2357
          %2363 = dma.vmem_to_hbm [thread:$0]  %s2358, 512, %s2356, %s2329, 256, 256, 16
        $region68: #{force_aptai_forward.3} parent=63 // pred_fallthru
          _
        // Predicated region
        $region69: #{force_aptai_forward.3} parent=63 // pred_check
          %p2364 = pneg %p322
        $region70: #{force_aptai_forward.3} parent=63 // pred_check_branch
          %2366 = sbr.rel (%p2364) target = $region72
        $region71: #{force_aptai_forward.3} parent=63 // pred_region
          _
        $region72: #{force_aptai_forward.3} parent=63 // pred_fallthru
          _
        // Predicated region
        $region73: #{force_aptai_forward.3} parent=63 // pred_check
          %p2367 = pneg %p348
        $region74: #{force_aptai_forward.3} parent=63 // pred_check_branch
          %2369 = sbr.rel (%p2367) target = $region76
        $region75: #{force_aptai_forward.3} parent=63 // pred_region
          %s2371 = ssub.s32 256, 256
          %2372 = vsyncadd %s2339, %s2371
          %s2373 = smul.addr %s32, 2
          %s2374 = smul.addr %s2373, 128
          %s2375 = scalar_lea.hbm %s13, %s2374
          %s2376 = sshll.u32 %s2342, 4
          %s2377 = int_to_ptr.vmem [resolvable:$true] %s2376
          %2382 = dma.vmem_to_hbm [thread:$0]  %s2377, 256, %s2375, %s2339, 128, 128, 8
        $region76: #{force_aptai_forward.3} parent=63 // pred_fallthru
          _
        // Predicated region
        $region77: #{force_aptai_forward.3} parent=63 // pred_check
          %p2383 = pneg %p374
        $region78: #{force_aptai_forward.3} parent=63 // pred_check_branch
          %2385 = sbr.rel (%p2383) target = $region80
        $region79: #{force_aptai_forward.3} parent=63 // pred_region
          _
        $region80: #{force_aptai_forward.3} parent=63 // pred_fallthru
          _
      $region64: #{force_aptai_forward.3} parent=5 // pred_fallthru
        _
      %p2386 = scmp.le.s32.totalorder 2, %s27
      // Predicated region
      $region81: #{force_aptai_forward.3} parent=5 // pred_check
        %p2387 = pneg %p2386
      $region82: #{force_aptai_forward.3} parent=5 // pred_check_branch
        %2389 = sbr.rel (%p2387) target = $region84
      $region83: #{force_aptai_forward.3} parent=5 // pred_region
        %s2390 = ssub.s32 %s27, 2
        // Predicated region
        $region85: #{force_aptai_forward.3} parent=83 // pred_check
          %p2391 = pneg %p302
        $region86: #{force_aptai_forward.3} parent=83 // pred_check_branch
          %2393 = sbr.rel (%p2391) target = $region88
        $region87: #{force_aptai_forward.3} parent=83 // pred_region
          %s2394 = sand.u32 %s287, 1
          %s2395 = scalar_lea.sflag [#allocation3], %s2394
          %s2396 = sand.u32 %s287, 1
          %s2397 = smul.addr %s2396, 32
          %s2398 = scalar_lea.vmem [#allocation2], %s2397
          %2399 = dma.done %s2395, 512
        $region88: #{force_aptai_forward.3} parent=83 // pred_fallthru
          _
        // Predicated region
        $region89: #{force_aptai_forward.3} parent=83 // pred_check
          %p2400 = pneg %p328
        $region90: #{force_aptai_forward.3} parent=83 // pred_check_branch
          %2402 = sbr.rel (%p2400) target = $region92
        $region91: #{force_aptai_forward.3} parent=83 // pred_region
          %p2403 = scmp.lt.s32.totalorder %s33, 1
          %s2404 = scalar_select %p2403, %s33, 1
          %s2405 = smul.addr %s2404, 6
          %s2406 = smul.addr %s2405, 8
          %s2407 = scalar_lea.vmem %s12, %s2406
        $region92: #{force_aptai_forward.3} parent=83 // pred_fallthru
          _
        // Predicated region
        $region93: #{force_aptai_forward.3} parent=83 // pred_check
          %p2408 = pneg %p354
        $region94: #{force_aptai_forward.3} parent=83 // pred_check_branch
          %2410 = sbr.rel (%p2408) target = $region96
        $region95: #{force_aptai_forward.3} parent=83 // pred_region
          %s2411 = sand.u32 %s339, 1
          %s2412 = scalar_lea.sflag [#allocation5], %s2411
          %s2413 = sand.u32 %s339, 1
          %s2414 = smul.addr %s2413, 16
          %s2415 = scalar_lea.vmem [#allocation4], %s2414
          %2416 = dma.done %s2412, 256
        $region96: #{force_aptai_forward.3} parent=83 // pred_fallthru
          _
        // Predicated region
        $region97: #{force_aptai_forward.3} parent=83 // pred_check
          %p2417 = pneg %p380
        $region98: #{force_aptai_forward.3} parent=83 // pred_check_branch
          %2419 = sbr.rel (%p2417) target = $region100
        $region99: #{force_aptai_forward.3} parent=83 // pred_region
          %p2420 = scmp.lt.s32.totalorder %s33, 1
          %s2421 = scalar_select %p2420, %s33, 1
          %s2422 = smul.addr %s2421, 2
          %s2423 = smul.addr %s2422, 8
          %s2424 = scalar_lea.vmem %s14, %s2423
        $region100: #{force_aptai_forward.3} parent=83 // pred_fallthru
          _
      $region84: #{force_aptai_forward.3} parent=5 // pred_fallthru
        _
    $region6: #{force_aptai_forward.3} parent=1 // loop_footer
      %s31 = sadd.s32 1, %s27
    $region7: #{force_aptai_forward.3} parent=1 // loop_footer_branch
      %26 = sbr.rel target = $region3
    $region8: #{force_aptai_forward.3} parent=1 // loop_exit
      _
    %2425 = vsyncpa [#allocation3], 1
    %s2426 = scalar_lea.sflag [#allocation3], 1
    %2427 = vsyncpa %s2426, 1
    %2428 = vsyncpa [#allocation5], 1
    %s2429 = scalar_lea.sflag [#allocation5], 1
    %2430 = vsyncpa %s2429, 1

// kernel: force_aptai_forward.4
$region0: #{force_aptai_forward.4}
  #allocation0 [shape = 'u32[]', space=smem, size = 0x4, offset = 0x4, fixed_abs, tag = 'smem constant byte address 0x4 - core index']
  #allocation1 [shape = 'u32[144,128]{1,0:T(1,128)}', space=vmem, size = 0x12000, scoped, tag = 'internal scratch']
  #allocation2 [shape = 'f32[8,128]{1,0:T(8,128)}', space=vmem, size = 0x1000, scoped, tag = 'scratch operand']
  %s0 = inlined_call_operand.vmem [shape: f32[16,8,384], index: 0, kind: input, shape index: {}]
  %s1 = inlined_call_operand.vmem [shape: f32[128,384], index: 1, kind: input, shape index: {}]
  %s2 = inlined_call_operand.vmem [shape: f32[1,384], index: 2, kind: input, shape index: {}]
  %s3 = inlined_call_operand.vmem [shape: f32[16,8,128], index: 3, kind: output, shape index: {}]
  %s4 = sld [smem:[#allocation0]]
  $region22: #{force_aptai_forward.4} parent=0
    _
  %s6 = ssub.s32 1, %s4
  %s7 = scalar_select 0, %s6, %s4
  // Predicated region
  $region2: #{force_aptai_forward.4} parent=0 // pred_check
    _
  $region3: #{force_aptai_forward.4} parent=0 // pred_check_branch
    %9 = sbr.rel (0) target = $region5
  $region4: #{force_aptai_forward.4} parent=0 // pred_region
    _
  $region5: #{force_aptai_forward.4} parent=0 // pred_fallthru
    _
  // Predicated region
  $region6: #{force_aptai_forward.4} parent=0 // pred_check
    _
  $region7: #{force_aptai_forward.4} parent=0 // pred_check_branch
    %11 = sbr.rel (0) target = $region9
  $region8: #{force_aptai_forward.4} parent=0 // pred_region
    _
  $region9: #{force_aptai_forward.4} parent=0 // pred_fallthru
    _
  // Predicated region
  $region10: #{force_aptai_forward.4} parent=0 // pred_check
    _
  $region11: #{force_aptai_forward.4} parent=0 // pred_check_branch
    %13 = sbr.rel (0) target = $region13
  $region12: #{force_aptai_forward.4} parent=0 // pred_region
    _
  $region13: #{force_aptai_forward.4} parent=0 // pred_fallthru
    _
  %14 = vst [vmem:[#allocation2] sm:$0xff] 0.0
  %v15 = vld [vmem:[#allocation2] sm:$0xff]
  %v16 = vld [vmem:[%s1] sm:$0xff]
  %v17 = vld [vmem:[%s1 + $0x8] sm:$0xff]
  %v18 = vld [vmem:[%s1 + $0x10] sm:$0xff]
  %v19 = vld [vmem:[%s1 + $0x18] sm:$0xff]
  %v20 = vld [vmem:[%s1 + $0x20] sm:$0xff]
  %v21 = vld [vmem:[%s1 + $0x28] sm:$0xff]
  %v22 = vld [vmem:[%s1 + $0x30] sm:$0xff]
  %v23 = vld [vmem:[%s1 + $0x38] sm:$0xff]
  %v24 = vld [vmem:[%s1 + $0x40] sm:$0xff]
  %v25 = vld [vmem:[%s1 + $0x48] sm:$0xff]
  %v26 = vld [vmem:[%s1 + $0x50] sm:$0xff]
  %v27 = vld [vmem:[%s1 + $0x58] sm:$0xff]
  %v28 = vld [vmem:[%s1 + $0x60] sm:$0xff]
  %v29 = vld [vmem:[%s1 + $0x68] sm:$0xff]
  %v30 = vld [vmem:[%s1 + $0x70] sm:$0xff]
  %v31 = vld [vmem:[%s1 + $0x78] sm:$0xff]
  %v32 = vld [vmem:[%s1 + $0x80] sm:$0xff]
  %v33 = vld [vmem:[%s1 + $0x88] sm:$0xff]
  %v34 = vld [vmem:[%s1 + $0x90] sm:$0xff]
  %v35 = vld [vmem:[%s1 + $0x98] sm:$0xff]
  %v36 = vld [vmem:[%s1 + $0xa0] sm:$0xff]
  %v37 = vld [vmem:[%s1 + $0xa8] sm:$0xff]
  %v38 = vld [vmem:[%s1 + $0xb0] sm:$0xff]
  %v39 = vld [vmem:[%s1 + $0xb8] sm:$0xff]
  %v40 = vld [vmem:[%s1 + $0xc0] sm:$0xff]
  %v41 = vld [vmem:[%s1 + $0xc8] sm:$0xff]
  %v42 = vld [vmem:[%s1 + $0xd0] sm:$0xff]
  %v43 = vld [vmem:[%s1 + $0xd8] sm:$0xff]
  %v44 = vld [vmem:[%s1 + $0xe0] sm:$0xff]
  %v45 = vld [vmem:[%s1 + $0xe8] sm:$0xff]
  %v46 = vld [vmem:[%s1 + $0xf0] sm:$0xff]
  %v47 = vld [vmem:[%s1 + $0xf8] sm:$0xff]
  %v48 = vld [vmem:[%s1 + $0x100] sm:$0xff]
  %v49 = vld [vmem:[%s1 + $0x108] sm:$0xff]
  %v50 = vld [vmem:[%s1 + $0x110] sm:$0xff]
  %v51 = vld [vmem:[%s1 + $0x118] sm:$0xff]
  %v52 = vld [vmem:[%s1 + $0x120] sm:$0xff]
  %v53 = vld [vmem:[%s1 + $0x128] sm:$0xff]
  %v54 = vld [vmem:[%s1 + $0x130] sm:$0xff]
  %v55 = vld [vmem:[%s1 + $0x138] sm:$0xff]
  %v56 = vld [vmem:[%s1 + $0x140] sm:$0xff]
  %v57 = vld [vmem:[%s1 + $0x148] sm:$0xff]
  %v58 = vld [vmem:[%s1 + $0x150] sm:$0xff]
  %v59 = vld [vmem:[%s1 + $0x158] sm:$0xff]
  %v60 = vld [vmem:[%s1 + $0x160] sm:$0xff]
  %v61 = vld [vmem:[%s1 + $0x168] sm:$0xff]
  %v62 = vld [vmem:[%s1 + $0x170] sm:$0xff]
  %v63 = vld [vmem:[%s1 + $0x178] sm:$0xff]
  %v64 = vld [vmem:[%s2] sm:$0x7]
  %v66 = vlaneseq
  %v67 = vshrl.u32 %v66, 7
  %v68 = vsub.s32 0, %v67
  %v69 = vrot.slane %v64, %v68
  %v70 = vlaneseq
  %v71 = vshrl.u32 %v70, 7
  %v72 = vsub.s32 1, %v71
  %v73 = vrot.slane %v64, %v72
  %v74 = vlaneseq
  %v75 = vshrl.u32 %v74, 7
  %v76 = vsub.s32 2, %v75
  %v77 = vrot.slane %v64, %v76
  %81 = vmatprep.subr.mxu0 %v17
  %82 = vmatpush1.msra.mxu0 %v16
  %83 = vmatprep.subr.mxu0 %v20
  %84 = vmatpush1.msra.mxu0 %v19
  %85 = vmatprep.subr.mxu0 %v23
  %86 = vmatpush1.msra.mxu0 %v22
  %87 = vmatprep.subr.mxu0 %v26
  %88 = vmatpush1.msra.mxu0 %v25
  %89 = vmatprep.subr.mxu0 %v29
  %90 = vmatpush1.msra.mxu0 %v28
  %91 = vmatprep.subr.mxu0 %v32
  %92 = vmatpush1.msra.mxu0 %v31
  %93 = vmatprep.subr.mxu0 %v35
  %94 = vmatpush1.msra.mxu0 %v34
  %95 = vmatprep.subr.mxu0 %v38
  %96 = vmatpush1.msra.mxu0 %v37
  %97 = vmatprep.subr.mxu0 %v41
  %98 = vmatpush1.msra.mxu0 %v40
  %99 = vmatprep.subr.mxu0 %v44
  %100 = vmatpush1.msra.mxu0 %v43
  %101 = vmatprep.subr.mxu0 %v47
  %102 = vmatpush1.msra.mxu0 %v46
  %103 = vmatprep.subr.mxu0 %v50
  %104 = vmatpush1.msra.mxu0 %v49
  %105 = vmatprep.subr.mxu0 %v53
  %106 = vmatpush1.msra.mxu0 %v52
  %107 = vmatprep.subr.mxu0 %v56
  %108 = vmatpush1.msra.mxu0 %v55
  %109 = vmatprep.subr.mxu0 %v59
  %110 = vmatpush1.msra.mxu0 %v58
  %111 = vmatprep.subr.mxu0 %v62
  %112 = vmatpush1.msra.mxu0 %v61
  %113 = vmatprep.subr.mxu0 0.0
  %114 = vmatpush1.msra.mxu0 0.0
  %115 = vmatprep.subr.mxu0 0.0
  %116 = vmatpush1.msra.mxu0 0.0
  %117 = vmatprep.subr.mxu0 0.0
  %118 = vmatpush1.msra.mxu0 0.0
  %119 = vmatprep.subr.mxu0 0.0
  %120 = vmatpush1.msra.mxu0 0.0
  %121 = vmatprep.subr.mxu0 0.0
  %122 = vmatpush1.msra.mxu0 0.0
  %123 = vmatprep.subr.mxu0 0.0
  %124 = vmatpush1.msra.mxu0 0.0
  %125 = vmatprep.subr.mxu0 0.0
  %126 = vmatpush1.msra.mxu0 0.0
  %127 = vmatprep.subr.mxu0 0.0
  %128 = vmatpush1.msra.mxu0 0.0
  %129 = vmatprep.subr.mxu0 0.0
  %130 = vmatpush1.msra.mxu0 0.0
  %131 = vmatprep.subr.mxu0 0.0
  %132 = vmatpush1.msra.mxu0 0.0
  %133 = vmatprep.subr.mxu0 0.0
  %134 = vmatpush1.msra.mxu0 0.0
  %135 = vmatprep.subr.mxu0 0.0
  %136 = vmatpush1.msra.mxu0 0.0
  %137 = vmatprep.subr.mxu0 0.0
  %138 = vmatpush1.msra.mxu0 0.0
  %139 = vmatprep.subr.mxu0 0.0
  %140 = vmatpush1.msra.mxu0 0.0
  %141 = vmatprep.subr.mxu0 0.0
  %142 = vmatpush1.msra.mxu0 0.0
  %143 = vmatprep.subr.mxu0 0.0
  %144 = vmatpush1.msra.mxu0 0.0
  %145 = vmatprep.mubr.f32.mxu0 0.0
  %146 = vmatmul.mubr.f32.gmra.mrb[0].mxu0 %v15
  %v147 = vpop.f32.mrb[0].mxu0
  %v148 = vadd.f32 %v69, %v147
  %v149 = vpop.f32.mrb[0].mxu0
  %v150 = vadd.f32 %v73, %v149
  %151 = vdwg.mxu0
  %152 = vmatprep.subr.mxu0 0.0
  %153 = vmatpush1.msra.mxu0 %v18
  %154 = vmatprep.subr.mxu0 0.0
  %155 = vmatpush1.msra.mxu0 %v21
  %156 = vmatprep.subr.mxu0 0.0
  %157 = vmatpush1.msra.mxu0 %v24
  %158 = vmatprep.subr.mxu0 0.0
  %159 = vmatpush1.msra.mxu0 %v27
  %160 = vmatprep.subr.mxu0 0.0
  %161 = vmatpush1.msra.mxu0 %v30
  %162 = vmatprep.subr.mxu0 0.0
  %163 = vmatpush1.msra.mxu0 %v33
  %164 = vmatprep.subr.mxu0 0.0
  %165 = vmatpush1.msra.mxu0 %v36
  %166 = vmatprep.subr.mxu0 0.0
  %167 = vmatpush1.msra.mxu0 %v39
  %168 = vmatprep.subr.mxu0 0.0
  %169 = vmatpush1.msra.mxu0 %v42
  %170 = vmatprep.subr.mxu0 0.0
  %171 = vmatpush1.msra.mxu0 %v45
  %172 = vmatprep.subr.mxu0 0.0
  %173 = vmatpush1.msra.mxu0 %v48
  %174 = vmatprep.subr.mxu0 0.0
  %175 = vmatpush1.msra.mxu0 %v51
  %176 = vmatprep.subr.mxu0 0.0
  %177 = vmatpush1.msra.mxu0 %v54
  %178 = vmatprep.subr.mxu0 0.0
  %179 = vmatpush1.msra.mxu0 %v57
  %180 = vmatprep.subr.mxu0 0.0
  %181 = vmatpush1.msra.mxu0 %v60
  %182 = vmatprep.subr.mxu0 0.0
  %183 = vmatpush1.msra.mxu0 %v63
  %184 = vmatprep.subr.mxu0 0.0
  %185 = vmatpush1.msra.mxu0 0.0
  %186 = vmatprep.subr.mxu0 0.0
  %187 = vmatpush1.msra.mxu0 0.0
  %188 = vmatprep.subr.mxu0 0.0
  %189 = vmatpush1.msra.mxu0 0.0
  %190 = vmatprep.subr.mxu0 0.0
  %191 = vmatpush1.msra.mxu0 0.0
  %192 = vmatprep.subr.mxu0 0.0
  %193 = vmatpush1.msra.mxu0 0.0
  %194 = vmatprep.subr.mxu0 0.0
  %195 = vmatpush1.msra.mxu0 0.0
  %196 = vmatprep.subr.mxu0 0.0
  %197 = vmatpush1.msra.mxu0 0.0
  %198 = vmatprep.subr.mxu0 0.0
  %199 = vmatpush1.msra.mxu0 0.0
  %200 = vmatprep.subr.mxu0 0.0
  %201 = vmatpush1.msra.mxu0 0.0
  %202 = vmatprep.subr.mxu0 0.0
  %203 = vmatpush1.msra.mxu0 0.0
  %204 = vmatprep.subr.mxu0 0.0
  %205 = vmatpush1.msra.mxu0 0.0
  %206 = vmatprep.subr.mxu0 0.0
  %207 = vmatpush1.msra.mxu0 0.0
  %208 = vmatprep.subr.mxu0 0.0
  %209 = vmatpush1.msra.mxu0 0.0
  %210 = vmatprep.subr.mxu0 0.0
  %211 = vmatpush1.msra.mxu0 0.0
  %212 = vmatprep.subr.mxu0 0.0
  %213 = vmatpush1.msra.mxu0 0.0
  %214 = vmatprep.subr.mxu0 0.0
  %215 = vmatpush1.msra.mxu0 0.0
  %216 = vmatprep.mubr.f32.mxu0 0.0
  %217 = vmatmul.mubr.f32.gmra.mrb[0].mxu0 %v15
  %v218 = vpop.f32.mrb[0].mxu0
  %v219 = vadd.f32 %v77, %v218
  %v220 = vpop.f32.mrb[0].mxu0
  %221 = vdwg.mxu0
  %v222 = vld [vmem:[%s0] sm:$0xff]
  %v223 = vld [vmem:[%s0 + $0x8] sm:$0xff]
  %v224 = vld [vmem:[%s0 + $0x10] sm:$0xff]
  %v225 = vadd.f32 %v222, %v148
  %v226 = vxor.u32 %v225, 2147483648
  %v227 = vmul.f32 %v226, 1.442695
  %v228 = vpow.pop %v227
  %v229 = vadd.f32 %v228, 1.0
  %v230 = vrcp.pop %v229
  %v231 = vmul.f32 1.0, %v230
  %v232 = vadd.f32 %v223, %v150
  %v233 = vxor.u32 %v232, 2147483648
  %v234 = vmul.f32 %v233, 1.442695
  %v235 = vpow.pop %v234
  %v236 = vadd.f32 %v235, 1.0
  %v237 = vrcp.pop %v236
  %v238 = vmul.f32 1.0, %v237
  %v239 = vmul.f32 %v231, %v219
  %v240 = vadd.f32 %v224, %v239
  %v241 = vtanh.pop %v240
  %v242 = vsub.f32 1.0, %v238
  %v243 = vmul.f32 %v242, %v241
  %v244 = vmul.f32 %v238, %v15
  %v245 = vadd.f32 %v243, %v244
  %246 = vst [vmem:[#allocation2] sm:$0xff] %v245
  %247 = vst [vmem:[%s3] sm:$0xff] %v245
  %v248 = vld [vmem:[#allocation2] sm:$0xff]
  %v249 = vld [vmem:[%s1] sm:$0xff]
  %v250 = vld [vmem:[%s1 + $0x8] sm:$0xff]
  %v251 = vld [vmem:[%s1 + $0x10] sm:$0xff]
  %v252 = vld [vmem:[%s1 + $0x18] sm:$0xff]
  %v253 = vld [vmem:[%s1 + $0x20] sm:$0xff]
  %v254 = vld [vmem:[%s1 + $0x28] sm:$0xff]
  %v255 = vld [vmem:[%s1 + $0x30] sm:$0xff]
  %v256 = vld [vmem:[%s1 + $0x38] sm:$0xff]
  %v257 = vld [vmem:[%s1 + $0x40] sm:$0xff]
  %v258 = vld [vmem:[%s1 + $0x48] sm:$0xff]
  %v259 = vld [vmem:[%s1 + $0x50] sm:$0xff]
  %v260 = vld [vmem:[%s1 + $0x58] sm:$0xff]
  %v261 = vld [vmem:[%s1 + $0x60] sm:$0xff]
  %v262 = vld [vmem:[%s1 + $0x68] sm:$0xff]
  %v263 = vld [vmem:[%s1 + $0x70] sm:$0xff]
  %v264 = vld [vmem:[%s1 + $0x78] sm:$0xff]
  %v265 = vld [vmem:[%s1 + $0x80] sm:$0xff]
  %v266 = vld [vmem:[%s1 + $0x88] sm:$0xff]
  %v267 = vld [vmem:[%s1 + $0x90] sm:$0xff]
  %v268 = vld [vmem:[%s1 + $0x98] sm:$0xff]
  %v269 = vld [vmem:[%s1 + $0xa0] sm:$0xff]
  %v270 = vld [vmem:[%s1 + $0xa8] sm:$0xff]
  %v271 = vld [vmem:[%s1 + $0xb0] sm:$0xff]
  %v272 = vld [vmem:[%s1 + $0xb8] sm:$0xff]
  %v273 = vld [vmem:[%s1 + $0xc0] sm:$0xff]
  %v274 = vld [vmem:[%s1 + $0xc8] sm:$0xff]
  %v275 = vld [vmem:[%s1 + $0xd0] sm:$0xff]
  %v276 = vld [vmem:[%s1 + $0xd8] sm:$0xff]
  %v277 = vld [vmem:[%s1 + $0xe0] sm:$0xff]
  %v278 = vld [vmem:[%s1 + $0xe8] sm:$0xff]
  %v279 = vld [vmem:[%s1 + $0xf0] sm:$0xff]
  %v280 = vld [vmem:[%s1 + $0xf8] sm:$0xff]
  %v281 = vld [vmem:[%s1 + $0x100] sm:$0xff]
  %v282 = vld [vmem:[%s1 + $0x108] sm:$0xff]
  %v283 = vld [vmem:[%s1 + $0x110] sm:$0xff]
  %v284 = vld [vmem:[%s1 + $0x118] sm:$0xff]
  %v285 = vld [vmem:[%s1 + $0x120] sm:$0xff]
  %v286 = vld [vmem:[%s1 + $0x128] sm:$0xff]
  %v287 = vld [vmem:[%s1 + $0x130] sm:$0xff]
  %v288 = vld [vmem:[%s1 + $0x138] sm:$0xff]
  %v289 = vld [vmem:[%s1 + $0x140] sm:$0xff]
  %v290 = vld [vmem:[%s1 + $0x148] sm:$0xff]
  %v291 = vld [vmem:[%s1 + $0x150] sm:$0xff]
  %v292 = vld [vmem:[%s1 + $0x158] sm:$0xff]
  %v293 = vld [vmem:[%s1 + $0x160] sm:$0xff]
  %v294 = vld [vmem:[%s1 + $0x168] sm:$0xff]
  %v295 = vld [vmem:[%s1 + $0x170] sm:$0xff]
  %v296 = vld [vmem:[%s1 + $0x178] sm:$0xff]
  %v297 = vld [vmem:[%s2] sm:$0x7]
  %v299 = vlaneseq
  %v300 = vshrl.u32 %v299, 7
  %v301 = vsub.s32 0, %v300
  %v302 = vrot.slane %v297, %v301
  %v303 = vlaneseq
  %v304 = vshrl.u32 %v303, 7
  %v305 = vsub.s32 1, %v304
  %v306 = vrot.slane %v297, %v305
  %v307 = vlaneseq
  %v308 = vshrl.u32 %v307, 7
  %v309 = vsub.s32 2, %v308
  %v310 = vrot.slane %v297, %v309
  %314 = vmatprep.subr.mxu0 %v250
  %315 = vmatpush1.msra.mxu0 %v249
  %316 = vmatprep.subr.mxu0 %v253
  %317 = vmatpush1.msra.mxu0 %v252
  %318 = vmatprep.subr.mxu0 %v256
  %319 = vmatpush1.msra.mxu0 %v255
  %320 = vmatprep.subr.mxu0 %v259
  %321 = vmatpush1.msra.mxu0 %v258
  %322 = vmatprep.subr.mxu0 %v262
  %323 = vmatpush1.msra.mxu0 %v261
  %324 = vmatprep.subr.mxu0 %v265
  %325 = vmatpush1.msra.mxu0 %v264
  %326 = vmatprep.subr.mxu0 %v268
  %327 = vmatpush1.msra.mxu0 %v267
  %328 = vmatprep.subr.mxu0 %v271
  %329 = vmatpush1.msra.mxu0 %v270
  %330 = vmatprep.subr.mxu0 %v274
  %331 = vmatpush1.msra.mxu0 %v273
  %332 = vmatprep.subr.mxu0 %v277
  %333 = vmatpush1.msra.mxu0 %v276
  %334 = vmatprep.subr.mxu0 %v280
  %335 = vmatpush1.msra.mxu0 %v279
  %336 = vmatprep.subr.mxu0 %v283
  %337 = vmatpush1.msra.mxu0 %v282
  %338 = vmatprep.subr.mxu0 %v286
  %339 = vmatpush1.msra.mxu0 %v285
  %340 = vmatprep.subr.mxu0 %v289
  %341 = vmatpush1.msra.mxu0 %v288
  %342 = vmatprep.subr.mxu0 %v292
  %343 = vmatpush1.msra.mxu0 %v291
  %344 = vmatprep.subr.mxu0 %v295
  %345 = vmatpush1.msra.mxu0 %v294
  %346 = vmatprep.subr.mxu0 0.0
  %347 = vmatpush1.msra.mxu0 0.0
  %348 = vmatprep.subr.mxu0 0.0
  %349 = vmatpush1.msra.mxu0 0.0
  %350 = vmatprep.subr.mxu0 0.0
  %351 = vmatpush1.msra.mxu0 0.0
  %352 = vmatprep.subr.mxu0 0.0
  %353 = vmatpush1.msra.mxu0 0.0
  %354 = vmatprep.subr.mxu0 0.0
  %355 = vmatpush1.msra.mxu0 0.0
  %356 = vmatprep.subr.mxu0 0.0
  %357 = vmatpush1.msra.mxu0 0.0
  %358 = vmatprep.subr.mxu0 0.0
  %359 = vmatpush1.msra.mxu0 0.0
  %360 = vmatprep.subr.mxu0 0.0
  %361 = vmatpush1.msra.mxu0 0.0
  %362 = vmatprep.subr.mxu0 0.0
  %363 = vmatpush1.msra.mxu0 0.0
  %364 = vmatprep.subr.mxu0 0.0
  %365 = vmatpush1.msra.mxu0 0.0
  %366 = vmatprep.subr.mxu0 0.0
  %367 = vmatpush1.msra.mxu0 0.0
  %368 = vmatprep.subr.mxu0 0.0
  %369 = vmatpush1.msra.mxu0 0.0
  %370 = vmatprep.subr.mxu0 0.0
  %371 = vmatpush1.msra.mxu0 0.0
  %372 = vmatprep.subr.mxu0 0.0
  %373 = vmatpush1.msra.mxu0 0.0
  %374 = vmatprep.subr.mxu0 0.0
  %375 = vmatpush1.msra.mxu0 0.0
  %376 = vmatprep.subr.mxu0 0.0
  %377 = vmatpush1.msra.mxu0 0.0
  %378 = vmatprep.mubr.f32.mxu0 0.0
  %379 = vmatmul.mubr.f32.gmra.mrb[0].mxu0 %v248
  %v380 = vpop.f32.mrb[0].mxu0
  %v381 = vadd.f32 %v302, %v380
  %v382 = vpop.f32.mrb[0].mxu0
  %v383 = vadd.f32 %v306, %v382
  %384 = vdwg.mxu0
  %385 = vmatprep.subr.mxu0 0.0
  %386 = vmatpush1.msra.mxu0 %v251
  %387 = vmatprep.subr.mxu0 0.0
  %388 = vmatpush1.msra.mxu0 %v254
  %389 = vmatprep.subr.mxu0 0.0
  %390 = vmatpush1.msra.mxu0 %v257
  %391 = vmatprep.subr.mxu0 0.0
  %392 = vmatpush1.msra.mxu0 %v260
  %393 = vmatprep.subr.mxu0 0.0
  %394 = vmatpush1.msra.mxu0 %v263
  %395 = vmatprep.subr.mxu0 0.0
  %396 = vmatpush1.msra.mxu0 %v266
  %397 = vmatprep.subr.mxu0 0.0
  %398 = vmatpush1.msra.mxu0 %v269
  %399 = vmatprep.subr.mxu0 0.0
  %400 = vmatpush1.msra.mxu0 %v272
  %401 = vmatprep.subr.mxu0 0.0
  %402 = vmatpush1.msra.mxu0 %v275
  %403 = vmatprep.subr.mxu0 0.0
  %404 = vmatpush1.msra.mxu0 %v278
  %405 = vmatprep.subr.mxu0 0.0
  %406 = vmatpush1.msra.mxu0 %v281
  %407 = vmatprep.subr.mxu0 0.0
  %408 = vmatpush1.msra.mxu0 %v284
  %409 = vmatprep.subr.mxu0 0.0
  %410 = vmatpush1.msra.mxu0 %v287
  %411 = vmatprep.subr.mxu0 0.0
  %412 = vmatpush1.msra.mxu0 %v290
  %413 = vmatprep.subr.mxu0 0.0
  %414 = vmatpush1.msra.mxu0 %v293
  %415 = vmatprep.subr.mxu0 0.0
  %416 = vmatpush1.msra.mxu0 %v296
  %417 = vmatprep.subr.mxu0 0.0
  %418 = vmatpush1.msra.mxu0 0.0
  %419 = vmatprep.subr.mxu0 0.0
  %420 = vmatpush1.msra.mxu0 0.0
  %421 = vmatprep.subr.mxu0 0.0
  %422 = vmatpush1.msra.mxu0 0.0
  %423 = vmatprep.subr.mxu0 0.0
  %424 = vmatpush1.msra.mxu0 0.0
  %425 = vmatprep.subr.mxu0 0.0
  %426 = vmatpush1.msra.mxu0 0.0
  %427 = vmatprep.subr.mxu0 0.0
  %428 = vmatpush1.msra.mxu0 0.0
  %429 = vmatprep.subr.mxu0 0.0
  %430 = vmatpush1.msra.mxu0 0.0
  %431 = vmatprep.subr.mxu0 0.0
  %432 = vmatpush1.msra.mxu0 0.0
  %433 = vmatprep.subr.mxu0 0.0
  %434 = vmatpush1.msra.mxu0 0.0
  %435 = vmatprep.subr.mxu0 0.0
  %436 = vmatpush1.msra.mxu0 0.0
  %437 = vmatprep.subr.mxu0 0.0
  %438 = vmatpush1.msra.mxu0 0.0
  %439 = vmatprep.subr.mxu0 0.0
  %440 = vmatpush1.msra.mxu0 0.0
  %441 = vmatprep.subr.mxu0 0.0
  %442 = vmatpush1.msra.mxu0 0.0
  %443 = vmatprep.subr.mxu0 0.0
  %444 = vmatpush1.msra.mxu0 0.0
  %445 = vmatprep.subr.mxu0 0.0
  %446 = vmatpush1.msra.mxu0 0.0
  %447 = vmatprep.subr.mxu0 0.0
  %448 = vmatpush1.msra.mxu0 0.0
  %449 = vmatprep.mubr.f32.mxu0 0.0
  %450 = vmatmul.mubr.f32.gmra.mrb[0].mxu0 %v248
  %v451 = vpop.f32.mrb[0].mxu0
  %v452 = vadd.f32 %v310, %v451
  %v453 = vpop.f32.mrb[0].mxu0
  %454 = vdwg.mxu0
  %s455 = scalar_lea.vmem %s0, 24
  %v456 = vld [vmem:[%s455] sm:$0xff]
  %v457 = vld [vmem:[%s455 + $0x8] sm:$0xff]
  %v458 = vld [vmem:[%s455 + $0x10] sm:$0xff]
  %v459 = vadd.f32 %v456, %v381
  %v460 = vxor.u32 %v459, 2147483648
  %v461 = vmul.f32 %v460, 1.442695
  %v462 = vpow.pop %v461
  %v463 = vadd.f32 %v462, 1.0
  %v464 = vrcp.pop %v463
  %v465 = vmul.f32 1.0, %v464
  %v466 = vadd.f32 %v457, %v383
  %v467 = vxor.u32 %v466, 2147483648
  %v468 = vmul.f32 %v467, 1.442695
  %v469 = vpow.pop %v468
  %v470 = vadd.f32 %v469, 1.0
  %v471 = vrcp.pop %v470
  %v472 = vmul.f32 1.0, %v471
  %v473 = vmul.f32 %v465, %v452
  %v474 = vadd.f32 %v458, %v473
  %v475 = vtanh.pop %v474
  %v476 = vsub.f32 1.0, %v472
  %v477 = vmul.f32 %v476, %v475
  %v478 = vmul.f32 %v472, %v248
  %v479 = vadd.f32 %v477, %v478
  %480 = vst [vmem:[#allocation2] sm:$0xff] %v479
  %s481 = scalar_lea.vmem %s3, 8
  %482 = vst [vmem:[%s481] sm:$0xff] %v479
  %v483 = vld [vmem:[#allocation2] sm:$0xff]
  %v484 = vld [vmem:[%s1] sm:$0xff]
  %v485 = vld [vmem:[%s1 + $0x8] sm:$0xff]
  %v486 = vld [vmem:[%s1 + $0x10] sm:$0xff]
  %v487 = vld [vmem:[%s1 + $0x18] sm:$0xff]
  %v488 = vld [vmem:[%s1 + $0x20] sm:$0xff]
  %v489 = vld [vmem:[%s1 + $0x28] sm:$0xff]
  %v490 = vld [vmem:[%s1 + $0x30] sm:$0xff]
  %v491 = vld [vmem:[%s1 + $0x38] sm:$0xff]
  %v492 = vld [vmem:[%s1 + $0x40] sm:$0xff]
  %v493 = vld [vmem:[%s1 + $0x48] sm:$0xff]
  %v494 = vld [vmem:[%s1 + $0x50] sm:$0xff]
  %v495 = vld [vmem:[%s1 + $0x58] sm:$0xff]
  %v496 = vld [vmem:[%s1 + $0x60] sm:$0xff]
  %v497 = vld [vmem:[%s1 + $0x68] sm:$0xff]
  %v498 = vld [vmem:[%s1 + $0x70] sm:$0xff]
  %v499 = vld [vmem:[%s1 + $0x78] sm:$0xff]
  %v500 = vld [vmem:[%s1 + $0x80] sm:$0xff]
  %v501 = vld [vmem:[%s1 + $0x88] sm:$0xff]
  %v502 = vld [vmem:[%s1 + $0x90] sm:$0xff]
  %v503 = vld [vmem:[%s1 + $0x98] sm:$0xff]
  %v504 = vld [vmem:[%s1 + $0xa0] sm:$0xff]
  %v505 = vld [vmem:[%s1 + $0xa8] sm:$0xff]
  %v506 = vld [vmem:[%s1 + $0xb0] sm:$0xff]
  %v507 = vld [vmem:[%s1 + $0xb8] sm:$0xff]
  %v508 = vld [vmem:[%s1 + $0xc0] sm:$0xff]
  %v509 = vld [vmem:[%s1 + $0xc8] sm:$0xff]
  %v510 = vld [vmem:[%s1 + $0xd0] sm:$0xff]
  %v511 = vld [vmem:[%s1 + $0xd8] sm:$0xff]
  %v512 = vld [vmem:[%s1 + $0xe0] sm:$0xff]
  %v513 = vld [vmem:[%s1 + $0xe8] sm:$0xff]
  %v514 = vld [vmem:[%s1 + $0xf0] sm:$0xff]
  %v515 = vld [vmem:[%s1 + $0xf8] sm:$0xff]
  %v516 = vld [vmem:[%s1 + $0x100] sm:$0xff]
  %v517 = vld [vmem:[%s1 + $0x108] sm:$0xff]
  %v518 = vld [vmem:[%s1 + $0x110] sm:$0xff]
  %v519 = vld [vmem:[%s1 + $0x118] sm:$0xff]
  %v520 = vld [vmem:[%s1 + $0x120] sm:$0xff]
  %v521 = vld [vmem:[%s1 + $0x128] sm:$0xff]
  %v522 = vld [vmem:[%s1 + $0x130] sm:$0xff]
  %v523 = vld [vmem:[%s1 + $0x138] sm:$0xff]
  %v524 = vld [vmem:[%s1 + $0x140] sm:$0xff]
  %v525 = vld [vmem:[%s1 + $0x148] sm:$0xff]
  %v526 = vld [vmem:[%s1 + $0x150] sm:$0xff]
  %v527 = vld [vmem:[%s1 + $0x158] sm:$0xff]
  %v528 = vld [vmem:[%s1 + $0x160] sm:$0xff]
  %v529 = vld [vmem:[%s1 + $0x168] sm:$0xff]
  %v530 = vld [vmem:[%s1 + $0x170] sm:$0xff]
  %v531 = vld [vmem:[%s1 + $0x178] sm:$0xff]
  %v532 = vld [vmem:[%s2] sm:$0x7]
  %v534 = vlaneseq
  %v535 = vshrl.u32 %v534, 7
  %v536 = vsub.s32 0, %v535
  %v537 = vrot.slane %v532, %v536
  %v538 = vlaneseq
  %v539 = vshrl.u32 %v538, 7
  %v540 = vsub.s32 1, %v539
  %v541 = vrot.slane %v532, %v540
  %v542 = vlaneseq
  %v543 = vshrl.u32 %v542, 7
  %v544 = vsub.s32 2, %v543
  %v545 = vrot.slane %v532, %v544
  %549 = vmatprep.subr.mxu0 %v485
  %550 = vmatpush1.msra.mxu0 %v484
  %551 = vmatprep.subr.mxu0 %v488
  %552 = vmatpush1.msra.mxu0 %v487
  %553 = vmatprep.subr.mxu0 %v491
  %554 = vmatpush1.msra.mxu0 %v490
  %555 = vmatprep.subr.mxu0 %v494
  %556 = vmatpush1.msra.mxu0 %v493
  %557 = vmatprep.subr.mxu0 %v497
  %558 = vmatpush1.msra.mxu0 %v496
  %559 = vmatprep.subr.mxu0 %v500
  %560 = vmatpush1.msra.mxu0 %v499
  %561 = vmatprep.subr.mxu0 %v503
  %562 = vmatpush1.msra.mxu0 %v502
  %563 = vmatprep.subr.mxu0 %v506
  %564 = vmatpush1.msra.mxu0 %v505
  %565 = vmatprep.subr.mxu0 %v509
  %566 = vmatpush1.msra.mxu0 %v508
  %567 = vmatprep.subr.mxu0 %v512
  %568 = vmatpush1.msra.mxu0 %v511
  %569 = vmatprep.subr.mxu0 %v515
  %570 = vmatpush1.msra.mxu0 %v514
  %571 = vmatprep.subr.mxu0 %v518
  %572 = vmatpush1.msra.mxu0 %v517
  %573 = vmatprep.subr.mxu0 %v521
  %574 = vmatpush1.msra.mxu0 %v520
  %575 = vmatprep.subr.mxu0 %v524
  %576 = vmatpush1.msra.mxu0 %v523
  %577 = vmatprep.subr.mxu0 %v527
  %578 = vmatpush1.msra.mxu0 %v526
  %579 = vmatprep.subr.mxu0 %v530
  %580 = vmatpush1.msra.mxu0 %v529
  %581 = vmatprep.subr.mxu0 0.0
  %582 = vmatpush1.msra.mxu0 0.0
  %583 = vmatprep.subr.mxu0 0.0
  %584 = vmatpush1.msra.mxu0 0.0
  %585 = vmatprep.subr.mxu0 0.0
  %586 = vmatpush1.msra.mxu0 0.0
  %587 = vmatprep.subr.mxu0 0.0
  %588 = vmatpush1.msra.mxu0 0.0
  %589 = vmatprep.subr.mxu0 0.0
  %590 = vmatpush1.msra.mxu0 0.0
  %591 = vmatprep.subr.mxu0 0.0
  %592 = vmatpush1.msra.mxu0 0.0
  %593 = vmatprep.subr.mxu0 0.0
  %594 = vmatpush1.msra.mxu0 0.0
  %595 = vmatprep.subr.mxu0 0.0
  %596 = vmatpush1.msra.mxu0 0.0
  %597 = vmatprep.subr.mxu0 0.0
  %598 = vmatpush1.msra.mxu0 0.0
  %599 = vmatprep.subr.mxu0 0.0
  %600 = vmatpush1.msra.mxu0 0.0
  %601 = vmatprep.subr.mxu0 0.0
  %602 = vmatpush1.msra.mxu0 0.0
  %603 = vmatprep.subr.mxu0 0.0
  %604 = vmatpush1.msra.mxu0 0.0
  %605 = vmatprep.subr.mxu0 0.0
  %606 = vmatpush1.msra.mxu0 0.0
  %607 = vmatprep.subr.mxu0 0.0
  %608 = vmatpush1.msra.mxu0 0.0
  %609 = vmatprep.subr.mxu0 0.0
  %610 = vmatpush1.msra.mxu0 0.0
  %611 = vmatprep.subr.mxu0 0.0
  %612 = vmatpush1.msra.mxu0 0.0
  %613 = vmatprep.mubr.f32.mxu0 0.0
  %614 = vmatmul.mubr.f32.gmra.mrb[0].mxu0 %v483
  %v615 = vpop.f32.mrb[0].mxu0
  %v616 = vadd.f32 %v537, %v615
  %v617 = vpop.f32.mrb[0].mxu0
  %v618 = vadd.f32 %v541, %v617
  %619 = vdwg.mxu0
  %620 = vmatprep.subr.mxu0 0.0
  %621 = vmatpush1.msra.mxu0 %v486
  %622 = vmatprep.subr.mxu0 0.0
  %623 = vmatpush1.msra.mxu0 %v489
  %624 = vmatprep.subr.mxu0 0.0
  %625 = vmatpush1.msra.mxu0 %v492
  %626 = vmatprep.subr.mxu0 0.0
  %627 = vmatpush1.msra.mxu0 %v495
  %628 = vmatprep.subr.mxu0 0.0
  %629 = vmatpush1.msra.mxu0 %v498
  %630 = vmatprep.subr.mxu0 0.0
  %631 = vmatpush1.msra.mxu0 %v501
  %632 = vmatprep.subr.mxu0 0.0
  %633 = vmatpush1.msra.mxu0 %v504
  %634 = vmatprep.subr.mxu0 0.0
  %635 = vmatpush1.msra.mxu0 %v507
  %636 = vmatprep.subr.mxu0 0.0
  %637 = vmatpush1.msra.mxu0 %v510
  %638 = vmatprep.subr.mxu0 0.0
  %639 = vmatpush1.msra.mxu0 %v513
  %640 = vmatprep.subr.mxu0 0.0
  %641 = vmatpush1.msra.mxu0 %v516
  %642 = vmatprep.subr.mxu0 0.0
  %643 = vmatpush1.msra.mxu0 %v519
  %644 = vmatprep.subr.mxu0 0.0
  %645 = vmatpush1.msra.mxu0 %v522
  %646 = vmatprep.subr.mxu0 0.0
  %647 = vmatpush1.msra.mxu0 %v525
  %648 = vmatprep.subr.mxu0 0.0
  %649 = vmatpush1.msra.mxu0 %v528
  %650 = vmatprep.subr.mxu0 0.0
  %651 = vmatpush1.msra.mxu0 %v531
  %652 = vmatprep.subr.mxu0 0.0
  %653 = vmatpush1.msra.mxu0 0.0
  %654 = vmatprep.subr.mxu0 0.0
  %655 = vmatpush1.msra.mxu0 0.0
  %656 = vmatprep.subr.mxu0 0.0
  %657 = vmatpush1.msra.mxu0 0.0
  %658 = vmatprep.subr.mxu0 0.0
  %659 = vmatpush1.msra.mxu0 0.0
  %660 = vmatprep.subr.mxu0 0.0
  %661 = vmatpush1.msra.mxu0 0.0
  %662 = vmatprep.subr.mxu0 0.0
  %663 = vmatpush1.msra.mxu0 0.0
  %664 = vmatprep.subr.mxu0 0.0
  %665 = vmatpush1.msra.mxu0 0.0
  %666 = vmatprep.subr.mxu0 0.0
  %667 = vmatpush1.msra.mxu0 0.0
  %668 = vmatprep.subr.mxu0 0.0
  %669 = vmatpush1.msra.mxu0 0.0
  %670 = vmatprep.subr.mxu0 0.0
  %671 = vmatpush1.msra.mxu0 0.0
  %672 = vmatprep.subr.mxu0 0.0
  %673 = vmatpush1.msra.mxu0 0.0
  %674 = vmatprep.subr.mxu0 0.0
  %675 = vmatpush1.msra.mxu0 0.0
  %676 = vmatprep.subr.mxu0 0.0
  %677 = vmatpush1.msra.mxu0 0.0
  %678 = vmatprep.subr.mxu0 0.0
  %679 = vmatpush1.msra.mxu0 0.0
  %680 = vmatprep.subr.mxu0 0.0
  %681 = vmatpush1.msra.mxu0 0.0
  %682 = vmatprep.subr.mxu0 0.0
  %683 = vmatpush1.msra.mxu0 0.0
  %684 = vmatprep.mubr.f32.mxu0 0.0
  %685 = vmatmul.mubr.f32.gmra.mrb[0].mxu0 %v483
  %v686 = vpop.f32.mrb[0].mxu0
  %v687 = vadd.f32 %v545, %v686
  %v688 = vpop.f32.mrb[0].mxu0
  %689 = vdwg.mxu0
  %s690 = scalar_lea.vmem %s0, 48
  %v691 = vld [vmem:[%s690] sm:$0xff]
  %v692 = vld [vmem:[%s690 + $0x8] sm:$0xff]
  %v693 = vld [vmem:[%s690 + $0x10] sm:$0xff]
  %v694 = vadd.f32 %v691, %v616
  %v695 = vxor.u32 %v694, 2147483648
  %v696 = vmul.f32 %v695, 1.442695
  %v697 = vpow.pop %v696
  %v698 = vadd.f32 %v697, 1.0
  %v699 = vrcp.pop %v698
  %v700 = vmul.f32 1.0, %v699
  %v701 = vadd.f32 %v692, %v618
  %v702 = vxor.u32 %v701, 2147483648
  %v703 = vmul.f32 %v702, 1.442695
  %v704 = vpow.pop %v703
  %v705 = vadd.f32 %v704, 1.0
  %v706 = vrcp.pop %v705
  %v707 = vmul.f32 1.0, %v706
  %v708 = vmul.f32 %v700, %v687
  %v709 = vadd.f32 %v693, %v708
  %v710 = vtanh.pop %v709
  %v711 = vsub.f32 1.0, %v707
  %v712 = vmul.f32 %v711, %v710
  %v713 = vmul.f32 %v707, %v483
  %v714 = vadd.f32 %v712, %v713
  %715 = vst [vmem:[#allocation2] sm:$0xff] %v714
  %s716 = scalar_lea.vmem %s3, 16
  %717 = vst [vmem:[%s716] sm:$0xff] %v714
  %v718 = vld [vmem:[#allocation2] sm:$0xff]
  %v719 = vld [vmem:[%s1] sm:$0xff]
  %v720 = vld [vmem:[%s1 + $0x8] sm:$0xff]
  %v721 = vld [vmem:[%s1 + $0x10] sm:$0xff]
  %v722 = vld [vmem:[%s1 + $0x18] sm:$0xff]
  %v723 = vld [vmem:[%s1 + $0x20] sm:$0xff]
  %v724 = vld [vmem:[%s1 + $0x28] sm:$0xff]
  %v725 = vld [vmem:[%s1 + $0x30] sm:$0xff]
  %v726 = vld [vmem:[%s1 + $0x38] sm:$0xff]
  %v727 = vld [vmem:[%s1 + $0x40] sm:$0xff]
  %v728 = vld [vmem:[%s1 + $0x48] sm:$0xff]
  %v729 = vld [vmem:[%s1 + $0x50] sm:$0xff]
  %v730 = vld [vmem:[%s1 + $0x58] sm:$0xff]
  %v731 = vld [vmem:[%s1 + $0x60] sm:$0xff]
  %v732 = vld [vmem:[%s1 + $0x68] sm:$0xff]
  %v733 = vld [vmem:[%s1 + $0x70] sm:$0xff]
  %v734 = vld [vmem:[%s1 + $0x78] sm:$0xff]
  %v735 = vld [vmem:[%s1 + $0x80] sm:$0xff]
  %v736 = vld [vmem:[%s1 + $0x88] sm:$0xff]
  %v737 = vld [vmem:[%s1 + $0x90] sm:$0xff]
  %v738 = vld [vmem:[%s1 + $0x98] sm:$0xff]
  %v739 = vld [vmem:[%s1 + $0xa0] sm:$0xff]
  %v740 = vld [vmem:[%s1 + $0xa8] sm:$0xff]
  %v741 = vld [vmem:[%s1 + $0xb0] sm:$0xff]
  %v742 = vld [vmem:[%s1 + $0xb8] sm:$0xff]
  %v743 = vld [vmem:[%s1 + $0xc0] sm:$0xff]
  %v744 = vld [vmem:[%s1 + $0xc8] sm:$0xff]
  %v745 = vld [vmem:[%s1 + $0xd0] sm:$0xff]
  %v746 = vld [vmem:[%s1 + $0xd8] sm:$0xff]
  %v747 = vld [vmem:[%s1 + $0xe0] sm:$0xff]
  %v748 = vld [vmem:[%s1 + $0xe8] sm:$0xff]
  %v749 = vld [vmem:[%s1 + $0xf0] sm:$0xff]
  %v750 = vld [vmem:[%s1 + $0xf8] sm:$0xff]
  %v751 = vld [vmem:[%s1 + $0x100] sm:$0xff]
  %v752 = vld [vmem:[%s1 + $0x108] sm:$0xff]
  %v753 = vld [vmem:[%s1 + $0x110] sm:$0xff]
  %v754 = vld [vmem:[%s1 + $0x118] sm:$0xff]
  %v755 = vld [vmem:[%s1 + $0x120] sm:$0xff]
  %v756 = vld [vmem:[%s1 + $0x128] sm:$0xff]
  %v757 = vld [vmem:[%s1 + $0x130] sm:$0xff]
  %v758 = vld [vmem:[%s1 + $0x138] sm:$0xff]
  %v759 = vld [vmem:[%s1 + $0x140] sm:$0xff]
  %v760 = vld [vmem:[%s1 + $0x148] sm:$0xff]
  %v761 = vld [vmem:[%s1 + $0x150] sm:$0xff]
  %v762 = vld [vmem:[%s1 + $0x158] sm:$0xff]
  %v763 = vld [vmem:[%s1 + $0x160] sm:$0xff]
  %v764 = vld [vmem:[%s1 + $0x168] sm:$0xff]
  %v765 = vld [vmem:[%s1 + $0x170] sm:$0xff]
  %v766 = vld [vmem:[%s1 + $0x178] sm:$0xff]
  %v767 = vld [vmem:[%s2] sm:$0x7]
  %v769 = vlaneseq
  %v770 = vshrl.u32 %v769, 7
  %v771 = vsub.s32 0, %v770
  %v772 = vrot.slane %v767, %v771
  %v773 = vlaneseq
  %v774 = vshrl.u32 %v773, 7
  %v775 = vsub.s32 1, %v774
  %v776 = vrot.slane %v767, %v775
  %v777 = vlaneseq
  %v778 = vshrl.u32 %v777, 7
  %v779 = vsub.s32 2, %v778
  %v780 = vrot.slane %v767, %v779
  %784 = vmatprep.subr.mxu0 %v720
  %785 = vmatpush1.msra.mxu0 %v719
  %786 = vmatprep.subr.mxu0 %v723
  %787 = vmatpush1.msra.mxu0 %v722
  %788 = vmatprep.subr.mxu0 %v726
  %789 = vmatpush1.msra.mxu0 %v725
  %790 = vmatprep.subr.mxu0 %v729
  %791 = vmatpush1.msra.mxu0 %v728
  %792 = vmatprep.subr.mxu0 %v732
  %793 = vmatpush1.msra.mxu0 %v731
  %794 = vmatprep.subr.mxu0 %v735
  %795 = vmatpush1.msra.mxu0 %v734
  %796 = vmatprep.subr.mxu0 %v738
  %797 = vmatpush1.msra.mxu0 %v737
  %798 = vmatprep.subr.mxu0 %v741
  %799 = vmatpush1.msra.mxu0 %v740
  %800 = vmatprep.subr.mxu0 %v744
  %801 = vmatpush1.msra.mxu0 %v743
  %802 = vmatprep.subr.mxu0 %v747
  %803 = vmatpush1.msra.mxu0 %v746
  %804 = vmatprep.subr.mxu0 %v750
  %805 = vmatpush1.msra.mxu0 %v749
  %806 = vmatprep.subr.mxu0 %v753
  %807 = vmatpush1.msra.mxu0 %v752
  %808 = vmatprep.subr.mxu0 %v756
  %809 = vmatpush1.msra.mxu0 %v755
  %810 = vmatprep.subr.mxu0 %v759
  %811 = vmatpush1.msra.mxu0 %v758
  %812 = vmatprep.subr.mxu0 %v762
  %813 = vmatpush1.msra.mxu0 %v761
  %814 = vmatprep.subr.mxu0 %v765
  %815 = vmatpush1.msra.mxu0 %v764
  %816 = vmatprep.subr.mxu0 0.0
  %817 = vmatpush1.msra.mxu0 0.0
  %818 = vmatprep.subr.mxu0 0.0
  %819 = vmatpush1.msra.mxu0 0.0
  %820 = vmatprep.subr.mxu0 0.0
  %821 = vmatpush1.msra.mxu0 0.0
  %822 = vmatprep.subr.mxu0 0.0
  %823 = vmatpush1.msra.mxu0 0.0
  %824 = vmatprep.subr.mxu0 0.0
  %825 = vmatpush1.msra.mxu0 0.0
  %826 = vmatprep.subr.mxu0 0.0
  %827 = vmatpush1.msra.mxu0 0.0
  %828 = vmatprep.subr.mxu0 0.0
  %829 = vmatpush1.msra.mxu0 0.0
  %830 = vmatprep.subr.mxu0 0.0
  %831 = vmatpush1.msra.mxu0 0.0
  %832 = vmatprep.subr.mxu0 0.0
  %833 = vmatpush1.msra.mxu0 0.0
  %834 = vmatprep.subr.mxu0 0.0
  %835 = vmatpush1.msra.mxu0 0.0
  %836 = vmatprep.subr.mxu0 0.0
  %837 = vmatpush1.msra.mxu0 0.0
  %838 = vmatprep.subr.mxu0 0.0
  %839 = vmatpush1.msra.mxu0 0.0
  %840 = vmatprep.subr.mxu0 0.0
  %841 = vmatpush1.msra.mxu0 0.0
  %842 = vmatprep.subr.mxu0 0.0
  %843 = vmatpush1.msra.mxu0 0.0
  %844 = vmatprep.subr.mxu0 0.0
  %845 = vmatpush1.msra.mxu0 0.0
  %846 = vmatprep.subr.mxu0 0.0
  %847 = vmatpush1.msra.mxu0 0.0
  %848 = vmatprep.mubr.f32.mxu0 0.0
  %849 = vmatmul.mubr.f32.gmra.mrb[0].mxu0 %v718
  %v850 = vpop.f32.mrb[0].mxu0
  %v851 = vadd.f32 %v772, %v850
  %v852 = vpop.f32.mrb[0].mxu0
  %v853 = vadd.f32 %v776, %v852
  %854 = vdwg.mxu0
  %855 = vmatprep.subr.mxu0 0.0
  %856 = vmatpush1.msra.mxu0 %v721
  %857 = vmatprep.subr.mxu0 0.0
  %858 = vmatpush1.msra.mxu0 %v724
  %859 = vmatprep.subr.mxu0 0.0
  %860 = vmatpush1.msra.mxu0 %v727
  %861 = vmatprep.subr.mxu0 0.0
  %862 = vmatpush1.msra.mxu0 %v730
  %863 = vmatprep.subr.mxu0 0.0
  %864 = vmatpush1.msra.mxu0 %v733
  %865 = vmatprep.subr.mxu0 0.0
  %866 = vmatpush1.msra.mxu0 %v736
  %867 = vmatprep.subr.mxu0 0.0
  %868 = vmatpush1.msra.mxu0 %v739
  %869 = vmatprep.subr.mxu0 0.0
  %870 = vmatpush1.msra.mxu0 %v742
  %871 = vmatprep.subr.mxu0 0.0
  %872 = vmatpush1.msra.mxu0 %v745
  %873 = vmatprep.subr.mxu0 0.0
  %874 = vmatpush1.msra.mxu0 %v748
  %875 = vmatprep.subr.mxu0 0.0
  %876 = vmatpush1.msra.mxu0 %v751
  %877 = vmatprep.subr.mxu0 0.0
  %878 = vmatpush1.msra.mxu0 %v754
  %879 = vmatprep.subr.mxu0 0.0
  %880 = vmatpush1.msra.mxu0 %v757
  %881 = vmatprep.subr.mxu0 0.0
  %882 = vmatpush1.msra.mxu0 %v760
  %883 = vmatprep.subr.mxu0 0.0
  %884 = vmatpush1.msra.mxu0 %v763
  %885 = vmatprep.subr.mxu0 0.0
  %886 = vmatpush1.msra.mxu0 %v766
  %887 = vmatprep.subr.mxu0 0.0
  %888 = vmatpush1.msra.mxu0 0.0
  %889 = vmatprep.subr.mxu0 0.0
  %890 = vmatpush1.msra.mxu0 0.0
  %891 = vmatprep.subr.mxu0 0.0
  %892 = vmatpush1.msra.mxu0 0.0
  %893 = vmatprep.subr.mxu0 0.0
  %894 = vmatpush1.msra.mxu0 0.0
  %895 = vmatprep.subr.mxu0 0.0
  %896 = vmatpush1.msra.mxu0 0.0
  %897 = vmatprep.subr.mxu0 0.0
  %898 = vmatpush1.msra.mxu0 0.0
  %899 = vmatprep.subr.mxu0 0.0
  %900 = vmatpush1.msra.mxu0 0.0
  %901 = vmatprep.subr.mxu0 0.0
  %902 = vmatpush1.msra.mxu0 0.0
  %903 = vmatprep.subr.mxu0 0.0
  %904 = vmatpush1.msra.mxu0 0.0
  %905 = vmatprep.subr.mxu0 0.0
  %906 = vmatpush1.msra.mxu0 0.0
  %907 = vmatprep.subr.mxu0 0.0
  %908 = vmatpush1.msra.mxu0 0.0
  %909 = vmatprep.subr.mxu0 0.0
  %910 = vmatpush1.msra.mxu0 0.0
  %911 = vmatprep.subr.mxu0 0.0
  %912 = vmatpush1.msra.mxu0 0.0
  %913 = vmatprep.subr.mxu0 0.0
  %914 = vmatpush1.msra.mxu0 0.0
  %915 = vmatprep.subr.mxu0 0.0
  %916 = vmatpush1.msra.mxu0 0.0
  %917 = vmatprep.subr.mxu0 0.0
  %918 = vmatpush1.msra.mxu0 0.0
  %919 = vmatprep.mubr.f32.mxu0 0.0
  %920 = vmatmul.mubr.f32.gmra.mrb[0].mxu0 %v718
  %v921 = vpop.f32.mrb[0].mxu0
  %v922 = vadd.f32 %v780, %v921
  %v923 = vpop.f32.mrb[0].mxu0
  %924 = vdwg.mxu0
  %s925 = scalar_lea.vmem %s0, 72
  %v926 = vld [vmem:[%s925] sm:$0xff]
  %v927 = vld [vmem:[%s925 + $0x8] sm:$0xff]
  %v928 = vld [vmem:[%s925 + $0x10] sm:$0xff]
  %v929 = vadd.f32 %v926, %v851
  %v930 = vxor.u32 %v929, 2147483648
  %v931 = vmul.f32 %v930, 1.442695
  %v932 = vpow.pop %v931
  %v933 = vadd.f32 %v932, 1.0
  %v934 = vrcp.pop %v933
  %v935 = vmul.f32 1.0, %v934
  %v936 = vadd.f32 %v927, %v853
  %v937 = vxor.u32 %v936, 2147483648
  %v938 = vmul.f32 %v937, 1.442695
  %v939 = vpow.pop %v938
  %v940 = vadd.f32 %v939, 1.0
  %v941 = vrcp.pop %v940
  %v942 = vmul.f32 1.0, %v941
  %v943 = vmul.f32 %v935, %v922
  %v944 = vadd.f32 %v928, %v943
  %v945 = vtanh.pop %v944
  %v946 = vsub.f32 1.0, %v942
  %v947 = vmul.f32 %v946, %v945
  %v948 = vmul.f32 %v942, %v718
  %v949 = vadd.f32 %v947, %v948
  %950 = vst [vmem:[#allocation2] sm:$0xff] %v949
  %s951 = scalar_lea.vmem %s3, 24
  %952 = vst [vmem:[%s951] sm:$0xff] %v949
  %v953 = vld [vmem:[#allocation2] sm:$0xff]
  %v954 = vld [vmem:[%s1] sm:$0xff]
  %v955 = vld [vmem:[%s1 + $0x8] sm:$0xff]
  %v956 = vld [vmem:[%s1 + $0x10] sm:$0xff]
  %v957 = vld [vmem:[%s1 + $0x18] sm:$0xff]
  %v958 = vld [vmem:[%s1 + $0x20] sm:$0xff]
  %v959 = vld [vmem:[%s1 + $0x28] sm:$0xff]
  %v960 = vld [vmem:[%s1 + $0x30] sm:$0xff]
  %v961 = vld [vmem:[%s1 + $0x38] sm:$0xff]
  %v962 = vld [vmem:[%s1 + $0x40] sm:$0xff]
  %v963 = vld [vmem:[%s1 + $0x48] sm:$0xff]
  %v964 = vld [vmem:[%s1 + $0x50] sm:$0xff]
  %v965 = vld [vmem:[%s1 + $0x58] sm:$0xff]
  %v966 = vld [vmem:[%s1 + $0x60] sm:$0xff]
  %v967 = vld [vmem:[%s1 + $0x68] sm:$0xff]
  %v968 = vld [vmem:[%s1 + $0x70] sm:$0xff]
  %v969 = vld [vmem:[%s1 + $0x78] sm:$0xff]
  %v970 = vld [vmem:[%s1 + $0x80] sm:$0xff]
  %v971 = vld [vmem:[%s1 + $0x88] sm:$0xff]
  %v972 = vld [vmem:[%s1 + $0x90] sm:$0xff]
  %v973 = vld [vmem:[%s1 + $0x98] sm:$0xff]
  %v974 = vld [vmem:[%s1 + $0xa0] sm:$0xff]
  %v975 = vld [vmem:[%s1 + $0xa8] sm:$0xff]
  %v976 = vld [vmem:[%s1 + $0xb0] sm:$0xff]
  %v977 = vld [vmem:[%s1 + $0xb8] sm:$0xff]
  %v978 = vld [vmem:[%s1 + $0xc0] sm:$0xff]
  %v979 = vld [vmem:[%s1 + $0xc8] sm:$0xff]
  %v980 = vld [vmem:[%s1 + $0xd0] sm:$0xff]
  %v981 = vld [vmem:[%s1 + $0xd8] sm:$0xff]
  %v982 = vld [vmem:[%s1 + $0xe0] sm:$0xff]
  %v983 = vld [vmem:[%s1 + $0xe8] sm:$0xff]
  %v984 = vld [vmem:[%s1 + $0xf0] sm:$0xff]
  %v985 = vld [vmem:[%s1 + $0xf8] sm:$0xff]
  %v986 = vld [vmem:[%s1 + $0x100] sm:$0xff]
  %v987 = vld [vmem:[%s1 + $0x108] sm:$0xff]
  %v988 = vld [vmem:[%s1 + $0x110] sm:$0xff]
  %v989 = vld [vmem:[%s1 + $0x118] sm:$0xff]
  %v990 = vld [vmem:[%s1 + $0x120] sm:$0xff]
  %v991 = vld [vmem:[%s1 + $0x128] sm:$0xff]
  %v992 = vld [vmem:[%s1 + $0x130] sm:$0xff]
  %v993 = vld [vmem:[%s1 + $0x138] sm:$0xff]
  %v994 = vld [vmem:[%s1 + $0x140] sm:$0xff]
  %v995 = vld [vmem:[%s1 + $0x148] sm:$0xff]
  %v996 = vld [vmem:[%s1 + $0x150] sm:$0xff]
  %v997 = vld [vmem:[%s1 + $0x158] sm:$0xff]
  %v998 = vld [vmem:[%s1 + $0x160] sm:$0xff]
  %v999 = vld [vmem:[%s1 + $0x168] sm:$0xff]
  %v1000 = vld [vmem:[%s1 + $0x170] sm:$0xff]
  %v1001 = vld [vmem:[%s1 + $0x178] sm:$0xff]
  %v1002 = vld [vmem:[%s2] sm:$0x7]
  %v1004 = vlaneseq
  %v1005 = vshrl.u32 %v1004, 7
  %v1006 = vsub.s32 0, %v1005
  %v1007 = vrot.slane %v1002, %v1006
  %v1008 = vlaneseq
  %v1009 = vshrl.u32 %v1008, 7
  %v1010 = vsub.s32 1, %v1009
  %v1011 = vrot.slane %v1002, %v1010
  %v1012 = vlaneseq
  %v1013 = vshrl.u32 %v1012, 7
  %v1014 = vsub.s32 2, %v1013
  %v1015 = vrot.slane %v1002, %v1014
  %1019 = vmatprep.subr.mxu0 %v955
  %1020 = vmatpush1.msra.mxu0 %v954
  %1021 = vmatprep.subr.mxu0 %v958
  %1022 = vmatpush1.msra.mxu0 %v957
  %1023 = vmatprep.subr.mxu0 %v961
  %1024 = vmatpush1.msra.mxu0 %v960
  %1025 = vmatprep.subr.mxu0 %v964
  %1026 = vmatpush1.msra.mxu0 %v963
  %1027 = vmatprep.subr.mxu0 %v967
  %1028 = vmatpush1.msra.mxu0 %v966
  %1029 = vmatprep.subr.mxu0 %v970
  %1030 = vmatpush1.msra.mxu0 %v969
  %1031 = vmatprep.subr.mxu0 %v973
  %1032 = vmatpush1.msra.mxu0 %v972
  %1033 = vmatprep.subr.mxu0 %v976
  %1034 = vmatpush1.msra.mxu0 %v975
  %1035 = vmatprep.subr.mxu0 %v979
  %1036 = vmatpush1.msra.mxu0 %v978
  %1037 = vmatprep.subr.mxu0 %v982
  %1038 = vmatpush1.msra.mxu0 %v981
  %1039 = vmatprep.subr.mxu0 %v985
  %1040 = vmatpush1.msra.mxu0 %v984
  %1041 = vmatprep.subr.mxu0 %v988
  %1042 = vmatpush1.msra.mxu0 %v987
  %1043 = vmatprep.subr.mxu0 %v991
  %1044 = vmatpush1.msra.mxu0 %v990
  %1045 = vmatprep.subr.mxu0 %v994
  %1046 = vmatpush1.msra.mxu0 %v993
  %1047 = vmatprep.subr.mxu0 %v997
  %1048 = vmatpush1.msra.mxu0 %v996
  %1049 = vmatprep.subr.mxu0 %v1000
  %1050 = vmatpush1.msra.mxu0 %v999
  %1051 = vmatprep.subr.mxu0 0.0
  %1052 = vmatpush1.msra.mxu0 0.0
  %1053 = vmatprep.subr.mxu0 0.0
  %1054 = vmatpush1.msra.mxu0 0.0
  %1055 = vmatprep.subr.mxu0 0.0
  %1056 = vmatpush1.msra.mxu0 0.0
  %1057 = vmatprep.subr.mxu0 0.0
  %1058 = vmatpush1.msra.mxu0 0.0
  %1059 = vmatprep.subr.mxu0 0.0
  %1060 = vmatpush1.msra.mxu0 0.0
  %1061 = vmatprep.subr.mxu0 0.0
  %1062 = vmatpush1.msra.mxu0 0.0
  %1063 = vmatprep.subr.mxu0 0.0
  %1064 = vmatpush1.msra.mxu0 0.0
  %1065 = vmatprep.subr.mxu0 0.0
  %1066 = vmatpush1.msra.mxu0 0.0
  %1067 = vmatprep.subr.mxu0 0.0
  %1068 = vmatpush1.msra.mxu0 0.0
  %1069 = vmatprep.subr.mxu0 0.0
  %1070 = vmatpush1.msra.mxu0 0.0
  %1071 = vmatprep.subr.mxu0 0.0
  %1072 = vmatpush1.msra.mxu0 0.0
  %1073 = vmatprep.subr.mxu0 0.0
  %1074 = vmatpush1.msra.mxu0 0.0
  %1075 = vmatprep.subr.mxu0 0.0
  %1076 = vmatpush1.msra.mxu0 0.0
  %1077 = vmatprep.subr.mxu0 0.0
  %1078 = vmatpush1.msra.mxu0 0.0
  %1079 = vmatprep.subr.mxu0 0.0
  %1080 = vmatpush1.msra.mxu0 0.0
  %1081 = vmatprep.subr.mxu0 0.0
  %1082 = vmatpush1.msra.mxu0 0.0
  %1083 = vmatprep.mubr.f32.mxu0 0.0
  %1084 = vmatmul.mubr.f32.gmra.mrb[0].mxu0 %v953
  %v1085 = vpop.f32.mrb[0].mxu0
  %v1086 = vadd.f32 %v1007, %v1085
  %v1087 = vpop.f32.mrb[0].mxu0
  %v1088 = vadd.f32 %v1011, %v1087
  %1089 = vdwg.mxu0
  %1090 = vmatprep.subr.mxu0 0.0
  %1091 = vmatpush1.msra.mxu0 %v956
  %1092 = vmatprep.subr.mxu0 0.0
  %1093 = vmatpush1.msra.mxu0 %v959
  %1094 = vmatprep.subr.mxu0 0.0
  %1095 = vmatpush1.msra.mxu0 %v962
  %1096 = vmatprep.subr.mxu0 0.0
  %1097 = vmatpush1.msra.mxu0 %v965
  %1098 = vmatprep.subr.mxu0 0.0
  %1099 = vmatpush1.msra.mxu0 %v968
  %1100 = vmatprep.subr.mxu0 0.0
  %1101 = vmatpush1.msra.mxu0 %v971
  %1102 = vmatprep.subr.mxu0 0.0
  %1103 = vmatpush1.msra.mxu0 %v974
  %1104 = vmatprep.subr.mxu0 0.0
  %1105 = vmatpush1.msra.mxu0 %v977
  %1106 = vmatprep.subr.mxu0 0.0
  %1107 = vmatpush1.msra.mxu0 %v980
  %1108 = vmatprep.subr.mxu0 0.0
  %1109 = vmatpush1.msra.mxu0 %v983
  %1110 = vmatprep.subr.mxu0 0.0
  %1111 = vmatpush1.msra.mxu0 %v986
  %1112 = vmatprep.subr.mxu0 0.0
  %1113 = vmatpush1.msra.mxu0 %v989
  %1114 = vmatprep.subr.mxu0 0.0
  %1115 = vmatpush1.msra.mxu0 %v992
  %1116 = vmatprep.subr.mxu0 0.0
  %1117 = vmatpush1.msra.mxu0 %v995
  %1118 = vmatprep.subr.mxu0 0.0
  %1119 = vmatpush1.msra.mxu0 %v998
  %1120 = vmatprep.subr.mxu0 0.0
  %1121 = vmatpush1.msra.mxu0 %v1001
  %1122 = vmatprep.subr.mxu0 0.0
  %1123 = vmatpush1.msra.mxu0 0.0
  %1124 = vmatprep.subr.mxu0 0.0
  %1125 = vmatpush1.msra.mxu0 0.0
  %1126 = vmatprep.subr.mxu0 0.0
  %1127 = vmatpush1.msra.mxu0 0.0
  %1128 = vmatprep.subr.mxu0 0.0
  %1129 = vmatpush1.msra.mxu0 0.0
  %1130 = vmatprep.subr.mxu0 0.0
  %1131 = vmatpush1.msra.mxu0 0.0
  %1132 = vmatprep.subr.mxu0 0.0
  %1133 = vmatpush1.msra.mxu0 0.0
  %1134 = vmatprep.subr.mxu0 0.0
  %1135 = vmatpush1.msra.mxu0 0.0
  %1136 = vmatprep.subr.mxu0 0.0
  %1137 = vmatpush1.msra.mxu0 0.0
  %1138 = vmatprep.subr.mxu0 0.0
  %1139 = vmatpush1.msra.mxu0 0.0
  %1140 = vmatprep.subr.mxu0 0.0
  %1141 = vmatpush1.msra.mxu0 0.0
  %1142 = vmatprep.subr.mxu0 0.0
  %1143 = vmatpush1.msra.mxu0 0.0
  %1144 = vmatprep.subr.mxu0 0.0
  %1145 = vmatpush1.msra.mxu0 0.0
  %1146 = vmatprep.subr.mxu0 0.0
  %1147 = vmatpush1.msra.mxu0 0.0
  %1148 = vmatprep.subr.mxu0 0.0
  %1149 = vmatpush1.msra.mxu0 0.0
  %1150 = vmatprep.subr.mxu0 0.0
  %1151 = vmatpush1.msra.mxu0 0.0
  %1152 = vmatprep.subr.mxu0 0.0
  %1153 = vmatpush1.msra.mxu0 0.0
  %1154 = vmatprep.mubr.f32.mxu0 0.0
  %1155 = vmatmul.mubr.f32.gmra.mrb[0].mxu0 %v953
  %v1156 = vpop.f32.mrb[0].mxu0
  %v1157 = vadd.f32 %v1015, %v1156
  %v1158 = vpop.f32.mrb[0].mxu0
  %1159 = vdwg.mxu0
  %s1160 = scalar_lea.vmem %s0, 96
  %v1161 = vld [vmem:[%s1160] sm:$0xff]
  %v1162 = vld [vmem:[%s1160 + $0x8] sm:$0xff]
  %v1163 = vld [vmem:[%s1160 + $0x10] sm:$0xff]
  %v1164 = vadd.f32 %v1161, %v1086
  %v1165 = vxor.u32 %v1164, 2147483648
  %v1166 = vmul.f32 %v1165, 1.442695
  %v1167 = vpow.pop %v1166
  %v1168 = vadd.f32 %v1167, 1.0
  %v1169 = vrcp.pop %v1168
  %v1170 = vmul.f32 1.0, %v1169
  %v1171 = vadd.f32 %v1162, %v1088
  %v1172 = vxor.u32 %v1171, 2147483648
  %v1173 = vmul.f32 %v1172, 1.442695
  %v1174 = vpow.pop %v1173
  %v1175 = vadd.f32 %v1174, 1.0
  %v1176 = vrcp.pop %v1175
  %v1177 = vmul.f32 1.0, %v1176
  %v1178 = vmul.f32 %v1170, %v1157
  %v1179 = vadd.f32 %v1163, %v1178
  %v1180 = vtanh.pop %v1179
  %v1181 = vsub.f32 1.0, %v1177
  %v1182 = vmul.f32 %v1181, %v1180
  %v1183 = vmul.f32 %v1177, %v953
  %v1184 = vadd.f32 %v1182, %v1183
  %1185 = vst [vmem:[#allocation2] sm:$0xff] %v1184
  %s1186 = scalar_lea.vmem %s3, 32
  %1187 = vst [vmem:[%s1186] sm:$0xff] %v1184
  %v1188 = vld [vmem:[#allocation2] sm:$0xff]
  %v1189 = vld [vmem:[%s1] sm:$0xff]
  %v1190 = vld [vmem:[%s1 + $0x8] sm:$0xff]
  %v1191 = vld [vmem:[%s1 + $0x10] sm:$0xff]
  %v1192 = vld [vmem:[%s1 + $0x18] sm:$0xff]
  %v1193 = vld [vmem:[%s1 + $0x20] sm:$0xff]
  %v1194 = vld [vmem:[%s1 + $0x28] sm:$0xff]
  %v1195 = vld [vmem:[%s1 + $0x30] sm:$0xff]
  %v1196 = vld [vmem:[%s1 + $0x38] sm:$0xff]
  %v1197 = vld [vmem:[%s1 + $0x40] sm:$0xff]
  %v1198 = vld [vmem:[%s1 + $0x48] sm:$0xff]
  %v1199 = vld [vmem:[%s1 + $0x50] sm:$0xff]
  %v1200 = vld [vmem:[%s1 + $0x58] sm:$0xff]
  %v1201 = vld [vmem:[%s1 + $0x60] sm:$0xff]
  %v1202 = vld [vmem:[%s1 + $0x68] sm:$0xff]
  %v1203 = vld [vmem:[%s1 + $0x70] sm:$0xff]
  %v1204 = vld [vmem:[%s1 + $0x78] sm:$0xff]
  %v1205 = vld [vmem:[%s1 + $0x80] sm:$0xff]
  %v1206 = vld [vmem:[%s1 + $0x88] sm:$0xff]
  %v1207 = vld [vmem:[%s1 + $0x90] sm:$0xff]
  %v1208 = vld [vmem:[%s1 + $0x98] sm:$0xff]
  %v1209 = vld [vmem:[%s1 + $0xa0] sm:$0xff]
  %v1210 = vld [vmem:[%s1 + $0xa8] sm:$0xff]
  %v1211 = vld [vmem:[%s1 + $0xb0] sm:$0xff]
  %v1212 = vld [vmem:[%s1 + $0xb8] sm:$0xff]
  %v1213 = vld [vmem:[%s1 + $0xc0] sm:$0xff]
  %v1214 = vld [vmem:[%s1 + $0xc8] sm:$0xff]
  %v1215 = vld [vmem:[%s1 + $0xd0] sm:$0xff]
  %v1216 = vld [vmem:[%s1 + $0xd8] sm:$0xff]
  %v1217 = vld [vmem:[%s1 + $0xe0] sm:$0xff]
  %v1218 = vld [vmem:[%s1 + $0xe8] sm:$0xff]
  %v1219 = vld [vmem:[%s1 + $0xf0] sm:$0xff]
  %v1220 = vld [vmem:[%s1 + $0xf8] sm:$0xff]
  %v1221 = vld [vmem:[%s1 + $0x100] sm:$0xff]
  %v1222 = vld [vmem:[%s1 + $0x108] sm:$0xff]
  %v1223 = vld [vmem:[%s1 + $0x110] sm:$0xff]
  %v1224 = vld [vmem:[%s1 + $0x118] sm:$0xff]
  %v1225 = vld [vmem:[%s1 + $0x120] sm:$0xff]
  %v1226 = vld [vmem:[%s1 + $0x128] sm:$0xff]
  %v1227 = vld [vmem:[%s1 + $0x130] sm:$0xff]
  %v1228 = vld [vmem:[%s1 + $0x138] sm:$0xff]
  %v1229 = vld [vmem:[%s1 + $0x140] sm:$0xff]
  %v1230 = vld [vmem:[%s1 + $0x148] sm:$0xff]
  %v1231 = vld [vmem:[%s1 + $0x150] sm:$0xff]
  %v1232 = vld [vmem:[%s1 + $0x158] sm:$0xff]
  %v1233 = vld [vmem:[%s1 + $0x160] sm:$0xff]
  %v1234 = vld [vmem:[%s1 + $0x168] sm:$0xff]
  %v1235 = vld [vmem:[%s1 + $0x170] sm:$0xff]
  %v1236 = vld [vmem:[%s1 + $0x178] sm:$0xff]
  %v1237 = vld [vmem:[%s2] sm:$0x7]
  %v1239 = vlaneseq
  %v1240 = vshrl.u32 %v1239, 7
  %v1241 = vsub.s32 0, %v1240
  %v1242 = vrot.slane %v1237, %v1241
  %v1243 = vlaneseq
  %v1244 = vshrl.u32 %v1243, 7
  %v1245 = vsub.s32 1, %v1244
  %v1246 = vrot.slane %v1237, %v1245
  %v1247 = vlaneseq
  %v1248 = vshrl.u32 %v1247, 7
  %v1249 = vsub.s32 2, %v1248
  %v1250 = vrot.slane %v1237, %v1249
  %1254 = vmatprep.subr.mxu0 %v1190
  %1255 = vmatpush1.msra.mxu0 %v1189
  %1256 = vmatprep.subr.mxu0 %v1193
  %1257 = vmatpush1.msra.mxu0 %v1192
  %1258 = vmatprep.subr.mxu0 %v1196
  %1259 = vmatpush1.msra.mxu0 %v1195
  %1260 = vmatprep.subr.mxu0 %v1199
  %1261 = vmatpush1.msra.mxu0 %v1198
  %1262 = vmatprep.subr.mxu0 %v1202
  %1263 = vmatpush1.msra.mxu0 %v1201
  %1264 = vmatprep.subr.mxu0 %v1205
  %1265 = vmatpush1.msra.mxu0 %v1204
  %1266 = vmatprep.subr.mxu0 %v1208
  %1267 = vmatpush1.msra.mxu0 %v1207
  %1268 = vmatprep.subr.mxu0 %v1211
  %1269 = vmatpush1.msra.mxu0 %v1210
  %1270 = vmatprep.subr.mxu0 %v1214
  %1271 = vmatpush1.msra.mxu0 %v1213
  %1272 = vmatprep.subr.mxu0 %v1217
  %1273 = vmatpush1.msra.mxu0 %v1216
  %1274 = vmatprep.subr.mxu0 %v1220
  %1275 = vmatpush1.msra.mxu0 %v1219
  %1276 = vmatprep.subr.mxu0 %v1223
  %1277 = vmatpush1.msra.mxu0 %v1222
  %1278 = vmatprep.subr.mxu0 %v1226
  %1279 = vmatpush1.msra.mxu0 %v1225
  %1280 = vmatprep.subr.mxu0 %v1229
  %1281 = vmatpush1.msra.mxu0 %v1228
  %1282 = vmatprep.subr.mxu0 %v1232
  %1283 = vmatpush1.msra.mxu0 %v1231
  %1284 = vmatprep.subr.mxu0 %v1235
  %1285 = vmatpush1.msra.mxu0 %v1234
  %1286 = vmatprep.subr.mxu0 0.0
  %1287 = vmatpush1.msra.mxu0 0.0
  %1288 = vmatprep.subr.mxu0 0.0
  %1289 = vmatpush1.msra.mxu0 0.0
  %1290 = vmatprep.subr.mxu0 0.0
  %1291 = vmatpush1.msra.mxu0 0.0
  %1292 = vmatprep.subr.mxu0 0.0
  %1293 = vmatpush1.msra.mxu0 0.0
  %1294 = vmatprep.subr.mxu0 0.0
  %1295 = vmatpush1.msra.mxu0 0.0
  %1296 = vmatprep.subr.mxu0 0.0
  %1297 = vmatpush1.msra.mxu0 0.0
  %1298 = vmatprep.subr.mxu0 0.0
  %1299 = vmatpush1.msra.mxu0 0.0
  %1300 = vmatprep.subr.mxu0 0.0
  %1301 = vmatpush1.msra.mxu0 0.0
  %1302 = vmatprep.subr.mxu0 0.0
  %1303 = vmatpush1.msra.mxu0 0.0
  %1304 = vmatprep.subr.mxu0 0.0
  %1305 = vmatpush1.msra.mxu0 0.0
  %1306 = vmatprep.subr.mxu0 0.0
  %1307 = vmatpush1.msra.mxu0 0.0
  %1308 = vmatprep.subr.mxu0 0.0
  %1309 = vmatpush1.msra.mxu0 0.0
  %1310 = vmatprep.subr.mxu0 0.0
  %1311 = vmatpush1.msra.mxu0 0.0
  %1312 = vmatprep.subr.mxu0 0.0
  %1313 = vmatpush1.msra.mxu0 0.0
  %1314 = vmatprep.subr.mxu0 0.0
  %1315 = vmatpush1.msra.mxu0 0.0
  %1316 = vmatprep.subr.mxu0 0.0
  %1317 = vmatpush1.msra.mxu0 0.0
  %1318 = vmatprep.mubr.f32.mxu0 0.0
  %1319 = vmatmul.mubr.f32.gmra.mrb[0].mxu0 %v1188
  %v1320 = vpop.f32.mrb[0].mxu0
  %v1321 = vadd.f32 %v1242, %v1320
  %v1322 = vpop.f32.mrb[0].mxu0
  %v1323 = vadd.f32 %v1246, %v1322
  %1324 = vdwg.mxu0
  %1325 = vmatprep.subr.mxu0 0.0
  %1326 = vmatpush1.msra.mxu0 %v1191
  %1327 = vmatprep.subr.mxu0 0.0
  %1328 = vmatpush1.msra.mxu0 %v1194
  %1329 = vmatprep.subr.mxu0 0.0
  %1330 = vmatpush1.msra.mxu0 %v1197
  %1331 = vmatprep.subr.mxu0 0.0
  %1332 = vmatpush1.msra.mxu0 %v1200
  %1333 = vmatprep.subr.mxu0 0.0
  %1334 = vmatpush1.msra.mxu0 %v1203
  %1335 = vmatprep.subr.mxu0 0.0
  %1336 = vmatpush1.msra.mxu0 %v1206
  %1337 = vmatprep.subr.mxu0 0.0
  %1338 = vmatpush1.msra.mxu0 %v1209
  %1339 = vmatprep.subr.mxu0 0.0
  %1340 = vmatpush1.msra.mxu0 %v1212
  %1341 = vmatprep.subr.mxu0 0.0
  %1342 = vmatpush1.msra.mxu0 %v1215
  %1343 = vmatprep.subr.mxu0 0.0
  %1344 = vmatpush1.msra.mxu0 %v1218
  %1345 = vmatprep.subr.mxu0 0.0
  %1346 = vmatpush1.msra.mxu0 %v1221
  %1347 = vmatprep.subr.mxu0 0.0
  %1348 = vmatpush1.msra.mxu0 %v1224
  %1349 = vmatprep.subr.mxu0 0.0
  %1350 = vmatpush1.msra.mxu0 %v1227
  %1351 = vmatprep.subr.mxu0 0.0
  %1352 = vmatpush1.msra.mxu0 %v1230
  %1353 = vmatprep.subr.mxu0 0.0
  %1354 = vmatpush1.msra.mxu0 %v1233
  %1355 = vmatprep.subr.mxu0 0.0
  %1356 = vmatpush1.msra.mxu0 %v1236
  %1357 = vmatprep.subr.mxu0 0.0
  %1358 = vmatpush1.msra.mxu0 0.0
  %1359 = vmatprep.subr.mxu0 0.0
  %1360 = vmatpush1.msra.mxu0 0.0
  %1361 = vmatprep.subr.mxu0 0.0
  %1362 = vmatpush1.msra.mxu0 0.0
  %1363 = vmatprep.subr.mxu0 0.0
  %1364 = vmatpush1.msra.mxu0 0.0
  %1365 = vmatprep.subr.mxu0 0.0
  %1366 = vmatpush1.msra.mxu0 0.0
  %1367 = vmatprep.subr.mxu0 0.0
  %1368 = vmatpush1.msra.mxu0 0.0
  %1369 = vmatprep.subr.mxu0 0.0
  %1370 = vmatpush1.msra.mxu0 0.0
  %1371 = vmatprep.subr.mxu0 0.0
  %1372 = vmatpush1.msra.mxu0 0.0
  %1373 = vmatprep.subr.mxu0 0.0
  %1374 = vmatpush1.msra.mxu0 0.0
  %1375 = vmatprep.subr.mxu0 0.0
  %1376 = vmatpush1.msra.mxu0 0.0
  %1377 = vmatprep.subr.mxu0 0.0
  %1378 = vmatpush1.msra.mxu0 0.0
  %1379 = vmatprep.subr.mxu0 0.0
  %1380 = vmatpush1.msra.mxu0 0.0
  %1381 = vmatprep.subr.mxu0 0.0
  %1382 = vmatpush1.msra.mxu0 0.0
  %1383 = vmatprep.subr.mxu0 0.0
  %1384 = vmatpush1.msra.mxu0 0.0
  %1385 = vmatprep.subr.mxu0 0.0
  %1386 = vmatpush1.msra.mxu0 0.0
  %1387 = vmatprep.subr.mxu0 0.0
  %1388 = vmatpush1.msra.mxu0 0.0
  %1389 = vmatprep.mubr.f32.mxu0 0.0
  %1390 = vmatmul.mubr.f32.gmra.mrb[0].mxu0 %v1188
  %v1391 = vpop.f32.mrb[0].mxu0
  %v1392 = vadd.f32 %v1250, %v1391
  %v1393 = vpop.f32.mrb[0].mxu0
  %1394 = vdwg.mxu0
  %s1395 = scalar_lea.vmem %s0, 120
  %v1396 = vld [vmem:[%s1395] sm:$0xff]
  %v1397 = vld [vmem:[%s1395 + $0x8] sm:$0xff]
  %v1398 = vld [vmem:[%s1395 + $0x10] sm:$0xff]
  %v1399 = vadd.f32 %v1396, %v1321
  %v1400 = vxor.u32 %v1399, 2147483648
  %v1401 = vmul.f32 %v1400, 1.442695
  %v1402 = vpow.pop %v1401
  %v1403 = vadd.f32 %v1402, 1.0
  %v1404 = vrcp.pop %v1403
  %v1405 = vmul.f32 1.0, %v1404
  %v1406 = vadd.f32 %v1397, %v1323
  %v1407 = vxor.u32 %v1406, 2147483648
  %v1408 = vmul.f32 %v1407, 1.442695
  %v1409 = vpow.pop %v1408
  %v1410 = vadd.f32 %v1409, 1.0
  %v1411 = vrcp.pop %v1410
  %v1412 = vmul.f32 1.0, %v1411
  %v1413 = vmul.f32 %v1405, %v1392
  %v1414 = vadd.f32 %v1398, %v1413
  %v1415 = vtanh.pop %v1414
  %v1416 = vsub.f32 1.0, %v1412
  %v1417 = vmul.f32 %v1416, %v1415
  %v1418 = vmul.f32 %v1412, %v1188
  %v1419 = vadd.f32 %v1417, %v1418
  %1420 = vst [vmem:[#allocation2] sm:$0xff] %v1419
  %s1421 = scalar_lea.vmem %s3, 40
  %1422 = vst [vmem:[%s1421] sm:$0xff] %v1419
  %v1423 = vld [vmem:[#allocation2] sm:$0xff]
  %v1424 = vld [vmem:[%s1] sm:$0xff]
  %v1425 = vld [vmem:[%s1 + $0x8] sm:$0xff]
  %v1426 = vld [vmem:[%s1 + $0x10] sm:$0xff]
  %v1427 = vld [vmem:[%s1 + $0x18] sm:$0xff]
  %v1428 = vld [vmem:[%s1 + $0x20] sm:$0xff]
  %v1429 = vld [vmem:[%s1 + $0x28] sm:$0xff]
  %v1430 = vld [vmem:[%s1 + $0x30] sm:$0xff]
  %v1431 = vld [vmem:[%s1 + $0x38] sm:$0xff]
  %v1432 = vld [vmem:[%s1 + $0x40] sm:$0xff]
  %v1433 = vld [vmem:[%s1 + $0x48] sm:$0xff]
  %v1434 = vld [vmem:[%s1 + $0x50] sm:$0xff]
  %v1435 = vld [vmem:[%s1 + $0x58] sm:$0xff]
  %v1436 = vld [vmem:[%s1 + $0x60] sm:$0xff]
  %v1437 = vld [vmem:[%s1 + $0x68] sm:$0xff]
  %v1438 = vld [vmem:[%s1 + $0x70] sm:$0xff]
  %v1439 = vld [vmem:[%s1 + $0x78] sm:$0xff]
  %v1440 = vld [vmem:[%s1 + $0x80] sm:$0xff]
  %v1441 = vld [vmem:[%s1 + $0x88] sm:$0xff]
  %v1442 = vld [vmem:[%s1 + $0x90] sm:$0xff]
  %v1443 = vld [vmem:[%s1 + $0x98] sm:$0xff]
  %v1444 = vld [vmem:[%s1 + $0xa0] sm:$0xff]
  %v1445 = vld [vmem:[%s1 + $0xa8] sm:$0xff]
  %v1446 = vld [vmem:[%s1 + $0xb0] sm:$0xff]
  %v1447 = vld [vmem:[%s1 + $0xb8] sm:$0xff]
  %v1448 = vld [vmem:[%s1 + $0xc0] sm:$0xff]
  %v1449 = vld [vmem:[%s1 + $0xc8] sm:$0xff]
  %v1450 = vld [vmem:[%s1 + $0xd0] sm:$0xff]
  %v1451 = vld [vmem:[%s1 + $0xd8] sm:$0xff]
  %v1452 = vld [vmem:[%s1 + $0xe0] sm:$0xff]
  %v1453 = vld [vmem:[%s1 + $0xe8] sm:$0xff]
  %v1454 = vld [vmem:[%s1 + $0xf0] sm:$0xff]
  %v1455 = vld [vmem:[%s1 + $0xf8] sm:$0xff]
  %v1456 = vld [vmem:[%s1 + $0x100] sm:$0xff]
  %v1457 = vld [vmem:[%s1 + $0x108] sm:$0xff]
  %v1458 = vld [vmem:[%s1 + $0x110] sm:$0xff]
  %v1459 = vld [vmem:[%s1 + $0x118] sm:$0xff]
  %v1460 = vld [vmem:[%s1 + $0x120] sm:$0xff]
  %v1461 = vld [vmem:[%s1 + $0x128] sm:$0xff]
  %v1462 = vld [vmem:[%s1 + $0x130] sm:$0xff]
  %v1463 = vld [vmem:[%s1 + $0x138] sm:$0xff]
  %v1464 = vld [vmem:[%s1 + $0x140] sm:$0xff]
  %v1465 = vld [vmem:[%s1 + $0x148] sm:$0xff]
  %v1466 = vld [vmem:[%s1 + $0x150] sm:$0xff]
  %v1467 = vld [vmem:[%s1 + $0x158] sm:$0xff]
  %v1468 = vld [vmem:[%s1 + $0x160] sm:$0xff]
  %v1469 = vld [vmem:[%s1 + $0x168] sm:$0xff]
  %v1470 = vld [vmem:[%s1 + $0x170] sm:$0xff]
  %v1471 = vld [vmem:[%s1 + $0x178] sm:$0xff]
  %v1472 = vld [vmem:[%s2] sm:$0x7]
  %v1474 = vlaneseq
  %v1475 = vshrl.u32 %v1474, 7
  %v1476 = vsub.s32 0, %v1475
  %v1477 = vrot.slane %v1472, %v1476
  %v1478 = vlaneseq
  %v1479 = vshrl.u32 %v1478, 7
  %v1480 = vsub.s32 1, %v1479
  %v1481 = vrot.slane %v1472, %v1480
  %v1482 = vlaneseq
  %v1483 = vshrl.u32 %v1482, 7
  %v1484 = vsub.s32 2, %v1483
  %v1485 = vrot.slane %v1472, %v1484
  %1489 = vmatprep.subr.mxu0 %v1425
  %1490 = vmatpush1.msra.mxu0 %v1424
  %1491 = vmatprep.subr.mxu0 %v1428
  %1492 = vmatpush1.msra.mxu0 %v1427
  %1493 = vmatprep.subr.mxu0 %v1431
  %1494 = vmatpush1.msra.mxu0 %v1430
  %1495 = vmatprep.subr.mxu0 %v1434
  %1496 = vmatpush1.msra.mxu0 %v1433
  %1497 = vmatprep.subr.mxu0 %v1437
  %1498 = vmatpush1.msra.mxu0 %v1436
  %1499 = vmatprep.subr.mxu0 %v1440
  %1500 = vmatpush1.msra.mxu0 %v1439
  %1501 = vmatprep.subr.mxu0 %v1443
  %1502 = vmatpush1.msra.mxu0 %v1442
  %1503 = vmatprep.subr.mxu0 %v1446
  %1504 = vmatpush1.msra.mxu0 %v1445
  %1505 = vmatprep.subr.mxu0 %v1449
  %1506 = vmatpush1.msra.mxu0 %v1448
  %1507 = vmatprep.subr.mxu0 %v1452
  %1508 = vmatpush1.msra.mxu0 %v1451
  %1509 = vmatprep.subr.mxu0 %v1455
  %1510 = vmatpush1.msra.mxu0 %v1454
  %1511 = vmatprep.subr.mxu0 %v1458
  %1512 = vmatpush1.msra.mxu0 %v1457
  %1513 = vmatprep.subr.mxu0 %v1461
  %1514 = vmatpush1.msra.mxu0 %v1460
  %1515 = vmatprep.subr.mxu0 %v1464
  %1516 = vmatpush1.msra.mxu0 %v1463
  %1517 = vmatprep.subr.mxu0 %v1467
  %1518 = vmatpush1.msra.mxu0 %v1466
  %1519 = vmatprep.subr.mxu0 %v1470
  %1520 = vmatpush1.msra.mxu0 %v1469
  %1521 = vmatprep.subr.mxu0 0.0
  %1522 = vmatpush1.msra.mxu0 0.0
  %1523 = vmatprep.subr.mxu0 0.0
  %1524 = vmatpush1.msra.mxu0 0.0
  %1525 = vmatprep.subr.mxu0 0.0
  %1526 = vmatpush1.msra.mxu0 0.0
  %1527 = vmatprep.subr.mxu0 0.0
  %1528 = vmatpush1.msra.mxu0 0.0
  %1529 = vmatprep.subr.mxu0 0.0
  %1530 = vmatpush1.msra.mxu0 0.0
  %1531 = vmatprep.subr.mxu0 0.0
  %1532 = vmatpush1.msra.mxu0 0.0
  %1533 = vmatprep.subr.mxu0 0.0
  %1534 = vmatpush1.msra.mxu0 0.0
  %1535 = vmatprep.subr.mxu0 0.0
  %1536 = vmatpush1.msra.mxu0 0.0
  %1537 = vmatprep.subr.mxu0 0.0
  %1538 = vmatpush1.msra.mxu0 0.0
  %1539 = vmatprep.subr.mxu0 0.0
  %1540 = vmatpush1.msra.mxu0 0.0
  %1541 = vmatprep.subr.mxu0 0.0
  %1542 = vmatpush1.msra.mxu0 0.0
  %1543 = vmatprep.subr.mxu0 0.0
  %1544 = vmatpush1.msra.mxu0 0.0
  %1545 = vmatprep.subr.mxu0 0.0
  %1546 = vmatpush1.msra.mxu0 0.0
  %1547 = vmatprep.subr.mxu0 0.0
  %1548 = vmatpush1.msra.mxu0 0.0
  %1549 = vmatprep.subr.mxu0 0.0
  %1550 = vmatpush1.msra.mxu0 0.0
  %1551 = vmatprep.subr.mxu0 0.0
  %1552 = vmatpush1.msra.mxu0 0.0
  %1553 = vmatprep.mubr.f32.mxu0 0.0
  %1554 = vmatmul.mubr.f32.gmra.mrb[0].mxu0 %v1423
  %v1555 = vpop.f32.mrb[0].mxu0
  %v1556 = vadd.f32 %v1477, %v1555
  %v1557 = vpop.f32.mrb[0].mxu0
  %v1558 = vadd.f32 %v1481, %v1557
  %1559 = vdwg.mxu0
  %1560 = vmatprep.subr.mxu0 0.0
  %1561 = vmatpush1.msra.mxu0 %v1426
  %1562 = vmatprep.subr.mxu0 0.0
  %1563 = vmatpush1.msra.mxu0 %v1429
  %1564 = vmatprep.subr.mxu0 0.0
  %1565 = vmatpush1.msra.mxu0 %v1432
  %1566 = vmatprep.subr.mxu0 0.0
  %1567 = vmatpush1.msra.mxu0 %v1435
  %1568 = vmatprep.subr.mxu0 0.0
  %1569 = vmatpush1.msra.mxu0 %v1438
  %1570 = vmatprep.subr.mxu0 0.0
  %1571 = vmatpush1.msra.mxu0 %v1441
  %1572 = vmatprep.subr.mxu0 0.0
  %1573 = vmatpush1.msra.mxu0 %v1444
  %1574 = vmatprep.subr.mxu0 0.0
  %1575 = vmatpush1.msra.mxu0 %v1447
  %1576 = vmatprep.subr.mxu0 0.0
  %1577 = vmatpush1.msra.mxu0 %v1450
  %1578 = vmatprep.subr.mxu0 0.0
  %1579 = vmatpush1.msra.mxu0 %v1453
  %1580 = vmatprep.subr.mxu0 0.0
  %1581 = vmatpush1.msra.mxu0 %v1456
  %1582 = vmatprep.subr.mxu0 0.0
  %1583 = vmatpush1.msra.mxu0 %v1459
  %1584 = vmatprep.subr.mxu0 0.0
  %1585 = vmatpush1.msra.mxu0 %v1462
  %1586 = vmatprep.subr.mxu0 0.0
  %1587 = vmatpush1.msra.mxu0 %v1465
  %1588 = vmatprep.subr.mxu0 0.0
  %1589 = vmatpush1.msra.mxu0 %v1468
  %1590 = vmatprep.subr.mxu0 0.0
  %1591 = vmatpush1.msra.mxu0 %v1471
  %1592 = vmatprep.subr.mxu0 0.0
  %1593 = vmatpush1.msra.mxu0 0.0
  %1594 = vmatprep.subr.mxu0 0.0
  %1595 = vmatpush1.msra.mxu0 0.0
  %1596 = vmatprep.subr.mxu0 0.0
  %1597 = vmatpush1.msra.mxu0 0.0
  %1598 = vmatprep.subr.mxu0 0.0
  %1599 = vmatpush1.msra.mxu0 0.0
  %1600 = vmatprep.subr.mxu0 0.0
  %1601 = vmatpush1.msra.mxu0 0.0
  %1602 = vmatprep.subr.mxu0 0.0
  %1603 = vmatpush1.msra.mxu0 0.0
  %1604 = vmatprep.subr.mxu0 0.0
  %1605 = vmatpush1.msra.mxu0 0.0
  %1606 = vmatprep.subr.mxu0 0.0
  %1607 = vmatpush1.msra.mxu0 0.0
  %1608 = vmatprep.subr.mxu0 0.0
  %1609 = vmatpush1.msra.mxu0 0.0
  %1610 = vmatprep.subr.mxu0 0.0
  %1611 = vmatpush1.msra.mxu0 0.0
  %1612 = vmatprep.subr.mxu0 0.0
  %1613 = vmatpush1.msra.mxu0 0.0
  %1614 = vmatprep.subr.mxu0 0.0
  %1615 = vmatpush1.msra.mxu0 0.0
  %1616 = vmatprep.subr.mxu0 0.0
  %1617 = vmatpush1.msra.mxu0 0.0
  %1618 = vmatprep.subr.mxu0 0.0
  %1619 = vmatpush1.msra.mxu0 0.0
  %1620 = vmatprep.subr.mxu0 0.0
  %1621 = vmatpush1.msra.mxu0 0.0
  %1622 = vmatprep.subr.mxu0 0.0
  %1623 = vmatpush1.msra.mxu0 0.0
  %1624 = vmatprep.mubr.f32.mxu0 0.0
  %1625 = vmatmul.mubr.f32.gmra.mrb[0].mxu0 %v1423
  %v1626 = vpop.f32.mrb[0].mxu0
  %v1627 = vadd.f32 %v1485, %v1626
  %v1628 = vpop.f32.mrb[0].mxu0
  %1629 = vdwg.mxu0
  %s1630 = scalar_lea.vmem %s0, 144
  %v1631 = vld [vmem:[%s1630] sm:$0xff]
  %v1632 = vld [vmem:[%s1630 + $0x8] sm:$0xff]
  %v1633 = vld [vmem:[%s1630 + $0x10] sm:$0xff]
  %v1634 = vadd.f32 %v1631, %v1556
  %v1635 = vxor.u32 %v1634, 2147483648
  %v1636 = vmul.f32 %v1635, 1.442695
  %v1637 = vpow.pop %v1636
  %v1638 = vadd.f32 %v1637, 1.0
  %v1639 = vrcp.pop %v1638
  %v1640 = vmul.f32 1.0, %v1639
  %v1641 = vadd.f32 %v1632, %v1558
  %v1642 = vxor.u32 %v1641, 2147483648
  %v1643 = vmul.f32 %v1642, 1.442695
  %v1644 = vpow.pop %v1643
  %v1645 = vadd.f32 %v1644, 1.0
  %v1646 = vrcp.pop %v1645
  %v1647 = vmul.f32 1.0, %v1646
  %v1648 = vmul.f32 %v1640, %v1627
  %v1649 = vadd.f32 %v1633, %v1648
  %v1650 = vtanh.pop %v1649
  %v1651 = vsub.f32 1.0, %v1647
  %v1652 = vmul.f32 %v1651, %v1650
  %v1653 = vmul.f32 %v1647, %v1423
  %v1654 = vadd.f32 %v1652, %v1653
  %1655 = vst [vmem:[#allocation2] sm:$0xff] %v1654
  %s1656 = scalar_lea.vmem %s3, 48
  %1657 = vst [vmem:[%s1656] sm:$0xff] %v1654
  %v1658 = vld [vmem:[#allocation2] sm:$0xff]
  %v1659 = vld [vmem:[%s1] sm:$0xff]
  %v1660 = vld [vmem:[%s1 + $0x8] sm:$0xff]
  %v1661 = vld [vmem:[%s1 + $0x10] sm:$0xff]
  %v1662 = vld [vmem:[%s1 + $0x18] sm:$0xff]
  %v1663 = vld [vmem:[%s1 + $0x20] sm:$0xff]
  %v1664 = vld [vmem:[%s1 + $0x28] sm:$0xff]
  %v1665 = vld [vmem:[%s1 + $0x30] sm:$0xff]
  %v1666 = vld [vmem:[%s1 + $0x38] sm:$0xff]
  %v1667 = vld [vmem:[%s1 + $0x40] sm:$0xff]
  %v1668 = vld [vmem:[%s1 + $0x48] sm:$0xff]
  %v1669 = vld [vmem:[%s1 + $0x50] sm:$0xff]
  %v1670 = vld [vmem:[%s1 + $0x58] sm:$0xff]
  %v1671 = vld [vmem:[%s1 + $0x60] sm:$0xff]
  %v1672 = vld [vmem:[%s1 + $0x68] sm:$0xff]
  %v1673 = vld [vmem:[%s1 + $0x70] sm:$0xff]
  %v1674 = vld [vmem:[%s1 + $0x78] sm:$0xff]
  %v1675 = vld [vmem:[%s1 + $0x80] sm:$0xff]
  %v1676 = vld [vmem:[%s1 + $0x88] sm:$0xff]
  %v1677 = vld [vmem:[%s1 + $0x90] sm:$0xff]
  %v1678 = vld [vmem:[%s1 + $0x98] sm:$0xff]
  %v1679 = vld [vmem:[%s1 + $0xa0] sm:$0xff]
  %v1680 = vld [vmem:[%s1 + $0xa8] sm:$0xff]
  %v1681 = vld [vmem:[%s1 + $0xb0] sm:$0xff]
  %v1682 = vld [vmem:[%s1 + $0xb8] sm:$0xff]
  %v1683 = vld [vmem:[%s1 + $0xc0] sm:$0xff]
  %v1684 = vld [vmem:[%s1 + $0xc8] sm:$0xff]
  %v1685 = vld [vmem:[%s1 + $0xd0] sm:$0xff]
  %v1686 = vld [vmem:[%s1 + $0xd8] sm:$0xff]
  %v1687 = vld [vmem:[%s1 + $0xe0] sm:$0xff]
  %v1688 = vld [vmem:[%s1 + $0xe8] sm:$0xff]
  %v1689 = vld [vmem:[%s1 + $0xf0] sm:$0xff]
  %v1690 = vld [vmem:[%s1 + $0xf8] sm:$0xff]
  %v1691 = vld [vmem:[%s1 + $0x100] sm:$0xff]
  %v1692 = vld [vmem:[%s1 + $0x108] sm:$0xff]
  %v1693 = vld [vmem:[%s1 + $0x110] sm:$0xff]
  %v1694 = vld [vmem:[%s1 + $0x118] sm:$0xff]
  %v1695 = vld [vmem:[%s1 + $0x120] sm:$0xff]
  %v1696 = vld [vmem:[%s1 + $0x128] sm:$0xff]
  %v1697 = vld [vmem:[%s1 + $0x130] sm:$0xff]
  %v1698 = vld [vmem:[%s1 + $0x138] sm:$0xff]
  %v1699 = vld [vmem:[%s1 + $0x140] sm:$0xff]
  %v1700 = vld [vmem:[%s1 + $0x148] sm:$0xff]
  %v1701 = vld [vmem:[%s1 + $0x150] sm:$0xff]
  %v1702 = vld [vmem:[%s1 + $0x158] sm:$0xff]
  %v1703 = vld [vmem:[%s1 + $0x160] sm:$0xff]
  %v1704 = vld [vmem:[%s1 + $0x168] sm:$0xff]
  %v1705 = vld [vmem:[%s1 + $0x170] sm:$0xff]
  %v1706 = vld [vmem:[%s1 + $0x178] sm:$0xff]
  %v1707 = vld [vmem:[%s2] sm:$0x7]
  %v1709 = vlaneseq
  %v1710 = vshrl.u32 %v1709, 7
  %v1711 = vsub.s32 0, %v1710
  %v1712 = vrot.slane %v1707, %v1711
  %v1713 = vlaneseq
  %v1714 = vshrl.u32 %v1713, 7
  %v1715 = vsub.s32 1, %v1714
  %v1716 = vrot.slane %v1707, %v1715
  %v1717 = vlaneseq
  %v1718 = vshrl.u32 %v1717, 7
  %v1719 = vsub.s32 2, %v1718
  %v1720 = vrot.slane %v1707, %v1719
  %1724 = vmatprep.subr.mxu0 %v1660
  %1725 = vmatpush1.msra.mxu0 %v1659
  %1726 = vmatprep.subr.mxu0 %v1663
  %1727 = vmatpush1.msra.mxu0 %v1662
  %1728 = vmatprep.subr.mxu0 %v1666
  %1729 = vmatpush1.msra.mxu0 %v1665
  %1730 = vmatprep.subr.mxu0 %v1669
  %1731 = vmatpush1.msra.mxu0 %v1668
  %1732 = vmatprep.subr.mxu0 %v1672
  %1733 = vmatpush1.msra.mxu0 %v1671
  %1734 = vmatprep.subr.mxu0 %v1675
  %1735 = vmatpush1.msra.mxu0 %v1674
  %1736 = vmatprep.subr.mxu0 %v1678
  %1737 = vmatpush1.msra.mxu0 %v1677
  %1738 = vmatprep.subr.mxu0 %v1681
  %1739 = vmatpush1.msra.mxu0 %v1680
  %1740 = vmatprep.subr.mxu0 %v1684
  %1741 = vmatpush1.msra.mxu0 %v1683
  %1742 = vmatprep.subr.mxu0 %v1687
  %1743 = vmatpush1.msra.mxu0 %v1686
  %1744 = vmatprep.subr.mxu0 %v1690
  %1745 = vmatpush1.msra.mxu0 %v1689
  %1746 = vmatprep.subr.mxu0 %v1693
  %1747 = vmatpush1.msra.mxu0 %v1692
  %1748 = vmatprep.subr.mxu0 %v1696
  %1749 = vmatpush1.msra.mxu0 %v1695
  %1750 = vmatprep.subr.mxu0 %v1699
  %1751 = vmatpush1.msra.mxu0 %v1698
  %1752 = vmatprep.subr.mxu0 %v1702
  %1753 = vmatpush1.msra.mxu0 %v1701
  %1754 = vmatprep.subr.mxu0 %v1705
  %1755 = vmatpush1.msra.mxu0 %v1704
  %1756 = vmatprep.subr.mxu0 0.0
  %1757 = vmatpush1.msra.mxu0 0.0
  %1758 = vmatprep.subr.mxu0 0.0
  %1759 = vmatpush1.msra.mxu0 0.0
  %1760 = vmatprep.subr.mxu0 0.0
  %1761 = vmatpush1.msra.mxu0 0.0
  %1762 = vmatprep.subr.mxu0 0.0
  %1763 = vmatpush1.msra.mxu0 0.0
  %1764 = vmatprep.subr.mxu0 0.0
  %1765 = vmatpush1.msra.mxu0 0.0
  %1766 = vmatprep.subr.mxu0 0.0
  %1767 = vmatpush1.msra.mxu0 0.0
  %1768 = vmatprep.subr.mxu0 0.0
  %1769 = vmatpush1.msra.mxu0 0.0
  %1770 = vmatprep.subr.mxu0 0.0
  %1771 = vmatpush1.msra.mxu0 0.0
  %1772 = vmatprep.subr.mxu0 0.0
  %1773 = vmatpush1.msra.mxu0 0.0
  %1774 = vmatprep.subr.mxu0 0.0
  %1775 = vmatpush1.msra.mxu0 0.0
  %1776 = vmatprep.subr.mxu0 0.0
  %1777 = vmatpush1.msra.mxu0 0.0
  %1778 = vmatprep.subr.mxu0 0.0
  %1779 = vmatpush1.msra.mxu0 0.0
  %1780 = vmatprep.subr.mxu0 0.0
  %1781 = vmatpush1.msra.mxu0 0.0
  %1782 = vmatprep.subr.mxu0 0.0
  %1783 = vmatpush1.msra.mxu0 0.0
  %1784 = vmatprep.subr.mxu0 0.0
  %1785 = vmatpush1.msra.mxu0 0.0
  %1786 = vmatprep.subr.mxu0 0.0
  %1787 = vmatpush1.msra.mxu0 0.0
  %1788 = vmatprep.mubr.f32.mxu0 0.0
  %1789 = vmatmul.mubr.f32.gmra.mrb[0].mxu0 %v1658
  %v1790 = vpop.f32.mrb[0].mxu0
  %v1791 = vadd.f32 %v1712, %v1790
  %v1792 = vpop.f32.mrb[0].mxu0
  %v1793 = vadd.f32 %v1716, %v1792
  %1794 = vdwg.mxu0
  %1795 = vmatprep.subr.mxu0 0.0
  %1796 = vmatpush1.msra.mxu0 %v1661
  %1797 = vmatprep.subr.mxu0 0.0
  %1798 = vmatpush1.msra.mxu0 %v1664
  %1799 = vmatprep.subr.mxu0 0.0
  %1800 = vmatpush1.msra.mxu0 %v1667
  %1801 = vmatprep.subr.mxu0 0.0
  %1802 = vmatpush1.msra.mxu0 %v1670
  %1803 = vmatprep.subr.mxu0 0.0
  %1804 = vmatpush1.msra.mxu0 %v1673
  %1805 = vmatprep.subr.mxu0 0.0
  %1806 = vmatpush1.msra.mxu0 %v1676
  %1807 = vmatprep.subr.mxu0 0.0
  %1808 = vmatpush1.msra.mxu0 %v1679
  %1809 = vmatprep.subr.mxu0 0.0
  %1810 = vmatpush1.msra.mxu0 %v1682
  %1811 = vmatprep.subr.mxu0 0.0
  %1812 = vmatpush1.msra.mxu0 %v1685
  %1813 = vmatprep.subr.mxu0 0.0
  %1814 = vmatpush1.msra.mxu0 %v1688
  %1815 = vmatprep.subr.mxu0 0.0
  %1816 = vmatpush1.msra.mxu0 %v1691
  %1817 = vmatprep.subr.mxu0 0.0
  %1818 = vmatpush1.msra.mxu0 %v1694
  %1819 = vmatprep.subr.mxu0 0.0
  %1820 = vmatpush1.msra.mxu0 %v1697
  %1821 = vmatprep.subr.mxu0 0.0
  %1822 = vmatpush1.msra.mxu0 %v1700
  %1823 = vmatprep.subr.mxu0 0.0
  %1824 = vmatpush1.msra.mxu0 %v1703
  %1825 = vmatprep.subr.mxu0 0.0
  %1826 = vmatpush1.msra.mxu0 %v1706
  %1827 = vmatprep.subr.mxu0 0.0
  %1828 = vmatpush1.msra.mxu0 0.0
  %1829 = vmatprep.subr.mxu0 0.0
  %1830 = vmatpush1.msra.mxu0 0.0
  %1831 = vmatprep.subr.mxu0 0.0
  %1832 = vmatpush1.msra.mxu0 0.0
  %1833 = vmatprep.subr.mxu0 0.0
  %1834 = vmatpush1.msra.mxu0 0.0
  %1835 = vmatprep.subr.mxu0 0.0
  %1836 = vmatpush1.msra.mxu0 0.0
  %1837 = vmatprep.subr.mxu0 0.0
  %1838 = vmatpush1.msra.mxu0 0.0
  %1839 = vmatprep.subr.mxu0 0.0
  %1840 = vmatpush1.msra.mxu0 0.0
  %1841 = vmatprep.subr.mxu0 0.0
  %1842 = vmatpush1.msra.mxu0 0.0
  %1843 = vmatprep.subr.mxu0 0.0
  %1844 = vmatpush1.msra.mxu0 0.0
  %1845 = vmatprep.subr.mxu0 0.0
  %1846 = vmatpush1.msra.mxu0 0.0
  %1847 = vmatprep.subr.mxu0 0.0
  %1848 = vmatpush1.msra.mxu0 0.0
  %1849 = vmatprep.subr.mxu0 0.0
  %1850 = vmatpush1.msra.mxu0 0.0
  %1851 = vmatprep.subr.mxu0 0.0
  %1852 = vmatpush1.msra.mxu0 0.0
  %1853 = vmatprep.subr.mxu0 0.0
  %1854 = vmatpush1.msra.mxu0 0.0
  %1855 = vmatprep.subr.mxu0 0.0
  %1856 = vmatpush1.msra.mxu0 0.0
  %1857 = vmatprep.subr.mxu0 0.0
  %1858 = vmatpush1.msra.mxu0 0.0
  %1859 = vmatprep.mubr.f32.mxu0 0.0
  %1860 = vmatmul.mubr.f32.gmra.mrb[0].mxu0 %v1658
  %v1861 = vpop.f32.mrb[0].mxu0
  %v1862 = vadd.f32 %v1720, %v1861
  %v1863 = vpop.f32.mrb[0].mxu0
  %1864 = vdwg.mxu0
  %s1865 = scalar_lea.vmem %s0, 168
  %v1866 = vld [vmem:[%s1865] sm:$0xff]
  %v1867 = vld [vmem:[%s1865 + $0x8] sm:$0xff]
  %v1868 = vld [vmem:[%s1865 + $0x10] sm:$0xff]
  %v1869 = vadd.f32 %v1866, %v1791
  %v1870 = vxor.u32 %v1869, 2147483648
  %v1871 = vmul.f32 %v1870, 1.442695
  %v1872 = vpow.pop %v1871
  %v1873 = vadd.f32 %v1872, 1.0
  %v1874 = vrcp.pop %v1873
  %v1875 = vmul.f32 1.0, %v1874
  %v1876 = vadd.f32 %v1867, %v1793
  %v1877 = vxor.u32 %v1876, 2147483648
  %v1878 = vmul.f32 %v1877, 1.442695
  %v1879 = vpow.pop %v1878
  %v1880 = vadd.f32 %v1879, 1.0
  %v1881 = vrcp.pop %v1880
  %v1882 = vmul.f32 1.0, %v1881
  %v1883 = vmul.f32 %v1875, %v1862
  %v1884 = vadd.f32 %v1868, %v1883
  %v1885 = vtanh.pop %v1884
  %v1886 = vsub.f32 1.0, %v1882
  %v1887 = vmul.f32 %v1886, %v1885
  %v1888 = vmul.f32 %v1882, %v1658
  %v1889 = vadd.f32 %v1887, %v1888
  %1890 = vst [vmem:[#allocation2] sm:$0xff] %v1889
  %s1891 = scalar_lea.vmem %s3, 56
  %1892 = vst [vmem:[%s1891] sm:$0xff] %v1889
  %v1893 = vld [vmem:[#allocation2] sm:$0xff]
  %v1894 = vld [vmem:[%s1] sm:$0xff]
  %v1895 = vld [vmem:[%s1 + $0x8] sm:$0xff]
  %v1896 = vld [vmem:[%s1 + $0x10] sm:$0xff]
  %v1897 = vld [vmem:[%s1 + $0x18] sm:$0xff]
  %v1898 = vld [vmem:[%s1 + $0x20] sm:$0xff]
  %v1899 = vld [vmem:[%s1 + $0x28] sm:$0xff]
  %v1900 = vld [vmem:[%s1 + $0x30] sm:$0xff]
  %v1901 = vld [vmem:[%s1 + $0x38] sm:$0xff]
  %v1902 = vld [vmem:[%s1 + $0x40] sm:$0xff]
  %v1903 = vld [vmem:[%s1 + $0x48] sm:$0xff]
  %v1904 = vld [vmem:[%s1 + $0x50] sm:$0xff]
  %v1905 = vld [vmem:[%s1 + $0x58] sm:$0xff]
  %v1906 = vld [vmem:[%s1 + $0x60] sm:$0xff]
  %v1907 = vld [vmem:[%s1 + $0x68] sm:$0xff]
  %v1908 = vld [vmem:[%s1 + $0x70] sm:$0xff]
  %v1909 = vld [vmem:[%s1 + $0x78] sm:$0xff]
  %v1910 = vld [vmem:[%s1 + $0x80] sm:$0xff]
  %v1911 = vld [vmem:[%s1 + $0x88] sm:$0xff]
  %v1912 = vld [vmem:[%s1 + $0x90] sm:$0xff]
  %v1913 = vld [vmem:[%s1 + $0x98] sm:$0xff]
  %v1914 = vld [vmem:[%s1 + $0xa0] sm:$0xff]
  %v1915 = vld [vmem:[%s1 + $0xa8] sm:$0xff]
  %v1916 = vld [vmem:[%s1 + $0xb0] sm:$0xff]
  %v1917 = vld [vmem:[%s1 + $0xb8] sm:$0xff]
  %v1918 = vld [vmem:[%s1 + $0xc0] sm:$0xff]
  %v1919 = vld [vmem:[%s1 + $0xc8] sm:$0xff]
  %v1920 = vld [vmem:[%s1 + $0xd0] sm:$0xff]
  %v1921 = vld [vmem:[%s1 + $0xd8] sm:$0xff]
  %v1922 = vld [vmem:[%s1 + $0xe0] sm:$0xff]
  %v1923 = vld [vmem:[%s1 + $0xe8] sm:$0xff]
  %v1924 = vld [vmem:[%s1 + $0xf0] sm:$0xff]
  %v1925 = vld [vmem:[%s1 + $0xf8] sm:$0xff]
  %v1926 = vld [vmem:[%s1 + $0x100] sm:$0xff]
  %v1927 = vld [vmem:[%s1 + $0x108] sm:$0xff]
  %v1928 = vld [vmem:[%s1 + $0x110] sm:$0xff]
  %v1929 = vld [vmem:[%s1 + $0x118] sm:$0xff]
  %v1930 = vld [vmem:[%s1 + $0x120] sm:$0xff]
  %v1931 = vld [vmem:[%s1 + $0x128] sm:$0xff]
  %v1932 = vld [vmem:[%s1 + $0x130] sm:$0xff]
  %v1933 = vld [vmem:[%s1 + $0x138] sm:$0xff]
  %v1934 = vld [vmem:[%s1 + $0x140] sm:$0xff]
  %v1935 = vld [vmem:[%s1 + $0x148] sm:$0xff]
  %v1936 = vld [vmem:[%s1 + $0x150] sm:$0xff]
  %v1937 = vld [vmem:[%s1 + $0x158] sm:$0xff]
  %v1938 = vld [vmem:[%s1 + $0x160] sm:$0xff]
  %v1939 = vld [vmem:[%s1 + $0x168] sm:$0xff]
  %v1940 = vld [vmem:[%s1 + $0x170] sm:$0xff]
  %v1941 = vld [vmem:[%s1 + $0x178] sm:$0xff]
  %v1942 = vld [vmem:[%s2] sm:$0x7]
  %v1944 = vlaneseq
  %v1945 = vshrl.u32 %v1944, 7
  %v1946 = vsub.s32 0, %v1945
  %v1947 = vrot.slane %v1942, %v1946
  %v1948 = vlaneseq
  %v1949 = vshrl.u32 %v1948, 7
  %v1950 = vsub.s32 1, %v1949
  %v1951 = vrot.slane %v1942, %v1950
  %v1952 = vlaneseq
  %v1953 = vshrl.u32 %v1952, 7
  %v1954 = vsub.s32 2, %v1953
  %v1955 = vrot.slane %v1942, %v1954
  %1959 = vmatprep.subr.mxu0 %v1895
  %1960 = vmatpush1.msra.mxu0 %v1894
  %1961 = vmatprep.subr.mxu0 %v1898
  %1962 = vmatpush1.msra.mxu0 %v1897
  %1963 = vmatprep.subr.mxu0 %v1901
  %1964 = vmatpush1.msra.mxu0 %v1900
  %1965 = vmatprep.subr.mxu0 %v1904
  %1966 = vmatpush1.msra.mxu0 %v1903
  %1967 = vmatprep.subr.mxu0 %v1907
  %1968 = vmatpush1.msra.mxu0 %v1906
  %1969 = vmatprep.subr.mxu0 %v1910
  %1970 = vmatpush1.msra.mxu0 %v1909
  %1971 = vmatprep.subr.mxu0 %v1913
  %1972 = vmatpush1.msra.mxu0 %v1912
  %1973 = vmatprep.subr.mxu0 %v1916
  %1974 = vmatpush1.msra.mxu0 %v1915
  %1975 = vmatprep.subr.mxu0 %v1919
  %1976 = vmatpush1.msra.mxu0 %v1918
  %1977 = vmatprep.subr.mxu0 %v1922
  %1978 = vmatpush1.msra.mxu0 %v1921
  %1979 = vmatprep.subr.mxu0 %v1925
  %1980 = vmatpush1.msra.mxu0 %v1924
  %1981 = vmatprep.subr.mxu0 %v1928
  %1982 = vmatpush1.msra.mxu0 %v1927
  %1983 = vmatprep.subr.mxu0 %v1931
  %1984 = vmatpush1.msra.mxu0 %v1930
  %1985 = vmatprep.subr.mxu0 %v1934
  %1986 = vmatpush1.msra.mxu0 %v1933
  %1987 = vmatprep.subr.mxu0 %v1937
  %1988 = vmatpush1.msra.mxu0 %v1936
  %1989 = vmatprep.subr.mxu0 %v1940
  %1990 = vmatpush1.msra.mxu0 %v1939
  %1991 = vmatprep.subr.mxu0 0.0
  %1992 = vmatpush1.msra.mxu0 0.0
  %1993 = vmatprep.subr.mxu0 0.0
  %1994 = vmatpush1.msra.mxu0 0.0
  %1995 = vmatprep.subr.mxu0 0.0
  %1996 = vmatpush1.msra.mxu0 0.0
  %1997 = vmatprep.subr.mxu0 0.0
  %1998 = vmatpush1.msra.mxu0 0.0
  %1999 = vmatprep.subr.mxu0 0.0
  %2000 = vmatpush1.msra.mxu0 0.0
  %2001 = vmatprep.subr.mxu0 0.0
  %2002 = vmatpush1.msra.mxu0 0.0
  %2003 = vmatprep.subr.mxu0 0.0
  %2004 = vmatpush1.msra.mxu0 0.0
  %2005 = vmatprep.subr.mxu0 0.0
  %2006 = vmatpush1.msra.mxu0 0.0
  %2007 = vmatprep.subr.mxu0 0.0
  %2008 = vmatpush1.msra.mxu0 0.0
  %2009 = vmatprep.subr.mxu0 0.0
  %2010 = vmatpush1.msra.mxu0 0.0
  %2011 = vmatprep.subr.mxu0 0.0
  %2012 = vmatpush1.msra.mxu0 0.0
  %2013 = vmatprep.subr.mxu0 0.0
  %2014 = vmatpush1.msra.mxu0 0.0
  %2015 = vmatprep.subr.mxu0 0.0
  %2016 = vmatpush1.msra.mxu0 0.0
  %2017 = vmatprep.subr.mxu0 0.0
  %2018 = vmatpush1.msra.mxu0 0.0
  %2019 = vmatprep.subr.mxu0 0.0
  %2020 = vmatpush1.msra.mxu0 0.0
  %2021 = vmatprep.subr.mxu0 0.0
  %2022 = vmatpush1.msra.mxu0 0.0
  %2023 = vmatprep.mubr.f32.mxu0 0.0
  %2024 = vmatmul.mubr.f32.gmra.mrb[0].mxu0 %v1893
  %v2025 = vpop.f32.mrb[0].mxu0
  %v2026 = vadd.f32 %v1947, %v2025
  %v2027 = vpop.f32.mrb[0].mxu0
  %v2028 = vadd.f32 %v1951, %v2027
  %2029 = vdwg.mxu0
  %2030 = vmatprep.subr.mxu0 0.0
  %2031 = vmatpush1.msra.mxu0 %v1896
  %2032 = vmatprep.subr.mxu0 0.0
  %2033 = vmatpush1.msra.mxu0 %v1899
  %2034 = vmatprep.subr.mxu0 0.0
  %2035 = vmatpush1.msra.mxu0 %v1902
  %2036 = vmatprep.subr.mxu0 0.0
  %2037 = vmatpush1.msra.mxu0 %v1905
  %2038 = vmatprep.subr.mxu0 0.0
  %2039 = vmatpush1.msra.mxu0 %v1908
  %2040 = vmatprep.subr.mxu0 0.0
  %2041 = vmatpush1.msra.mxu0 %v1911
  %2042 = vmatprep.subr.mxu0 0.0
  %2043 = vmatpush1.msra.mxu0 %v1914
  %2044 = vmatprep.subr.mxu0 0.0
  %2045 = vmatpush1.msra.mxu0 %v1917
  %2046 = vmatprep.subr.mxu0 0.0
  %2047 = vmatpush1.msra.mxu0 %v1920
  %2048 = vmatprep.subr.mxu0 0.0
  %2049 = vmatpush1.msra.mxu0 %v1923
  %2050 = vmatprep.subr.mxu0 0.0
  %2051 = vmatpush1.msra.mxu0 %v1926
  %2052 = vmatprep.subr.mxu0 0.0
  %2053 = vmatpush1.msra.mxu0 %v1929
  %2054 = vmatprep.subr.mxu0 0.0
  %2055 = vmatpush1.msra.mxu0 %v1932
  %2056 = vmatprep.subr.mxu0 0.0
  %2057 = vmatpush1.msra.mxu0 %v1935
  %2058 = vmatprep.subr.mxu0 0.0
  %2059 = vmatpush1.msra.mxu0 %v1938
  %2060 = vmatprep.subr.mxu0 0.0
  %2061 = vmatpush1.msra.mxu0 %v1941
  %2062 = vmatprep.subr.mxu0 0.0
  %2063 = vmatpush1.msra.mxu0 0.0
  %2064 = vmatprep.subr.mxu0 0.0
  %2065 = vmatpush1.msra.mxu0 0.0
  %2066 = vmatprep.subr.mxu0 0.0
  %2067 = vmatpush1.msra.mxu0 0.0
  %2068 = vmatprep.subr.mxu0 0.0
  %2069 = vmatpush1.msra.mxu0 0.0
  %2070 = vmatprep.subr.mxu0 0.0
  %2071 = vmatpush1.msra.mxu0 0.0
  %2072 = vmatprep.subr.mxu0 0.0
  %2073 = vmatpush1.msra.mxu0 0.0
  %2074 = vmatprep.subr.mxu0 0.0
  %2075 = vmatpush1.msra.mxu0 0.0
  %2076 = vmatprep.subr.mxu0 0.0
  %2077 = vmatpush1.msra.mxu0 0.0
  %2078 = vmatprep.subr.mxu0 0.0
  %2079 = vmatpush1.msra.mxu0 0.0
  %2080 = vmatprep.subr.mxu0 0.0
  %2081 = vmatpush1.msra.mxu0 0.0
  %2082 = vmatprep.subr.mxu0 0.0
  %2083 = vmatpush1.msra.mxu0 0.0
  %2084 = vmatprep.subr.mxu0 0.0
  %2085 = vmatpush1.msra.mxu0 0.0
  %2086 = vmatprep.subr.mxu0 0.0
  %2087 = vmatpush1.msra.mxu0 0.0
  %2088 = vmatprep.subr.mxu0 0.0
  %2089 = vmatpush1.msra.mxu0 0.0
  %2090 = vmatprep.subr.mxu0 0.0
  %2091 = vmatpush1.msra.mxu0 0.0
  %2092 = vmatprep.subr.mxu0 0.0
  %2093 = vmatpush1.msra.mxu0 0.0
  %2094 = vmatprep.mubr.f32.mxu0 0.0
  %2095 = vmatmul.mubr.f32.gmra.mrb[0].mxu0 %v1893
  %v2096 = vpop.f32.mrb[0].mxu0
  %v2097 = vadd.f32 %v1955, %v2096
  %v2098 = vpop.f32.mrb[0].mxu0
  %2099 = vdwg.mxu0
  %s2100 = scalar_lea.vmem %s0, 192
  %v2101 = vld [vmem:[%s2100] sm:$0xff]
  %v2102 = vld [vmem:[%s2100 + $0x8] sm:$0xff]
  %v2103 = vld [vmem:[%s2100 + $0x10] sm:$0xff]
  %v2104 = vadd.f32 %v2101, %v2026
  %v2105 = vxor.u32 %v2104, 2147483648
  %v2106 = vmul.f32 %v2105, 1.442695
  %v2107 = vpow.pop %v2106
  %v2108 = vadd.f32 %v2107, 1.0
  %v2109 = vrcp.pop %v2108
  %v2110 = vmul.f32 1.0, %v2109
  %v2111 = vadd.f32 %v2102, %v2028
  %v2112 = vxor.u32 %v2111, 2147483648
  %v2113 = vmul.f32 %v2112, 1.442695
  %v2114 = vpow.pop %v2113
  %v2115 = vadd.f32 %v2114, 1.0
  %v2116 = vrcp.pop %v2115
  %v2117 = vmul.f32 1.0, %v2116
  %v2118 = vmul.f32 %v2110, %v2097
  %v2119 = vadd.f32 %v2103, %v2118
  %v2120 = vtanh.pop %v2119
  %v2121 = vsub.f32 1.0, %v2117
  %v2122 = vmul.f32 %v2121, %v2120
  %v2123 = vmul.f32 %v2117, %v1893
  %v2124 = vadd.f32 %v2122, %v2123
  %2125 = vst [vmem:[#allocation2] sm:$0xff] %v2124
  %s2126 = scalar_lea.vmem %s3, 64
  %2127 = vst [vmem:[%s2126] sm:$0xff] %v2124
  %v2128 = vld [vmem:[#allocation2] sm:$0xff]
  %v2129 = vld [vmem:[%s1] sm:$0xff]
  %v2130 = vld [vmem:[%s1 + $0x8] sm:$0xff]
  %v2131 = vld [vmem:[%s1 + $0x10] sm:$0xff]
  %v2132 = vld [vmem:[%s1 + $0x18] sm:$0xff]
  %v2133 = vld [vmem:[%s1 + $0x20] sm:$0xff]
  %v2134 = vld [vmem:[%s1 + $0x28] sm:$0xff]
  %v2135 = vld [vmem:[%s1 + $0x30] sm:$0xff]
  %v2136 = vld [vmem:[%s1 + $0x38] sm:$0xff]
  %v2137 = vld [vmem:[%s1 + $0x40] sm:$0xff]
  %v2138 = vld [vmem:[%s1 + $0x48] sm:$0xff]
  %v2139 = vld [vmem:[%s1 + $0x50] sm:$0xff]
  %v2140 = vld [vmem:[%s1 + $0x58] sm:$0xff]
  %v2141 = vld [vmem:[%s1 + $0x60] sm:$0xff]
  %v2142 = vld [vmem:[%s1 + $0x68] sm:$0xff]
  %v2143 = vld [vmem:[%s1 + $0x70] sm:$0xff]
  %v2144 = vld [vmem:[%s1 + $0x78] sm:$0xff]
  %v2145 = vld [vmem:[%s1 + $0x80] sm:$0xff]
  %v2146 = vld [vmem:[%s1 + $0x88] sm:$0xff]
  %v2147 = vld [vmem:[%s1 + $0x90] sm:$0xff]
  %v2148 = vld [vmem:[%s1 + $0x98] sm:$0xff]
  %v2149 = vld [vmem:[%s1 + $0xa0] sm:$0xff]
  %v2150 = vld [vmem:[%s1 + $0xa8] sm:$0xff]
  %v2151 = vld [vmem:[%s1 + $0xb0] sm:$0xff]
  %v2152 = vld [vmem:[%s1 + $0xb8] sm:$0xff]
  %v2153 = vld [vmem:[%s1 + $0xc0] sm:$0xff]
  %v2154 = vld [vmem:[%s1 + $0xc8] sm:$0xff]
  %v2155 = vld [vmem:[%s1 + $0xd0] sm:$0xff]
  %v2156 = vld [vmem:[%s1 + $0xd8] sm:$0xff]
  %v2157 = vld [vmem:[%s1 + $0xe0] sm:$0xff]
  %v2158 = vld [vmem:[%s1 + $0xe8] sm:$0xff]
  %v2159 = vld [vmem:[%s1 + $0xf0] sm:$0xff]
  %v2160 = vld [vmem:[%s1 + $0xf8] sm:$0xff]
  %v2161 = vld [vmem:[%s1 + $0x100] sm:$0xff]
  %v2162 = vld [vmem:[%s1 + $0x108] sm:$0xff]
  %v2163 = vld [vmem:[%s1 + $0x110] sm:$0xff]
  %v2164 = vld [vmem:[%s1 + $0x118] sm:$0xff]
  %v2165 = vld [vmem:[%s1 + $0x120] sm:$0xff]
  %v2166 = vld [vmem:[%s1 + $0x128] sm:$0xff]
  %v2167 = vld [vmem:[%s1 + $0x130] sm:$0xff]
  %v2168 = vld [vmem:[%s1 + $0x138] sm:$0xff]
  %v2169 = vld [vmem:[%s1 + $0x140] sm:$0xff]
  %v2170 = vld [vmem:[%s1 + $0x148] sm:$0xff]
  %v2171 = vld [vmem:[%s1 + $0x150] sm:$0xff]
  %v2172 = vld [vmem:[%s1 + $0x158] sm:$0xff]
  %v2173 = vld [vmem:[%s1 + $0x160] sm:$0xff]
  %v2174 = vld [vmem:[%s1 + $0x168] sm:$0xff]
  %v2175 = vld [vmem:[%s1 + $0x170] sm:$0xff]
  %v2176 = vld [vmem:[%s1 + $0x178] sm:$0xff]
  %v2177 = vld [vmem:[%s2] sm:$0x7]
  %v2179 = vlaneseq
  %v2180 = vshrl.u32 %v2179, 7
  %v2181 = vsub.s32 0, %v2180
  %v2182 = vrot.slane %v2177, %v2181
  %v2183 = vlaneseq
  %v2184 = vshrl.u32 %v2183, 7
  %v2185 = vsub.s32 1, %v2184
  %v2186 = vrot.slane %v2177, %v2185
  %v2187 = vlaneseq
  %v2188 = vshrl.u32 %v2187, 7
  %v2189 = vsub.s32 2, %v2188
  %v2190 = vrot.slane %v2177, %v2189
  %2194 = vmatprep.subr.mxu0 %v2130
  %2195 = vmatpush1.msra.mxu0 %v2129
  %2196 = vmatprep.subr.mxu0 %v2133
  %2197 = vmatpush1.msra.mxu0 %v2132
  %2198 = vmatprep.subr.mxu0 %v2136
  %2199 = vmatpush1.msra.mxu0 %v2135
  %2200 = vmatprep.subr.mxu0 %v2139
  %2201 = vmatpush1.msra.mxu0 %v2138
  %2202 = vmatprep.subr.mxu0 %v2142
  %2203 = vmatpush1.msra.mxu0 %v2141
  %2204 = vmatprep.subr.mxu0 %v2145
  %2205 = vmatpush1.msra.mxu0 %v2144
  %2206 = vmatprep.subr.mxu0 %v2148
  %2207 = vmatpush1.msra.mxu0 %v2147
  %2208 = vmatprep.subr.mxu0 %v2151
  %2209 = vmatpush1.msra.mxu0 %v2150
  %2210 = vmatprep.subr.mxu0 %v2154
  %2211 = vmatpush1.msra.mxu0 %v2153
  %2212 = vmatprep.subr.mxu0 %v2157
  %2213 = vmatpush1.msra.mxu0 %v2156
  %2214 = vmatprep.subr.mxu0 %v2160
  %2215 = vmatpush1.msra.mxu0 %v2159
  %2216 = vmatprep.subr.mxu0 %v2163
  %2217 = vmatpush1.msra.mxu0 %v2162
  %2218 = vmatprep.subr.mxu0 %v2166
  %2219 = vmatpush1.msra.mxu0 %v2165
  %2220 = vmatprep.subr.mxu0 %v2169
  %2221 = vmatpush1.msra.mxu0 %v2168
  %2222 = vmatprep.subr.mxu0 %v2172
  %2223 = vmatpush1.msra.mxu0 %v2171
  %2224 = vmatprep.subr.mxu0 %v2175
  %2225 = vmatpush1.msra.mxu0 %v2174
  %2226 = vmatprep.subr.mxu0 0.0
  %2227 = vmatpush1.msra.mxu0 0.0
  %2228 = vmatprep.subr.mxu0 0.0
  %2229 = vmatpush1.msra.mxu0 0.0
  %2230 = vmatprep.subr.mxu0 0.0
  %2231 = vmatpush1.msra.mxu0 0.0
  %2232 = vmatprep.subr.mxu0 0.0
  %2233 = vmatpush1.msra.mxu0 0.0
  %2234 = vmatprep.subr.mxu0 0.0
  %2235 = vmatpush1.msra.mxu0 0.0
  %2236 = vmatprep.subr.mxu0 0.0
  %2237 = vmatpush1.msra.mxu0 0.0
  %2238 = vmatprep.subr.mxu0 0.0
  %2239 = vmatpush1.msra.mxu0 0.0
  %2240 = vmatprep.subr.mxu0 0.0
  %2241 = vmatpush1.msra.mxu0 0.0
  %2242 = vmatprep.subr.mxu0 0.0
  %2243 = vmatpush1.msra.mxu0 0.0
  %2244 = vmatprep.subr.mxu0 0.0
  %2245 = vmatpush1.msra.mxu0 0.0
  %2246 = vmatprep.subr.mxu0 0.0
  %2247 = vmatpush1.msra.mxu0 0.0
  %2248 = vmatprep.subr.mxu0 0.0
  %2249 = vmatpush1.msra.mxu0 0.0
  %2250 = vmatprep.subr.mxu0 0.0
  %2251 = vmatpush1.msra.mxu0 0.0
  %2252 = vmatprep.subr.mxu0 0.0
  %2253 = vmatpush1.msra.mxu0 0.0
  %2254 = vmatprep.subr.mxu0 0.0
  %2255 = vmatpush1.msra.mxu0 0.0
  %2256 = vmatprep.subr.mxu0 0.0
  %2257 = vmatpush1.msra.mxu0 0.0
  %2258 = vmatprep.mubr.f32.mxu0 0.0
  %2259 = vmatmul.mubr.f32.gmra.mrb[0].mxu0 %v2128
  %v2260 = vpop.f32.mrb[0].mxu0
  %v2261 = vadd.f32 %v2182, %v2260
  %v2262 = vpop.f32.mrb[0].mxu0
  %v2263 = vadd.f32 %v2186, %v2262
  %2264 = vdwg.mxu0
  %2265 = vmatprep.subr.mxu0 0.0
  %2266 = vmatpush1.msra.mxu0 %v2131
  %2267 = vmatprep.subr.mxu0 0.0
  %2268 = vmatpush1.msra.mxu0 %v2134
  %2269 = vmatprep.subr.mxu0 0.0
  %2270 = vmatpush1.msra.mxu0 %v2137
  %2271 = vmatprep.subr.mxu0 0.0
  %2272 = vmatpush1.msra.mxu0 %v2140
  %2273 = vmatprep.subr.mxu0 0.0
  %2274 = vmatpush1.msra.mxu0 %v2143
  %2275 = vmatprep.subr.mxu0 0.0
  %2276 = vmatpush1.msra.mxu0 %v2146
  %2277 = vmatprep.subr.mxu0 0.0
  %2278 = vmatpush1.msra.mxu0 %v2149
  %2279 = vmatprep.subr.mxu0 0.0
  %2280 = vmatpush1.msra.mxu0 %v2152
  %2281 = vmatprep.subr.mxu0 0.0
  %2282 = vmatpush1.msra.mxu0 %v2155
  %2283 = vmatprep.subr.mxu0 0.0
  %2284 = vmatpush1.msra.mxu0 %v2158
  %2285 = vmatprep.subr.mxu0 0.0
  %2286 = vmatpush1.msra.mxu0 %v2161
  %2287 = vmatprep.subr.mxu0 0.0
  %2288 = vmatpush1.msra.mxu0 %v2164
  %2289 = vmatprep.subr.mxu0 0.0
  %2290 = vmatpush1.msra.mxu0 %v2167
  %2291 = vmatprep.subr.mxu0 0.0
  %2292 = vmatpush1.msra.mxu0 %v2170
  %2293 = vmatprep.subr.mxu0 0.0
  %2294 = vmatpush1.msra.mxu0 %v2173
  %2295 = vmatprep.subr.mxu0 0.0
  %2296 = vmatpush1.msra.mxu0 %v2176
  %2297 = vmatprep.subr.mxu0 0.0
  %2298 = vmatpush1.msra.mxu0 0.0
  %2299 = vmatprep.subr.mxu0 0.0
  %2300 = vmatpush1.msra.mxu0 0.0
  %2301 = vmatprep.subr.mxu0 0.0
  %2302 = vmatpush1.msra.mxu0 0.0
  %2303 = vmatprep.subr.mxu0 0.0
  %2304 = vmatpush1.msra.mxu0 0.0
  %2305 = vmatprep.subr.mxu0 0.0
  %2306 = vmatpush1.msra.mxu0 0.0
  %2307 = vmatprep.subr.mxu0 0.0
  %2308 = vmatpush1.msra.mxu0 0.0
  %2309 = vmatprep.subr.mxu0 0.0
  %2310 = vmatpush1.msra.mxu0 0.0
  %2311 = vmatprep.subr.mxu0 0.0
  %2312 = vmatpush1.msra.mxu0 0.0
  %2313 = vmatprep.subr.mxu0 0.0
  %2314 = vmatpush1.msra.mxu0 0.0
  %2315 = vmatprep.subr.mxu0 0.0
  %2316 = vmatpush1.msra.mxu0 0.0
  %2317 = vmatprep.subr.mxu0 0.0
  %2318 = vmatpush1.msra.mxu0 0.0
  %2319 = vmatprep.subr.mxu0 0.0
  %2320 = vmatpush1.msra.mxu0 0.0
  %2321 = vmatprep.subr.mxu0 0.0
  %2322 = vmatpush1.msra.mxu0 0.0
  %2323 = vmatprep.subr.mxu0 0.0
  %2324 = vmatpush1.msra.mxu0 0.0
  %2325 = vmatprep.subr.mxu0 0.0
  %2326 = vmatpush1.msra.mxu0 0.0
  %2327 = vmatprep.subr.mxu0 0.0
  %2328 = vmatpush1.msra.mxu0 0.0
  %2329 = vmatprep.mubr.f32.mxu0 0.0
  %2330 = vmatmul.mubr.f32.gmra.mrb[0].mxu0 %v2128
  %v2331 = vpop.f32.mrb[0].mxu0
  %v2332 = vadd.f32 %v2190, %v2331
  %v2333 = vpop.f32.mrb[0].mxu0
  %2334 = vdwg.mxu0
  %s2335 = scalar_lea.vmem %s0, 216
  %v2336 = vld [vmem:[%s2335] sm:$0xff]
  %v2337 = vld [vmem:[%s2335 + $0x8] sm:$0xff]
  %v2338 = vld [vmem:[%s2335 + $0x10] sm:$0xff]
  %v2339 = vadd.f32 %v2336, %v2261
  %v2340 = vxor.u32 %v2339, 2147483648
  %v2341 = vmul.f32 %v2340, 1.442695
  %v2342 = vpow.pop %v2341
  %v2343 = vadd.f32 %v2342, 1.0
  %v2344 = vrcp.pop %v2343
  %v2345 = vmul.f32 1.0, %v2344
  %v2346 = vadd.f32 %v2337, %v2263
  %v2347 = vxor.u32 %v2346, 2147483648
  %v2348 = vmul.f32 %v2347, 1.442695
  %v2349 = vpow.pop %v2348
  %v2350 = vadd.f32 %v2349, 1.0
  %v2351 = vrcp.pop %v2350
  %v2352 = vmul.f32 1.0, %v2351
  %v2353 = vmul.f32 %v2345, %v2332
  %v2354 = vadd.f32 %v2338, %v2353
  %v2355 = vtanh.pop %v2354
  %v2356 = vsub.f32 1.0, %v2352
  %v2357 = vmul.f32 %v2356, %v2355
  %v2358 = vmul.f32 %v2352, %v2128
  %v2359 = vadd.f32 %v2357, %v2358
  %2360 = vst [vmem:[#allocation2] sm:$0xff] %v2359
  %s2361 = scalar_lea.vmem %s3, 72
  %2362 = vst [vmem:[%s2361] sm:$0xff] %v2359
  %v2363 = vld [vmem:[#allocation2] sm:$0xff]
  %v2364 = vld [vmem:[%s1] sm:$0xff]
  %v2365 = vld [vmem:[%s1 + $0x8] sm:$0xff]
  %v2366 = vld [vmem:[%s1 + $0x10] sm:$0xff]
  %v2367 = vld [vmem:[%s1 + $0x18] sm:$0xff]
  %v2368 = vld [vmem:[%s1 + $0x20] sm:$0xff]
  %v2369 = vld [vmem:[%s1 + $0x28] sm:$0xff]
  %v2370 = vld [vmem:[%s1 + $0x30] sm:$0xff]
  %v2371 = vld [vmem:[%s1 + $0x38] sm:$0xff]
  %v2372 = vld [vmem:[%s1 + $0x40] sm:$0xff]
  %v2373 = vld [vmem:[%s1 + $0x48] sm:$0xff]
  %v2374 = vld [vmem:[%s1 + $0x50] sm:$0xff]
  %v2375 = vld [vmem:[%s1 + $0x58] sm:$0xff]
  %v2376 = vld [vmem:[%s1 + $0x60] sm:$0xff]
  %v2377 = vld [vmem:[%s1 + $0x68] sm:$0xff]
  %v2378 = vld [vmem:[%s1 + $0x70] sm:$0xff]
  %v2379 = vld [vmem:[%s1 + $0x78] sm:$0xff]
  %v2380 = vld [vmem:[%s1 + $0x80] sm:$0xff]
  %v2381 = vld [vmem:[%s1 + $0x88] sm:$0xff]
  %v2382 = vld [vmem:[%s1 + $0x90] sm:$0xff]
  %v2383 = vld [vmem:[%s1 + $0x98] sm:$0xff]
  %v2384 = vld [vmem:[%s1 + $0xa0] sm:$0xff]
  %v2385 = vld [vmem:[%s1 + $0xa8] sm:$0xff]
  %v2386 = vld [vmem:[%s1 + $0xb0] sm:$0xff]
  %v2387 = vld [vmem:[%s1 + $0xb8] sm:$0xff]
  %v2388 = vld [vmem:[%s1 + $0xc0] sm:$0xff]
  %v2389 = vld [vmem:[%s1 + $0xc8] sm:$0xff]
  %v2390 = vld [vmem:[%s1 + $0xd0] sm:$0xff]
  %v2391 = vld [vmem:[%s1 + $0xd8] sm:$0xff]
  %v2392 = vld [vmem:[%s1 + $0xe0] sm:$0xff]
  %v2393 = vld [vmem:[%s1 + $0xe8] sm:$0xff]
  %v2394 = vld [vmem:[%s1 + $0xf0] sm:$0xff]
  %v2395 = vld [vmem:[%s1 + $0xf8] sm:$0xff]
  %v2396 = vld [vmem:[%s1 + $0x100] sm:$0xff]
  %v2397 = vld [vmem:[%s1 + $0x108] sm:$0xff]
  %v2398 = vld [vmem:[%s1 + $0x110] sm:$0xff]
  %v2399 = vld [vmem:[%s1 + $0x118] sm:$0xff]
  %v2400 = vld [vmem:[%s1 + $0x120] sm:$0xff]
  %v2401 = vld [vmem:[%s1 + $0x128] sm:$0xff]
  %v2402 = vld [vmem:[%s1 + $0x130] sm:$0xff]
  %v2403 = vld [vmem:[%s1 + $0x138] sm:$0xff]
  %v2404 = vld [vmem:[%s1 + $0x140] sm:$0xff]
  %v2405 = vld [vmem:[%s1 + $0x148] sm:$0xff]
  %v2406 = vld [vmem:[%s1 + $0x150] sm:$0xff]
  %v2407 = vld [vmem:[%s1 + $0x158] sm:$0xff]
  %v2408 = vld [vmem:[%s1 + $0x160] sm:$0xff]
  %v2409 = vld [vmem:[%s1 + $0x168] sm:$0xff]
  %v2410 = vld [vmem:[%s1 + $0x170] sm:$0xff]
  %v2411 = vld [vmem:[%s1 + $0x178] sm:$0xff]
  %v2412 = vld [vmem:[%s2] sm:$0x7]
  %v2414 = vlaneseq
  %v2415 = vshrl.u32 %v2414, 7
  %v2416 = vsub.s32 0, %v2415
  %v2417 = vrot.slane %v2412, %v2416
  %v2418 = vlaneseq
  %v2419 = vshrl.u32 %v2418, 7
  %v2420 = vsub.s32 1, %v2419
  %v2421 = vrot.slane %v2412, %v2420
  %v2422 = vlaneseq
  %v2423 = vshrl.u32 %v2422, 7
  %v2424 = vsub.s32 2, %v2423
  %v2425 = vrot.slane %v2412, %v2424
  %2429 = vmatprep.subr.mxu0 %v2365
  %2430 = vmatpush1.msra.mxu0 %v2364
  %2431 = vmatprep.subr.mxu0 %v2368
  %2432 = vmatpush1.msra.mxu0 %v2367
  %2433 = vmatprep.subr.mxu0 %v2371
  %2434 = vmatpush1.msra.mxu0 %v2370
  %2435 = vmatprep.subr.mxu0 %v2374
  %2436 = vmatpush1.msra.mxu0 %v2373
  %2437 = vmatprep.subr.mxu0 %v2377
  %2438 = vmatpush1.msra.mxu0 %v2376
  %2439 = vmatprep.subr.mxu0 %v2380
  %2440 = vmatpush1.msra.mxu0 %v2379
  %2441 = vmatprep.subr.mxu0 %v2383
  %2442 = vmatpush1.msra.mxu0 %v2382
  %2443 = vmatprep.subr.mxu0 %v2386
  %2444 = vmatpush1.msra.mxu0 %v2385
  %2445 = vmatprep.subr.mxu0 %v2389
  %2446 = vmatpush1.msra.mxu0 %v2388
  %2447 = vmatprep.subr.mxu0 %v2392
  %2448 = vmatpush1.msra.mxu0 %v2391
  %2449 = vmatprep.subr.mxu0 %v2395
  %2450 = vmatpush1.msra.mxu0 %v2394
  %2451 = vmatprep.subr.mxu0 %v2398
  %2452 = vmatpush1.msra.mxu0 %v2397
  %2453 = vmatprep.subr.mxu0 %v2401
  %2454 = vmatpush1.msra.mxu0 %v2400
  %2455 = vmatprep.subr.mxu0 %v2404
  %2456 = vmatpush1.msra.mxu0 %v2403
  %2457 = vmatprep.subr.mxu0 %v2407
  %2458 = vmatpush1.msra.mxu0 %v2406
  %2459 = vmatprep.subr.mxu0 %v2410
  %2460 = vmatpush1.msra.mxu0 %v2409
  %2461 = vmatprep.subr.mxu0 0.0
  %2462 = vmatpush1.msra.mxu0 0.0
  %2463 = vmatprep.subr.mxu0 0.0
  %2464 = vmatpush1.msra.mxu0 0.0
  %2465 = vmatprep.subr.mxu0 0.0
  %2466 = vmatpush1.msra.mxu0 0.0
  %2467 = vmatprep.subr.mxu0 0.0
  %2468 = vmatpush1.msra.mxu0 0.0
  %2469 = vmatprep.subr.mxu0 0.0
  %2470 = vmatpush1.msra.mxu0 0.0
  %2471 = vmatprep.subr.mxu0 0.0
  %2472 = vmatpush1.msra.mxu0 0.0
  %2473 = vmatprep.subr.mxu0 0.0
  %2474 = vmatpush1.msra.mxu0 0.0
  %2475 = vmatprep.subr.mxu0 0.0
  %2476 = vmatpush1.msra.mxu0 0.0
  %2477 = vmatprep.subr.mxu0 0.0
  %2478 = vmatpush1.msra.mxu0 0.0
  %2479 = vmatprep.subr.mxu0 0.0
  %2480 = vmatpush1.msra.mxu0 0.0
  %2481 = vmatprep.subr.mxu0 0.0
  %2482 = vmatpush1.msra.mxu0 0.0
  %2483 = vmatprep.subr.mxu0 0.0
  %2484 = vmatpush1.msra.mxu0 0.0
  %2485 = vmatprep.subr.mxu0 0.0
  %2486 = vmatpush1.msra.mxu0 0.0
  %2487 = vmatprep.subr.mxu0 0.0
  %2488 = vmatpush1.msra.mxu0 0.0
  %2489 = vmatprep.subr.mxu0 0.0
  %2490 = vmatpush1.msra.mxu0 0.0
  %2491 = vmatprep.subr.mxu0 0.0
  %2492 = vmatpush1.msra.mxu0 0.0
  %2493 = vmatprep.mubr.f32.mxu0 0.0
  %2494 = vmatmul.mubr.f32.gmra.mrb[0].mxu0 %v2363
  %v2495 = vpop.f32.mrb[0].mxu0
  %v2496 = vadd.f32 %v2417, %v2495
  %v2497 = vpop.f32.mrb[0].mxu0
  %v2498 = vadd.f32 %v2421, %v2497
  %2499 = vdwg.mxu0
  %2500 = vmatprep.subr.mxu0 0.0
  %2501 = vmatpush1.msra.mxu0 %v2366
  %2502 = vmatprep.subr.mxu0 0.0
  %2503 = vmatpush1.msra.mxu0 %v2369
  %2504 = vmatprep.subr.mxu0 0.0
  %2505 = vmatpush1.msra.mxu0 %v2372
  %2506 = vmatprep.subr.mxu0 0.0
  %2507 = vmatpush1.msra.mxu0 %v2375
  %2508 = vmatprep.subr.mxu0 0.0
  %2509 = vmatpush1.msra.mxu0 %v2378
  %2510 = vmatprep.subr.mxu0 0.0
  %2511 = vmatpush1.msra.mxu0 %v2381
  %2512 = vmatprep.subr.mxu0 0.0
  %2513 = vmatpush1.msra.mxu0 %v2384
  %2514 = vmatprep.subr.mxu0 0.0
  %2515 = vmatpush1.msra.mxu0 %v2387
  %2516 = vmatprep.subr.mxu0 0.0
  %2517 = vmatpush1.msra.mxu0 %v2390
  %2518 = vmatprep.subr.mxu0 0.0
  %2519 = vmatpush1.msra.mxu0 %v2393
  %2520 = vmatprep.subr.mxu0 0.0
  %2521 = vmatpush1.msra.mxu0 %v2396
  %2522 = vmatprep.subr.mxu0 0.0
  %2523 = vmatpush1.msra.mxu0 %v2399
  %2524 = vmatprep.subr.mxu0 0.0
  %2525 = vmatpush1.msra.mxu0 %v2402
  %2526 = vmatprep.subr.mxu0 0.0
  %2527 = vmatpush1.msra.mxu0 %v2405
  %2528 = vmatprep.subr.mxu0 0.0
  %2529 = vmatpush1.msra.mxu0 %v2408
  %2530 = vmatprep.subr.mxu0 0.0
  %2531 = vmatpush1.msra.mxu0 %v2411
  %2532 = vmatprep.subr.mxu0 0.0
  %2533 = vmatpush1.msra.mxu0 0.0
  %2534 = vmatprep.subr.mxu0 0.0
  %2535 = vmatpush1.msra.mxu0 0.0
  %2536 = vmatprep.subr.mxu0 0.0
  %2537 = vmatpush1.msra.mxu0 0.0
  %2538 = vmatprep.subr.mxu0 0.0
  %2539 = vmatpush1.msra.mxu0 0.0
  %2540 = vmatprep.subr.mxu0 0.0
  %2541 = vmatpush1.msra.mxu0 0.0
  %2542 = vmatprep.subr.mxu0 0.0
  %2543 = vmatpush1.msra.mxu0 0.0
  %2544 = vmatprep.subr.mxu0 0.0
  %2545 = vmatpush1.msra.mxu0 0.0
  %2546 = vmatprep.subr.mxu0 0.0
  %2547 = vmatpush1.msra.mxu0 0.0
  %2548 = vmatprep.subr.mxu0 0.0
  %2549 = vmatpush1.msra.mxu0 0.0
  %2550 = vmatprep.subr.mxu0 0.0
  %2551 = vmatpush1.msra.mxu0 0.0
  %2552 = vmatprep.subr.mxu0 0.0
  %2553 = vmatpush1.msra.mxu0 0.0
  %2554 = vmatprep.subr.mxu0 0.0
  %2555 = vmatpush1.msra.mxu0 0.0
  %2556 = vmatprep.subr.mxu0 0.0
  %2557 = vmatpush1.msra.mxu0 0.0
  %2558 = vmatprep.subr.mxu0 0.0
  %2559 = vmatpush1.msra.mxu0 0.0
  %2560 = vmatprep.subr.mxu0 0.0
  %2561 = vmatpush1.msra.mxu0 0.0
  %2562 = vmatprep.subr.mxu0 0.0
  %2563 = vmatpush1.msra.mxu0 0.0
  %2564 = vmatprep.mubr.f32.mxu0 0.0
  %2565 = vmatmul.mubr.f32.gmra.mrb[0].mxu0 %v2363
  %v2566 = vpop.f32.mrb[0].mxu0
  %v2567 = vadd.f32 %v2425, %v2566
  %v2568 = vpop.f32.mrb[0].mxu0
  %2569 = vdwg.mxu0
  %s2570 = scalar_lea.vmem %s0, 240
  %v2571 = vld [vmem:[%s2570] sm:$0xff]
  %v2572 = vld [vmem:[%s2570 + $0x8] sm:$0xff]
  %v2573 = vld [vmem:[%s2570 + $0x10] sm:$0xff]
  %v2574 = vadd.f32 %v2571, %v2496
  %v2575 = vxor.u32 %v2574, 2147483648
  %v2576 = vmul.f32 %v2575, 1.442695
  %v2577 = vpow.pop %v2576
  %v2578 = vadd.f32 %v2577, 1.0
  %v2579 = vrcp.pop %v2578
  %v2580 = vmul.f32 1.0, %v2579
  %v2581 = vadd.f32 %v2572, %v2498
  %v2582 = vxor.u32 %v2581, 2147483648
  %v2583 = vmul.f32 %v2582, 1.442695
  %v2584 = vpow.pop %v2583
  %v2585 = vadd.f32 %v2584, 1.0
  %v2586 = vrcp.pop %v2585
  %v2587 = vmul.f32 1.0, %v2586
  %v2588 = vmul.f32 %v2580, %v2567
  %v2589 = vadd.f32 %v2573, %v2588
  %v2590 = vtanh.pop %v2589
  %v2591 = vsub.f32 1.0, %v2587
  %v2592 = vmul.f32 %v2591, %v2590
  %v2593 = vmul.f32 %v2587, %v2363
  %v2594 = vadd.f32 %v2592, %v2593
  %2595 = vst [vmem:[#allocation2] sm:$0xff] %v2594
  %s2596 = scalar_lea.vmem %s3, 80
  %2597 = vst [vmem:[%s2596] sm:$0xff] %v2594
  %v2598 = vld [vmem:[#allocation2] sm:$0xff]
  %v2599 = vld [vmem:[%s1] sm:$0xff]
  %v2600 = vld [vmem:[%s1 + $0x8] sm:$0xff]
  %v2601 = vld [vmem:[%s1 + $0x10] sm:$0xff]
  %v2602 = vld [vmem:[%s1 + $0x18] sm:$0xff]
  %v2603 = vld [vmem:[%s1 + $0x20] sm:$0xff]
  %v2604 = vld [vmem:[%s1 + $0x28] sm:$0xff]
  %v2605 = vld [vmem:[%s1 + $0x30] sm:$0xff]
  %v2606 = vld [vmem:[%s1 + $0x38] sm:$0xff]
  %v2607 = vld [vmem:[%s1 + $0x40] sm:$0xff]
  %v2608 = vld [vmem:[%s1 + $0x48] sm:$0xff]
  %v2609 = vld [vmem:[%s1 + $0x50] sm:$0xff]
  %v2610 = vld [vmem:[%s1 + $0x58] sm:$0xff]
  %v2611 = vld [vmem:[%s1 + $0x60] sm:$0xff]
  %v2612 = vld [vmem:[%s1 + $0x68] sm:$0xff]
  %v2613 = vld [vmem:[%s1 + $0x70] sm:$0xff]
  %v2614 = vld [vmem:[%s1 + $0x78] sm:$0xff]
  %v2615 = vld [vmem:[%s1 + $0x80] sm:$0xff]
  %v2616 = vld [vmem:[%s1 + $0x88] sm:$0xff]
  %v2617 = vld [vmem:[%s1 + $0x90] sm:$0xff]
  %v2618 = vld [vmem:[%s1 + $0x98] sm:$0xff]
  %v2619 = vld [vmem:[%s1 + $0xa0] sm:$0xff]
  %v2620 = vld [vmem:[%s1 + $0xa8] sm:$0xff]
  %v2621 = vld [vmem:[%s1 + $0xb0] sm:$0xff]
  %v2622 = vld [vmem:[%s1 + $0xb8] sm:$0xff]
  %v2623 = vld [vmem:[%s1 + $0xc0] sm:$0xff]
  %v2624 = vld [vmem:[%s1 + $0xc8] sm:$0xff]
  %v2625 = vld [vmem:[%s1 + $0xd0] sm:$0xff]
  %v2626 = vld [vmem:[%s1 + $0xd8] sm:$0xff]
  %v2627 = vld [vmem:[%s1 + $0xe0] sm:$0xff]
  %v2628 = vld [vmem:[%s1 + $0xe8] sm:$0xff]
  %v2629 = vld [vmem:[%s1 + $0xf0] sm:$0xff]
  %v2630 = vld [vmem:[%s1 + $0xf8] sm:$0xff]
  %v2631 = vld [vmem:[%s1 + $0x100] sm:$0xff]
  %v2632 = vld [vmem:[%s1 + $0x108] sm:$0xff]
  %v2633 = vld [vmem:[%s1 + $0x110] sm:$0xff]
  %v2634 = vld [vmem:[%s1 + $0x118] sm:$0xff]
  %v2635 = vld [vmem:[%s1 + $0x120] sm:$0xff]
  %v2636 = vld [vmem:[%s1 + $0x128] sm:$0xff]
  %v2637 = vld [vmem:[%s1 + $0x130] sm:$0xff]
  %v2638 = vld [vmem:[%s1 + $0x138] sm:$0xff]
  %v2639 = vld [vmem:[%s1 + $0x140] sm:$0xff]
  %v2640 = vld [vmem:[%s1 + $0x148] sm:$0xff]
  %v2641 = vld [vmem:[%s1 + $0x150] sm:$0xff]
  %v2642 = vld [vmem:[%s1 + $0x158] sm:$0xff]
  %v2643 = vld [vmem:[%s1 + $0x160] sm:$0xff]
  %v2644 = vld [vmem:[%s1 + $0x168] sm:$0xff]
  %v2645 = vld [vmem:[%s1 + $0x170] sm:$0xff]
  %v2646 = vld [vmem:[%s1 + $0x178] sm:$0xff]
  %v2647 = vld [vmem:[%s2] sm:$0x7]
  %v2649 = vlaneseq
  %v2650 = vshrl.u32 %v2649, 7
  %v2651 = vsub.s32 0, %v2650
  %v2652 = vrot.slane %v2647, %v2651
  %v2653 = vlaneseq
  %v2654 = vshrl.u32 %v2653, 7
  %v2655 = vsub.s32 1, %v2654
  %v2656 = vrot.slane %v2647, %v2655
  %v2657 = vlaneseq
  %v2658 = vshrl.u32 %v2657, 7
  %v2659 = vsub.s32 2, %v2658
  %v2660 = vrot.slane %v2647, %v2659
  %2664 = vmatprep.subr.mxu0 %v2600
  %2665 = vmatpush1.msra.mxu0 %v2599
  %2666 = vmatprep.subr.mxu0 %v2603
  %2667 = vmatpush1.msra.mxu0 %v2602
  %2668 = vmatprep.subr.mxu0 %v2606
  %2669 = vmatpush1.msra.mxu0 %v2605
  %2670 = vmatprep.subr.mxu0 %v2609
  %2671 = vmatpush1.msra.mxu0 %v2608
  %2672 = vmatprep.subr.mxu0 %v2612
  %2673 = vmatpush1.msra.mxu0 %v2611
  %2674 = vmatprep.subr.mxu0 %v2615
  %2675 = vmatpush1.msra.mxu0 %v2614
  %2676 = vmatprep.subr.mxu0 %v2618
  %2677 = vmatpush1.msra.mxu0 %v2617
  %2678 = vmatprep.subr.mxu0 %v2621
  %2679 = vmatpush1.msra.mxu0 %v2620
  %2680 = vmatprep.subr.mxu0 %v2624
  %2681 = vmatpush1.msra.mxu0 %v2623
  %2682 = vmatprep.subr.mxu0 %v2627
  %2683 = vmatpush1.msra.mxu0 %v2626
  %2684 = vmatprep.subr.mxu0 %v2630
  %2685 = vmatpush1.msra.mxu0 %v2629
  %2686 = vmatprep.subr.mxu0 %v2633
  %2687 = vmatpush1.msra.mxu0 %v2632
  %2688 = vmatprep.subr.mxu0 %v2636
  %2689 = vmatpush1.msra.mxu0 %v2635
  %2690 = vmatprep.subr.mxu0 %v2639
  %2691 = vmatpush1.msra.mxu0 %v2638
  %2692 = vmatprep.subr.mxu0 %v2642
  %2693 = vmatpush1.msra.mxu0 %v2641
  %2694 = vmatprep.subr.mxu0 %v2645
  %2695 = vmatpush1.msra.mxu0 %v2644
  %2696 = vmatprep.subr.mxu0 0.0
  %2697 = vmatpush1.msra.mxu0 0.0
  %2698 = vmatprep.subr.mxu0 0.0
  %2699 = vmatpush1.msra.mxu0 0.0
  %2700 = vmatprep.subr.mxu0 0.0
  %2701 = vmatpush1.msra.mxu0 0.0
  %2702 = vmatprep.subr.mxu0 0.0
  %2703 = vmatpush1.msra.mxu0 0.0
  %2704 = vmatprep.subr.mxu0 0.0
  %2705 = vmatpush1.msra.mxu0 0.0
  %2706 = vmatprep.subr.mxu0 0.0
  %2707 = vmatpush1.msra.mxu0 0.0
  %2708 = vmatprep.subr.mxu0 0.0
  %2709 = vmatpush1.msra.mxu0 0.0
  %2710 = vmatprep.subr.mxu0 0.0
  %2711 = vmatpush1.msra.mxu0 0.0
  %2712 = vmatprep.subr.mxu0 0.0
  %2713 = vmatpush1.msra.mxu0 0.0
  %2714 = vmatprep.subr.mxu0 0.0
  %2715 = vmatpush1.msra.mxu0 0.0
  %2716 = vmatprep.subr.mxu0 0.0
  %2717 = vmatpush1.msra.mxu0 0.0
  %2718 = vmatprep.subr.mxu0 0.0
  %2719 = vmatpush1.msra.mxu0 0.0
  %2720 = vmatprep.subr.mxu0 0.0
  %2721 = vmatpush1.msra.mxu0 0.0
  %2722 = vmatprep.subr.mxu0 0.0
  %2723 = vmatpush1.msra.mxu0 0.0
  %2724 = vmatprep.subr.mxu0 0.0
  %2725 = vmatpush1.msra.mxu0 0.0
  %2726 = vmatprep.subr.mxu0 0.0
  %2727 = vmatpush1.msra.mxu0 0.0
  %2728 = vmatprep.mubr.f32.mxu0 0.0
  %2729 = vmatmul.mubr.f32.gmra.mrb[0].mxu0 %v2598
  %v2730 = vpop.f32.mrb[0].mxu0
  %v2731 = vadd.f32 %v2652, %v2730
  %v2732 = vpop.f32.mrb[0].mxu0
  %v2733 = vadd.f32 %v2656, %v2732
  %2734 = vdwg.mxu0
  %2735 = vmatprep.subr.mxu0 0.0
  %2736 = vmatpush1.msra.mxu0 %v2601
  %2737 = vmatprep.subr.mxu0 0.0
  %2738 = vmatpush1.msra.mxu0 %v2604
  %2739 = vmatprep.subr.mxu0 0.0
  %2740 = vmatpush1.msra.mxu0 %v2607
  %2741 = vmatprep.subr.mxu0 0.0
  %2742 = vmatpush1.msra.mxu0 %v2610
  %2743 = vmatprep.subr.mxu0 0.0
  %2744 = vmatpush1.msra.mxu0 %v2613
  %2745 = vmatprep.subr.mxu0 0.0
  %2746 = vmatpush1.msra.mxu0 %v2616
  %2747 = vmatprep.subr.mxu0 0.0
  %2748 = vmatpush1.msra.mxu0 %v2619
  %2749 = vmatprep.subr.mxu0 0.0
  %2750 = vmatpush1.msra.mxu0 %v2622
  %2751 = vmatprep.subr.mxu0 0.0
  %2752 = vmatpush1.msra.mxu0 %v2625
  %2753 = vmatprep.subr.mxu0 0.0
  %2754 = vmatpush1.msra.mxu0 %v2628
  %2755 = vmatprep.subr.mxu0 0.0
  %2756 = vmatpush1.msra.mxu0 %v2631
  %2757 = vmatprep.subr.mxu0 0.0
  %2758 = vmatpush1.msra.mxu0 %v2634
  %2759 = vmatprep.subr.mxu0 0.0
  %2760 = vmatpush1.msra.mxu0 %v2637
  %2761 = vmatprep.subr.mxu0 0.0
  %2762 = vmatpush1.msra.mxu0 %v2640
  %2763 = vmatprep.subr.mxu0 0.0
  %2764 = vmatpush1.msra.mxu0 %v2643
  %2765 = vmatprep.subr.mxu0 0.0
  %2766 = vmatpush1.msra.mxu0 %v2646
  %2767 = vmatprep.subr.mxu0 0.0
  %2768 = vmatpush1.msra.mxu0 0.0
  %2769 = vmatprep.subr.mxu0 0.0
  %2770 = vmatpush1.msra.mxu0 0.0
  %2771 = vmatprep.subr.mxu0 0.0
  %2772 = vmatpush1.msra.mxu0 0.0
  %2773 = vmatprep.subr.mxu0 0.0
  %2774 = vmatpush1.msra.mxu0 0.0
  %2775 = vmatprep.subr.mxu0 0.0
  %2776 = vmatpush1.msra.mxu0 0.0
  %2777 = vmatprep.subr.mxu0 0.0
  %2778 = vmatpush1.msra.mxu0 0.0
  %2779 = vmatprep.subr.mxu0 0.0
  %2780 = vmatpush1.msra.mxu0 0.0
  %2781 = vmatprep.subr.mxu0 0.0
  %2782 = vmatpush1.msra.mxu0 0.0
  %2783 = vmatprep.subr.mxu0 0.0
  %2784 = vmatpush1.msra.mxu0 0.0
  %2785 = vmatprep.subr.mxu0 0.0
  %2786 = vmatpush1.msra.mxu0 0.0
  %2787 = vmatprep.subr.mxu0 0.0
  %2788 = vmatpush1.msra.mxu0 0.0
  %2789 = vmatprep.subr.mxu0 0.0
  %2790 = vmatpush1.msra.mxu0 0.0
  %2791 = vmatprep.subr.mxu0 0.0
  %2792 = vmatpush1.msra.mxu0 0.0
  %2793 = vmatprep.subr.mxu0 0.0
  %2794 = vmatpush1.msra.mxu0 0.0
  %2795 = vmatprep.subr.mxu0 0.0
  %2796 = vmatpush1.msra.mxu0 0.0
  %2797 = vmatprep.subr.mxu0 0.0
  %2798 = vmatpush1.msra.mxu0 0.0
  %2799 = vmatprep.mubr.f32.mxu0 0.0
  %2800 = vmatmul.mubr.f32.gmra.mrb[0].mxu0 %v2598
  %v2801 = vpop.f32.mrb[0].mxu0
  %v2802 = vadd.f32 %v2660, %v2801
  %v2803 = vpop.f32.mrb[0].mxu0
  %2804 = vdwg.mxu0
  %s2805 = scalar_lea.vmem %s0, 264
  %v2806 = vld [vmem:[%s2805] sm:$0xff]
  %v2807 = vld [vmem:[%s2805 + $0x8] sm:$0xff]
  %v2808 = vld [vmem:[%s2805 + $0x10] sm:$0xff]
  %v2809 = vadd.f32 %v2806, %v2731
  %v2810 = vxor.u32 %v2809, 2147483648
  %v2811 = vmul.f32 %v2810, 1.442695
  %v2812 = vpow.pop %v2811
  %v2813 = vadd.f32 %v2812, 1.0
  %v2814 = vrcp.pop %v2813
  %v2815 = vmul.f32 1.0, %v2814
  %v2816 = vadd.f32 %v2807, %v2733
  %v2817 = vxor.u32 %v2816, 2147483648
  %v2818 = vmul.f32 %v2817, 1.442695
  %v2819 = vpow.pop %v2818
  %v2820 = vadd.f32 %v2819, 1.0
  %v2821 = vrcp.pop %v2820
  %v2822 = vmul.f32 1.0, %v2821
  %v2823 = vmul.f32 %v2815, %v2802
  %v2824 = vadd.f32 %v2808, %v2823
  %v2825 = vtanh.pop %v2824
  %v2826 = vsub.f32 1.0, %v2822
  %v2827 = vmul.f32 %v2826, %v2825
  %v2828 = vmul.f32 %v2822, %v2598
  %v2829 = vadd.f32 %v2827, %v2828
  %2830 = vst [vmem:[#allocation2] sm:$0xff] %v2829
  %s2831 = scalar_lea.vmem %s3, 88
  %2832 = vst [vmem:[%s2831] sm:$0xff] %v2829
  %v2833 = vld [vmem:[#allocation2] sm:$0xff]
  %v2834 = vld [vmem:[%s1] sm:$0xff]
  %v2835 = vld [vmem:[%s1 + $0x8] sm:$0xff]
  %v2836 = vld [vmem:[%s1 + $0x10] sm:$0xff]
  %v2837 = vld [vmem:[%s1 + $0x18] sm:$0xff]
  %v2838 = vld [vmem:[%s1 + $0x20] sm:$0xff]
  %v2839 = vld [vmem:[%s1 + $0x28] sm:$0xff]
  %v2840 = vld [vmem:[%s1 + $0x30] sm:$0xff]
  %v2841 = vld [vmem:[%s1 + $0x38] sm:$0xff]
  %v2842 = vld [vmem:[%s1 + $0x40] sm:$0xff]
  %v2843 = vld [vmem:[%s1 + $0x48] sm:$0xff]
  %v2844 = vld [vmem:[%s1 + $0x50] sm:$0xff]
  %v2845 = vld [vmem:[%s1 + $0x58] sm:$0xff]
  %v2846 = vld [vmem:[%s1 + $0x60] sm:$0xff]
  %v2847 = vld [vmem:[%s1 + $0x68] sm:$0xff]
  %v2848 = vld [vmem:[%s1 + $0x70] sm:$0xff]
  %v2849 = vld [vmem:[%s1 + $0x78] sm:$0xff]
  %v2850 = vld [vmem:[%s1 + $0x80] sm:$0xff]
  %v2851 = vld [vmem:[%s1 + $0x88] sm:$0xff]
  %v2852 = vld [vmem:[%s1 + $0x90] sm:$0xff]
  %v2853 = vld [vmem:[%s1 + $0x98] sm:$0xff]
  %v2854 = vld [vmem:[%s1 + $0xa0] sm:$0xff]
  %v2855 = vld [vmem:[%s1 + $0xa8] sm:$0xff]
  %v2856 = vld [vmem:[%s1 + $0xb0] sm:$0xff]
  %v2857 = vld [vmem:[%s1 + $0xb8] sm:$0xff]
  %v2858 = vld [vmem:[%s1 + $0xc0] sm:$0xff]
  %v2859 = vld [vmem:[%s1 + $0xc8] sm:$0xff]
  %v2860 = vld [vmem:[%s1 + $0xd0] sm:$0xff]
  %v2861 = vld [vmem:[%s1 + $0xd8] sm:$0xff]
  %v2862 = vld [vmem:[%s1 + $0xe0] sm:$0xff]
  %v2863 = vld [vmem:[%s1 + $0xe8] sm:$0xff]
  %v2864 = vld [vmem:[%s1 + $0xf0] sm:$0xff]
  %v2865 = vld [vmem:[%s1 + $0xf8] sm:$0xff]
  %v2866 = vld [vmem:[%s1 + $0x100] sm:$0xff]
  %v2867 = vld [vmem:[%s1 + $0x108] sm:$0xff]
  %v2868 = vld [vmem:[%s1 + $0x110] sm:$0xff]
  %v2869 = vld [vmem:[%s1 + $0x118] sm:$0xff]
  %v2870 = vld [vmem:[%s1 + $0x120] sm:$0xff]
  %v2871 = vld [vmem:[%s1 + $0x128] sm:$0xff]
  %v2872 = vld [vmem:[%s1 + $0x130] sm:$0xff]
  %v2873 = vld [vmem:[%s1 + $0x138] sm:$0xff]
  %v2874 = vld [vmem:[%s1 + $0x140] sm:$0xff]
  %v2875 = vld [vmem:[%s1 + $0x148] sm:$0xff]
  %v2876 = vld [vmem:[%s1 + $0x150] sm:$0xff]
  %v2877 = vld [vmem:[%s1 + $0x158] sm:$0xff]
  %v2878 = vld [vmem:[%s1 + $0x160] sm:$0xff]
  %v2879 = vld [vmem:[%s1 + $0x168] sm:$0xff]
  %v2880 = vld [vmem:[%s1 + $0x170] sm:$0xff]
  %v2881 = vld [vmem:[%s1 + $0x178] sm:$0xff]
  %v2882 = vld [vmem:[%s2] sm:$0x7]
  %v2884 = vlaneseq
  %v2885 = vshrl.u32 %v2884, 7
  %v2886 = vsub.s32 0, %v2885
  %v2887 = vrot.slane %v2882, %v2886
  %v2888 = vlaneseq
  %v2889 = vshrl.u32 %v2888, 7
  %v2890 = vsub.s32 1, %v2889
  %v2891 = vrot.slane %v2882, %v2890
  %v2892 = vlaneseq
  %v2893 = vshrl.u32 %v2892, 7
  %v2894 = vsub.s32 2, %v2893
  %v2895 = vrot.slane %v2882, %v2894
  %2899 = vmatprep.subr.mxu0 %v2835
  %2900 = vmatpush1.msra.mxu0 %v2834
  %2901 = vmatprep.subr.mxu0 %v2838
  %2902 = vmatpush1.msra.mxu0 %v2837
  %2903 = vmatprep.subr.mxu0 %v2841
  %2904 = vmatpush1.msra.mxu0 %v2840
  %2905 = vmatprep.subr.mxu0 %v2844
  %2906 = vmatpush1.msra.mxu0 %v2843
  %2907 = vmatprep.subr.mxu0 %v2847
  %2908 = vmatpush1.msra.mxu0 %v2846
  %2909 = vmatprep.subr.mxu0 %v2850
  %2910 = vmatpush1.msra.mxu0 %v2849
  %2911 = vmatprep.subr.mxu0 %v2853
  %2912 = vmatpush1.msra.mxu0 %v2852
  %2913 = vmatprep.subr.mxu0 %v2856
  %2914 = vmatpush1.msra.mxu0 %v2855
  %2915 = vmatprep.subr.mxu0 %v2859
  %2916 = vmatpush1.msra.mxu0 %v2858
  %2917 = vmatprep.subr.mxu0 %v2862
  %2918 = vmatpush1.msra.mxu0 %v2861
  %2919 = vmatprep.subr.mxu0 %v2865
  %2920 = vmatpush1.msra.mxu0 %v2864
  %2921 = vmatprep.subr.mxu0 %v2868
  %2922 = vmatpush1.msra.mxu0 %v2867
  %2923 = vmatprep.subr.mxu0 %v2871
  %2924 = vmatpush1.msra.mxu0 %v2870
  %2925 = vmatprep.subr.mxu0 %v2874
  %2926 = vmatpush1.msra.mxu0 %v2873
  %2927 = vmatprep.subr.mxu0 %v2877
  %2928 = vmatpush1.msra.mxu0 %v2876
  %2929 = vmatprep.subr.mxu0 %v2880
  %2930 = vmatpush1.msra.mxu0 %v2879
  %2931 = vmatprep.subr.mxu0 0.0
  %2932 = vmatpush1.msra.mxu0 0.0
  %2933 = vmatprep.subr.mxu0 0.0
  %2934 = vmatpush1.msra.mxu0 0.0
  %2935 = vmatprep.subr.mxu0 0.0
  %2936 = vmatpush1.msra.mxu0 0.0
  %2937 = vmatprep.subr.mxu0 0.0
  %2938 = vmatpush1.msra.mxu0 0.0
  %2939 = vmatprep.subr.mxu0 0.0
  %2940 = vmatpush1.msra.mxu0 0.0
  %2941 = vmatprep.subr.mxu0 0.0
  %2942 = vmatpush1.msra.mxu0 0.0
  %2943 = vmatprep.subr.mxu0 0.0
  %2944 = vmatpush1.msra.mxu0 0.0
  %2945 = vmatprep.subr.mxu0 0.0
  %2946 = vmatpush1.msra.mxu0 0.0
  %2947 = vmatprep.subr.mxu0 0.0
  %2948 = vmatpush1.msra.mxu0 0.0
  %2949 = vmatprep.subr.mxu0 0.0
  %2950 = vmatpush1.msra.mxu0 0.0
  %2951 = vmatprep.subr.mxu0 0.0
  %2952 = vmatpush1.msra.mxu0 0.0
  %2953 = vmatprep.subr.mxu0 0.0
  %2954 = vmatpush1.msra.mxu0 0.0
  %2955 = vmatprep.subr.mxu0 0.0
  %2956 = vmatpush1.msra.mxu0 0.0
  %2957 = vmatprep.subr.mxu0 0.0
  %2958 = vmatpush1.msra.mxu0 0.0
  %2959 = vmatprep.subr.mxu0 0.0
  %2960 = vmatpush1.msra.mxu0 0.0
  %2961 = vmatprep.subr.mxu0 0.0
  %2962 = vmatpush1.msra.mxu0 0.0
  %2963 = vmatprep.mubr.f32.mxu0 0.0
  %2964 = vmatmul.mubr.f32.gmra.mrb[0].mxu0 %v2833
  %v2965 = vpop.f32.mrb[0].mxu0
  %v2966 = vadd.f32 %v2887, %v2965
  %v2967 = vpop.f32.mrb[0].mxu0
  %v2968 = vadd.f32 %v2891, %v2967
  %2969 = vdwg.mxu0
  %2970 = vmatprep.subr.mxu0 0.0
  %2971 = vmatpush1.msra.mxu0 %v2836
  %2972 = vmatprep.subr.mxu0 0.0
  %2973 = vmatpush1.msra.mxu0 %v2839
  %2974 = vmatprep.subr.mxu0 0.0
  %2975 = vmatpush1.msra.mxu0 %v2842
  %2976 = vmatprep.subr.mxu0 0.0
  %2977 = vmatpush1.msra.mxu0 %v2845
  %2978 = vmatprep.subr.mxu0 0.0
  %2979 = vmatpush1.msra.mxu0 %v2848
  %2980 = vmatprep.subr.mxu0 0.0
  %2981 = vmatpush1.msra.mxu0 %v2851
  %2982 = vmatprep.subr.mxu0 0.0
  %2983 = vmatpush1.msra.mxu0 %v2854
  %2984 = vmatprep.subr.mxu0 0.0
  %2985 = vmatpush1.msra.mxu0 %v2857
  %2986 = vmatprep.subr.mxu0 0.0
  %2987 = vmatpush1.msra.mxu0 %v2860
  %2988 = vmatprep.subr.mxu0 0.0
  %2989 = vmatpush1.msra.mxu0 %v2863
  %2990 = vmatprep.subr.mxu0 0.0
  %2991 = vmatpush1.msra.mxu0 %v2866
  %2992 = vmatprep.subr.mxu0 0.0
  %2993 = vmatpush1.msra.mxu0 %v2869
  %2994 = vmatprep.subr.mxu0 0.0
  %2995 = vmatpush1.msra.mxu0 %v2872
  %2996 = vmatprep.subr.mxu0 0.0
  %2997 = vmatpush1.msra.mxu0 %v2875
  %2998 = vmatprep.subr.mxu0 0.0
  %2999 = vmatpush1.msra.mxu0 %v2878
  %3000 = vmatprep.subr.mxu0 0.0
  %3001 = vmatpush1.msra.mxu0 %v2881
  %3002 = vmatprep.subr.mxu0 0.0
  %3003 = vmatpush1.msra.mxu0 0.0
  %3004 = vmatprep.subr.mxu0 0.0
  %3005 = vmatpush1.msra.mxu0 0.0
  %3006 = vmatprep.subr.mxu0 0.0
  %3007 = vmatpush1.msra.mxu0 0.0
  %3008 = vmatprep.subr.mxu0 0.0
  %3009 = vmatpush1.msra.mxu0 0.0
  %3010 = vmatprep.subr.mxu0 0.0
  %3011 = vmatpush1.msra.mxu0 0.0
  %3012 = vmatprep.subr.mxu0 0.0
  %3013 = vmatpush1.msra.mxu0 0.0
  %3014 = vmatprep.subr.mxu0 0.0
  %3015 = vmatpush1.msra.mxu0 0.0
  %3016 = vmatprep.subr.mxu0 0.0
  %3017 = vmatpush1.msra.mxu0 0.0
  %3018 = vmatprep.subr.mxu0 0.0
  %3019 = vmatpush1.msra.mxu0 0.0
  %3020 = vmatprep.subr.mxu0 0.0
  %3021 = vmatpush1.msra.mxu0 0.0
  %3022 = vmatprep.subr.mxu0 0.0
  %3023 = vmatpush1.msra.mxu0 0.0
  %3024 = vmatprep.subr.mxu0 0.0
  %3025 = vmatpush1.msra.mxu0 0.0
  %3026 = vmatprep.subr.mxu0 0.0
  %3027 = vmatpush1.msra.mxu0 0.0
  %3028 = vmatprep.subr.mxu0 0.0
  %3029 = vmatpush1.msra.mxu0 0.0
  %3030 = vmatprep.subr.mxu0 0.0
  %3031 = vmatpush1.msra.mxu0 0.0
  %3032 = vmatprep.subr.mxu0 0.0
  %3033 = vmatpush1.msra.mxu0 0.0
  %3034 = vmatprep.mubr.f32.mxu0 0.0
  %3035 = vmatmul.mubr.f32.gmra.mrb[0].mxu0 %v2833
  %v3036 = vpop.f32.mrb[0].mxu0
  %v3037 = vadd.f32 %v2895, %v3036
  %v3038 = vpop.f32.mrb[0].mxu0
  %3039 = vdwg.mxu0
  %s3040 = scalar_lea.vmem %s0, 288
  %v3041 = vld [vmem:[%s3040] sm:$0xff]
  %v3042 = vld [vmem:[%s3040 + $0x8] sm:$0xff]
  %v3043 = vld [vmem:[%s3040 + $0x10] sm:$0xff]
  %v3044 = vadd.f32 %v3041, %v2966
  %v3045 = vxor.u32 %v3044, 2147483648
  %v3046 = vmul.f32 %v3045, 1.442695
  %v3047 = vpow.pop %v3046
  %v3048 = vadd.f32 %v3047, 1.0
  %v3049 = vrcp.pop %v3048
  %v3050 = vmul.f32 1.0, %v3049
  %v3051 = vadd.f32 %v3042, %v2968
  %v3052 = vxor.u32 %v3051, 2147483648
  %v3053 = vmul.f32 %v3052, 1.442695
  %v3054 = vpow.pop %v3053
  %v3055 = vadd.f32 %v3054, 1.0
  %v3056 = vrcp.pop %v3055
  %v3057 = vmul.f32 1.0, %v3056
  %v3058 = vmul.f32 %v3050, %v3037
  %v3059 = vadd.f32 %v3043, %v3058
  %v3060 = vtanh.pop %v3059
  %v3061 = vsub.f32 1.0, %v3057
  %v3062 = vmul.f32 %v3061, %v3060
  %v3063 = vmul.f32 %v3057, %v2833
  %v3064 = vadd.f32 %v3062, %v3063
  %3065 = vst [vmem:[#allocation2] sm:$0xff] %v3064
  %s3066 = scalar_lea.vmem %s3, 96
  %3067 = vst [vmem:[%s3066] sm:$0xff] %v3064
  %v3068 = vld [vmem:[#allocation2] sm:$0xff]
  %v3069 = vld [vmem:[%s1] sm:$0xff]
  %v3070 = vld [vmem:[%s1 + $0x8] sm:$0xff]
  %v3071 = vld [vmem:[%s1 + $0x10] sm:$0xff]
  %v3072 = vld [vmem:[%s1 + $0x18] sm:$0xff]
  %v3073 = vld [vmem:[%s1 + $0x20] sm:$0xff]
  %v3074 = vld [vmem:[%s1 + $0x28] sm:$0xff]
  %v3075 = vld [vmem:[%s1 + $0x30] sm:$0xff]
  %v3076 = vld [vmem:[%s1 + $0x38] sm:$0xff]
  %v3077 = vld [vmem:[%s1 + $0x40] sm:$0xff]
  %v3078 = vld [vmem:[%s1 + $0x48] sm:$0xff]
  %v3079 = vld [vmem:[%s1 + $0x50] sm:$0xff]
  %v3080 = vld [vmem:[%s1 + $0x58] sm:$0xff]
  %v3081 = vld [vmem:[%s1 + $0x60] sm:$0xff]
  %v3082 = vld [vmem:[%s1 + $0x68] sm:$0xff]
  %v3083 = vld [vmem:[%s1 + $0x70] sm:$0xff]
  %v3084 = vld [vmem:[%s1 + $0x78] sm:$0xff]
  %v3085 = vld [vmem:[%s1 + $0x80] sm:$0xff]
  %v3086 = vld [vmem:[%s1 + $0x88] sm:$0xff]
  %v3087 = vld [vmem:[%s1 + $0x90] sm:$0xff]
  %v3088 = vld [vmem:[%s1 + $0x98] sm:$0xff]
  %v3089 = vld [vmem:[%s1 + $0xa0] sm:$0xff]
  %v3090 = vld [vmem:[%s1 + $0xa8] sm:$0xff]
  %v3091 = vld [vmem:[%s1 + $0xb0] sm:$0xff]
  %v3092 = vld [vmem:[%s1 + $0xb8] sm:$0xff]
  %v3093 = vld [vmem:[%s1 + $0xc0] sm:$0xff]
  %v3094 = vld [vmem:[%s1 + $0xc8] sm:$0xff]
  %v3095 = vld [vmem:[%s1 + $0xd0] sm:$0xff]
  %v3096 = vld [vmem:[%s1 + $0xd8] sm:$0xff]
  %v3097 = vld [vmem:[%s1 + $0xe0] sm:$0xff]
  %v3098 = vld [vmem:[%s1 + $0xe8] sm:$0xff]
  %v3099 = vld [vmem:[%s1 + $0xf0] sm:$0xff]
  %v3100 = vld [vmem:[%s1 + $0xf8] sm:$0xff]
  %v3101 = vld [vmem:[%s1 + $0x100] sm:$0xff]
  %v3102 = vld [vmem:[%s1 + $0x108] sm:$0xff]
  %v3103 = vld [vmem:[%s1 + $0x110] sm:$0xff]
  %v3104 = vld [vmem:[%s1 + $0x118] sm:$0xff]
  %v3105 = vld [vmem:[%s1 + $0x120] sm:$0xff]
  %v3106 = vld [vmem:[%s1 + $0x128] sm:$0xff]
  %v3107 = vld [vmem:[%s1 + $0x130] sm:$0xff]
  %v3108 = vld [vmem:[%s1 + $0x138] sm:$0xff]
  %v3109 = vld [vmem:[%s1 + $0x140] sm:$0xff]
  %v3110 = vld [vmem:[%s1 + $0x148] sm:$0xff]
  %v3111 = vld [vmem:[%s1 + $0x150] sm:$0xff]
  %v3112 = vld [vmem:[%s1 + $0x158] sm:$0xff]
  %v3113 = vld [vmem:[%s1 + $0x160] sm:$0xff]
  %v3114 = vld [vmem:[%s1 + $0x168] sm:$0xff]
  %v3115 = vld [vmem:[%s1 + $0x170] sm:$0xff]
  %v3116 = vld [vmem:[%s1 + $0x178] sm:$0xff]
  %v3117 = vld [vmem:[%s2] sm:$0x7]
  %v3119 = vlaneseq
  %v3120 = vshrl.u32 %v3119, 7
  %v3121 = vsub.s32 0, %v3120
  %v3122 = vrot.slane %v3117, %v3121
  %v3123 = vlaneseq
  %v3124 = vshrl.u32 %v3123, 7
  %v3125 = vsub.s32 1, %v3124
  %v3126 = vrot.slane %v3117, %v3125
  %v3127 = vlaneseq
  %v3128 = vshrl.u32 %v3127, 7
  %v3129 = vsub.s32 2, %v3128
  %v3130 = vrot.slane %v3117, %v3129
  %3134 = vmatprep.subr.mxu0 %v3070
  %3135 = vmatpush1.msra.mxu0 %v3069
  %3136 = vmatprep.subr.mxu0 %v3073
  %3137 = vmatpush1.msra.mxu0 %v3072
  %3138 = vmatprep.subr.mxu0 %v3076
  %3139 = vmatpush1.msra.mxu0 %v3075
  %3140 = vmatprep.subr.mxu0 %v3079
  %3141 = vmatpush1.msra.mxu0 %v3078
  %3142 = vmatprep.subr.mxu0 %v3082
  %3143 = vmatpush1.msra.mxu0 %v3081
  %3144 = vmatprep.subr.mxu0 %v3085
  %3145 = vmatpush1.msra.mxu0 %v3084
  %3146 = vmatprep.subr.mxu0 %v3088
  %3147 = vmatpush1.msra.mxu0 %v3087
  %3148 = vmatprep.subr.mxu0 %v3091
  %3149 = vmatpush1.msra.mxu0 %v3090
  %3150 = vmatprep.subr.mxu0 %v3094
  %3151 = vmatpush1.msra.mxu0 %v3093
  %3152 = vmatprep.subr.mxu0 %v3097
  %3153 = vmatpush1.msra.mxu0 %v3096
  %3154 = vmatprep.subr.mxu0 %v3100
  %3155 = vmatpush1.msra.mxu0 %v3099
  %3156 = vmatprep.subr.mxu0 %v3103
  %3157 = vmatpush1.msra.mxu0 %v3102
  %3158 = vmatprep.subr.mxu0 %v3106
  %3159 = vmatpush1.msra.mxu0 %v3105
  %3160 = vmatprep.subr.mxu0 %v3109
  %3161 = vmatpush1.msra.mxu0 %v3108
  %3162 = vmatprep.subr.mxu0 %v3112
  %3163 = vmatpush1.msra.mxu0 %v3111
  %3164 = vmatprep.subr.mxu0 %v3115
  %3165 = vmatpush1.msra.mxu0 %v3114
  %3166 = vmatprep.subr.mxu0 0.0
  %3167 = vmatpush1.msra.mxu0 0.0
  %3168 = vmatprep.subr.mxu0 0.0
  %3169 = vmatpush1.msra.mxu0 0.0
  %3170 = vmatprep.subr.mxu0 0.0
  %3171 = vmatpush1.msra.mxu0 0.0
  %3172 = vmatprep.subr.mxu0 0.0
  %3173 = vmatpush1.msra.mxu0 0.0
  %3174 = vmatprep.subr.mxu0 0.0
  %3175 = vmatpush1.msra.mxu0 0.0
  %3176 = vmatprep.subr.mxu0 0.0
  %3177 = vmatpush1.msra.mxu0 0.0
  %3178 = vmatprep.subr.mxu0 0.0
  %3179 = vmatpush1.msra.mxu0 0.0
  %3180 = vmatprep.subr.mxu0 0.0
  %3181 = vmatpush1.msra.mxu0 0.0
  %3182 = vmatprep.subr.mxu0 0.0
  %3183 = vmatpush1.msra.mxu0 0.0
  %3184 = vmatprep.subr.mxu0 0.0
  %3185 = vmatpush1.msra.mxu0 0.0
  %3186 = vmatprep.subr.mxu0 0.0
  %3187 = vmatpush1.msra.mxu0 0.0
  %3188 = vmatprep.subr.mxu0 0.0
  %3189 = vmatpush1.msra.mxu0 0.0
  %3190 = vmatprep.subr.mxu0 0.0
  %3191 = vmatpush1.msra.mxu0 0.0
  %3192 = vmatprep.subr.mxu0 0.0
  %3193 = vmatpush1.msra.mxu0 0.0
  %3194 = vmatprep.subr.mxu0 0.0
  %3195 = vmatpush1.msra.mxu0 0.0
  %3196 = vmatprep.subr.mxu0 0.0
  %3197 = vmatpush1.msra.mxu0 0.0
  %3198 = vmatprep.mubr.f32.mxu0 0.0
  %3199 = vmatmul.mubr.f32.gmra.mrb[0].mxu0 %v3068
  %v3200 = vpop.f32.mrb[0].mxu0
  %v3201 = vadd.f32 %v3122, %v3200
  %v3202 = vpop.f32.mrb[0].mxu0
  %v3203 = vadd.f32 %v3126, %v3202
  %3204 = vdwg.mxu0
  %3205 = vmatprep.subr.mxu0 0.0
  %3206 = vmatpush1.msra.mxu0 %v3071
  %3207 = vmatprep.subr.mxu0 0.0
  %3208 = vmatpush1.msra.mxu0 %v3074
  %3209 = vmatprep.subr.mxu0 0.0
  %3210 = vmatpush1.msra.mxu0 %v3077
  %3211 = vmatprep.subr.mxu0 0.0
  %3212 = vmatpush1.msra.mxu0 %v3080
  %3213 = vmatprep.subr.mxu0 0.0
  %3214 = vmatpush1.msra.mxu0 %v3083
  %3215 = vmatprep.subr.mxu0 0.0
  %3216 = vmatpush1.msra.mxu0 %v3086
  %3217 = vmatprep.subr.mxu0 0.0
  %3218 = vmatpush1.msra.mxu0 %v3089
  %3219 = vmatprep.subr.mxu0 0.0
  %3220 = vmatpush1.msra.mxu0 %v3092
  %3221 = vmatprep.subr.mxu0 0.0
  %3222 = vmatpush1.msra.mxu0 %v3095
  %3223 = vmatprep.subr.mxu0 0.0
  %3224 = vmatpush1.msra.mxu0 %v3098
  %3225 = vmatprep.subr.mxu0 0.0
  %3226 = vmatpush1.msra.mxu0 %v3101
  %3227 = vmatprep.subr.mxu0 0.0
  %3228 = vmatpush1.msra.mxu0 %v3104
  %3229 = vmatprep.subr.mxu0 0.0
  %3230 = vmatpush1.msra.mxu0 %v3107
  %3231 = vmatprep.subr.mxu0 0.0
  %3232 = vmatpush1.msra.mxu0 %v3110
  %3233 = vmatprep.subr.mxu0 0.0
  %3234 = vmatpush1.msra.mxu0 %v3113
  %3235 = vmatprep.subr.mxu0 0.0
  %3236 = vmatpush1.msra.mxu0 %v3116
  %3237 = vmatprep.subr.mxu0 0.0
  %3238 = vmatpush1.msra.mxu0 0.0
  %3239 = vmatprep.subr.mxu0 0.0
  %3240 = vmatpush1.msra.mxu0 0.0
  %3241 = vmatprep.subr.mxu0 0.0
  %3242 = vmatpush1.msra.mxu0 0.0
  %3243 = vmatprep.subr.mxu0 0.0
  %3244 = vmatpush1.msra.mxu0 0.0
  %3245 = vmatprep.subr.mxu0 0.0
  %3246 = vmatpush1.msra.mxu0 0.0
  %3247 = vmatprep.subr.mxu0 0.0
  %3248 = vmatpush1.msra.mxu0 0.0
  %3249 = vmatprep.subr.mxu0 0.0
  %3250 = vmatpush1.msra.mxu0 0.0
  %3251 = vmatprep.subr.mxu0 0.0
  %3252 = vmatpush1.msra.mxu0 0.0
  %3253 = vmatprep.subr.mxu0 0.0
  %3254 = vmatpush1.msra.mxu0 0.0
  %3255 = vmatprep.subr.mxu0 0.0
  %3256 = vmatpush1.msra.mxu0 0.0
  %3257 = vmatprep.subr.mxu0 0.0
  %3258 = vmatpush1.msra.mxu0 0.0
  %3259 = vmatprep.subr.mxu0 0.0
  %3260 = vmatpush1.msra.mxu0 0.0
  %3261 = vmatprep.subr.mxu0 0.0
  %3262 = vmatpush1.msra.mxu0 0.0
  %3263 = vmatprep.subr.mxu0 0.0
  %3264 = vmatpush1.msra.mxu0 0.0
  %3265 = vmatprep.subr.mxu0 0.0
  %3266 = vmatpush1.msra.mxu0 0.0
  %3267 = vmatprep.subr.mxu0 0.0
  %3268 = vmatpush1.msra.mxu0 0.0
  %3269 = vmatprep.mubr.f32.mxu0 0.0
  %3270 = vmatmul.mubr.f32.gmra.mrb[0].mxu0 %v3068
  %v3271 = vpop.f32.mrb[0].mxu0
  %v3272 = vadd.f32 %v3130, %v3271
  %v3273 = vpop.f32.mrb[0].mxu0
  %3274 = vdwg.mxu0
  %s3275 = scalar_lea.vmem %s0, 312
  %v3276 = vld [vmem:[%s3275] sm:$0xff]
  %v3277 = vld [vmem:[%s3275 + $0x8] sm:$0xff]
  %v3278 = vld [vmem:[%s3275 + $0x10] sm:$0xff]
  %v3279 = vadd.f32 %v3276, %v3201
  %v3280 = vxor.u32 %v3279, 2147483648
  %v3281 = vmul.f32 %v3280, 1.442695
  %v3282 = vpow.pop %v3281
  %v3283 = vadd.f32 %v3282, 1.0
  %v3284 = vrcp.pop %v3283
  %v3285 = vmul.f32 1.0, %v3284
  %v3286 = vadd.f32 %v3277, %v3203
  %v3287 = vxor.u32 %v3286, 2147483648
  %v3288 = vmul.f32 %v3287, 1.442695
  %v3289 = vpow.pop %v3288
  %v3290 = vadd.f32 %v3289, 1.0
  %v3291 = vrcp.pop %v3290
  %v3292 = vmul.f32 1.0, %v3291
  %v3293 = vmul.f32 %v3285, %v3272
  %v3294 = vadd.f32 %v3278, %v3293
  %v3295 = vtanh.pop %v3294
  %v3296 = vsub.f32 1.0, %v3292
  %v3297 = vmul.f32 %v3296, %v3295
  %v3298 = vmul.f32 %v3292, %v3068
  %v3299 = vadd.f32 %v3297, %v3298
  %3300 = vst [vmem:[#allocation2] sm:$0xff] %v3299
  %s3301 = scalar_lea.vmem %s3, 104
  %3302 = vst [vmem:[%s3301] sm:$0xff] %v3299
  %v3303 = vld [vmem:[#allocation2] sm:$0xff]
  %v3304 = vld [vmem:[%s1] sm:$0xff]
  %v3305 = vld [vmem:[%s1 + $0x8] sm:$0xff]
  %v3306 = vld [vmem:[%s1 + $0x10] sm:$0xff]
  %v3307 = vld [vmem:[%s1 + $0x18] sm:$0xff]
  %v3308 = vld [vmem:[%s1 + $0x20] sm:$0xff]
  %v3309 = vld [vmem:[%s1 + $0x28] sm:$0xff]
  %v3310 = vld [vmem:[%s1 + $0x30] sm:$0xff]
  %v3311 = vld [vmem:[%s1 + $0x38] sm:$0xff]
  %v3312 = vld [vmem:[%s1 + $0x40] sm:$0xff]
  %v3313 = vld [vmem:[%s1 + $0x48] sm:$0xff]
  %v3314 = vld [vmem:[%s1 + $0x50] sm:$0xff]
  %v3315 = vld [vmem:[%s1 + $0x58] sm:$0xff]
  %v3316 = vld [vmem:[%s1 + $0x60] sm:$0xff]
  %v3317 = vld [vmem:[%s1 + $0x68] sm:$0xff]
  %v3318 = vld [vmem:[%s1 + $0x70] sm:$0xff]
  %v3319 = vld [vmem:[%s1 + $0x78] sm:$0xff]
  %v3320 = vld [vmem:[%s1 + $0x80] sm:$0xff]
  %v3321 = vld [vmem:[%s1 + $0x88] sm:$0xff]
  %v3322 = vld [vmem:[%s1 + $0x90] sm:$0xff]
  %v3323 = vld [vmem:[%s1 + $0x98] sm:$0xff]
  %v3324 = vld [vmem:[%s1 + $0xa0] sm:$0xff]
  %v3325 = vld [vmem:[%s1 + $0xa8] sm:$0xff]
  %v3326 = vld [vmem:[%s1 + $0xb0] sm:$0xff]
  %v3327 = vld [vmem:[%s1 + $0xb8] sm:$0xff]
  %v3328 = vld [vmem:[%s1 + $0xc0] sm:$0xff]
  %v3329 = vld [vmem:[%s1 + $0xc8] sm:$0xff]
  %v3330 = vld [vmem:[%s1 + $0xd0] sm:$0xff]
  %v3331 = vld [vmem:[%s1 + $0xd8] sm:$0xff]
  %v3332 = vld [vmem:[%s1 + $0xe0] sm:$0xff]
  %v3333 = vld [vmem:[%s1 + $0xe8] sm:$0xff]
  %v3334 = vld [vmem:[%s1 + $0xf0] sm:$0xff]
  %v3335 = vld [vmem:[%s1 + $0xf8] sm:$0xff]
  %v3336 = vld [vmem:[%s1 + $0x100] sm:$0xff]
  %v3337 = vld [vmem:[%s1 + $0x108] sm:$0xff]
  %v3338 = vld [vmem:[%s1 + $0x110] sm:$0xff]
  %v3339 = vld [vmem:[%s1 + $0x118] sm:$0xff]
  %v3340 = vld [vmem:[%s1 + $0x120] sm:$0xff]
  %v3341 = vld [vmem:[%s1 + $0x128] sm:$0xff]
  %v3342 = vld [vmem:[%s1 + $0x130] sm:$0xff]
  %v3343 = vld [vmem:[%s1 + $0x138] sm:$0xff]
  %v3344 = vld [vmem:[%s1 + $0x140] sm:$0xff]
  %v3345 = vld [vmem:[%s1 + $0x148] sm:$0xff]
  %v3346 = vld [vmem:[%s1 + $0x150] sm:$0xff]
  %v3347 = vld [vmem:[%s1 + $0x158] sm:$0xff]
  %v3348 = vld [vmem:[%s1 + $0x160] sm:$0xff]
  %v3349 = vld [vmem:[%s1 + $0x168] sm:$0xff]
  %v3350 = vld [vmem:[%s1 + $0x170] sm:$0xff]
  %v3351 = vld [vmem:[%s1 + $0x178] sm:$0xff]
  %v3352 = vld [vmem:[%s2] sm:$0x7]
  %v3354 = vlaneseq
  %v3355 = vshrl.u32 %v3354, 7
  %v3356 = vsub.s32 0, %v3355
  %v3357 = vrot.slane %v3352, %v3356
  %v3358 = vlaneseq
  %v3359 = vshrl.u32 %v3358, 7
  %v3360 = vsub.s32 1, %v3359
  %v3361 = vrot.slane %v3352, %v3360
  %v3362 = vlaneseq
  %v3363 = vshrl.u32 %v3362, 7
  %v3364 = vsub.s32 2, %v3363
  %v3365 = vrot.slane %v3352, %v3364
  %3369 = vmatprep.subr.mxu0 %v3305
  %3370 = vmatpush1.msra.mxu0 %v3304
  %3371 = vmatprep.subr.mxu0 %v3308
  %3372 = vmatpush1.msra.mxu0 %v3307
  %3373 = vmatprep.subr.mxu0 %v3311
  %3374 = vmatpush1.msra.mxu0 %v3310
  %3375 = vmatprep.subr.mxu0 %v3314
  %3376 = vmatpush1.msra.mxu0 %v3313
  %3377 = vmatprep.subr.mxu0 %v3317
  %3378 = vmatpush1.msra.mxu0 %v3316
  %3379 = vmatprep.subr.mxu0 %v3320
  %3380 = vmatpush1.msra.mxu0 %v3319
  %3381 = vmatprep.subr.mxu0 %v3323
  %3382 = vmatpush1.msra.mxu0 %v3322
  %3383 = vmatprep.subr.mxu0 %v3326
  %3384 = vmatpush1.msra.mxu0 %v3325
  %3385 = vmatprep.subr.mxu0 %v3329
  %3386 = vmatpush1.msra.mxu0 %v3328
  %3387 = vmatprep.subr.mxu0 %v3332
  %3388 = vmatpush1.msra.mxu0 %v3331
  %3389 = vmatprep.subr.mxu0 %v3335
  %3390 = vmatpush1.msra.mxu0 %v3334
  %3391 = vmatprep.subr.mxu0 %v3338
  %3392 = vmatpush1.msra.mxu0 %v3337
  %3393 = vmatprep.subr.mxu0 %v3341
  %3394 = vmatpush1.msra.mxu0 %v3340
  %3395 = vmatprep.subr.mxu0 %v3344
  %3396 = vmatpush1.msra.mxu0 %v3343
  %3397 = vmatprep.subr.mxu0 %v3347
  %3398 = vmatpush1.msra.mxu0 %v3346
  %3399 = vmatprep.subr.mxu0 %v3350
  %3400 = vmatpush1.msra.mxu0 %v3349
  %3401 = vmatprep.subr.mxu0 0.0
  %3402 = vmatpush1.msra.mxu0 0.0
  %3403 = vmatprep.subr.mxu0 0.0
  %3404 = vmatpush1.msra.mxu0 0.0
  %3405 = vmatprep.subr.mxu0 0.0
  %3406 = vmatpush1.msra.mxu0 0.0
  %3407 = vmatprep.subr.mxu0 0.0
  %3408 = vmatpush1.msra.mxu0 0.0
  %3409 = vmatprep.subr.mxu0 0.0
  %3410 = vmatpush1.msra.mxu0 0.0
  %3411 = vmatprep.subr.mxu0 0.0
  %3412 = vmatpush1.msra.mxu0 0.0
  %3413 = vmatprep.subr.mxu0 0.0
  %3414 = vmatpush1.msra.mxu0 0.0
  %3415 = vmatprep.subr.mxu0 0.0
  %3416 = vmatpush1.msra.mxu0 0.0
  %3417 = vmatprep.subr.mxu0 0.0
  %3418 = vmatpush1.msra.mxu0 0.0
  %3419 = vmatprep.subr.mxu0 0.0
  %3420 = vmatpush1.msra.mxu0 0.0
  %3421 = vmatprep.subr.mxu0 0.0
  %3422 = vmatpush1.msra.mxu0 0.0
  %3423 = vmatprep.subr.mxu0 0.0
  %3424 = vmatpush1.msra.mxu0 0.0
  %3425 = vmatprep.subr.mxu0 0.0
  %3426 = vmatpush1.msra.mxu0 0.0
  %3427 = vmatprep.subr.mxu0 0.0
  %3428 = vmatpush1.msra.mxu0 0.0
  %3429 = vmatprep.subr.mxu0 0.0
  %3430 = vmatpush1.msra.mxu0 0.0
  %3431 = vmatprep.subr.mxu0 0.0
  %3432 = vmatpush1.msra.mxu0 0.0
  %3433 = vmatprep.mubr.f32.mxu0 0.0
  %3434 = vmatmul.mubr.f32.gmra.mrb[0].mxu0 %v3303
  %v3435 = vpop.f32.mrb[0].mxu0
  %v3436 = vadd.f32 %v3357, %v3435
  %v3437 = vpop.f32.mrb[0].mxu0
  %v3438 = vadd.f32 %v3361, %v3437
  %3439 = vdwg.mxu0
  %3440 = vmatprep.subr.mxu0 0.0
  %3441 = vmatpush1.msra.mxu0 %v3306
  %3442 = vmatprep.subr.mxu0 0.0
  %3443 = vmatpush1.msra.mxu0 %v3309
  %3444 = vmatprep.subr.mxu0 0.0
  %3445 = vmatpush1.msra.mxu0 %v3312
  %3446 = vmatprep.subr.mxu0 0.0
  %3447 = vmatpush1.msra.mxu0 %v3315
  %3448 = vmatprep.subr.mxu0 0.0
  %3449 = vmatpush1.msra.mxu0 %v3318
  %3450 = vmatprep.subr.mxu0 0.0
  %3451 = vmatpush1.msra.mxu0 %v3321
  %3452 = vmatprep.subr.mxu0 0.0
  %3453 = vmatpush1.msra.mxu0 %v3324
  %3454 = vmatprep.subr.mxu0 0.0
  %3455 = vmatpush1.msra.mxu0 %v3327
  %3456 = vmatprep.subr.mxu0 0.0
  %3457 = vmatpush1.msra.mxu0 %v3330
  %3458 = vmatprep.subr.mxu0 0.0
  %3459 = vmatpush1.msra.mxu0 %v3333
  %3460 = vmatprep.subr.mxu0 0.0
  %3461 = vmatpush1.msra.mxu0 %v3336
  %3462 = vmatprep.subr.mxu0 0.0
  %3463 = vmatpush1.msra.mxu0 %v3339
  %3464 = vmatprep.subr.mxu0 0.0
  %3465 = vmatpush1.msra.mxu0 %v3342
  %3466 = vmatprep.subr.mxu0 0.0
  %3467 = vmatpush1.msra.mxu0 %v3345
  %3468 = vmatprep.subr.mxu0 0.0
  %3469 = vmatpush1.msra.mxu0 %v3348
  %3470 = vmatprep.subr.mxu0 0.0
  %3471 = vmatpush1.msra.mxu0 %v3351
  %3472 = vmatprep.subr.mxu0 0.0
  %3473 = vmatpush1.msra.mxu0 0.0
  %3474 = vmatprep.subr.mxu0 0.0
  %3475 = vmatpush1.msra.mxu0 0.0
  %3476 = vmatprep.subr.mxu0 0.0
  %3477 = vmatpush1.msra.mxu0 0.0
  %3478 = vmatprep.subr.mxu0 0.0
  %3479 = vmatpush1.msra.mxu0 0.0
  %3480 = vmatprep.subr.mxu0 0.0
  %3481 = vmatpush1.msra.mxu0 0.0
  %3482 = vmatprep.subr.mxu0 0.0
  %3483 = vmatpush1.msra.mxu0 0.0
  %3484 = vmatprep.subr.mxu0 0.0
  %3485 = vmatpush1.msra.mxu0 0.0
  %3486 = vmatprep.subr.mxu0 0.0
  %3487 = vmatpush1.msra.mxu0 0.0
  %3488 = vmatprep.subr.mxu0 0.0
  %3489 = vmatpush1.msra.mxu0 0.0
  %3490 = vmatprep.subr.mxu0 0.0
  %3491 = vmatpush1.msra.mxu0 0.0
  %3492 = vmatprep.subr.mxu0 0.0
  %3493 = vmatpush1.msra.mxu0 0.0
  %3494 = vmatprep.subr.mxu0 0.0
  %3495 = vmatpush1.msra.mxu0 0.0
  %3496 = vmatprep.subr.mxu0 0.0
  %3497 = vmatpush1.msra.mxu0 0.0
  %3498 = vmatprep.subr.mxu0 0.0
  %3499 = vmatpush1.msra.mxu0 0.0
  %3500 = vmatprep.subr.mxu0 0.0
  %3501 = vmatpush1.msra.mxu0 0.0
  %3502 = vmatprep.subr.mxu0 0.0
  %3503 = vmatpush1.msra.mxu0 0.0
  %3504 = vmatprep.mubr.f32.mxu0 0.0
  %3505 = vmatmul.mubr.f32.gmra.mrb[0].mxu0 %v3303
  %v3506 = vpop.f32.mrb[0].mxu0
  %v3507 = vadd.f32 %v3365, %v3506
  %v3508 = vpop.f32.mrb[0].mxu0
  %3509 = vdwg.mxu0
  %s3510 = scalar_lea.vmem %s0, 336
  %v3511 = vld [vmem:[%s3510] sm:$0xff]
  %v3512 = vld [vmem:[%s3510 + $0x8] sm:$0xff]
  %v3513 = vld [vmem:[%s3510 + $0x10] sm:$0xff]
  %v3514 = vadd.f32 %v3511, %v3436
  %v3515 = vxor.u32 %v3514, 2147483648
  %v3516 = vmul.f32 %v3515, 1.442695
  %v3517 = vpow.pop %v3516
  %v3518 = vadd.f32 %v3517, 1.0
  %v3519 = vrcp.pop %v3518
  %v3520 = vmul.f32 1.0, %v3519
  %v3521 = vadd.f32 %v3512, %v3438
  %v3522 = vxor.u32 %v3521, 2147483648
  %v3523 = vmul.f32 %v3522, 1.442695
  %v3524 = vpow.pop %v3523
  %v3525 = vadd.f32 %v3524, 1.0
  %v3526 = vrcp.pop %v3525
  %v3527 = vmul.f32 1.0, %v3526
  %v3528 = vmul.f32 %v3520, %v3507
  %v3529 = vadd.f32 %v3513, %v3528
  %v3530 = vtanh.pop %v3529
  %v3531 = vsub.f32 1.0, %v3527
  %v3532 = vmul.f32 %v3531, %v3530
  %v3533 = vmul.f32 %v3527, %v3303
  %v3534 = vadd.f32 %v3532, %v3533
  %3535 = vst [vmem:[#allocation2] sm:$0xff] %v3534
  %s3536 = scalar_lea.vmem %s3, 112
  %3537 = vst [vmem:[%s3536] sm:$0xff] %v3534
  %v3538 = vld [vmem:[#allocation2] sm:$0xff]
  %v3539 = vld [vmem:[%s1] sm:$0xff]
  %v3540 = vld [vmem:[%s1 + $0x8] sm:$0xff]
  %v3541 = vld [vmem:[%s1 + $0x10] sm:$0xff]
  %v3542 = vld [vmem:[%s1 + $0x18] sm:$0xff]
  %v3543 = vld [vmem:[%s1 + $0x20] sm:$0xff]
  %v3544 = vld [vmem:[%s1 + $0x28] sm:$0xff]
  %v3545 = vld [vmem:[%s1 + $0x30] sm:$0xff]
  %v3546 = vld [vmem:[%s1 + $0x38] sm:$0xff]
  %v3547 = vld [vmem:[%s1 + $0x40] sm:$0xff]
  %v3548 = vld [vmem:[%s1 + $0x48] sm:$0xff]
  %v3549 = vld [vmem:[%s1 + $0x50] sm:$0xff]
  %v3550 = vld [vmem:[%s1 + $0x58] sm:$0xff]
  %v3551 = vld [vmem:[%s1 + $0x60] sm:$0xff]
  %v3552 = vld [vmem:[%s1 + $0x68] sm:$0xff]
  %v3553 = vld [vmem:[%s1 + $0x70] sm:$0xff]
  %v3554 = vld [vmem:[%s1 + $0x78] sm:$0xff]
  %v3555 = vld [vmem:[%s1 + $0x80] sm:$0xff]
  %v3556 = vld [vmem:[%s1 + $0x88] sm:$0xff]
  %v3557 = vld [vmem:[%s1 + $0x90] sm:$0xff]
  %v3558 = vld [vmem:[%s1 + $0x98] sm:$0xff]
  %v3559 = vld [vmem:[%s1 + $0xa0] sm:$0xff]
  %v3560 = vld [vmem:[%s1 + $0xa8] sm:$0xff]
  %v3561 = vld [vmem:[%s1 + $0xb0] sm:$0xff]
  %v3562 = vld [vmem:[%s1 + $0xb8] sm:$0xff]
  %v3563 = vld [vmem:[%s1 + $0xc0] sm:$0xff]
  %v3564 = vld [vmem:[%s1 + $0xc8] sm:$0xff]
  %v3565 = vld [vmem:[%s1 + $0xd0] sm:$0xff]
  %v3566 = vld [vmem:[%s1 + $0xd8] sm:$0xff]
  %v3567 = vld [vmem:[%s1 + $0xe0] sm:$0xff]
  %v3568 = vld [vmem:[%s1 + $0xe8] sm:$0xff]
  %v3569 = vld [vmem:[%s1 + $0xf0] sm:$0xff]
  %v3570 = vld [vmem:[%s1 + $0xf8] sm:$0xff]
  %v3571 = vld [vmem:[%s1 + $0x100] sm:$0xff]
  %v3572 = vld [vmem:[%s1 + $0x108] sm:$0xff]
  %v3573 = vld [vmem:[%s1 + $0x110] sm:$0xff]
  %v3574 = vld [vmem:[%s1 + $0x118] sm:$0xff]
  %v3575 = vld [vmem:[%s1 + $0x120] sm:$0xff]
  %v3576 = vld [vmem:[%s1 + $0x128] sm:$0xff]
  %v3577 = vld [vmem:[%s1 + $0x130] sm:$0xff]
  %v3578 = vld [vmem:[%s1 + $0x138] sm:$0xff]
  %v3579 = vld [vmem:[%s1 + $0x140] sm:$0xff]
  %v3580 = vld [vmem:[%s1 + $0x148] sm:$0xff]
  %v3581 = vld [vmem:[%s1 + $0x150] sm:$0xff]
  %v3582 = vld [vmem:[%s1 + $0x158] sm:$0xff]
  %v3583 = vld [vmem:[%s1 + $0x160] sm:$0xff]
  %v3584 = vld [vmem:[%s1 + $0x168] sm:$0xff]
  %v3585 = vld [vmem:[%s1 + $0x170] sm:$0xff]
  %v3586 = vld [vmem:[%s1 + $0x178] sm:$0xff]
  %v3587 = vld [vmem:[%s2] sm:$0x7]
  %v3589 = vlaneseq
  %v3590 = vshrl.u32 %v3589, 7
  %v3591 = vsub.s32 0, %v3590
  %v3592 = vrot.slane %v3587, %v3591
  %v3593 = vlaneseq
  %v3594 = vshrl.u32 %v3593, 7
  %v3595 = vsub.s32 1, %v3594
  %v3596 = vrot.slane %v3587, %v3595
  %v3597 = vlaneseq
  %v3598 = vshrl.u32 %v3597, 7
  %v3599 = vsub.s32 2, %v3598
  %v3600 = vrot.slane %v3587, %v3599
  %3604 = vmatprep.subr.mxu0 %v3540
  %3605 = vmatpush1.msra.mxu0 %v3539
  %3606 = vmatprep.subr.mxu0 %v3543
  %3607 = vmatpush1.msra.mxu0 %v3542
  %3608 = vmatprep.subr.mxu0 %v3546
  %3609 = vmatpush1.msra.mxu0 %v3545
  %3610 = vmatprep.subr.mxu0 %v3549
  %3611 = vmatpush1.msra.mxu0 %v3548
  %3612 = vmatprep.subr.mxu0 %v3552
  %3613 = vmatpush1.msra.mxu0 %v3551
  %3614 = vmatprep.subr.mxu0 %v3555
  %3615 = vmatpush1.msra.mxu0 %v3554
  %3616 = vmatprep.subr.mxu0 %v3558
  %3617 = vmatpush1.msra.mxu0 %v3557
  %3618 = vmatprep.subr.mxu0 %v3561
  %3619 = vmatpush1.msra.mxu0 %v3560
  %3620 = vmatprep.subr.mxu0 %v3564
  %3621 = vmatpush1.msra.mxu0 %v3563
  %3622 = vmatprep.subr.mxu0 %v3567
  %3623 = vmatpush1.msra.mxu0 %v3566
  %3624 = vmatprep.subr.mxu0 %v3570
  %3625 = vmatpush1.msra.mxu0 %v3569
  %3626 = vmatprep.subr.mxu0 %v3573
  %3627 = vmatpush1.msra.mxu0 %v3572
  %3628 = vmatprep.subr.mxu0 %v3576
  %3629 = vmatpush1.msra.mxu0 %v3575
  %3630 = vmatprep.subr.mxu0 %v3579
  %3631 = vmatpush1.msra.mxu0 %v3578
  %3632 = vmatprep.subr.mxu0 %v3582
  %3633 = vmatpush1.msra.mxu0 %v3581
  %3634 = vmatprep.subr.mxu0 %v3585
  %3635 = vmatpush1.msra.mxu0 %v3584
  %3636 = vmatprep.subr.mxu0 0.0
  %3637 = vmatpush1.msra.mxu0 0.0
  %3638 = vmatprep.subr.mxu0 0.0
  %3639 = vmatpush1.msra.mxu0 0.0
  %3640 = vmatprep.subr.mxu0 0.0
  %3641 = vmatpush1.msra.mxu0 0.0
  %3642 = vmatprep.subr.mxu0 0.0
  %3643 = vmatpush1.msra.mxu0 0.0
  %3644 = vmatprep.subr.mxu0 0.0
  %3645 = vmatpush1.msra.mxu0 0.0
  %3646 = vmatprep.subr.mxu0 0.0
  %3647 = vmatpush1.msra.mxu0 0.0
  %3648 = vmatprep.subr.mxu0 0.0
  %3649 = vmatpush1.msra.mxu0 0.0
  %3650 = vmatprep.subr.mxu0 0.0
  %3651 = vmatpush1.msra.mxu0 0.0
  %3652 = vmatprep.subr.mxu0 0.0
  %3653 = vmatpush1.msra.mxu0 0.0
  %3654 = vmatprep.subr.mxu0 0.0
  %3655 = vmatpush1.msra.mxu0 0.0
  %3656 = vmatprep.subr.mxu0 0.0
  %3657 = vmatpush1.msra.mxu0 0.0
  %3658 = vmatprep.subr.mxu0 0.0
  %3659 = vmatpush1.msra.mxu0 0.0
  %3660 = vmatprep.subr.mxu0 0.0
  %3661 = vmatpush1.msra.mxu0 0.0
  %3662 = vmatprep.subr.mxu0 0.0
  %3663 = vmatpush1.msra.mxu0 0.0
  %3664 = vmatprep.subr.mxu0 0.0
  %3665 = vmatpush1.msra.mxu0 0.0
  %3666 = vmatprep.subr.mxu0 0.0
  %3667 = vmatpush1.msra.mxu0 0.0
  %3668 = vmatprep.mubr.f32.mxu0 0.0
  %3669 = vmatmul.mubr.f32.gmra.mrb[0].mxu0 %v3538
  %v3670 = vpop.f32.mrb[0].mxu0
  %v3671 = vadd.f32 %v3592, %v3670
  %v3672 = vpop.f32.mrb[0].mxu0
  %v3673 = vadd.f32 %v3596, %v3672
  %3674 = vdwg.mxu0
  %3675 = vmatprep.subr.mxu0 0.0
  %3676 = vmatpush1.msra.mxu0 %v3541
  %3677 = vmatprep.subr.mxu0 0.0
  %3678 = vmatpush1.msra.mxu0 %v3544
  %3679 = vmatprep.subr.mxu0 0.0
  %3680 = vmatpush1.msra.mxu0 %v3547
  %3681 = vmatprep.subr.mxu0 0.0
  %3682 = vmatpush1.msra.mxu0 %v3550
  %3683 = vmatprep.subr.mxu0 0.0
  %3684 = vmatpush1.msra.mxu0 %v3553
  %3685 = vmatprep.subr.mxu0 0.0
  %3686 = vmatpush1.msra.mxu0 %v3556
  %3687 = vmatprep.subr.mxu0 0.0
  %3688 = vmatpush1.msra.mxu0 %v3559
  %3689 = vmatprep.subr.mxu0 0.0
  %3690 = vmatpush1.msra.mxu0 %v3562
  %3691 = vmatprep.subr.mxu0 0.0
  %3692 = vmatpush1.msra.mxu0 %v3565
  %3693 = vmatprep.subr.mxu0 0.0
  %3694 = vmatpush1.msra.mxu0 %v3568
  %3695 = vmatprep.subr.mxu0 0.0
  %3696 = vmatpush1.msra.mxu0 %v3571
  %3697 = vmatprep.subr.mxu0 0.0
  %3698 = vmatpush1.msra.mxu0 %v3574
  %3699 = vmatprep.subr.mxu0 0.0
  %3700 = vmatpush1.msra.mxu0 %v3577
  %3701 = vmatprep.subr.mxu0 0.0
  %3702 = vmatpush1.msra.mxu0 %v3580
  %3703 = vmatprep.subr.mxu0 0.0
  %3704 = vmatpush1.msra.mxu0 %v3583
  %3705 = vmatprep.subr.mxu0 0.0
  %3706 = vmatpush1.msra.mxu0 %v3586
  %3707 = vmatprep.subr.mxu0 0.0
  %3708 = vmatpush1.msra.mxu0 0.0
  %3709 = vmatprep.subr.mxu0 0.0
  %3710 = vmatpush1.msra.mxu0 0.0
  %3711 = vmatprep.subr.mxu0 0.0
  %3712 = vmatpush1.msra.mxu0 0.0
  %3713 = vmatprep.subr.mxu0 0.0
  %3714 = vmatpush1.msra.mxu0 0.0
  %3715 = vmatprep.subr.mxu0 0.0
  %3716 = vmatpush1.msra.mxu0 0.0
  %3717 = vmatprep.subr.mxu0 0.0
  %3718 = vmatpush1.msra.mxu0 0.0
  %3719 = vmatprep.subr.mxu0 0.0
  %3720 = vmatpush1.msra.mxu0 0.0
  %3721 = vmatprep.subr.mxu0 0.0
  %3722 = vmatpush1.msra.mxu0 0.0
  %3723 = vmatprep.subr.mxu0 0.0
  %3724 = vmatpush1.msra.mxu0 0.0
  %3725 = vmatprep.subr.mxu0 0.0
  %3726 = vmatpush1.msra.mxu0 0.0
  %3727 = vmatprep.subr.mxu0 0.0
  %3728 = vmatpush1.msra.mxu0 0.0
  %3729 = vmatprep.subr.mxu0 0.0
  %3730 = vmatpush1.msra.mxu0 0.0
  %3731 = vmatprep.subr.mxu0 0.0
  %3732 = vmatpush1.msra.mxu0 0.0
  %3733 = vmatprep.subr.mxu0 0.0
  %3734 = vmatpush1.msra.mxu0 0.0
  %3735 = vmatprep.subr.mxu0 0.0
  %3736 = vmatpush1.msra.mxu0 0.0
  %3737 = vmatprep.subr.mxu0 0.0
  %3738 = vmatpush1.msra.mxu0 0.0
  %3739 = vmatprep.mubr.f32.mxu0 0.0
  %3740 = vmatmul.mubr.f32.gmra.mrb[0].mxu0 %v3538
  %v3741 = vpop.f32.mrb[0].mxu0
  %v3742 = vadd.f32 %v3600, %v3741
  %v3743 = vpop.f32.mrb[0].mxu0
  %3744 = vdwg.mxu0
  %s3745 = scalar_lea.vmem %s0, 360
  %v3746 = vld [vmem:[%s3745] sm:$0xff]
  %v3747 = vld [vmem:[%s3745 + $0x8] sm:$0xff]
  %v3748 = vld [vmem:[%s3745 + $0x10] sm:$0xff]
  %v3749 = vadd.f32 %v3746, %v3671
  %v3750 = vxor.u32 %v3749, 2147483648
  %v3751 = vmul.f32 %v3750, 1.442695
  %v3752 = vpow.pop %v3751
  %v3753 = vadd.f32 %v3752, 1.0
  %v3754 = vrcp.pop %v3753
  %v3755 = vmul.f32 1.0, %v3754
  %v3756 = vadd.f32 %v3747, %v3673
  %v3757 = vxor.u32 %v3756, 2147483648
  %v3758 = vmul.f32 %v3757, 1.442695
  %v3759 = vpow.pop %v3758
  %v3760 = vadd.f32 %v3759, 1.0
  %v3761 = vrcp.pop %v3760
  %v3762 = vmul.f32 1.0, %v3761
  %v3763 = vmul.f32 %v3755, %v3742
  %v3764 = vadd.f32 %v3748, %v3763
  %v3765 = vtanh.pop %v3764
  %v3766 = vsub.f32 1.0, %v3762
  %v3767 = vmul.f32 %v3766, %v3765
  %v3768 = vmul.f32 %v3762, %v3538
  %v3769 = vadd.f32 %v3767, %v3768
  %3770 = vst [vmem:[#allocation2] sm:$0xff] %v3769
  %s3771 = scalar_lea.vmem %s3, 120
  %3772 = vst [vmem:[%s3771] sm:$0xff] %v3769
  // Predicated region
  $region14: #{force_aptai_forward.4} parent=0 // pred_check
    _
  $region15: #{force_aptai_forward.4} parent=0 // pred_check_branch
    %3774 = sbr.rel (0) target = $region17
  $region16: #{force_aptai_forward.4} parent=0 // pred_region
    _
  $region17: #{force_aptai_forward.4} parent=0 // pred_fallthru
    _
  // Predicated region
  $region18: #{force_aptai_forward.4} parent=0 // pred_check
    _
  $region19: #{force_aptai_forward.4} parent=0 // pred_check_branch
    %3776 = sbr.rel (0) target = $region21
  $region20: #{force_aptai_forward.4} parent=0 // pred_region
    _
  $region21: #{force_aptai_forward.4} parent=0 // pred_fallthru
    _

</llo_original>
